<compile_context>
chip_gen: v5e
topology: v5e:2x2
jax: 0.10.0
libtpu: 0.0.40
codegen_flags: <defaults>
</compile_context>

<pallas_src>
import functools

import numpy as np
import jax
import jax.numpy as jnp
from jax import lax
from jax.experimental import pallas as pl
from jax.experimental.pallas import tpu as pltpu


_BLOCKS = ["block1", "block3", "block5", "block7", "block9", "block11"]


# ----------------------------------------------------------------------------
# Host-side constants: one-hot gather ("selection") matrices per conv geometry
# ----------------------------------------------------------------------------
def _build_selection(h, w, stride):
    """sel[t] : (h*w, ho*wo) one-hot gather matrix for tap t = kh*3 + kw of a
    3x3 / pad=1 / given-stride conv acting on a channel-major (C, h*w)
    activation.  Out-of-bounds taps stay all-zero == implicit zero padding."""
    ho, wo = (h - 1) // stride + 1, (w - 1) // stride + 1
    sel = np.zeros((9, h * w, ho * wo), np.float32)
    oi, oj = np.meshgrid(np.arange(ho), np.arange(wo), indexing="ij")
    oflat = (oi * wo + oj).ravel()
    for kh in range(3):
        for kw in range(3):
            r = (oi * stride + kh - 1).ravel()
            c = (oj * stride + kw - 1).ravel()
            ok = (r >= 0) & (r < h) & (c >= 0) & (c < w)
            sel[kh * 3 + kw, (r * w + c)[ok], oflat[ok]] = 1.0
    return jnp.asarray(sel, jnp.bfloat16)


# ----------------------------------------------------------------------------
# Fused Pallas kernel: whole network for one batch element per grid step
# ----------------------------------------------------------------------------
def _fused_kernel(*refs, sel_index, n_sel):
    xtap_ref, w1_ref, wblk_ref, scl_ref, sht_ref = refs[:5]
    sel_refs = refs[5:5 + n_sel]
    out_ref = refs[5 + n_sel]
    f32, bf16 = jnp.float32, jnp.bfloat16

    def gather_patchesT(act_bf16, sel_ref):
        # act_bf16: (Cin, Pin) -> patches (9*Cin, Pout), rows ordered (tap, ci)
        if sel_ref is None:
            # 1x1 spatial input: only the centre tap (kh=kw=1, t=4) is in-bounds.
            zero = jnp.zeros_like(act_bf16)
            parts = [act_bf16 if t == 4 else zero for t in range(9)]
        else:
            # one-hot gather matmuls == in-kernel im2col (exact in bf16)
            parts = [
                jnp.dot(act_bf16, sel_ref[t],
                        preferred_element_type=f32).astype(bf16)
                for t in range(9)
            ]
        return jnp.concatenate(parts, axis=0)

    def conv(actT, sel_ref, conv_idx, residualT=None, lrelu=False):
        patches = gather_patchesT(actT.astype(bf16), sel_ref)       # (288, Pout)
        y = jnp.dot(wblk_ref[conv_idx - 1], patches,
                    preferred_element_type=f32)                     # (32, Pout) f32
        y = y * scl_ref[conv_idx] + sht_ref[conv_idx]               # bias / BN affine
        if residualT is not None:
            y = y + residualT
        if lrelu:
            y = jnp.where(y >= 0, y, 0.01 * y)
        return y

    # --- layer 0: conv1 (Cin=1).  Its tiny 9-tap patches are precomputed on
    #     the host; here it is a single (32, 9) x (9, P) matmul.
    out = jnp.dot(w1_ref[...], xtap_ref[0], preferred_element_type=f32)
    out = out * scl_ref[0] + sht_ref[0]

    # --- 6 ResNetBlocks, fully unrolled (static geometry chain) --------------
    cidx = 1
    for (i1, i3) in sel_index:
        sel1 = sel_refs[i1] if i1 is not None else None
        sel3 = sel_refs[i3] if i3 is not None else None
        prev_mp = conv(out, sel3, cidx + 0)                      # conv11, stride 3
        h = conv(out, sel1, cidx + 1, lrelu=True)                # conv1,  stride 1, BN+LReLU
        # dropout: identity in eval mode
        out = conv(h, sel3, cidx + 2, residualT=prev_mp)         # conv2,  stride 3, +residual
        cidx += 3

    out_ref[0] = out.astype(out_ref.dtype)                       # (32, P_final)


# ----------------------------------------------------------------------------
# Wrapper: packing + single pallas_call
# ----------------------------------------------------------------------------
def spectrogram_forward(x, params):
    """x: (B, H, W) float32 -> (B, 32 * Hf * Wf)  (== (B, 32) for 16x16 input)."""
    B, H, W = x.shape

    # --- first-layer im2col (Cin=1) done once in XLA: (B, 9, H*W), tiny ------
    xp = jnp.pad(x, ((0, 0), (1, 1), (1, 1)))
    taps = [xp[:, kh:kh + H, kw:kw + W].reshape(B, 1, H * W)
            for kh in range(3) for kw in range(3)]
    xtaps = jnp.concatenate(taps, axis=1).astype(jnp.bfloat16)

    # --- pack weights + per-conv affine (bias / folded eval-BN) once ---------
    w1, b1 = params["conv1"]
    w1m = w1.reshape(9, 32).T.astype(jnp.bfloat16)               # (32, 9)
    wrows = []
    scales = [jnp.ones((32,), jnp.float32)]
    shifts = [b1]
    for name in _BLOCKS:
        p = params["blocks"][name]
        for cname in ("conv11", "conv1", "conv2"):
            w, b = p[cname]
            wrows.append(w.reshape(9 * 32, 32).T)                # (32, 288), (tap, ci) order
            if cname == "conv1":
                bn = p["bn1"]
                s = bn["gamma"] * lax.rsqrt(bn["var"] + bn["eps"])
                scales.append(s)
                shifts.append((b - bn["mean"]) * s + bn["beta"])
            else:
                scales.append(jnp.ones((32,), jnp.float32))
                shifts.append(b)
    wblk = jnp.stack(wrows).astype(jnp.bfloat16)                 # (18, 32, 288)
    scales = jnp.stack(scales)[:, :, None].astype(jnp.float32)   # (19, 32, 1)
    shifts = jnp.stack(shifts)[:, :, None].astype(jnp.float32)   # (19, 32, 1)

    # --- conv geometry chain & selection constants ---------------------------
    sel_keys = {}

    def sel_key(h_, w_, s_):
        if (h_, w_) == (1, 1):
            return None                        # centre-tap special case, no gather
        k = (h_, w_, s_)
        if k not in sel_keys:
            sel_keys[k] = len(sel_keys)
        return sel_keys[k]

    sel_index = []
    h, w = H, W                                # conv1 is stride 1: size unchanged
    for _ in _BLOCKS:
        i1 = sel_key(h, w, 1)
        i3 = sel_key(h, w, 3)
        sel_index.append((i1, i3))
        h, w = (h - 1) // 3 + 1, (w - 1) // 3 + 1
    p_final = h * w
    sel_arrays = [None] * len(sel_keys)
    for (hh, ww, ss), idx in sel_keys.items():
        sel_arrays[idx] = _build_selection(hh, ww, ss)

    # --- one fused pallas_call over the batch --------------------------------
    kernel = functools.partial(_fused_kernel,
                               sel_index=tuple(sel_index),
                               n_sel=len(sel_arrays))
    in_specs = [
        pl.BlockSpec((1,) + xtaps.shape[1:], lambda b: (b, 0, 0)),   # per-image taps
        pl.BlockSpec(w1m.shape, lambda b: (0, 0)),
        pl.BlockSpec(wblk.shape, lambda b: (0, 0, 0)),
        pl.BlockSpec(scales.shape, lambda b: (0, 0, 0)),
        pl.BlockSpec(shifts.shape, lambda b: (0, 0, 0)),
    ] + [pl.BlockSpec(s.shape, lambda b: (0, 0, 0)) for s in sel_arrays]

    out = pl.pallas_call(
        kernel,
        out_shape=jax.ShapeDtypeStruct((B, 32, p_final), jnp.float32),
        grid=(B,),
        in_specs=in_specs,
        out_specs=pl.BlockSpec((1, 32, p_final), lambda b: (b, 0, 0)),
        compiler_params=pltpu.CompilerParams(
            dimension_semantics=("parallel",),        # batch across TCs on v7x
            vmem_limit_bytes=32 * 1024 * 1024,
        ),
    )(xtaps, w1m, wblk, scales, shifts, *sel_arrays)

    # (C, P) channel-major layout == PyTorch NCHW .view(B, -1) ordering.
    return out.reshape(B, -1)


# ----------------------------------------------------------------------------
# Parameter init + pure-JAX reference
# ----------------------------------------------------------------------------
def init_params(key):
    def conv_init(k, cin, cout):
        k1, k2 = jax.random.split(k)
        bound = 1.0 / np.sqrt(9 * cin)
        w = jax.random.uniform(k1, (3, 3, cin, cout), jnp.float32, -bound, bound)
        b = jax.random.uniform(k2, (cout,), jnp.float32, -bound, bound)
        return w, b

    def bn_init(k, c):
        k1, k2, k3, k4 = jax.random.split(k, 4)
        return dict(
            gamma=1.0 + 0.1 * jax.random.normal(k1, (c,), jnp.float32),
            beta=0.1 * jax.random.normal(k2, (c,), jnp.float32),
            mean=0.1 * jax.random.normal(k3, (c,), jnp.float32),
            var=1.0 + 0.1 * jnp.abs(jax.random.normal(k4, (c,), jnp.float32)),
            eps=1e-5,
        )

    keys = jax.random.split(key, len(_BLOCKS) + 1)
    params = {"conv1": conv_init(keys[0], 1, 32), "blocks": {}}
    for i, name in enumerate(_BLOCKS):
        k = jax.random.split(keys[i + 1], 4)
        params["blocks"][name] = dict(
            conv1=conv_init(k[0], 32, 32),
            conv2=conv_init(k[1], 32, 32),
            conv11=conv_init(k[2], 32, 32),
            bn1=bn_init(k[3], 32),
        )
    return params


def spectrogram_forward_ref(x, params):
    def conv(a, w, b, stride):
        y = lax.conv_general_dilated(
            a, w, (stride, stride), ((1, 1), (1, 1)),
            dimension_numbers=("NHWC", "HWIO", "NHWC"),
            precision=lax.Precision.HIGHEST,
        )
        return y + b

    def lrelu(y):
        return jnp.where(y >= 0, y, 0.01 * y)

    def bnorm(y, p):
        return p["gamma"] * (y - p["mean"]) * lax.rsqrt(p["var"] + p["eps"]) + p["beta"]

    B = x.shape[0]
    out = conv(x[..., None], *params["conv1"], 1)
    for name in _BLOCKS:
        p = params["blocks"][name]
        prev_mp = conv(out, *p["conv11"], 3)
        h = lrelu(bnorm(conv(out, *p["conv1"], 1), p["bn1"]))
        out = conv(h, *p["conv2"], 3) + prev_mp
    return jnp.transpose(out, (0, 3, 1, 2)).reshape(B, -1)


if __name__ == "__main__":
    key = jax.random.PRNGKey(0)
    kx, kp = jax.random.split(key)
    # PyTorch forward takes (B, H, W) and unsqueezes the channel dim itself.
    x = jax.random.normal(kx, (2, 16, 16), jnp.float32)
    params = init_params(kp)

    out = jax.block_until_ready(jax.jit(spectrogram_forward)(x, params))
    ref = spectrogram_forward_ref(x, params)

    assert out.shape == (2, 32), out.shape
    # Kernel uses bf16 MXU operands (f32 accumulation) vs. an f32
    # HIGHEST-precision reference -> tolerance loosened accordingly.
    np.testing.assert_allclose(np.asarray(out), np.asarray(ref),
                               rtol=1e-2, atol=1e-2)
    print("KERNEL_OK")
</pallas_src>

<mosaic_0001>
module attributes {stable_mosaic.version = 11 : i64} {
  func.func @_fused_kernel(%arg0: i32, %arg1: memref<1x9x256xbf16, #tpu.memory_space<vmem>>, %arg2: memref<32x9xbf16, #tpu.memory_space<vmem>>, %arg3: memref<18x32x288xbf16, #tpu.memory_space<vmem>>, %arg4: memref<19x32x1xf32, #tpu.memory_space<vmem>>, %arg5: memref<19x32x1xf32, #tpu.memory_space<vmem>>, %arg6: memref<9x256x256xbf16, #tpu.memory_space<vmem>>, %arg7: memref<9x256x36xbf16, #tpu.memory_space<vmem>>, %arg8: memref<9x36x36xbf16, #tpu.memory_space<vmem>>, %arg9: memref<9x36x4xbf16, #tpu.memory_space<vmem>>, %arg10: memref<9x4x4xbf16, #tpu.memory_space<vmem>>, %arg11: memref<9x4x1xbf16, #tpu.memory_space<vmem>>, %arg12: memref<1x32x1xf32, #tpu.memory_space<vmem>>) attributes {dimension_semantics = [#tpu.dimension_semantics<parallel>], iteration_bounds = array<i64: 2>, scalar_prefetch = 0 : i64, scratch_operands = 0 : i64, tpu.core_type = #tpu.core_type<tc>, window_params = [{transform_indices = @transform_0, window_bounds = array<i64: 1, 9, 256>}, {pipeline_mode = #tpu.pipeline_mode<synchronous>, transform_indices = @transform_1, window_bounds = array<i64: 32, 9>}, {pipeline_mode = #tpu.pipeline_mode<synchronous>, transform_indices = @transform_2, window_bounds = array<i64: 18, 32, 288>}, {pipeline_mode = #tpu.pipeline_mode<synchronous>, transform_indices = @transform_3, window_bounds = array<i64: 19, 32, 1>}, {pipeline_mode = #tpu.pipeline_mode<synchronous>, transform_indices = @transform_4, window_bounds = array<i64: 19, 32, 1>}, {pipeline_mode = #tpu.pipeline_mode<synchronous>, transform_indices = @transform_5, window_bounds = array<i64: 9, 256, 256>}, {pipeline_mode = #tpu.pipeline_mode<synchronous>, transform_indices = @transform_6, window_bounds = array<i64: 9, 256, 36>}, {pipeline_mode = #tpu.pipeline_mode<synchronous>, transform_indices = @transform_7, window_bounds = array<i64: 9, 36, 36>}, {pipeline_mode = #tpu.pipeline_mode<synchronous>, transform_indices = @transform_8, window_bounds = array<i64: 9, 36, 4>}, {pipeline_mode = #tpu.pipeline_mode<synchronous>, transform_indices = @transform_9, window_bounds = array<i64: 9, 4, 4>}, {pipeline_mode = #tpu.pipeline_mode<synchronous>, transform_indices = @transform_10, window_bounds = array<i64: 9, 4, 1>}, {transform_indices = @transform_11, window_bounds = array<i64: 1, 32, 1>}]} {
    %c0 = arith.constant 0 : index
    %c0_0 = arith.constant 0 : index
    %0 = vector.load %arg2[%c0, %c0_0] : memref<32x9xbf16, #tpu.memory_space<vmem>>, vector<32x9xbf16>
    %c0_1 = arith.constant 0 : index
    %c0_2 = arith.constant 0 : index
    %c0_3 = arith.constant 0 : index
    %1 = vector.load %arg1[%c0_1, %c0_2, %c0_3] : memref<1x9x256xbf16, #tpu.memory_space<vmem>>, vector<1x9x256xbf16>
    %2 = vector.shape_cast %1 : vector<1x9x256xbf16> to vector<9x256xbf16>
    %cst = arith.constant dense<0.000000e+00> : vector<32x256xf32>
    %3 = tpu.matmul %0, %2, %cst {dimension_numbers = #tpu.dot_dimension_numbers<[1], [0], [0], [1], [0, 0, 1, 1], [], []>} : vector<32x9xbf16>, vector<9x256xbf16>, vector<32x256xf32> -> vector<32x256xf32>
    %c0_4 = arith.constant 0 : index
    %c0_5 = arith.constant 0 : index
    %c0_6 = arith.constant 0 : index
    %4 = vector.load %arg4[%c0_4, %c0_5, %c0_6] : memref<19x32x1xf32, #tpu.memory_space<vmem>>, vector<1x32x1xf32>
    %5 = vector.shape_cast %4 : vector<1x32x1xf32> to vector<32x1xf32>
    %6 = vector.broadcast %5 : vector<32x1xf32> to vector<32x256xf32>
    %7 = arith.mulf %3, %6 : vector<32x256xf32>
    %c0_7 = arith.constant 0 : index
    %c0_8 = arith.constant 0 : index
    %c0_9 = arith.constant 0 : index
    %8 = vector.load %arg5[%c0_7, %c0_8, %c0_9] : memref<19x32x1xf32, #tpu.memory_space<vmem>>, vector<1x32x1xf32>
    %9 = vector.shape_cast %8 : vector<1x32x1xf32> to vector<32x1xf32>
    %10 = vector.broadcast %9 : vector<32x1xf32> to vector<32x256xf32>
    %11 = arith.addf %7, %10 : vector<32x256xf32>
    %12 = arith.truncf %11 : vector<32x256xf32> to vector<32x256xbf16>
    %c0_10 = arith.constant 0 : index
    %c0_11 = arith.constant 0 : index
    %c0_12 = arith.constant 0 : index
    %13 = vector.load %arg7[%c0_10, %c0_11, %c0_12] : memref<9x256x36xbf16, #tpu.memory_space<vmem>>, vector<1x256x36xbf16>
    %14 = vector.shape_cast %13 : vector<1x256x36xbf16> to vector<256x36xbf16>
    %cst_13 = arith.constant dense<0.000000e+00> : vector<32x36xf32>
    %15 = tpu.matmul %12, %14, %cst_13 {dimension_numbers = #tpu.dot_dimension_numbers<[1], [0], [0], [1], [0, 0, 1, 1], [], []>} : vector<32x256xbf16>, vector<256x36xbf16>, vector<32x36xf32> -> vector<32x36xf32>
    %16 = arith.truncf %15 : vector<32x36xf32> to vector<32x36xbf16>
    %c1 = arith.constant 1 : index
    %c0_14 = arith.constant 0 : index
    %c0_15 = arith.constant 0 : index
    %17 = vector.load %arg7[%c1, %c0_14, %c0_15] : memref<9x256x36xbf16, #tpu.memory_space<vmem>>, vector<1x256x36xbf16>
    %18 = vector.shape_cast %17 : vector<1x256x36xbf16> to vector<256x36xbf16>
    %cst_16 = arith.constant dense<0.000000e+00> : vector<32x36xf32>
    %19 = tpu.matmul %12, %18, %cst_16 {dimension_numbers = #tpu.dot_dimension_numbers<[1], [0], [0], [1], [0, 0, 1, 1], [], []>} : vector<32x256xbf16>, vector<256x36xbf16>, vector<32x36xf32> -> vector<32x36xf32>
    %20 = arith.truncf %19 : vector<32x36xf32> to vector<32x36xbf16>
    %c2 = arith.constant 2 : index
    %c0_17 = arith.constant 0 : index
    %c0_18 = arith.constant 0 : index
    %21 = vector.load %arg7[%c2, %c0_17, %c0_18] : memref<9x256x36xbf16, #tpu.memory_space<vmem>>, vector<1x256x36xbf16>
    %22 = vector.shape_cast %21 : vector<1x256x36xbf16> to vector<256x36xbf16>
    %cst_19 = arith.constant dense<0.000000e+00> : vector<32x36xf32>
    %23 = tpu.matmul %12, %22, %cst_19 {dimension_numbers = #tpu.dot_dimension_numbers<[1], [0], [0], [1], [0, 0, 1, 1], [], []>} : vector<32x256xbf16>, vector<256x36xbf16>, vector<32x36xf32> -> vector<32x36xf32>
    %24 = arith.truncf %23 : vector<32x36xf32> to vector<32x36xbf16>
    %c3 = arith.constant 3 : index
    %c0_20 = arith.constant 0 : index
    %c0_21 = arith.constant 0 : index
    %25 = vector.load %arg7[%c3, %c0_20, %c0_21] : memref<9x256x36xbf16, #tpu.memory_space<vmem>>, vector<1x256x36xbf16>
    %26 = vector.shape_cast %25 : vector<1x256x36xbf16> to vector<256x36xbf16>
    %cst_22 = arith.constant dense<0.000000e+00> : vector<32x36xf32>
    %27 = tpu.matmul %12, %26, %cst_22 {dimension_numbers = #tpu.dot_dimension_numbers<[1], [0], [0], [1], [0, 0, 1, 1], [], []>} : vector<32x256xbf16>, vector<256x36xbf16>, vector<32x36xf32> -> vector<32x36xf32>
    %28 = arith.truncf %27 : vector<32x36xf32> to vector<32x36xbf16>
    %c4 = arith.constant 4 : index
    %c0_23 = arith.constant 0 : index
    %c0_24 = arith.constant 0 : index
    %29 = vector.load %arg7[%c4, %c0_23, %c0_24] : memref<9x256x36xbf16, #tpu.memory_space<vmem>>, vector<1x256x36xbf16>
    %30 = vector.shape_cast %29 : vector<1x256x36xbf16> to vector<256x36xbf16>
    %cst_25 = arith.constant dense<0.000000e+00> : vector<32x36xf32>
    %31 = tpu.matmul %12, %30, %cst_25 {dimension_numbers = #tpu.dot_dimension_numbers<[1], [0], [0], [1], [0, 0, 1, 1], [], []>} : vector<32x256xbf16>, vector<256x36xbf16>, vector<32x36xf32> -> vector<32x36xf32>
    %32 = arith.truncf %31 : vector<32x36xf32> to vector<32x36xbf16>
    %c5 = arith.constant 5 : index
    %c0_26 = arith.constant 0 : index
    %c0_27 = arith.constant 0 : index
    %33 = vector.load %arg7[%c5, %c0_26, %c0_27] : memref<9x256x36xbf16, #tpu.memory_space<vmem>>, vector<1x256x36xbf16>
    %34 = vector.shape_cast %33 : vector<1x256x36xbf16> to vector<256x36xbf16>
    %cst_28 = arith.constant dense<0.000000e+00> : vector<32x36xf32>
    %35 = tpu.matmul %12, %34, %cst_28 {dimension_numbers = #tpu.dot_dimension_numbers<[1], [0], [0], [1], [0, 0, 1, 1], [], []>} : vector<32x256xbf16>, vector<256x36xbf16>, vector<32x36xf32> -> vector<32x36xf32>
    %36 = arith.truncf %35 : vector<32x36xf32> to vector<32x36xbf16>
    %c6 = arith.constant 6 : index
    %c0_29 = arith.constant 0 : index
    %c0_30 = arith.constant 0 : index
    %37 = vector.load %arg7[%c6, %c0_29, %c0_30] : memref<9x256x36xbf16, #tpu.memory_space<vmem>>, vector<1x256x36xbf16>
    %38 = vector.shape_cast %37 : vector<1x256x36xbf16> to vector<256x36xbf16>
    %cst_31 = arith.constant dense<0.000000e+00> : vector<32x36xf32>
    %39 = tpu.matmul %12, %38, %cst_31 {dimension_numbers = #tpu.dot_dimension_numbers<[1], [0], [0], [1], [0, 0, 1, 1], [], []>} : vector<32x256xbf16>, vector<256x36xbf16>, vector<32x36xf32> -> vector<32x36xf32>
    %40 = arith.truncf %39 : vector<32x36xf32> to vector<32x36xbf16>
    %c7 = arith.constant 7 : index
    %c0_32 = arith.constant 0 : index
    %c0_33 = arith.constant 0 : index
    %41 = vector.load %arg7[%c7, %c0_32, %c0_33] : memref<9x256x36xbf16, #tpu.memory_space<vmem>>, vector<1x256x36xbf16>
    %42 = vector.shape_cast %41 : vector<1x256x36xbf16> to vector<256x36xbf16>
    %cst_34 = arith.constant dense<0.000000e+00> : vector<32x36xf32>
    %43 = tpu.matmul %12, %42, %cst_34 {dimension_numbers = #tpu.dot_dimension_numbers<[1], [0], [0], [1], [0, 0, 1, 1], [], []>} : vector<32x256xbf16>, vector<256x36xbf16>, vector<32x36xf32> -> vector<32x36xf32>
    %44 = arith.truncf %43 : vector<32x36xf32> to vector<32x36xbf16>
    %c8 = arith.constant 8 : index
    %c0_35 = arith.constant 0 : index
    %c0_36 = arith.constant 0 : index
    %45 = vector.load %arg7[%c8, %c0_35, %c0_36] : memref<9x256x36xbf16, #tpu.memory_space<vmem>>, vector<1x256x36xbf16>
    %46 = vector.shape_cast %45 : vector<1x256x36xbf16> to vector<256x36xbf16>
    %cst_37 = arith.constant dense<0.000000e+00> : vector<32x36xf32>
    %47 = tpu.matmul %12, %46, %cst_37 {dimension_numbers = #tpu.dot_dimension_numbers<[1], [0], [0], [1], [0, 0, 1, 1], [], []>} : vector<32x256xbf16>, vector<256x36xbf16>, vector<32x36xf32> -> vector<32x36xf32>
    %48 = arith.truncf %47 : vector<32x36xf32> to vector<32x36xbf16>
    %49 = tpu.concatenate %16, %20, %24, %28, %32, %36, %40, %44, %48 in 0 : vector<32x36xbf16>, vector<32x36xbf16>, vector<32x36xbf16>, vector<32x36xbf16>, vector<32x36xbf16>, vector<32x36xbf16>, vector<32x36xbf16>, vector<32x36xbf16>, vector<32x36xbf16> -> vector<288x36xbf16>
    %c0_38 = arith.constant 0 : index
    %c0_39 = arith.constant 0 : index
    %c0_40 = arith.constant 0 : index
    %50 = vector.load %arg3[%c0_38, %c0_39, %c0_40] : memref<18x32x288xbf16, #tpu.memory_space<vmem>>, vector<1x32x288xbf16>
    %51 = vector.shape_cast %50 : vector<1x32x288xbf16> to vector<32x288xbf16>
    %cst_41 = arith.constant dense<0.000000e+00> : vector<32x36xf32>
    %52 = tpu.matmul %51, %49, %cst_41 {dimension_numbers = #tpu.dot_dimension_numbers<[1], [0], [0], [1], [0, 0, 1, 1], [], []>} : vector<32x288xbf16>, vector<288x36xbf16>, vector<32x36xf32> -> vector<32x36xf32>
    %c1_42 = arith.constant 1 : index
    %c0_43 = arith.constant 0 : index
    %c0_44 = arith.constant 0 : index
    %53 = vector.load %arg4[%c1_42, %c0_43, %c0_44] : memref<19x32x1xf32, #tpu.memory_space<vmem>>, vector<1x32x1xf32>
    %54 = vector.shape_cast %53 : vector<1x32x1xf32> to vector<32x1xf32>
    %55 = vector.broadcast %54 : vector<32x1xf32> to vector<32x36xf32>
    %56 = arith.mulf %52, %55 : vector<32x36xf32>
    %c1_45 = arith.constant 1 : index
    %c0_46 = arith.constant 0 : index
    %c0_47 = arith.constant 0 : index
    %57 = vector.load %arg5[%c1_45, %c0_46, %c0_47] : memref<19x32x1xf32, #tpu.memory_space<vmem>>, vector<1x32x1xf32>
    %58 = vector.shape_cast %57 : vector<1x32x1xf32> to vector<32x1xf32>
    %59 = vector.broadcast %58 : vector<32x1xf32> to vector<32x36xf32>
    %60 = arith.addf %56, %59 : vector<32x36xf32>
    %61 = arith.truncf %11 : vector<32x256xf32> to vector<32x256xbf16>
    %c0_48 = arith.constant 0 : index
    %c0_49 = arith.constant 0 : index
    %c0_50 = arith.constant 0 : index
    %62 = vector.load %arg6[%c0_48, %c0_49, %c0_50] : memref<9x256x256xbf16, #tpu.memory_space<vmem>>, vector<1x256x256xbf16>
    %63 = vector.shape_cast %62 : vector<1x256x256xbf16> to vector<256x256xbf16>
    %cst_51 = arith.constant dense<0.000000e+00> : vector<32x256xf32>
    %64 = tpu.matmul %61, %63, %cst_51 {dimension_numbers = #tpu.dot_dimension_numbers<[1], [0], [0], [1], [0, 0, 1, 1], [], []>} : vector<32x256xbf16>, vector<256x256xbf16>, vector<32x256xf32> -> vector<32x256xf32>
    %65 = arith.truncf %64 : vector<32x256xf32> to vector<32x256xbf16>
    %c1_52 = arith.constant 1 : index
    %c0_53 = arith.constant 0 : index
    %c0_54 = arith.constant 0 : index
    %66 = vector.load %arg6[%c1_52, %c0_53, %c0_54] : memref<9x256x256xbf16, #tpu.memory_space<vmem>>, vector<1x256x256xbf16>
    %67 = vector.shape_cast %66 : vector<1x256x256xbf16> to vector<256x256xbf16>
    %cst_55 = arith.constant dense<0.000000e+00> : vector<32x256xf32>
    %68 = tpu.matmul %61, %67, %cst_55 {dimension_numbers = #tpu.dot_dimension_numbers<[1], [0], [0], [1], [0, 0, 1, 1], [], []>} : vector<32x256xbf16>, vector<256x256xbf16>, vector<32x256xf32> -> vector<32x256xf32>
    %69 = arith.truncf %68 : vector<32x256xf32> to vector<32x256xbf16>
    %c2_56 = arith.constant 2 : index
    %c0_57 = arith.constant 0 : index
    %c0_58 = arith.constant 0 : index
    %70 = vector.load %arg6[%c2_56, %c0_57, %c0_58] : memref<9x256x256xbf16, #tpu.memory_space<vmem>>, vector<1x256x256xbf16>
    %71 = vector.shape_cast %70 : vector<1x256x256xbf16> to vector<256x256xbf16>
    %cst_59 = arith.constant dense<0.000000e+00> : vector<32x256xf32>
    %72 = tpu.matmul %61, %71, %cst_59 {dimension_numbers = #tpu.dot_dimension_numbers<[1], [0], [0], [1], [0, 0, 1, 1], [], []>} : vector<32x256xbf16>, vector<256x256xbf16>, vector<32x256xf32> -> vector<32x256xf32>
    %73 = arith.truncf %72 : vector<32x256xf32> to vector<32x256xbf16>
    %c3_60 = arith.constant 3 : index
    %c0_61 = arith.constant 0 : index
    %c0_62 = arith.constant 0 : index
    %74 = vector.load %arg6[%c3_60, %c0_61, %c0_62] : memref<9x256x256xbf16, #tpu.memory_space<vmem>>, vector<1x256x256xbf16>
    %75 = vector.shape_cast %74 : vector<1x256x256xbf16> to vector<256x256xbf16>
    %cst_63 = arith.constant dense<0.000000e+00> : vector<32x256xf32>
    %76 = tpu.matmul %61, %75, %cst_63 {dimension_numbers = #tpu.dot_dimension_numbers<[1], [0], [0], [1], [0, 0, 1, 1], [], []>} : vector<32x256xbf16>, vector<256x256xbf16>, vector<32x256xf32> -> vector<32x256xf32>
    %77 = arith.truncf %76 : vector<32x256xf32> to vector<32x256xbf16>
    %c4_64 = arith.constant 4 : index
    %c0_65 = arith.constant 0 : index
    %c0_66 = arith.constant 0 : index
    %78 = vector.load %arg6[%c4_64, %c0_65, %c0_66] : memref<9x256x256xbf16, #tpu.memory_space<vmem>>, vector<1x256x256xbf16>
    %79 = vector.shape_cast %78 : vector<1x256x256xbf16> to vector<256x256xbf16>
    %cst_67 = arith.constant dense<0.000000e+00> : vector<32x256xf32>
    %80 = tpu.matmul %61, %79, %cst_67 {dimension_numbers = #tpu.dot_dimension_numbers<[1], [0], [0], [1], [0, 0, 1, 1], [], []>} : vector<32x256xbf16>, vector<256x256xbf16>, vector<32x256xf32> -> vector<32x256xf32>
    %81 = arith.truncf %80 : vector<32x256xf32> to vector<32x256xbf16>
    %c5_68 = arith.constant 5 : index
    %c0_69 = arith.constant 0 : index
    %c0_70 = arith.constant 0 : index
    %82 = vector.load %arg6[%c5_68, %c0_69, %c0_70] : memref<9x256x256xbf16, #tpu.memory_space<vmem>>, vector<1x256x256xbf16>
    %83 = vector.shape_cast %82 : vector<1x256x256xbf16> to vector<256x256xbf16>
    %cst_71 = arith.constant dense<0.000000e+00> : vector<32x256xf32>
    %84 = tpu.matmul %61, %83, %cst_71 {dimension_numbers = #tpu.dot_dimension_numbers<[1], [0], [0], [1], [0, 0, 1, 1], [], []>} : vector<32x256xbf16>, vector<256x256xbf16>, vector<32x256xf32> -> vector<32x256xf32>
    %85 = arith.truncf %84 : vector<32x256xf32> to vector<32x256xbf16>
    %c6_72 = arith.constant 6 : index
    %c0_73 = arith.constant 0 : index
    %c0_74 = arith.constant 0 : index
    %86 = vector.load %arg6[%c6_72, %c0_73, %c0_74] : memref<9x256x256xbf16, #tpu.memory_space<vmem>>, vector<1x256x256xbf16>
    %87 = vector.shape_cast %86 : vector<1x256x256xbf16> to vector<256x256xbf16>
    %cst_75 = arith.constant dense<0.000000e+00> : vector<32x256xf32>
    %88 = tpu.matmul %61, %87, %cst_75 {dimension_numbers = #tpu.dot_dimension_numbers<[1], [0], [0], [1], [0, 0, 1, 1], [], []>} : vector<32x256xbf16>, vector<256x256xbf16>, vector<32x256xf32> -> vector<32x256xf32>
    %89 = arith.truncf %88 : vector<32x256xf32> to vector<32x256xbf16>
    %c7_76 = arith.constant 7 : index
    %c0_77 = arith.constant 0 : index
    %c0_78 = arith.constant 0 : index
    %90 = vector.load %arg6[%c7_76, %c0_77, %c0_78] : memref<9x256x256xbf16, #tpu.memory_space<vmem>>, vector<1x256x256xbf16>
    %91 = vector.shape_cast %90 : vector<1x256x256xbf16> to vector<256x256xbf16>
    %cst_79 = arith.constant dense<0.000000e+00> : vector<32x256xf32>
    %92 = tpu.matmul %61, %91, %cst_79 {dimension_numbers = #tpu.dot_dimension_numbers<[1], [0], [0], [1], [0, 0, 1, 1], [], []>} : vector<32x256xbf16>, vector<256x256xbf16>, vector<32x256xf32> -> vector<32x256xf32>
    %93 = arith.truncf %92 : vector<32x256xf32> to vector<32x256xbf16>
    %c8_80 = arith.constant 8 : index
    %c0_81 = arith.constant 0 : index
    %c0_82 = arith.constant 0 : index
    %94 = vector.load %arg6[%c8_80, %c0_81, %c0_82] : memref<9x256x256xbf16, #tpu.memory_space<vmem>>, vector<1x256x256xbf16>
    %95 = vector.shape_cast %94 : vector<1x256x256xbf16> to vector<256x256xbf16>
    %cst_83 = arith.constant dense<0.000000e+00> : vector<32x256xf32>
    %96 = tpu.matmul %61, %95, %cst_83 {dimension_numbers = #tpu.dot_dimension_numbers<[1], [0], [0], [1], [0, 0, 1, 1], [], []>} : vector<32x256xbf16>, vector<256x256xbf16>, vector<32x256xf32> -> vector<32x256xf32>
    %97 = arith.truncf %96 : vector<32x256xf32> to vector<32x256xbf16>
    %98 = tpu.concatenate %65, %69, %73, %77, %81, %85, %89, %93, %97 in 0 : vector<32x256xbf16>, vector<32x256xbf16>, vector<32x256xbf16>, vector<32x256xbf16>, vector<32x256xbf16>, vector<32x256xbf16>, vector<32x256xbf16>, vector<32x256xbf16>, vector<32x256xbf16> -> vector<288x256xbf16>
    %c1_84 = arith.constant 1 : index
    %c0_85 = arith.constant 0 : index
    %c0_86 = arith.constant 0 : index
    %99 = vector.load %arg3[%c1_84, %c0_85, %c0_86] : memref<18x32x288xbf16, #tpu.memory_space<vmem>>, vector<1x32x288xbf16>
    %100 = vector.shape_cast %99 : vector<1x32x288xbf16> to vector<32x288xbf16>
    %cst_87 = arith.constant dense<0.000000e+00> : vector<32x256xf32>
    %101 = tpu.matmul %100, %98, %cst_87 {dimension_numbers = #tpu.dot_dimension_numbers<[1], [0], [0], [1], [0, 0, 1, 1], [], []>} : vector<32x288xbf16>, vector<288x256xbf16>, vector<32x256xf32> -> vector<32x256xf32>
    %c2_88 = arith.constant 2 : index
    %c0_89 = arith.constant 0 : index
    %c0_90 = arith.constant 0 : index
    %102 = vector.load %arg4[%c2_88, %c0_89, %c0_90] : memref<19x32x1xf32, #tpu.memory_space<vmem>>, vector<1x32x1xf32>
    %103 = vector.shape_cast %102 : vector<1x32x1xf32> to vector<32x1xf32>
    %104 = vector.broadcast %103 : vector<32x1xf32> to vector<32x256xf32>
    %105 = arith.mulf %101, %104 : vector<32x256xf32>
    %c2_91 = arith.constant 2 : index
    %c0_92 = arith.constant 0 : index
    %c0_93 = arith.constant 0 : index
    %106 = vector.load %arg5[%c2_91, %c0_92, %c0_93] : memref<19x32x1xf32, #tpu.memory_space<vmem>>, vector<1x32x1xf32>
    %107 = vector.shape_cast %106 : vector<1x32x1xf32> to vector<32x1xf32>
    %108 = vector.broadcast %107 : vector<32x1xf32> to vector<32x256xf32>
    %109 = arith.addf %105, %108 : vector<32x256xf32>
    %cst_94 = arith.constant 0.000000e+00 : f32
    %110 = vector.broadcast %cst_94 : f32 to vector<32x256xf32>
    %111 = arith.cmpf oge, %109, %110 : vector<32x256xf32>
    %cst_95 = arith.constant 0.00999999977 : f32
    %112 = vector.broadcast %cst_95 : f32 to vector<32x256xf32>
    %113 = arith.mulf %112, %109 : vector<32x256xf32>
    %114 = arith.select %111, %109, %113 : vector<32x256xi1>, vector<32x256xf32>
    %115 = arith.truncf %114 : vector<32x256xf32> to vector<32x256xbf16>
    %c0_96 = arith.constant 0 : index
    %c0_97 = arith.constant 0 : index
    %c0_98 = arith.constant 0 : index
    %116 = vector.load %arg7[%c0_96, %c0_97, %c0_98] : memref<9x256x36xbf16, #tpu.memory_space<vmem>>, vector<1x256x36xbf16>
    %117 = vector.shape_cast %116 : vector<1x256x36xbf16> to vector<256x36xbf16>
    %cst_99 = arith.constant dense<0.000000e+00> : vector<32x36xf32>
    %118 = tpu.matmul %115, %117, %cst_99 {dimension_numbers = #tpu.dot_dimension_numbers<[1], [0], [0], [1], [0, 0, 1, 1], [], []>} : vector<32x256xbf16>, vector<256x36xbf16>, vector<32x36xf32> -> vector<32x36xf32>
    %119 = arith.truncf %118 : vector<32x36xf32> to vector<32x36xbf16>
    %c1_100 = arith.constant 1 : index
    %c0_101 = arith.constant 0 : index
    %c0_102 = arith.constant 0 : index
    %120 = vector.load %arg7[%c1_100, %c0_101, %c0_102] : memref<9x256x36xbf16, #tpu.memory_space<vmem>>, vector<1x256x36xbf16>
    %121 = vector.shape_cast %120 : vector<1x256x36xbf16> to vector<256x36xbf16>
    %cst_103 = arith.constant dense<0.000000e+00> : vector<32x36xf32>
    %122 = tpu.matmul %115, %121, %cst_103 {dimension_numbers = #tpu.dot_dimension_numbers<[1], [0], [0], [1], [0, 0, 1, 1], [], []>} : vector<32x256xbf16>, vector<256x36xbf16>, vector<32x36xf32> -> vector<32x36xf32>
    %123 = arith.truncf %122 : vector<32x36xf32> to vector<32x36xbf16>
    %c2_104 = arith.constant 2 : index
    %c0_105 = arith.constant 0 : index
    %c0_106 = arith.constant 0 : index
    %124 = vector.load %arg7[%c2_104, %c0_105, %c0_106] : memref<9x256x36xbf16, #tpu.memory_space<vmem>>, vector<1x256x36xbf16>
    %125 = vector.shape_cast %124 : vector<1x256x36xbf16> to vector<256x36xbf16>
    %cst_107 = arith.constant dense<0.000000e+00> : vector<32x36xf32>
    %126 = tpu.matmul %115, %125, %cst_107 {dimension_numbers = #tpu.dot_dimension_numbers<[1], [0], [0], [1], [0, 0, 1, 1], [], []>} : vector<32x256xbf16>, vector<256x36xbf16>, vector<32x36xf32> -> vector<32x36xf32>
    %127 = arith.truncf %126 : vector<32x36xf32> to vector<32x36xbf16>
    %c3_108 = arith.constant 3 : index
    %c0_109 = arith.constant 0 : index
    %c0_110 = arith.constant 0 : index
    %128 = vector.load %arg7[%c3_108, %c0_109, %c0_110] : memref<9x256x36xbf16, #tpu.memory_space<vmem>>, vector<1x256x36xbf16>
    %129 = vector.shape_cast %128 : vector<1x256x36xbf16> to vector<256x36xbf16>
    %cst_111 = arith.constant dense<0.000000e+00> : vector<32x36xf32>
    %130 = tpu.matmul %115, %129, %cst_111 {dimension_numbers = #tpu.dot_dimension_numbers<[1], [0], [0], [1], [0, 0, 1, 1], [], []>} : vector<32x256xbf16>, vector<256x36xbf16>, vector<32x36xf32> -> vector<32x36xf32>
    %131 = arith.truncf %130 : vector<32x36xf32> to vector<32x36xbf16>
    %c4_112 = arith.constant 4 : index
    %c0_113 = arith.constant 0 : index
    %c0_114 = arith.constant 0 : index
    %132 = vector.load %arg7[%c4_112, %c0_113, %c0_114] : memref<9x256x36xbf16, #tpu.memory_space<vmem>>, vector<1x256x36xbf16>
    %133 = vector.shape_cast %132 : vector<1x256x36xbf16> to vector<256x36xbf16>
    %cst_115 = arith.constant dense<0.000000e+00> : vector<32x36xf32>
    %134 = tpu.matmul %115, %133, %cst_115 {dimension_numbers = #tpu.dot_dimension_numbers<[1], [0], [0], [1], [0, 0, 1, 1], [], []>} : vector<32x256xbf16>, vector<256x36xbf16>, vector<32x36xf32> -> vector<32x36xf32>
    %135 = arith.truncf %134 : vector<32x36xf32> to vector<32x36xbf16>
    %c5_116 = arith.constant 5 : index
    %c0_117 = arith.constant 0 : index
    %c0_118 = arith.constant 0 : index
    %136 = vector.load %arg7[%c5_116, %c0_117, %c0_118] : memref<9x256x36xbf16, #tpu.memory_space<vmem>>, vector<1x256x36xbf16>
    %137 = vector.shape_cast %136 : vector<1x256x36xbf16> to vector<256x36xbf16>
    %cst_119 = arith.constant dense<0.000000e+00> : vector<32x36xf32>
    %138 = tpu.matmul %115, %137, %cst_119 {dimension_numbers = #tpu.dot_dimension_numbers<[1], [0], [0], [1], [0, 0, 1, 1], [], []>} : vector<32x256xbf16>, vector<256x36xbf16>, vector<32x36xf32> -> vector<32x36xf32>
    %139 = arith.truncf %138 : vector<32x36xf32> to vector<32x36xbf16>
    %c6_120 = arith.constant 6 : index
    %c0_121 = arith.constant 0 : index
    %c0_122 = arith.constant 0 : index
    %140 = vector.load %arg7[%c6_120, %c0_121, %c0_122] : memref<9x256x36xbf16, #tpu.memory_space<vmem>>, vector<1x256x36xbf16>
    %141 = vector.shape_cast %140 : vector<1x256x36xbf16> to vector<256x36xbf16>
    %cst_123 = arith.constant dense<0.000000e+00> : vector<32x36xf32>
    %142 = tpu.matmul %115, %141, %cst_123 {dimension_numbers = #tpu.dot_dimension_numbers<[1], [0], [0], [1], [0, 0, 1, 1], [], []>} : vector<32x256xbf16>, vector<256x36xbf16>, vector<32x36xf32> -> vector<32x36xf32>
    %143 = arith.truncf %142 : vector<32x36xf32> to vector<32x36xbf16>
    %c7_124 = arith.constant 7 : index
    %c0_125 = arith.constant 0 : index
    %c0_126 = arith.constant 0 : index
    %144 = vector.load %arg7[%c7_124, %c0_125, %c0_126] : memref<9x256x36xbf16, #tpu.memory_space<vmem>>, vector<1x256x36xbf16>
    %145 = vector.shape_cast %144 : vector<1x256x36xbf16> to vector<256x36xbf16>
    %cst_127 = arith.constant dense<0.000000e+00> : vector<32x36xf32>
    %146 = tpu.matmul %115, %145, %cst_127 {dimension_numbers = #tpu.dot_dimension_numbers<[1], [0], [0], [1], [0, 0, 1, 1], [], []>} : vector<32x256xbf16>, vector<256x36xbf16>, vector<32x36xf32> -> vector<32x36xf32>
    %147 = arith.truncf %146 : vector<32x36xf32> to vector<32x36xbf16>
    %c8_128 = arith.constant 8 : index
    %c0_129 = arith.constant 0 : index
    %c0_130 = arith.constant 0 : index
    %148 = vector.load %arg7[%c8_128, %c0_129, %c0_130] : memref<9x256x36xbf16, #tpu.memory_space<vmem>>, vector<1x256x36xbf16>
    %149 = vector.shape_cast %148 : vector<1x256x36xbf16> to vector<256x36xbf16>
    %cst_131 = arith.constant dense<0.000000e+00> : vector<32x36xf32>
    %150 = tpu.matmul %115, %149, %cst_131 {dimension_numbers = #tpu.dot_dimension_numbers<[1], [0], [0], [1], [0, 0, 1, 1], [], []>} : vector<32x256xbf16>, vector<256x36xbf16>, vector<32x36xf32> -> vector<32x36xf32>
    %151 = arith.truncf %150 : vector<32x36xf32> to vector<32x36xbf16>
    %152 = tpu.concatenate %119, %123, %127, %131, %135, %139, %143, %147, %151 in 0 : vector<32x36xbf16>, vector<32x36xbf16>, vector<32x36xbf16>, vector<32x36xbf16>, vector<32x36xbf16>, vector<32x36xbf16>, vector<32x36xbf16>, vector<32x36xbf16>, vector<32x36xbf16> -> vector<288x36xbf16>
    %c2_132 = arith.constant 2 : index
    %c0_133 = arith.constant 0 : index
    %c0_134 = arith.constant 0 : index
    %153 = vector.load %arg3[%c2_132, %c0_133, %c0_134] : memref<18x32x288xbf16, #tpu.memory_space<vmem>>, vector<1x32x288xbf16>
    %154 = vector.shape_cast %153 : vector<1x32x288xbf16> to vector<32x288xbf16>
    %cst_135 = arith.constant dense<0.000000e+00> : vector<32x36xf32>
    %155 = tpu.matmul %154, %152, %cst_135 {dimension_numbers = #tpu.dot_dimension_numbers<[1], [0], [0], [1], [0, 0, 1, 1], [], []>} : vector<32x288xbf16>, vector<288x36xbf16>, vector<32x36xf32> -> vector<32x36xf32>
    %c3_136 = arith.constant 3 : index
    %c0_137 = arith.constant 0 : index
    %c0_138 = arith.constant 0 : index
    %156 = vector.load %arg4[%c3_136, %c0_137, %c0_138] : memref<19x32x1xf32, #tpu.memory_space<vmem>>, vector<1x32x1xf32>
    %157 = vector.shape_cast %156 : vector<1x32x1xf32> to vector<32x1xf32>
    %158 = vector.broadcast %157 : vector<32x1xf32> to vector<32x36xf32>
    %159 = arith.mulf %155, %158 : vector<32x36xf32>
    %c3_139 = arith.constant 3 : index
    %c0_140 = arith.constant 0 : index
    %c0_141 = arith.constant 0 : index
    %160 = vector.load %arg5[%c3_139, %c0_140, %c0_141] : memref<19x32x1xf32, #tpu.memory_space<vmem>>, vector<1x32x1xf32>
    %161 = vector.shape_cast %160 : vector<1x32x1xf32> to vector<32x1xf32>
    %162 = vector.broadcast %161 : vector<32x1xf32> to vector<32x36xf32>
    %163 = arith.addf %159, %162 : vector<32x36xf32>
    %164 = arith.addf %163, %60 : vector<32x36xf32>
    %165 = arith.truncf %164 : vector<32x36xf32> to vector<32x36xbf16>
    %c0_142 = arith.constant 0 : index
    %c0_143 = arith.constant 0 : index
    %c0_144 = arith.constant 0 : index
    %166 = vector.load %arg9[%c0_142, %c0_143, %c0_144] : memref<9x36x4xbf16, #tpu.memory_space<vmem>>, vector<1x36x4xbf16>
    %167 = vector.shape_cast %166 : vector<1x36x4xbf16> to vector<36x4xbf16>
    %cst_145 = arith.constant dense<0.000000e+00> : vector<32x4xf32>
    %168 = tpu.matmul %165, %167, %cst_145 {dimension_numbers = #tpu.dot_dimension_numbers<[1], [0], [0], [1], [0, 0, 1, 1], [], []>} : vector<32x36xbf16>, vector<36x4xbf16>, vector<32x4xf32> -> vector<32x4xf32>
    %169 = arith.truncf %168 : vector<32x4xf32> to vector<32x4xbf16>
    %c1_146 = arith.constant 1 : index
    %c0_147 = arith.constant 0 : index
    %c0_148 = arith.constant 0 : index
    %170 = vector.load %arg9[%c1_146, %c0_147, %c0_148] : memref<9x36x4xbf16, #tpu.memory_space<vmem>>, vector<1x36x4xbf16>
    %171 = vector.shape_cast %170 : vector<1x36x4xbf16> to vector<36x4xbf16>
    %cst_149 = arith.constant dense<0.000000e+00> : vector<32x4xf32>
    %172 = tpu.matmul %165, %171, %cst_149 {dimension_numbers = #tpu.dot_dimension_numbers<[1], [0], [0], [1], [0, 0, 1, 1], [], []>} : vector<32x36xbf16>, vector<36x4xbf16>, vector<32x4xf32> -> vector<32x4xf32>
    %173 = arith.truncf %172 : vector<32x4xf32> to vector<32x4xbf16>
    %c2_150 = arith.constant 2 : index
    %c0_151 = arith.constant 0 : index
    %c0_152 = arith.constant 0 : index
    %174 = vector.load %arg9[%c2_150, %c0_151, %c0_152] : memref<9x36x4xbf16, #tpu.memory_space<vmem>>, vector<1x36x4xbf16>
    %175 = vector.shape_cast %174 : vector<1x36x4xbf16> to vector<36x4xbf16>
    %cst_153 = arith.constant dense<0.000000e+00> : vector<32x4xf32>
    %176 = tpu.matmul %165, %175, %cst_153 {dimension_numbers = #tpu.dot_dimension_numbers<[1], [0], [0], [1], [0, 0, 1, 1], [], []>} : vector<32x36xbf16>, vector<36x4xbf16>, vector<32x4xf32> -> vector<32x4xf32>
    %177 = arith.truncf %176 : vector<32x4xf32> to vector<32x4xbf16>
    %c3_154 = arith.constant 3 : index
    %c0_155 = arith.constant 0 : index
    %c0_156 = arith.constant 0 : index
    %178 = vector.load %arg9[%c3_154, %c0_155, %c0_156] : memref<9x36x4xbf16, #tpu.memory_space<vmem>>, vector<1x36x4xbf16>
    %179 = vector.shape_cast %178 : vector<1x36x4xbf16> to vector<36x4xbf16>
    %cst_157 = arith.constant dense<0.000000e+00> : vector<32x4xf32>
    %180 = tpu.matmul %165, %179, %cst_157 {dimension_numbers = #tpu.dot_dimension_numbers<[1], [0], [0], [1], [0, 0, 1, 1], [], []>} : vector<32x36xbf16>, vector<36x4xbf16>, vector<32x4xf32> -> vector<32x4xf32>
    %181 = arith.truncf %180 : vector<32x4xf32> to vector<32x4xbf16>
    %c4_158 = arith.constant 4 : index
    %c0_159 = arith.constant 0 : index
    %c0_160 = arith.constant 0 : index
    %182 = vector.load %arg9[%c4_158, %c0_159, %c0_160] : memref<9x36x4xbf16, #tpu.memory_space<vmem>>, vector<1x36x4xbf16>
    %183 = vector.shape_cast %182 : vector<1x36x4xbf16> to vector<36x4xbf16>
    %cst_161 = arith.constant dense<0.000000e+00> : vector<32x4xf32>
    %184 = tpu.matmul %165, %183, %cst_161 {dimension_numbers = #tpu.dot_dimension_numbers<[1], [0], [0], [1], [0, 0, 1, 1], [], []>} : vector<32x36xbf16>, vector<36x4xbf16>, vector<32x4xf32> -> vector<32x4xf32>
    %185 = arith.truncf %184 : vector<32x4xf32> to vector<32x4xbf16>
    %c5_162 = arith.constant 5 : index
    %c0_163 = arith.constant 0 : index
    %c0_164 = arith.constant 0 : index
    %186 = vector.load %arg9[%c5_162, %c0_163, %c0_164] : memref<9x36x4xbf16, #tpu.memory_space<vmem>>, vector<1x36x4xbf16>
    %187 = vector.shape_cast %186 : vector<1x36x4xbf16> to vector<36x4xbf16>
    %cst_165 = arith.constant dense<0.000000e+00> : vector<32x4xf32>
    %188 = tpu.matmul %165, %187, %cst_165 {dimension_numbers = #tpu.dot_dimension_numbers<[1], [0], [0], [1], [0, 0, 1, 1], [], []>} : vector<32x36xbf16>, vector<36x4xbf16>, vector<32x4xf32> -> vector<32x4xf32>
    %189 = arith.truncf %188 : vector<32x4xf32> to vector<32x4xbf16>
    %c6_166 = arith.constant 6 : index
    %c0_167 = arith.constant 0 : index
    %c0_168 = arith.constant 0 : index
    %190 = vector.load %arg9[%c6_166, %c0_167, %c0_168] : memref<9x36x4xbf16, #tpu.memory_space<vmem>>, vector<1x36x4xbf16>
    %191 = vector.shape_cast %190 : vector<1x36x4xbf16> to vector<36x4xbf16>
    %cst_169 = arith.constant dense<0.000000e+00> : vector<32x4xf32>
    %192 = tpu.matmul %165, %191, %cst_169 {dimension_numbers = #tpu.dot_dimension_numbers<[1], [0], [0], [1], [0, 0, 1, 1], [], []>} : vector<32x36xbf16>, vector<36x4xbf16>, vector<32x4xf32> -> vector<32x4xf32>
    %193 = arith.truncf %192 : vector<32x4xf32> to vector<32x4xbf16>
    %c7_170 = arith.constant 7 : index
    %c0_171 = arith.constant 0 : index
    %c0_172 = arith.constant 0 : index
    %194 = vector.load %arg9[%c7_170, %c0_171, %c0_172] : memref<9x36x4xbf16, #tpu.memory_space<vmem>>, vector<1x36x4xbf16>
    %195 = vector.shape_cast %194 : vector<1x36x4xbf16> to vector<36x4xbf16>
    %cst_173 = arith.constant dense<0.000000e+00> : vector<32x4xf32>
    %196 = tpu.matmul %165, %195, %cst_173 {dimension_numbers = #tpu.dot_dimension_numbers<[1], [0], [0], [1], [0, 0, 1, 1], [], []>} : vector<32x36xbf16>, vector<36x4xbf16>, vector<32x4xf32> -> vector<32x4xf32>
    %197 = arith.truncf %196 : vector<32x4xf32> to vector<32x4xbf16>
    %c8_174 = arith.constant 8 : index
    %c0_175 = arith.constant 0 : index
    %c0_176 = arith.constant 0 : index
    %198 = vector.load %arg9[%c8_174, %c0_175, %c0_176] : memref<9x36x4xbf16, #tpu.memory_space<vmem>>, vector<1x36x4xbf16>
    %199 = vector.shape_cast %198 : vector<1x36x4xbf16> to vector<36x4xbf16>
    %cst_177 = arith.constant dense<0.000000e+00> : vector<32x4xf32>
    %200 = tpu.matmul %165, %199, %cst_177 {dimension_numbers = #tpu.dot_dimension_numbers<[1], [0], [0], [1], [0, 0, 1, 1], [], []>} : vector<32x36xbf16>, vector<36x4xbf16>, vector<32x4xf32> -> vector<32x4xf32>
    %201 = arith.truncf %200 : vector<32x4xf32> to vector<32x4xbf16>
    %202 = tpu.concatenate %169, %173, %177, %181, %185, %189, %193, %197, %201 in 0 : vector<32x4xbf16>, vector<32x4xbf16>, vector<32x4xbf16>, vector<32x4xbf16>, vector<32x4xbf16>, vector<32x4xbf16>, vector<32x4xbf16>, vector<32x4xbf16>, vector<32x4xbf16> -> vector<288x4xbf16>
    %c3_178 = arith.constant 3 : index
    %c0_179 = arith.constant 0 : index
    %c0_180 = arith.constant 0 : index
    %203 = vector.load %arg3[%c3_178, %c0_179, %c0_180] : memref<18x32x288xbf16, #tpu.memory_space<vmem>>, vector<1x32x288xbf16>
    %204 = vector.shape_cast %203 : vector<1x32x288xbf16> to vector<32x288xbf16>
    %cst_181 = arith.constant dense<0.000000e+00> : vector<32x4xf32>
    %205 = tpu.matmul %204, %202, %cst_181 {dimension_numbers = #tpu.dot_dimension_numbers<[1], [0], [0], [1], [0, 0, 1, 1], [], []>} : vector<32x288xbf16>, vector<288x4xbf16>, vector<32x4xf32> -> vector<32x4xf32>
    %c4_182 = arith.constant 4 : index
    %c0_183 = arith.constant 0 : index
    %c0_184 = arith.constant 0 : index
    %206 = vector.load %arg4[%c4_182, %c0_183, %c0_184] : memref<19x32x1xf32, #tpu.memory_space<vmem>>, vector<1x32x1xf32>
    %207 = vector.shape_cast %206 : vector<1x32x1xf32> to vector<32x1xf32>
    %208 = vector.broadcast %207 : vector<32x1xf32> to vector<32x4xf32>
    %209 = arith.mulf %205, %208 : vector<32x4xf32>
    %c4_185 = arith.constant 4 : index
    %c0_186 = arith.constant 0 : index
    %c0_187 = arith.constant 0 : index
    %210 = vector.load %arg5[%c4_185, %c0_186, %c0_187] : memref<19x32x1xf32, #tpu.memory_space<vmem>>, vector<1x32x1xf32>
    %211 = vector.shape_cast %210 : vector<1x32x1xf32> to vector<32x1xf32>
    %212 = vector.broadcast %211 : vector<32x1xf32> to vector<32x4xf32>
    %213 = arith.addf %209, %212 : vector<32x4xf32>
    %214 = arith.truncf %164 : vector<32x36xf32> to vector<32x36xbf16>
    %c0_188 = arith.constant 0 : index
    %c0_189 = arith.constant 0 : index
    %c0_190 = arith.constant 0 : index
    %215 = vector.load %arg8[%c0_188, %c0_189, %c0_190] : memref<9x36x36xbf16, #tpu.memory_space<vmem>>, vector<1x36x36xbf16>
    %216 = vector.shape_cast %215 : vector<1x36x36xbf16> to vector<36x36xbf16>
    %cst_191 = arith.constant dense<0.000000e+00> : vector<32x36xf32>
    %217 = tpu.matmul %214, %216, %cst_191 {dimension_numbers = #tpu.dot_dimension_numbers<[1], [0], [0], [1], [0, 0, 1, 1], [], []>} : vector<32x36xbf16>, vector<36x36xbf16>, vector<32x36xf32> -> vector<32x36xf32>
    %218 = arith.truncf %217 : vector<32x36xf32> to vector<32x36xbf16>
    %c1_192 = arith.constant 1 : index
    %c0_193 = arith.constant 0 : index
    %c0_194 = arith.constant 0 : index
    %219 = vector.load %arg8[%c1_192, %c0_193, %c0_194] : memref<9x36x36xbf16, #tpu.memory_space<vmem>>, vector<1x36x36xbf16>
    %220 = vector.shape_cast %219 : vector<1x36x36xbf16> to vector<36x36xbf16>
    %cst_195 = arith.constant dense<0.000000e+00> : vector<32x36xf32>
    %221 = tpu.matmul %214, %220, %cst_195 {dimension_numbers = #tpu.dot_dimension_numbers<[1], [0], [0], [1], [0, 0, 1, 1], [], []>} : vector<32x36xbf16>, vector<36x36xbf16>, vector<32x36xf32> -> vector<32x36xf32>
    %222 = arith.truncf %221 : vector<32x36xf32> to vector<32x36xbf16>
    %c2_196 = arith.constant 2 : index
    %c0_197 = arith.constant 0 : index
    %c0_198 = arith.constant 0 : index
    %223 = vector.load %arg8[%c2_196, %c0_197, %c0_198] : memref<9x36x36xbf16, #tpu.memory_space<vmem>>, vector<1x36x36xbf16>
    %224 = vector.shape_cast %223 : vector<1x36x36xbf16> to vector<36x36xbf16>
    %cst_199 = arith.constant dense<0.000000e+00> : vector<32x36xf32>
    %225 = tpu.matmul %214, %224, %cst_199 {dimension_numbers = #tpu.dot_dimension_numbers<[1], [0], [0], [1], [0, 0, 1, 1], [], []>} : vector<32x36xbf16>, vector<36x36xbf16>, vector<32x36xf32> -> vector<32x36xf32>
    %226 = arith.truncf %225 : vector<32x36xf32> to vector<32x36xbf16>
    %c3_200 = arith.constant 3 : index
    %c0_201 = arith.constant 0 : index
    %c0_202 = arith.constant 0 : index
    %227 = vector.load %arg8[%c3_200, %c0_201, %c0_202] : memref<9x36x36xbf16, #tpu.memory_space<vmem>>, vector<1x36x36xbf16>
    %228 = vector.shape_cast %227 : vector<1x36x36xbf16> to vector<36x36xbf16>
    %cst_203 = arith.constant dense<0.000000e+00> : vector<32x36xf32>
    %229 = tpu.matmul %214, %228, %cst_203 {dimension_numbers = #tpu.dot_dimension_numbers<[1], [0], [0], [1], [0, 0, 1, 1], [], []>} : vector<32x36xbf16>, vector<36x36xbf16>, vector<32x36xf32> -> vector<32x36xf32>
    %230 = arith.truncf %229 : vector<32x36xf32> to vector<32x36xbf16>
    %c4_204 = arith.constant 4 : index
    %c0_205 = arith.constant 0 : index
    %c0_206 = arith.constant 0 : index
    %231 = vector.load %arg8[%c4_204, %c0_205, %c0_206] : memref<9x36x36xbf16, #tpu.memory_space<vmem>>, vector<1x36x36xbf16>
    %232 = vector.shape_cast %231 : vector<1x36x36xbf16> to vector<36x36xbf16>
    %cst_207 = arith.constant dense<0.000000e+00> : vector<32x36xf32>
    %233 = tpu.matmul %214, %232, %cst_207 {dimension_numbers = #tpu.dot_dimension_numbers<[1], [0], [0], [1], [0, 0, 1, 1], [], []>} : vector<32x36xbf16>, vector<36x36xbf16>, vector<32x36xf32> -> vector<32x36xf32>
    %234 = arith.truncf %233 : vector<32x36xf32> to vector<32x36xbf16>
    %c5_208 = arith.constant 5 : index
    %c0_209 = arith.constant 0 : index
    %c0_210 = arith.constant 0 : index
    %235 = vector.load %arg8[%c5_208, %c0_209, %c0_210] : memref<9x36x36xbf16, #tpu.memory_space<vmem>>, vector<1x36x36xbf16>
    %236 = vector.shape_cast %235 : vector<1x36x36xbf16> to vector<36x36xbf16>
    %cst_211 = arith.constant dense<0.000000e+00> : vector<32x36xf32>
    %237 = tpu.matmul %214, %236, %cst_211 {dimension_numbers = #tpu.dot_dimension_numbers<[1], [0], [0], [1], [0, 0, 1, 1], [], []>} : vector<32x36xbf16>, vector<36x36xbf16>, vector<32x36xf32> -> vector<32x36xf32>
    %238 = arith.truncf %237 : vector<32x36xf32> to vector<32x36xbf16>
    %c6_212 = arith.constant 6 : index
    %c0_213 = arith.constant 0 : index
    %c0_214 = arith.constant 0 : index
    %239 = vector.load %arg8[%c6_212, %c0_213, %c0_214] : memref<9x36x36xbf16, #tpu.memory_space<vmem>>, vector<1x36x36xbf16>
    %240 = vector.shape_cast %239 : vector<1x36x36xbf16> to vector<36x36xbf16>
    %cst_215 = arith.constant dense<0.000000e+00> : vector<32x36xf32>
    %241 = tpu.matmul %214, %240, %cst_215 {dimension_numbers = #tpu.dot_dimension_numbers<[1], [0], [0], [1], [0, 0, 1, 1], [], []>} : vector<32x36xbf16>, vector<36x36xbf16>, vector<32x36xf32> -> vector<32x36xf32>
    %242 = arith.truncf %241 : vector<32x36xf32> to vector<32x36xbf16>
    %c7_216 = arith.constant 7 : index
    %c0_217 = arith.constant 0 : index
    %c0_218 = arith.constant 0 : index
    %243 = vector.load %arg8[%c7_216, %c0_217, %c0_218] : memref<9x36x36xbf16, #tpu.memory_space<vmem>>, vector<1x36x36xbf16>
    %244 = vector.shape_cast %243 : vector<1x36x36xbf16> to vector<36x36xbf16>
    %cst_219 = arith.constant dense<0.000000e+00> : vector<32x36xf32>
    %245 = tpu.matmul %214, %244, %cst_219 {dimension_numbers = #tpu.dot_dimension_numbers<[1], [0], [0], [1], [0, 0, 1, 1], [], []>} : vector<32x36xbf16>, vector<36x36xbf16>, vector<32x36xf32> -> vector<32x36xf32>
    %246 = arith.truncf %245 : vector<32x36xf32> to vector<32x36xbf16>
    %c8_220 = arith.constant 8 : index
    %c0_221 = arith.constant 0 : index
    %c0_222 = arith.constant 0 : index
    %247 = vector.load %arg8[%c8_220, %c0_221, %c0_222] : memref<9x36x36xbf16, #tpu.memory_space<vmem>>, vector<1x36x36xbf16>
    %248 = vector.shape_cast %247 : vector<1x36x36xbf16> to vector<36x36xbf16>
    %cst_223 = arith.constant dense<0.000000e+00> : vector<32x36xf32>
    %249 = tpu.matmul %214, %248, %cst_223 {dimension_numbers = #tpu.dot_dimension_numbers<[1], [0], [0], [1], [0, 0, 1, 1], [], []>} : vector<32x36xbf16>, vector<36x36xbf16>, vector<32x36xf32> -> vector<32x36xf32>
    %250 = arith.truncf %249 : vector<32x36xf32> to vector<32x36xbf16>
    %251 = tpu.concatenate %218, %222, %226, %230, %234, %238, %242, %246, %250 in 0 : vector<32x36xbf16>, vector<32x36xbf16>, vector<32x36xbf16>, vector<32x36xbf16>, vector<32x36xbf16>, vector<32x36xbf16>, vector<32x36xbf16>, vector<32x36xbf16>, vector<32x36xbf16> -> vector<288x36xbf16>
    %c4_224 = arith.constant 4 : index
    %c0_225 = arith.constant 0 : index
    %c0_226 = arith.constant 0 : index
    %252 = vector.load %arg3[%c4_224, %c0_225, %c0_226] : memref<18x32x288xbf16, #tpu.memory_space<vmem>>, vector<1x32x288xbf16>
    %253 = vector.shape_cast %252 : vector<1x32x288xbf16> to vector<32x288xbf16>
    %cst_227 = arith.constant dense<0.000000e+00> : vector<32x36xf32>
    %254 = tpu.matmul %253, %251, %cst_227 {dimension_numbers = #tpu.dot_dimension_numbers<[1], [0], [0], [1], [0, 0, 1, 1], [], []>} : vector<32x288xbf16>, vector<288x36xbf16>, vector<32x36xf32> -> vector<32x36xf32>
    %c5_228 = arith.constant 5 : index
    %c0_229 = arith.constant 0 : index
    %c0_230 = arith.constant 0 : index
    %255 = vector.load %arg4[%c5_228, %c0_229, %c0_230] : memref<19x32x1xf32, #tpu.memory_space<vmem>>, vector<1x32x1xf32>
    %256 = vector.shape_cast %255 : vector<1x32x1xf32> to vector<32x1xf32>
    %257 = vector.broadcast %256 : vector<32x1xf32> to vector<32x36xf32>
    %258 = arith.mulf %254, %257 : vector<32x36xf32>
    %c5_231 = arith.constant 5 : index
    %c0_232 = arith.constant 0 : index
    %c0_233 = arith.constant 0 : index
    %259 = vector.load %arg5[%c5_231, %c0_232, %c0_233] : memref<19x32x1xf32, #tpu.memory_space<vmem>>, vector<1x32x1xf32>
    %260 = vector.shape_cast %259 : vector<1x32x1xf32> to vector<32x1xf32>
    %261 = vector.broadcast %260 : vector<32x1xf32> to vector<32x36xf32>
    %262 = arith.addf %258, %261 : vector<32x36xf32>
    %cst_234 = arith.constant 0.000000e+00 : f32
    %263 = vector.broadcast %cst_234 : f32 to vector<32x36xf32>
    %264 = arith.cmpf oge, %262, %263 : vector<32x36xf32>
    %cst_235 = arith.constant 0.00999999977 : f32
    %265 = vector.broadcast %cst_235 : f32 to vector<32x36xf32>
    %266 = arith.mulf %265, %262 : vector<32x36xf32>
    %267 = arith.select %264, %262, %266 : vector<32x36xi1>, vector<32x36xf32>
    %268 = arith.truncf %267 : vector<32x36xf32> to vector<32x36xbf16>
    %c0_236 = arith.constant 0 : index
    %c0_237 = arith.constant 0 : index
    %c0_238 = arith.constant 0 : index
    %269 = vector.load %arg9[%c0_236, %c0_237, %c0_238] : memref<9x36x4xbf16, #tpu.memory_space<vmem>>, vector<1x36x4xbf16>
    %270 = vector.shape_cast %269 : vector<1x36x4xbf16> to vector<36x4xbf16>
    %cst_239 = arith.constant dense<0.000000e+00> : vector<32x4xf32>
    %271 = tpu.matmul %268, %270, %cst_239 {dimension_numbers = #tpu.dot_dimension_numbers<[1], [0], [0], [1], [0, 0, 1, 1], [], []>} : vector<32x36xbf16>, vector<36x4xbf16>, vector<32x4xf32> -> vector<32x4xf32>
    %272 = arith.truncf %271 : vector<32x4xf32> to vector<32x4xbf16>
    %c1_240 = arith.constant 1 : index
    %c0_241 = arith.constant 0 : index
    %c0_242 = arith.constant 0 : index
    %273 = vector.load %arg9[%c1_240, %c0_241, %c0_242] : memref<9x36x4xbf16, #tpu.memory_space<vmem>>, vector<1x36x4xbf16>
    %274 = vector.shape_cast %273 : vector<1x36x4xbf16> to vector<36x4xbf16>
    %cst_243 = arith.constant dense<0.000000e+00> : vector<32x4xf32>
    %275 = tpu.matmul %268, %274, %cst_243 {dimension_numbers = #tpu.dot_dimension_numbers<[1], [0], [0], [1], [0, 0, 1, 1], [], []>} : vector<32x36xbf16>, vector<36x4xbf16>, vector<32x4xf32> -> vector<32x4xf32>
    %276 = arith.truncf %275 : vector<32x4xf32> to vector<32x4xbf16>
    %c2_244 = arith.constant 2 : index
    %c0_245 = arith.constant 0 : index
    %c0_246 = arith.constant 0 : index
    %277 = vector.load %arg9[%c2_244, %c0_245, %c0_246] : memref<9x36x4xbf16, #tpu.memory_space<vmem>>, vector<1x36x4xbf16>
    %278 = vector.shape_cast %277 : vector<1x36x4xbf16> to vector<36x4xbf16>
    %cst_247 = arith.constant dense<0.000000e+00> : vector<32x4xf32>
    %279 = tpu.matmul %268, %278, %cst_247 {dimension_numbers = #tpu.dot_dimension_numbers<[1], [0], [0], [1], [0, 0, 1, 1], [], []>} : vector<32x36xbf16>, vector<36x4xbf16>, vector<32x4xf32> -> vector<32x4xf32>
    %280 = arith.truncf %279 : vector<32x4xf32> to vector<32x4xbf16>
    %c3_248 = arith.constant 3 : index
    %c0_249 = arith.constant 0 : index
    %c0_250 = arith.constant 0 : index
    %281 = vector.load %arg9[%c3_248, %c0_249, %c0_250] : memref<9x36x4xbf16, #tpu.memory_space<vmem>>, vector<1x36x4xbf16>
    %282 = vector.shape_cast %281 : vector<1x36x4xbf16> to vector<36x4xbf16>
    %cst_251 = arith.constant dense<0.000000e+00> : vector<32x4xf32>
    %283 = tpu.matmul %268, %282, %cst_251 {dimension_numbers = #tpu.dot_dimension_numbers<[1], [0], [0], [1], [0, 0, 1, 1], [], []>} : vector<32x36xbf16>, vector<36x4xbf16>, vector<32x4xf32> -> vector<32x4xf32>
    %284 = arith.truncf %283 : vector<32x4xf32> to vector<32x4xbf16>
    %c4_252 = arith.constant 4 : index
    %c0_253 = arith.constant 0 : index
    %c0_254 = arith.constant 0 : index
    %285 = vector.load %arg9[%c4_252, %c0_253, %c0_254] : memref<9x36x4xbf16, #tpu.memory_space<vmem>>, vector<1x36x4xbf16>
    %286 = vector.shape_cast %285 : vector<1x36x4xbf16> to vector<36x4xbf16>
    %cst_255 = arith.constant dense<0.000000e+00> : vector<32x4xf32>
    %287 = tpu.matmul %268, %286, %cst_255 {dimension_numbers = #tpu.dot_dimension_numbers<[1], [0], [0], [1], [0, 0, 1, 1], [], []>} : vector<32x36xbf16>, vector<36x4xbf16>, vector<32x4xf32> -> vector<32x4xf32>
    %288 = arith.truncf %287 : vector<32x4xf32> to vector<32x4xbf16>
    %c5_256 = arith.constant 5 : index
    %c0_257 = arith.constant 0 : index
    %c0_258 = arith.constant 0 : index
    %289 = vector.load %arg9[%c5_256, %c0_257, %c0_258] : memref<9x36x4xbf16, #tpu.memory_space<vmem>>, vector<1x36x4xbf16>
    %290 = vector.shape_cast %289 : vector<1x36x4xbf16> to vector<36x4xbf16>
    %cst_259 = arith.constant dense<0.000000e+00> : vector<32x4xf32>
    %291 = tpu.matmul %268, %290, %cst_259 {dimension_numbers = #tpu.dot_dimension_numbers<[1], [0], [0], [1], [0, 0, 1, 1], [], []>} : vector<32x36xbf16>, vector<36x4xbf16>, vector<32x4xf32> -> vector<32x4xf32>
    %292 = arith.truncf %291 : vector<32x4xf32> to vector<32x4xbf16>
    %c6_260 = arith.constant 6 : index
    %c0_261 = arith.constant 0 : index
    %c0_262 = arith.constant 0 : index
    %293 = vector.load %arg9[%c6_260, %c0_261, %c0_262] : memref<9x36x4xbf16, #tpu.memory_space<vmem>>, vector<1x36x4xbf16>
    %294 = vector.shape_cast %293 : vector<1x36x4xbf16> to vector<36x4xbf16>
    %cst_263 = arith.constant dense<0.000000e+00> : vector<32x4xf32>
    %295 = tpu.matmul %268, %294, %cst_263 {dimension_numbers = #tpu.dot_dimension_numbers<[1], [0], [0], [1], [0, 0, 1, 1], [], []>} : vector<32x36xbf16>, vector<36x4xbf16>, vector<32x4xf32> -> vector<32x4xf32>
    %296 = arith.truncf %295 : vector<32x4xf32> to vector<32x4xbf16>
    %c7_264 = arith.constant 7 : index
    %c0_265 = arith.constant 0 : index
    %c0_266 = arith.constant 0 : index
    %297 = vector.load %arg9[%c7_264, %c0_265, %c0_266] : memref<9x36x4xbf16, #tpu.memory_space<vmem>>, vector<1x36x4xbf16>
    %298 = vector.shape_cast %297 : vector<1x36x4xbf16> to vector<36x4xbf16>
    %cst_267 = arith.constant dense<0.000000e+00> : vector<32x4xf32>
    %299 = tpu.matmul %268, %298, %cst_267 {dimension_numbers = #tpu.dot_dimension_numbers<[1], [0], [0], [1], [0, 0, 1, 1], [], []>} : vector<32x36xbf16>, vector<36x4xbf16>, vector<32x4xf32> -> vector<32x4xf32>
    %300 = arith.truncf %299 : vector<32x4xf32> to vector<32x4xbf16>
    %c8_268 = arith.constant 8 : index
    %c0_269 = arith.constant 0 : index
    %c0_270 = arith.constant 0 : index
    %301 = vector.load %arg9[%c8_268, %c0_269, %c0_270] : memref<9x36x4xbf16, #tpu.memory_space<vmem>>, vector<1x36x4xbf16>
    %302 = vector.shape_cast %301 : vector<1x36x4xbf16> to vector<36x4xbf16>
    %cst_271 = arith.constant dense<0.000000e+00> : vector<32x4xf32>
    %303 = tpu.matmul %268, %302, %cst_271 {dimension_numbers = #tpu.dot_dimension_numbers<[1], [0], [0], [1], [0, 0, 1, 1], [], []>} : vector<32x36xbf16>, vector<36x4xbf16>, vector<32x4xf32> -> vector<32x4xf32>
    %304 = arith.truncf %303 : vector<32x4xf32> to vector<32x4xbf16>
    %305 = tpu.concatenate %272, %276, %280, %284, %288, %292, %296, %300, %304 in 0 : vector<32x4xbf16>, vector<32x4xbf16>, vector<32x4xbf16>, vector<32x4xbf16>, vector<32x4xbf16>, vector<32x4xbf16>, vector<32x4xbf16>, vector<32x4xbf16>, vector<32x4xbf16> -> vector<288x4xbf16>
    %c5_272 = arith.constant 5 : index
    %c0_273 = arith.constant 0 : index
    %c0_274 = arith.constant 0 : index
    %306 = vector.load %arg3[%c5_272, %c0_273, %c0_274] : memref<18x32x288xbf16, #tpu.memory_space<vmem>>, vector<1x32x288xbf16>
    %307 = vector.shape_cast %306 : vector<1x32x288xbf16> to vector<32x288xbf16>
    %cst_275 = arith.constant dense<0.000000e+00> : vector<32x4xf32>
    %308 = tpu.matmul %307, %305, %cst_275 {dimension_numbers = #tpu.dot_dimension_numbers<[1], [0], [0], [1], [0, 0, 1, 1], [], []>} : vector<32x288xbf16>, vector<288x4xbf16>, vector<32x4xf32> -> vector<32x4xf32>
    %c6_276 = arith.constant 6 : index
    %c0_277 = arith.constant 0 : index
    %c0_278 = arith.constant 0 : index
    %309 = vector.load %arg4[%c6_276, %c0_277, %c0_278] : memref<19x32x1xf32, #tpu.memory_space<vmem>>, vector<1x32x1xf32>
    %310 = vector.shape_cast %309 : vector<1x32x1xf32> to vector<32x1xf32>
    %311 = vector.broadcast %310 : vector<32x1xf32> to vector<32x4xf32>
    %312 = arith.mulf %308, %311 : vector<32x4xf32>
    %c6_279 = arith.constant 6 : index
    %c0_280 = arith.constant 0 : index
    %c0_281 = arith.constant 0 : index
    %313 = vector.load %arg5[%c6_279, %c0_280, %c0_281] : memref<19x32x1xf32, #tpu.memory_space<vmem>>, vector<1x32x1xf32>
    %314 = vector.shape_cast %313 : vector<1x32x1xf32> to vector<32x1xf32>
    %315 = vector.broadcast %314 : vector<32x1xf32> to vector<32x4xf32>
    %316 = arith.addf %312, %315 : vector<32x4xf32>
    %317 = arith.addf %316, %213 : vector<32x4xf32>
    %318 = arith.truncf %317 : vector<32x4xf32> to vector<32x4xbf16>
    %c0_282 = arith.constant 0 : index
    %c0_283 = arith.constant 0 : index
    %c0_284 = arith.constant 0 : index
    %319 = vector.load %arg11[%c0_282, %c0_283, %c0_284] : memref<9x4x1xbf16, #tpu.memory_space<vmem>>, vector<1x4x1xbf16>
    %320 = vector.shape_cast %319 : vector<1x4x1xbf16> to vector<4x1xbf16>
    %cst_285 = arith.constant dense<0.000000e+00> : vector<32x1xf32>
    %321 = tpu.matmul %318, %320, %cst_285 {dimension_numbers = #tpu.dot_dimension_numbers<[1], [0], [0], [1], [0, 0, 1, 1], [], []>} : vector<32x4xbf16>, vector<4x1xbf16>, vector<32x1xf32> -> vector<32x1xf32>
    %322 = arith.truncf %321 : vector<32x1xf32> to vector<32x1xbf16>
    %c1_286 = arith.constant 1 : index
    %c0_287 = arith.constant 0 : index
    %c0_288 = arith.constant 0 : index
    %323 = vector.load %arg11[%c1_286, %c0_287, %c0_288] : memref<9x4x1xbf16, #tpu.memory_space<vmem>>, vector<1x4x1xbf16>
    %324 = vector.shape_cast %323 : vector<1x4x1xbf16> to vector<4x1xbf16>
    %cst_289 = arith.constant dense<0.000000e+00> : vector<32x1xf32>
    %325 = tpu.matmul %318, %324, %cst_289 {dimension_numbers = #tpu.dot_dimension_numbers<[1], [0], [0], [1], [0, 0, 1, 1], [], []>} : vector<32x4xbf16>, vector<4x1xbf16>, vector<32x1xf32> -> vector<32x1xf32>
    %326 = arith.truncf %325 : vector<32x1xf32> to vector<32x1xbf16>
    %c2_290 = arith.constant 2 : index
    %c0_291 = arith.constant 0 : index
    %c0_292 = arith.constant 0 : index
    %327 = vector.load %arg11[%c2_290, %c0_291, %c0_292] : memref<9x4x1xbf16, #tpu.memory_space<vmem>>, vector<1x4x1xbf16>
    %328 = vector.shape_cast %327 : vector<1x4x1xbf16> to vector<4x1xbf16>
    %cst_293 = arith.constant dense<0.000000e+00> : vector<32x1xf32>
    %329 = tpu.matmul %318, %328, %cst_293 {dimension_numbers = #tpu.dot_dimension_numbers<[1], [0], [0], [1], [0, 0, 1, 1], [], []>} : vector<32x4xbf16>, vector<4x1xbf16>, vector<32x1xf32> -> vector<32x1xf32>
    %330 = arith.truncf %329 : vector<32x1xf32> to vector<32x1xbf16>
    %c3_294 = arith.constant 3 : index
    %c0_295 = arith.constant 0 : index
    %c0_296 = arith.constant 0 : index
    %331 = vector.load %arg11[%c3_294, %c0_295, %c0_296] : memref<9x4x1xbf16, #tpu.memory_space<vmem>>, vector<1x4x1xbf16>
    %332 = vector.shape_cast %331 : vector<1x4x1xbf16> to vector<4x1xbf16>
    %cst_297 = arith.constant dense<0.000000e+00> : vector<32x1xf32>
    %333 = tpu.matmul %318, %332, %cst_297 {dimension_numbers = #tpu.dot_dimension_numbers<[1], [0], [0], [1], [0, 0, 1, 1], [], []>} : vector<32x4xbf16>, vector<4x1xbf16>, vector<32x1xf32> -> vector<32x1xf32>
    %334 = arith.truncf %333 : vector<32x1xf32> to vector<32x1xbf16>
    %c4_298 = arith.constant 4 : index
    %c0_299 = arith.constant 0 : index
    %c0_300 = arith.constant 0 : index
    %335 = vector.load %arg11[%c4_298, %c0_299, %c0_300] : memref<9x4x1xbf16, #tpu.memory_space<vmem>>, vector<1x4x1xbf16>
    %336 = vector.shape_cast %335 : vector<1x4x1xbf16> to vector<4x1xbf16>
    %cst_301 = arith.constant dense<0.000000e+00> : vector<32x1xf32>
    %337 = tpu.matmul %318, %336, %cst_301 {dimension_numbers = #tpu.dot_dimension_numbers<[1], [0], [0], [1], [0, 0, 1, 1], [], []>} : vector<32x4xbf16>, vector<4x1xbf16>, vector<32x1xf32> -> vector<32x1xf32>
    %338 = arith.truncf %337 : vector<32x1xf32> to vector<32x1xbf16>
    %c5_302 = arith.constant 5 : index
    %c0_303 = arith.constant 0 : index
    %c0_304 = arith.constant 0 : index
    %339 = vector.load %arg11[%c5_302, %c0_303, %c0_304] : memref<9x4x1xbf16, #tpu.memory_space<vmem>>, vector<1x4x1xbf16>
    %340 = vector.shape_cast %339 : vector<1x4x1xbf16> to vector<4x1xbf16>
    %cst_305 = arith.constant dense<0.000000e+00> : vector<32x1xf32>
    %341 = tpu.matmul %318, %340, %cst_305 {dimension_numbers = #tpu.dot_dimension_numbers<[1], [0], [0], [1], [0, 0, 1, 1], [], []>} : vector<32x4xbf16>, vector<4x1xbf16>, vector<32x1xf32> -> vector<32x1xf32>
    %342 = arith.truncf %341 : vector<32x1xf32> to vector<32x1xbf16>
    %c6_306 = arith.constant 6 : index
    %c0_307 = arith.constant 0 : index
    %c0_308 = arith.constant 0 : index
    %343 = vector.load %arg11[%c6_306, %c0_307, %c0_308] : memref<9x4x1xbf16, #tpu.memory_space<vmem>>, vector<1x4x1xbf16>
    %344 = vector.shape_cast %343 : vector<1x4x1xbf16> to vector<4x1xbf16>
    %cst_309 = arith.constant dense<0.000000e+00> : vector<32x1xf32>
    %345 = tpu.matmul %318, %344, %cst_309 {dimension_numbers = #tpu.dot_dimension_numbers<[1], [0], [0], [1], [0, 0, 1, 1], [], []>} : vector<32x4xbf16>, vector<4x1xbf16>, vector<32x1xf32> -> vector<32x1xf32>
    %346 = arith.truncf %345 : vector<32x1xf32> to vector<32x1xbf16>
    %c7_310 = arith.constant 7 : index
    %c0_311 = arith.constant 0 : index
    %c0_312 = arith.constant 0 : index
    %347 = vector.load %arg11[%c7_310, %c0_311, %c0_312] : memref<9x4x1xbf16, #tpu.memory_space<vmem>>, vector<1x4x1xbf16>
    %348 = vector.shape_cast %347 : vector<1x4x1xbf16> to vector<4x1xbf16>
    %cst_313 = arith.constant dense<0.000000e+00> : vector<32x1xf32>
    %349 = tpu.matmul %318, %348, %cst_313 {dimension_numbers = #tpu.dot_dimension_numbers<[1], [0], [0], [1], [0, 0, 1, 1], [], []>} : vector<32x4xbf16>, vector<4x1xbf16>, vector<32x1xf32> -> vector<32x1xf32>
    %350 = arith.truncf %349 : vector<32x1xf32> to vector<32x1xbf16>
    %c8_314 = arith.constant 8 : index
    %c0_315 = arith.constant 0 : index
    %c0_316 = arith.constant 0 : index
    %351 = vector.load %arg11[%c8_314, %c0_315, %c0_316] : memref<9x4x1xbf16, #tpu.memory_space<vmem>>, vector<1x4x1xbf16>
    %352 = vector.shape_cast %351 : vector<1x4x1xbf16> to vector<4x1xbf16>
    %cst_317 = arith.constant dense<0.000000e+00> : vector<32x1xf32>
    %353 = tpu.matmul %318, %352, %cst_317 {dimension_numbers = #tpu.dot_dimension_numbers<[1], [0], [0], [1], [0, 0, 1, 1], [], []>} : vector<32x4xbf16>, vector<4x1xbf16>, vector<32x1xf32> -> vector<32x1xf32>
    %354 = arith.truncf %353 : vector<32x1xf32> to vector<32x1xbf16>
    %355 = tpu.concatenate %322, %326, %330, %334, %338, %342, %346, %350, %354 in 0 : vector<32x1xbf16>, vector<32x1xbf16>, vector<32x1xbf16>, vector<32x1xbf16>, vector<32x1xbf16>, vector<32x1xbf16>, vector<32x1xbf16>, vector<32x1xbf16>, vector<32x1xbf16> -> vector<288x1xbf16>
    %c6_318 = arith.constant 6 : index
    %c0_319 = arith.constant 0 : index
    %c0_320 = arith.constant 0 : index
    %356 = vector.load %arg3[%c6_318, %c0_319, %c0_320] : memref<18x32x288xbf16, #tpu.memory_space<vmem>>, vector<1x32x288xbf16>
    %357 = vector.shape_cast %356 : vector<1x32x288xbf16> to vector<32x288xbf16>
    %cst_321 = arith.constant dense<0.000000e+00> : vector<32x1xf32>
    %358 = tpu.matmul %357, %355, %cst_321 {dimension_numbers = #tpu.dot_dimension_numbers<[1], [0], [0], [1], [0, 0, 1, 1], [], []>} : vector<32x288xbf16>, vector<288x1xbf16>, vector<32x1xf32> -> vector<32x1xf32>
    %c7_322 = arith.constant 7 : index
    %c0_323 = arith.constant 0 : index
    %c0_324 = arith.constant 0 : index
    %359 = vector.load %arg4[%c7_322, %c0_323, %c0_324] : memref<19x32x1xf32, #tpu.memory_space<vmem>>, vector<1x32x1xf32>
    %360 = vector.shape_cast %359 : vector<1x32x1xf32> to vector<32x1xf32>
    %361 = arith.mulf %358, %360 : vector<32x1xf32>
    %c7_325 = arith.constant 7 : index
    %c0_326 = arith.constant 0 : index
    %c0_327 = arith.constant 0 : index
    %362 = vector.load %arg5[%c7_325, %c0_326, %c0_327] : memref<19x32x1xf32, #tpu.memory_space<vmem>>, vector<1x32x1xf32>
    %363 = vector.shape_cast %362 : vector<1x32x1xf32> to vector<32x1xf32>
    %364 = arith.addf %361, %363 : vector<32x1xf32>
    %365 = arith.truncf %317 : vector<32x4xf32> to vector<32x4xbf16>
    %c0_328 = arith.constant 0 : index
    %c0_329 = arith.constant 0 : index
    %c0_330 = arith.constant 0 : index
    %366 = vector.load %arg10[%c0_328, %c0_329, %c0_330] : memref<9x4x4xbf16, #tpu.memory_space<vmem>>, vector<1x4x4xbf16>
    %367 = vector.shape_cast %366 : vector<1x4x4xbf16> to vector<4x4xbf16>
    %cst_331 = arith.constant dense<0.000000e+00> : vector<32x4xf32>
    %368 = tpu.matmul %365, %367, %cst_331 {dimension_numbers = #tpu.dot_dimension_numbers<[1], [0], [0], [1], [0, 0, 1, 1], [], []>} : vector<32x4xbf16>, vector<4x4xbf16>, vector<32x4xf32> -> vector<32x4xf32>
    %369 = arith.truncf %368 : vector<32x4xf32> to vector<32x4xbf16>
    %c1_332 = arith.constant 1 : index
    %c0_333 = arith.constant 0 : index
    %c0_334 = arith.constant 0 : index
    %370 = vector.load %arg10[%c1_332, %c0_333, %c0_334] : memref<9x4x4xbf16, #tpu.memory_space<vmem>>, vector<1x4x4xbf16>
    %371 = vector.shape_cast %370 : vector<1x4x4xbf16> to vector<4x4xbf16>
    %cst_335 = arith.constant dense<0.000000e+00> : vector<32x4xf32>
    %372 = tpu.matmul %365, %371, %cst_335 {dimension_numbers = #tpu.dot_dimension_numbers<[1], [0], [0], [1], [0, 0, 1, 1], [], []>} : vector<32x4xbf16>, vector<4x4xbf16>, vector<32x4xf32> -> vector<32x4xf32>
    %373 = arith.truncf %372 : vector<32x4xf32> to vector<32x4xbf16>
    %c2_336 = arith.constant 2 : index
    %c0_337 = arith.constant 0 : index
    %c0_338 = arith.constant 0 : index
    %374 = vector.load %arg10[%c2_336, %c0_337, %c0_338] : memref<9x4x4xbf16, #tpu.memory_space<vmem>>, vector<1x4x4xbf16>
    %375 = vector.shape_cast %374 : vector<1x4x4xbf16> to vector<4x4xbf16>
    %cst_339 = arith.constant dense<0.000000e+00> : vector<32x4xf32>
    %376 = tpu.matmul %365, %375, %cst_339 {dimension_numbers = #tpu.dot_dimension_numbers<[1], [0], [0], [1], [0, 0, 1, 1], [], []>} : vector<32x4xbf16>, vector<4x4xbf16>, vector<32x4xf32> -> vector<32x4xf32>
    %377 = arith.truncf %376 : vector<32x4xf32> to vector<32x4xbf16>
    %c3_340 = arith.constant 3 : index
    %c0_341 = arith.constant 0 : index
    %c0_342 = arith.constant 0 : index
    %378 = vector.load %arg10[%c3_340, %c0_341, %c0_342] : memref<9x4x4xbf16, #tpu.memory_space<vmem>>, vector<1x4x4xbf16>
    %379 = vector.shape_cast %378 : vector<1x4x4xbf16> to vector<4x4xbf16>
    %cst_343 = arith.constant dense<0.000000e+00> : vector<32x4xf32>
    %380 = tpu.matmul %365, %379, %cst_343 {dimension_numbers = #tpu.dot_dimension_numbers<[1], [0], [0], [1], [0, 0, 1, 1], [], []>} : vector<32x4xbf16>, vector<4x4xbf16>, vector<32x4xf32> -> vector<32x4xf32>
    %381 = arith.truncf %380 : vector<32x4xf32> to vector<32x4xbf16>
    %c4_344 = arith.constant 4 : index
    %c0_345 = arith.constant 0 : index
    %c0_346 = arith.constant 0 : index
    %382 = vector.load %arg10[%c4_344, %c0_345, %c0_346] : memref<9x4x4xbf16, #tpu.memory_space<vmem>>, vector<1x4x4xbf16>
    %383 = vector.shape_cast %382 : vector<1x4x4xbf16> to vector<4x4xbf16>
    %cst_347 = arith.constant dense<0.000000e+00> : vector<32x4xf32>
    %384 = tpu.matmul %365, %383, %cst_347 {dimension_numbers = #tpu.dot_dimension_numbers<[1], [0], [0], [1], [0, 0, 1, 1], [], []>} : vector<32x4xbf16>, vector<4x4xbf16>, vector<32x4xf32> -> vector<32x4xf32>
    %385 = arith.truncf %384 : vector<32x4xf32> to vector<32x4xbf16>
    %c5_348 = arith.constant 5 : index
    %c0_349 = arith.constant 0 : index
    %c0_350 = arith.constant 0 : index
    %386 = vector.load %arg10[%c5_348, %c0_349, %c0_350] : memref<9x4x4xbf16, #tpu.memory_space<vmem>>, vector<1x4x4xbf16>
    %387 = vector.shape_cast %386 : vector<1x4x4xbf16> to vector<4x4xbf16>
    %cst_351 = arith.constant dense<0.000000e+00> : vector<32x4xf32>
    %388 = tpu.matmul %365, %387, %cst_351 {dimension_numbers = #tpu.dot_dimension_numbers<[1], [0], [0], [1], [0, 0, 1, 1], [], []>} : vector<32x4xbf16>, vector<4x4xbf16>, vector<32x4xf32> -> vector<32x4xf32>
    %389 = arith.truncf %388 : vector<32x4xf32> to vector<32x4xbf16>
    %c6_352 = arith.constant 6 : index
    %c0_353 = arith.constant 0 : index
    %c0_354 = arith.constant 0 : index
    %390 = vector.load %arg10[%c6_352, %c0_353, %c0_354] : memref<9x4x4xbf16, #tpu.memory_space<vmem>>, vector<1x4x4xbf16>
    %391 = vector.shape_cast %390 : vector<1x4x4xbf16> to vector<4x4xbf16>
    %cst_355 = arith.constant dense<0.000000e+00> : vector<32x4xf32>
    %392 = tpu.matmul %365, %391, %cst_355 {dimension_numbers = #tpu.dot_dimension_numbers<[1], [0], [0], [1], [0, 0, 1, 1], [], []>} : vector<32x4xbf16>, vector<4x4xbf16>, vector<32x4xf32> -> vector<32x4xf32>
    %393 = arith.truncf %392 : vector<32x4xf32> to vector<32x4xbf16>
    %c7_356 = arith.constant 7 : index
    %c0_357 = arith.constant 0 : index
    %c0_358 = arith.constant 0 : index
    %394 = vector.load %arg10[%c7_356, %c0_357, %c0_358] : memref<9x4x4xbf16, #tpu.memory_space<vmem>>, vector<1x4x4xbf16>
    %395 = vector.shape_cast %394 : vector<1x4x4xbf16> to vector<4x4xbf16>
    %cst_359 = arith.constant dense<0.000000e+00> : vector<32x4xf32>
    %396 = tpu.matmul %365, %395, %cst_359 {dimension_numbers = #tpu.dot_dimension_numbers<[1], [0], [0], [1], [0, 0, 1, 1], [], []>} : vector<32x4xbf16>, vector<4x4xbf16>, vector<32x4xf32> -> vector<32x4xf32>
    %397 = arith.truncf %396 : vector<32x4xf32> to vector<32x4xbf16>
    %c8_360 = arith.constant 8 : index
    %c0_361 = arith.constant 0 : index
    %c0_362 = arith.constant 0 : index
    %398 = vector.load %arg10[%c8_360, %c0_361, %c0_362] : memref<9x4x4xbf16, #tpu.memory_space<vmem>>, vector<1x4x4xbf16>
    %399 = vector.shape_cast %398 : vector<1x4x4xbf16> to vector<4x4xbf16>
    %cst_363 = arith.constant dense<0.000000e+00> : vector<32x4xf32>
    %400 = tpu.matmul %365, %399, %cst_363 {dimension_numbers = #tpu.dot_dimension_numbers<[1], [0], [0], [1], [0, 0, 1, 1], [], []>} : vector<32x4xbf16>, vector<4x4xbf16>, vector<32x4xf32> -> vector<32x4xf32>
    %401 = arith.truncf %400 : vector<32x4xf32> to vector<32x4xbf16>
    %402 = tpu.concatenate %369, %373, %377, %381, %385, %389, %393, %397, %401 in 0 : vector<32x4xbf16>, vector<32x4xbf16>, vector<32x4xbf16>, vector<32x4xbf16>, vector<32x4xbf16>, vector<32x4xbf16>, vector<32x4xbf16>, vector<32x4xbf16>, vector<32x4xbf16> -> vector<288x4xbf16>
    %c7_364 = arith.constant 7 : index
    %c0_365 = arith.constant 0 : index
    %c0_366 = arith.constant 0 : index
    %403 = vector.load %arg3[%c7_364, %c0_365, %c0_366] : memref<18x32x288xbf16, #tpu.memory_space<vmem>>, vector<1x32x288xbf16>
    %404 = vector.shape_cast %403 : vector<1x32x288xbf16> to vector<32x288xbf16>
    %cst_367 = arith.constant dense<0.000000e+00> : vector<32x4xf32>
    %405 = tpu.matmul %404, %402, %cst_367 {dimension_numbers = #tpu.dot_dimension_numbers<[1], [0], [0], [1], [0, 0, 1, 1], [], []>} : vector<32x288xbf16>, vector<288x4xbf16>, vector<32x4xf32> -> vector<32x4xf32>
    %c8_368 = arith.constant 8 : index
    %c0_369 = arith.constant 0 : index
    %c0_370 = arith.constant 0 : index
    %406 = vector.load %arg4[%c8_368, %c0_369, %c0_370] : memref<19x32x1xf32, #tpu.memory_space<vmem>>, vector<1x32x1xf32>
    %407 = vector.shape_cast %406 : vector<1x32x1xf32> to vector<32x1xf32>
    %408 = vector.broadcast %407 : vector<32x1xf32> to vector<32x4xf32>
    %409 = arith.mulf %405, %408 : vector<32x4xf32>
    %c8_371 = arith.constant 8 : index
    %c0_372 = arith.constant 0 : index
    %c0_373 = arith.constant 0 : index
    %410 = vector.load %arg5[%c8_371, %c0_372, %c0_373] : memref<19x32x1xf32, #tpu.memory_space<vmem>>, vector<1x32x1xf32>
    %411 = vector.shape_cast %410 : vector<1x32x1xf32> to vector<32x1xf32>
    %412 = vector.broadcast %411 : vector<32x1xf32> to vector<32x4xf32>
    %413 = arith.addf %409, %412 : vector<32x4xf32>
    %cst_374 = arith.constant 0.000000e+00 : f32
    %414 = vector.broadcast %cst_374 : f32 to vector<32x4xf32>
    %415 = arith.cmpf oge, %413, %414 : vector<32x4xf32>
    %cst_375 = arith.constant 0.00999999977 : f32
    %416 = vector.broadcast %cst_375 : f32 to vector<32x4xf32>
    %417 = arith.mulf %416, %413 : vector<32x4xf32>
    %418 = arith.select %415, %413, %417 : vector<32x4xi1>, vector<32x4xf32>
    %419 = arith.truncf %418 : vector<32x4xf32> to vector<32x4xbf16>
    %c0_376 = arith.constant 0 : index
    %c0_377 = arith.constant 0 : index
    %c0_378 = arith.constant 0 : index
    %420 = vector.load %arg11[%c0_376, %c0_377, %c0_378] : memref<9x4x1xbf16, #tpu.memory_space<vmem>>, vector<1x4x1xbf16>
    %421 = vector.shape_cast %420 : vector<1x4x1xbf16> to vector<4x1xbf16>
    %cst_379 = arith.constant dense<0.000000e+00> : vector<32x1xf32>
    %422 = tpu.matmul %419, %421, %cst_379 {dimension_numbers = #tpu.dot_dimension_numbers<[1], [0], [0], [1], [0, 0, 1, 1], [], []>} : vector<32x4xbf16>, vector<4x1xbf16>, vector<32x1xf32> -> vector<32x1xf32>
    %423 = arith.truncf %422 : vector<32x1xf32> to vector<32x1xbf16>
    %c1_380 = arith.constant 1 : index
    %c0_381 = arith.constant 0 : index
    %c0_382 = arith.constant 0 : index
    %424 = vector.load %arg11[%c1_380, %c0_381, %c0_382] : memref<9x4x1xbf16, #tpu.memory_space<vmem>>, vector<1x4x1xbf16>
    %425 = vector.shape_cast %424 : vector<1x4x1xbf16> to vector<4x1xbf16>
    %cst_383 = arith.constant dense<0.000000e+00> : vector<32x1xf32>
    %426 = tpu.matmul %419, %425, %cst_383 {dimension_numbers = #tpu.dot_dimension_numbers<[1], [0], [0], [1], [0, 0, 1, 1], [], []>} : vector<32x4xbf16>, vector<4x1xbf16>, vector<32x1xf32> -> vector<32x1xf32>
    %427 = arith.truncf %426 : vector<32x1xf32> to vector<32x1xbf16>
    %c2_384 = arith.constant 2 : index
    %c0_385 = arith.constant 0 : index
    %c0_386 = arith.constant 0 : index
    %428 = vector.load %arg11[%c2_384, %c0_385, %c0_386] : memref<9x4x1xbf16, #tpu.memory_space<vmem>>, vector<1x4x1xbf16>
    %429 = vector.shape_cast %428 : vector<1x4x1xbf16> to vector<4x1xbf16>
    %cst_387 = arith.constant dense<0.000000e+00> : vector<32x1xf32>
    %430 = tpu.matmul %419, %429, %cst_387 {dimension_numbers = #tpu.dot_dimension_numbers<[1], [0], [0], [1], [0, 0, 1, 1], [], []>} : vector<32x4xbf16>, vector<4x1xbf16>, vector<32x1xf32> -> vector<32x1xf32>
    %431 = arith.truncf %430 : vector<32x1xf32> to vector<32x1xbf16>
    %c3_388 = arith.constant 3 : index
    %c0_389 = arith.constant 0 : index
    %c0_390 = arith.constant 0 : index
    %432 = vector.load %arg11[%c3_388, %c0_389, %c0_390] : memref<9x4x1xbf16, #tpu.memory_space<vmem>>, vector<1x4x1xbf16>
    %433 = vector.shape_cast %432 : vector<1x4x1xbf16> to vector<4x1xbf16>
    %cst_391 = arith.constant dense<0.000000e+00> : vector<32x1xf32>
    %434 = tpu.matmul %419, %433, %cst_391 {dimension_numbers = #tpu.dot_dimension_numbers<[1], [0], [0], [1], [0, 0, 1, 1], [], []>} : vector<32x4xbf16>, vector<4x1xbf16>, vector<32x1xf32> -> vector<32x1xf32>
    %435 = arith.truncf %434 : vector<32x1xf32> to vector<32x1xbf16>
    %c4_392 = arith.constant 4 : index
    %c0_393 = arith.constant 0 : index
    %c0_394 = arith.constant 0 : index
    %436 = vector.load %arg11[%c4_392, %c0_393, %c0_394] : memref<9x4x1xbf16, #tpu.memory_space<vmem>>, vector<1x4x1xbf16>
    %437 = vector.shape_cast %436 : vector<1x4x1xbf16> to vector<4x1xbf16>
    %cst_395 = arith.constant dense<0.000000e+00> : vector<32x1xf32>
    %438 = tpu.matmul %419, %437, %cst_395 {dimension_numbers = #tpu.dot_dimension_numbers<[1], [0], [0], [1], [0, 0, 1, 1], [], []>} : vector<32x4xbf16>, vector<4x1xbf16>, vector<32x1xf32> -> vector<32x1xf32>
    %439 = arith.truncf %438 : vector<32x1xf32> to vector<32x1xbf16>
    %c5_396 = arith.constant 5 : index
    %c0_397 = arith.constant 0 : index
    %c0_398 = arith.constant 0 : index
    %440 = vector.load %arg11[%c5_396, %c0_397, %c0_398] : memref<9x4x1xbf16, #tpu.memory_space<vmem>>, vector<1x4x1xbf16>
    %441 = vector.shape_cast %440 : vector<1x4x1xbf16> to vector<4x1xbf16>
    %cst_399 = arith.constant dense<0.000000e+00> : vector<32x1xf32>
    %442 = tpu.matmul %419, %441, %cst_399 {dimension_numbers = #tpu.dot_dimension_numbers<[1], [0], [0], [1], [0, 0, 1, 1], [], []>} : vector<32x4xbf16>, vector<4x1xbf16>, vector<32x1xf32> -> vector<32x1xf32>
    %443 = arith.truncf %442 : vector<32x1xf32> to vector<32x1xbf16>
    %c6_400 = arith.constant 6 : index
    %c0_401 = arith.constant 0 : index
    %c0_402 = arith.constant 0 : index
    %444 = vector.load %arg11[%c6_400, %c0_401, %c0_402] : memref<9x4x1xbf16, #tpu.memory_space<vmem>>, vector<1x4x1xbf16>
    %445 = vector.shape_cast %444 : vector<1x4x1xbf16> to vector<4x1xbf16>
    %cst_403 = arith.constant dense<0.000000e+00> : vector<32x1xf32>
    %446 = tpu.matmul %419, %445, %cst_403 {dimension_numbers = #tpu.dot_dimension_numbers<[1], [0], [0], [1], [0, 0, 1, 1], [], []>} : vector<32x4xbf16>, vector<4x1xbf16>, vector<32x1xf32> -> vector<32x1xf32>
    %447 = arith.truncf %446 : vector<32x1xf32> to vector<32x1xbf16>
    %c7_404 = arith.constant 7 : index
    %c0_405 = arith.constant 0 : index
    %c0_406 = arith.constant 0 : index
    %448 = vector.load %arg11[%c7_404, %c0_405, %c0_406] : memref<9x4x1xbf16, #tpu.memory_space<vmem>>, vector<1x4x1xbf16>
    %449 = vector.shape_cast %448 : vector<1x4x1xbf16> to vector<4x1xbf16>
    %cst_407 = arith.constant dense<0.000000e+00> : vector<32x1xf32>
    %450 = tpu.matmul %419, %449, %cst_407 {dimension_numbers = #tpu.dot_dimension_numbers<[1], [0], [0], [1], [0, 0, 1, 1], [], []>} : vector<32x4xbf16>, vector<4x1xbf16>, vector<32x1xf32> -> vector<32x1xf32>
    %451 = arith.truncf %450 : vector<32x1xf32> to vector<32x1xbf16>
    %c8_408 = arith.constant 8 : index
    %c0_409 = arith.constant 0 : index
    %c0_410 = arith.constant 0 : index
    %452 = vector.load %arg11[%c8_408, %c0_409, %c0_410] : memref<9x4x1xbf16, #tpu.memory_space<vmem>>, vector<1x4x1xbf16>
    %453 = vector.shape_cast %452 : vector<1x4x1xbf16> to vector<4x1xbf16>
    %cst_411 = arith.constant dense<0.000000e+00> : vector<32x1xf32>
    %454 = tpu.matmul %419, %453, %cst_411 {dimension_numbers = #tpu.dot_dimension_numbers<[1], [0], [0], [1], [0, 0, 1, 1], [], []>} : vector<32x4xbf16>, vector<4x1xbf16>, vector<32x1xf32> -> vector<32x1xf32>
    %455 = arith.truncf %454 : vector<32x1xf32> to vector<32x1xbf16>
    %456 = tpu.concatenate %423, %427, %431, %435, %439, %443, %447, %451, %455 in 0 : vector<32x1xbf16>, vector<32x1xbf16>, vector<32x1xbf16>, vector<32x1xbf16>, vector<32x1xbf16>, vector<32x1xbf16>, vector<32x1xbf16>, vector<32x1xbf16>, vector<32x1xbf16> -> vector<288x1xbf16>
    %c8_412 = arith.constant 8 : index
    %c0_413 = arith.constant 0 : index
    %c0_414 = arith.constant 0 : index
    %457 = vector.load %arg3[%c8_412, %c0_413, %c0_414] : memref<18x32x288xbf16, #tpu.memory_space<vmem>>, vector<1x32x288xbf16>
    %458 = vector.shape_cast %457 : vector<1x32x288xbf16> to vector<32x288xbf16>
    %cst_415 = arith.constant dense<0.000000e+00> : vector<32x1xf32>
    %459 = tpu.matmul %458, %456, %cst_415 {dimension_numbers = #tpu.dot_dimension_numbers<[1], [0], [0], [1], [0, 0, 1, 1], [], []>} : vector<32x288xbf16>, vector<288x1xbf16>, vector<32x1xf32> -> vector<32x1xf32>
    %c9 = arith.constant 9 : index
    %c0_416 = arith.constant 0 : index
    %c0_417 = arith.constant 0 : index
    %460 = vector.load %arg4[%c9, %c0_416, %c0_417] : memref<19x32x1xf32, #tpu.memory_space<vmem>>, vector<1x32x1xf32>
    %461 = vector.shape_cast %460 : vector<1x32x1xf32> to vector<32x1xf32>
    %462 = arith.mulf %459, %461 : vector<32x1xf32>
    %c9_418 = arith.constant 9 : index
    %c0_419 = arith.constant 0 : index
    %c0_420 = arith.constant 0 : index
    %463 = vector.load %arg5[%c9_418, %c0_419, %c0_420] : memref<19x32x1xf32, #tpu.memory_space<vmem>>, vector<1x32x1xf32>
    %464 = vector.shape_cast %463 : vector<1x32x1xf32> to vector<32x1xf32>
    %465 = arith.addf %462, %464 : vector<32x1xf32>
    %466 = arith.addf %465, %364 : vector<32x1xf32>
    %467 = arith.truncf %466 : vector<32x1xf32> to vector<32x1xbf16>
    %cst_421 = arith.constant 0.000000e+00 : bf16
    %468 = vector.broadcast %cst_421 : bf16 to vector<32x1xbf16>
    %469 = tpu.concatenate %468, %468, %468, %468, %467, %468, %468, %468, %468 in 0 : vector<32x1xbf16>, vector<32x1xbf16>, vector<32x1xbf16>, vector<32x1xbf16>, vector<32x1xbf16>, vector<32x1xbf16>, vector<32x1xbf16>, vector<32x1xbf16>, vector<32x1xbf16> -> vector<288x1xbf16>
    %c9_422 = arith.constant 9 : index
    %c0_423 = arith.constant 0 : index
    %c0_424 = arith.constant 0 : index
    %470 = vector.load %arg3[%c9_422, %c0_423, %c0_424] : memref<18x32x288xbf16, #tpu.memory_space<vmem>>, vector<1x32x288xbf16>
    %471 = vector.shape_cast %470 : vector<1x32x288xbf16> to vector<32x288xbf16>
    %cst_425 = arith.constant dense<0.000000e+00> : vector<32x1xf32>
    %472 = tpu.matmul %471, %469, %cst_425 {dimension_numbers = #tpu.dot_dimension_numbers<[1], [0], [0], [1], [0, 0, 1, 1], [], []>} : vector<32x288xbf16>, vector<288x1xbf16>, vector<32x1xf32> -> vector<32x1xf32>
    %c10 = arith.constant 10 : index
    %c0_426 = arith.constant 0 : index
    %c0_427 = arith.constant 0 : index
    %473 = vector.load %arg4[%c10, %c0_426, %c0_427] : memref<19x32x1xf32, #tpu.memory_space<vmem>>, vector<1x32x1xf32>
    %474 = vector.shape_cast %473 : vector<1x32x1xf32> to vector<32x1xf32>
    %475 = arith.mulf %472, %474 : vector<32x1xf32>
    %c10_428 = arith.constant 10 : index
    %c0_429 = arith.constant 0 : index
    %c0_430 = arith.constant 0 : index
    %476 = vector.load %arg5[%c10_428, %c0_429, %c0_430] : memref<19x32x1xf32, #tpu.memory_space<vmem>>, vector<1x32x1xf32>
    %477 = vector.shape_cast %476 : vector<1x32x1xf32> to vector<32x1xf32>
    %478 = arith.addf %475, %477 : vector<32x1xf32>
    %479 = arith.truncf %466 : vector<32x1xf32> to vector<32x1xbf16>
    %cst_431 = arith.constant 0.000000e+00 : bf16
    %480 = vector.broadcast %cst_431 : bf16 to vector<32x1xbf16>
    %481 = tpu.concatenate %480, %480, %480, %480, %479, %480, %480, %480, %480 in 0 : vector<32x1xbf16>, vector<32x1xbf16>, vector<32x1xbf16>, vector<32x1xbf16>, vector<32x1xbf16>, vector<32x1xbf16>, vector<32x1xbf16>, vector<32x1xbf16>, vector<32x1xbf16> -> vector<288x1xbf16>
    %c10_432 = arith.constant 10 : index
    %c0_433 = arith.constant 0 : index
    %c0_434 = arith.constant 0 : index
    %482 = vector.load %arg3[%c10_432, %c0_433, %c0_434] : memref<18x32x288xbf16, #tpu.memory_space<vmem>>, vector<1x32x288xbf16>
    %483 = vector.shape_cast %482 : vector<1x32x288xbf16> to vector<32x288xbf16>
    %cst_435 = arith.constant dense<0.000000e+00> : vector<32x1xf32>
    %484 = tpu.matmul %483, %481, %cst_435 {dimension_numbers = #tpu.dot_dimension_numbers<[1], [0], [0], [1], [0, 0, 1, 1], [], []>} : vector<32x288xbf16>, vector<288x1xbf16>, vector<32x1xf32> -> vector<32x1xf32>
    %c11 = arith.constant 11 : index
    %c0_436 = arith.constant 0 : index
    %c0_437 = arith.constant 0 : index
    %485 = vector.load %arg4[%c11, %c0_436, %c0_437] : memref<19x32x1xf32, #tpu.memory_space<vmem>>, vector<1x32x1xf32>
    %486 = vector.shape_cast %485 : vector<1x32x1xf32> to vector<32x1xf32>
    %487 = arith.mulf %484, %486 : vector<32x1xf32>
    %c11_438 = arith.constant 11 : index
    %c0_439 = arith.constant 0 : index
    %c0_440 = arith.constant 0 : index
    %488 = vector.load %arg5[%c11_438, %c0_439, %c0_440] : memref<19x32x1xf32, #tpu.memory_space<vmem>>, vector<1x32x1xf32>
    %489 = vector.shape_cast %488 : vector<1x32x1xf32> to vector<32x1xf32>
    %490 = arith.addf %487, %489 : vector<32x1xf32>
    %cst_441 = arith.constant 0.000000e+00 : f32
    %491 = vector.broadcast %cst_441 : f32 to vector<32x1xf32>
    %492 = arith.cmpf oge, %490, %491 : vector<32x1xf32>
    %cst_442 = arith.constant 0.00999999977 : f32
    %493 = vector.broadcast %cst_442 : f32 to vector<32x1xf32>
    %494 = arith.mulf %493, %490 : vector<32x1xf32>
    %495 = arith.select %492, %490, %494 : vector<32x1xi1>, vector<32x1xf32>
    %496 = arith.truncf %495 : vector<32x1xf32> to vector<32x1xbf16>
    %cst_443 = arith.constant 0.000000e+00 : bf16
    %497 = vector.broadcast %cst_443 : bf16 to vector<32x1xbf16>
    %498 = tpu.concatenate %497, %497, %497, %497, %496, %497, %497, %497, %497 in 0 : vector<32x1xbf16>, vector<32x1xbf16>, vector<32x1xbf16>, vector<32x1xbf16>, vector<32x1xbf16>, vector<32x1xbf16>, vector<32x1xbf16>, vector<32x1xbf16>, vector<32x1xbf16> -> vector<288x1xbf16>
    %c11_444 = arith.constant 11 : index
    %c0_445 = arith.constant 0 : index
    %c0_446 = arith.constant 0 : index
    %499 = vector.load %arg3[%c11_444, %c0_445, %c0_446] : memref<18x32x288xbf16, #tpu.memory_space<vmem>>, vector<1x32x288xbf16>
    %500 = vector.shape_cast %499 : vector<1x32x288xbf16> to vector<32x288xbf16>
    %cst_447 = arith.constant dense<0.000000e+00> : vector<32x1xf32>
    %501 = tpu.matmul %500, %498, %cst_447 {dimension_numbers = #tpu.dot_dimension_numbers<[1], [0], [0], [1], [0, 0, 1, 1], [], []>} : vector<32x288xbf16>, vector<288x1xbf16>, vector<32x1xf32> -> vector<32x1xf32>
    %c12 = arith.constant 12 : index
    %c0_448 = arith.constant 0 : index
    %c0_449 = arith.constant 0 : index
    %502 = vector.load %arg4[%c12, %c0_448, %c0_449] : memref<19x32x1xf32, #tpu.memory_space<vmem>>, vector<1x32x1xf32>
    %503 = vector.shape_cast %502 : vector<1x32x1xf32> to vector<32x1xf32>
    %504 = arith.mulf %501, %503 : vector<32x1xf32>
    %c12_450 = arith.constant 12 : index
    %c0_451 = arith.constant 0 : index
    %c0_452 = arith.constant 0 : index
    %505 = vector.load %arg5[%c12_450, %c0_451, %c0_452] : memref<19x32x1xf32, #tpu.memory_space<vmem>>, vector<1x32x1xf32>
    %506 = vector.shape_cast %505 : vector<1x32x1xf32> to vector<32x1xf32>
    %507 = arith.addf %504, %506 : vector<32x1xf32>
    %508 = arith.addf %507, %478 : vector<32x1xf32>
    %509 = arith.truncf %508 : vector<32x1xf32> to vector<32x1xbf16>
    %cst_453 = arith.constant 0.000000e+00 : bf16
    %510 = vector.broadcast %cst_453 : bf16 to vector<32x1xbf16>
    %511 = tpu.concatenate %510, %510, %510, %510, %509, %510, %510, %510, %510 in 0 : vector<32x1xbf16>, vector<32x1xbf16>, vector<32x1xbf16>, vector<32x1xbf16>, vector<32x1xbf16>, vector<32x1xbf16>, vector<32x1xbf16>, vector<32x1xbf16>, vector<32x1xbf16> -> vector<288x1xbf16>
    %c12_454 = arith.constant 12 : index
    %c0_455 = arith.constant 0 : index
    %c0_456 = arith.constant 0 : index
    %512 = vector.load %arg3[%c12_454, %c0_455, %c0_456] : memref<18x32x288xbf16, #tpu.memory_space<vmem>>, vector<1x32x288xbf16>
    %513 = vector.shape_cast %512 : vector<1x32x288xbf16> to vector<32x288xbf16>
    %cst_457 = arith.constant dense<0.000000e+00> : vector<32x1xf32>
    %514 = tpu.matmul %513, %511, %cst_457 {dimension_numbers = #tpu.dot_dimension_numbers<[1], [0], [0], [1], [0, 0, 1, 1], [], []>} : vector<32x288xbf16>, vector<288x1xbf16>, vector<32x1xf32> -> vector<32x1xf32>
    %c13 = arith.constant 13 : index
    %c0_458 = arith.constant 0 : index
    %c0_459 = arith.constant 0 : index
    %515 = vector.load %arg4[%c13, %c0_458, %c0_459] : memref<19x32x1xf32, #tpu.memory_space<vmem>>, vector<1x32x1xf32>
    %516 = vector.shape_cast %515 : vector<1x32x1xf32> to vector<32x1xf32>
    %517 = arith.mulf %514, %516 : vector<32x1xf32>
    %c13_460 = arith.constant 13 : index
    %c0_461 = arith.constant 0 : index
    %c0_462 = arith.constant 0 : index
    %518 = vector.load %arg5[%c13_460, %c0_461, %c0_462] : memref<19x32x1xf32, #tpu.memory_space<vmem>>, vector<1x32x1xf32>
    %519 = vector.shape_cast %518 : vector<1x32x1xf32> to vector<32x1xf32>
    %520 = arith.addf %517, %519 : vector<32x1xf32>
    %521 = arith.truncf %508 : vector<32x1xf32> to vector<32x1xbf16>
    %cst_463 = arith.constant 0.000000e+00 : bf16
    %522 = vector.broadcast %cst_463 : bf16 to vector<32x1xbf16>
    %523 = tpu.concatenate %522, %522, %522, %522, %521, %522, %522, %522, %522 in 0 : vector<32x1xbf16>, vector<32x1xbf16>, vector<32x1xbf16>, vector<32x1xbf16>, vector<32x1xbf16>, vector<32x1xbf16>, vector<32x1xbf16>, vector<32x1xbf16>, vector<32x1xbf16> -> vector<288x1xbf16>
    %c13_464 = arith.constant 13 : index
    %c0_465 = arith.constant 0 : index
    %c0_466 = arith.constant 0 : index
    %524 = vector.load %arg3[%c13_464, %c0_465, %c0_466] : memref<18x32x288xbf16, #tpu.memory_space<vmem>>, vector<1x32x288xbf16>
    %525 = vector.shape_cast %524 : vector<1x32x288xbf16> to vector<32x288xbf16>
    %cst_467 = arith.constant dense<0.000000e+00> : vector<32x1xf32>
    %526 = tpu.matmul %525, %523, %cst_467 {dimension_numbers = #tpu.dot_dimension_numbers<[1], [0], [0], [1], [0, 0, 1, 1], [], []>} : vector<32x288xbf16>, vector<288x1xbf16>, vector<32x1xf32> -> vector<32x1xf32>
    %c14 = arith.constant 14 : index
    %c0_468 = arith.constant 0 : index
    %c0_469 = arith.constant 0 : index
    %527 = vector.load %arg4[%c14, %c0_468, %c0_469] : memref<19x32x1xf32, #tpu.memory_space<vmem>>, vector<1x32x1xf32>
    %528 = vector.shape_cast %527 : vector<1x32x1xf32> to vector<32x1xf32>
    %529 = arith.mulf %526, %528 : vector<32x1xf32>
    %c14_470 = arith.constant 14 : index
    %c0_471 = arith.constant 0 : index
    %c0_472 = arith.constant 0 : index
    %530 = vector.load %arg5[%c14_470, %c0_471, %c0_472] : memref<19x32x1xf32, #tpu.memory_space<vmem>>, vector<1x32x1xf32>
    %531 = vector.shape_cast %530 : vector<1x32x1xf32> to vector<32x1xf32>
    %532 = arith.addf %529, %531 : vector<32x1xf32>
    %cst_473 = arith.constant 0.000000e+00 : f32
    %533 = vector.broadcast %cst_473 : f32 to vector<32x1xf32>
    %534 = arith.cmpf oge, %532, %533 : vector<32x1xf32>
    %cst_474 = arith.constant 0.00999999977 : f32
    %535 = vector.broadcast %cst_474 : f32 to vector<32x1xf32>
    %536 = arith.mulf %535, %532 : vector<32x1xf32>
    %537 = arith.select %534, %532, %536 : vector<32x1xi1>, vector<32x1xf32>
    %538 = arith.truncf %537 : vector<32x1xf32> to vector<32x1xbf16>
    %cst_475 = arith.constant 0.000000e+00 : bf16
    %539 = vector.broadcast %cst_475 : bf16 to vector<32x1xbf16>
    %540 = tpu.concatenate %539, %539, %539, %539, %538, %539, %539, %539, %539 in 0 : vector<32x1xbf16>, vector<32x1xbf16>, vector<32x1xbf16>, vector<32x1xbf16>, vector<32x1xbf16>, vector<32x1xbf16>, vector<32x1xbf16>, vector<32x1xbf16>, vector<32x1xbf16> -> vector<288x1xbf16>
    %c14_476 = arith.constant 14 : index
    %c0_477 = arith.constant 0 : index
    %c0_478 = arith.constant 0 : index
    %541 = vector.load %arg3[%c14_476, %c0_477, %c0_478] : memref<18x32x288xbf16, #tpu.memory_space<vmem>>, vector<1x32x288xbf16>
    %542 = vector.shape_cast %541 : vector<1x32x288xbf16> to vector<32x288xbf16>
    %cst_479 = arith.constant dense<0.000000e+00> : vector<32x1xf32>
    %543 = tpu.matmul %542, %540, %cst_479 {dimension_numbers = #tpu.dot_dimension_numbers<[1], [0], [0], [1], [0, 0, 1, 1], [], []>} : vector<32x288xbf16>, vector<288x1xbf16>, vector<32x1xf32> -> vector<32x1xf32>
    %c15 = arith.constant 15 : index
    %c0_480 = arith.constant 0 : index
    %c0_481 = arith.constant 0 : index
    %544 = vector.load %arg4[%c15, %c0_480, %c0_481] : memref<19x32x1xf32, #tpu.memory_space<vmem>>, vector<1x32x1xf32>
    %545 = vector.shape_cast %544 : vector<1x32x1xf32> to vector<32x1xf32>
    %546 = arith.mulf %543, %545 : vector<32x1xf32>
    %c15_482 = arith.constant 15 : index
    %c0_483 = arith.constant 0 : index
    %c0_484 = arith.constant 0 : index
    %547 = vector.load %arg5[%c15_482, %c0_483, %c0_484] : memref<19x32x1xf32, #tpu.memory_space<vmem>>, vector<1x32x1xf32>
    %548 = vector.shape_cast %547 : vector<1x32x1xf32> to vector<32x1xf32>
    %549 = arith.addf %546, %548 : vector<32x1xf32>
    %550 = arith.addf %549, %520 : vector<32x1xf32>
    %551 = arith.truncf %550 : vector<32x1xf32> to vector<32x1xbf16>
    %cst_485 = arith.constant 0.000000e+00 : bf16
    %552 = vector.broadcast %cst_485 : bf16 to vector<32x1xbf16>
    %553 = tpu.concatenate %552, %552, %552, %552, %551, %552, %552, %552, %552 in 0 : vector<32x1xbf16>, vector<32x1xbf16>, vector<32x1xbf16>, vector<32x1xbf16>, vector<32x1xbf16>, vector<32x1xbf16>, vector<32x1xbf16>, vector<32x1xbf16>, vector<32x1xbf16> -> vector<288x1xbf16>
    %c15_486 = arith.constant 15 : index
    %c0_487 = arith.constant 0 : index
    %c0_488 = arith.constant 0 : index
    %554 = vector.load %arg3[%c15_486, %c0_487, %c0_488] : memref<18x32x288xbf16, #tpu.memory_space<vmem>>, vector<1x32x288xbf16>
    %555 = vector.shape_cast %554 : vector<1x32x288xbf16> to vector<32x288xbf16>
    %cst_489 = arith.constant dense<0.000000e+00> : vector<32x1xf32>
    %556 = tpu.matmul %555, %553, %cst_489 {dimension_numbers = #tpu.dot_dimension_numbers<[1], [0], [0], [1], [0, 0, 1, 1], [], []>} : vector<32x288xbf16>, vector<288x1xbf16>, vector<32x1xf32> -> vector<32x1xf32>
    %c16 = arith.constant 16 : index
    %c0_490 = arith.constant 0 : index
    %c0_491 = arith.constant 0 : index
    %557 = vector.load %arg4[%c16, %c0_490, %c0_491] : memref<19x32x1xf32, #tpu.memory_space<vmem>>, vector<1x32x1xf32>
    %558 = vector.shape_cast %557 : vector<1x32x1xf32> to vector<32x1xf32>
    %559 = arith.mulf %556, %558 : vector<32x1xf32>
    %c16_492 = arith.constant 16 : index
    %c0_493 = arith.constant 0 : index
    %c0_494 = arith.constant 0 : index
    %560 = vector.load %arg5[%c16_492, %c0_493, %c0_494] : memref<19x32x1xf32, #tpu.memory_space<vmem>>, vector<1x32x1xf32>
    %561 = vector.shape_cast %560 : vector<1x32x1xf32> to vector<32x1xf32>
    %562 = arith.addf %559, %561 : vector<32x1xf32>
    %563 = arith.truncf %550 : vector<32x1xf32> to vector<32x1xbf16>
    %cst_495 = arith.constant 0.000000e+00 : bf16
    %564 = vector.broadcast %cst_495 : bf16 to vector<32x1xbf16>
    %565 = tpu.concatenate %564, %564, %564, %564, %563, %564, %564, %564, %564 in 0 : vector<32x1xbf16>, vector<32x1xbf16>, vector<32x1xbf16>, vector<32x1xbf16>, vector<32x1xbf16>, vector<32x1xbf16>, vector<32x1xbf16>, vector<32x1xbf16>, vector<32x1xbf16> -> vector<288x1xbf16>
    %c16_496 = arith.constant 16 : index
    %c0_497 = arith.constant 0 : index
    %c0_498 = arith.constant 0 : index
    %566 = vector.load %arg3[%c16_496, %c0_497, %c0_498] : memref<18x32x288xbf16, #tpu.memory_space<vmem>>, vector<1x32x288xbf16>
    %567 = vector.shape_cast %566 : vector<1x32x288xbf16> to vector<32x288xbf16>
    %cst_499 = arith.constant dense<0.000000e+00> : vector<32x1xf32>
    %568 = tpu.matmul %567, %565, %cst_499 {dimension_numbers = #tpu.dot_dimension_numbers<[1], [0], [0], [1], [0, 0, 1, 1], [], []>} : vector<32x288xbf16>, vector<288x1xbf16>, vector<32x1xf32> -> vector<32x1xf32>
    %c17 = arith.constant 17 : index
    %c0_500 = arith.constant 0 : index
    %c0_501 = arith.constant 0 : index
    %569 = vector.load %arg4[%c17, %c0_500, %c0_501] : memref<19x32x1xf32, #tpu.memory_space<vmem>>, vector<1x32x1xf32>
    %570 = vector.shape_cast %569 : vector<1x32x1xf32> to vector<32x1xf32>
    %571 = arith.mulf %568, %570 : vector<32x1xf32>
    %c17_502 = arith.constant 17 : index
    %c0_503 = arith.constant 0 : index
    %c0_504 = arith.constant 0 : index
    %572 = vector.load %arg5[%c17_502, %c0_503, %c0_504] : memref<19x32x1xf32, #tpu.memory_space<vmem>>, vector<1x32x1xf32>
    %573 = vector.shape_cast %572 : vector<1x32x1xf32> to vector<32x1xf32>
    %574 = arith.addf %571, %573 : vector<32x1xf32>
    %cst_505 = arith.constant 0.000000e+00 : f32
    %575 = vector.broadcast %cst_505 : f32 to vector<32x1xf32>
    %576 = arith.cmpf oge, %574, %575 : vector<32x1xf32>
    %cst_506 = arith.constant 0.00999999977 : f32
    %577 = vector.broadcast %cst_506 : f32 to vector<32x1xf32>
    %578 = arith.mulf %577, %574 : vector<32x1xf32>
    %579 = arith.select %576, %574, %578 : vector<32x1xi1>, vector<32x1xf32>
    %580 = arith.truncf %579 : vector<32x1xf32> to vector<32x1xbf16>
    %cst_507 = arith.constant 0.000000e+00 : bf16
    %581 = vector.broadcast %cst_507 : bf16 to vector<32x1xbf16>
    %582 = tpu.concatenate %581, %581, %581, %581, %580, %581, %581, %581, %581 in 0 : vector<32x1xbf16>, vector<32x1xbf16>, vector<32x1xbf16>, vector<32x1xbf16>, vector<32x1xbf16>, vector<32x1xbf16>, vector<32x1xbf16>, vector<32x1xbf16>, vector<32x1xbf16> -> vector<288x1xbf16>
    %c17_508 = arith.constant 17 : index
    %c0_509 = arith.constant 0 : index
    %c0_510 = arith.constant 0 : index
    %583 = vector.load %arg3[%c17_508, %c0_509, %c0_510] : memref<18x32x288xbf16, #tpu.memory_space<vmem>>, vector<1x32x288xbf16>
    %584 = vector.shape_cast %583 : vector<1x32x288xbf16> to vector<32x288xbf16>
    %cst_511 = arith.constant dense<0.000000e+00> : vector<32x1xf32>
    %585 = tpu.matmul %584, %582, %cst_511 {dimension_numbers = #tpu.dot_dimension_numbers<[1], [0], [0], [1], [0, 0, 1, 1], [], []>} : vector<32x288xbf16>, vector<288x1xbf16>, vector<32x1xf32> -> vector<32x1xf32>
    %c18 = arith.constant 18 : index
    %c0_512 = arith.constant 0 : index
    %c0_513 = arith.constant 0 : index
    %586 = vector.load %arg4[%c18, %c0_512, %c0_513] : memref<19x32x1xf32, #tpu.memory_space<vmem>>, vector<1x32x1xf32>
    %587 = vector.shape_cast %586 : vector<1x32x1xf32> to vector<32x1xf32>
    %588 = arith.mulf %585, %587 : vector<32x1xf32>
    %c18_514 = arith.constant 18 : index
    %c0_515 = arith.constant 0 : index
    %c0_516 = arith.constant 0 : index
    %589 = vector.load %arg5[%c18_514, %c0_515, %c0_516] : memref<19x32x1xf32, #tpu.memory_space<vmem>>, vector<1x32x1xf32>
    %590 = vector.shape_cast %589 : vector<1x32x1xf32> to vector<32x1xf32>
    %591 = arith.addf %588, %590 : vector<32x1xf32>
    %592 = arith.addf %591, %562 : vector<32x1xf32>
    %c0_517 = arith.constant 0 : index
    %c0_518 = arith.constant 0 : index
    %c0_519 = arith.constant 0 : index
    %593 = vector.load %arg12[%c0_517, %c0_518, %c0_519] : memref<1x32x1xf32, #tpu.memory_space<vmem>>, vector<1x32x1xf32>
    %594 = vector.shape_cast %593 : vector<1x32x1xf32> to vector<32x1xf32>
    %595 = vector.shape_cast %592 : vector<32x1xf32> to vector<1x32x1xf32>
    tpu.vector_store %arg12[%c0_517, %c0_518, %c0_519], %595 {strides = array<i32>} : memref<1x32x1xf32, #tpu.memory_space<vmem>>, vector<1x32x1xf32>,
    return
  }
  func.func @transform_0(%arg0: i32) -> (i32, i32, i32) {
    %c0_i32 = arith.constant 0 : i32
    %c0_i32_0 = arith.constant 0 : i32
    %c0_i32_1 = arith.constant 0 : i32
    return %arg0, %c0_i32, %c0_i32_0 : i32, i32, i32
  }
  func.func @transform_1(%arg0: i32) -> (i32, i32) {
    %c0_i32 = arith.constant 0 : i32
    %c0_i32_0 = arith.constant 0 : i32
    %c0_i32_1 = arith.constant 0 : i32
    return %c0_i32, %c0_i32_0 : i32, i32
  }
  func.func @transform_2(%arg0: i32) -> (i32, i32, i32) {
    %c0_i32 = arith.constant 0 : i32
    %c0_i32_0 = arith.constant 0 : i32
    %c0_i32_1 = arith.constant 0 : i32
    %c0_i32_2 = arith.constant 0 : i32
    return %c0_i32, %c0_i32_0, %c0_i32_1 : i32, i32, i32
  }
  func.func @transform_3(%arg0: i32) -> (i32, i32, i32) {
    %c0_i32 = arith.constant 0 : i32
    %c0_i32_0 = arith.constant 0 : i32
    %c0_i32_1 = arith.constant 0 : i32
    %c0_i32_2 = arith.constant 0 : i32
    return %c0_i32, %c0_i32_0, %c0_i32_1 : i32, i32, i32
  }
  func.func @transform_4(%arg0: i32) -> (i32, i32, i32) {
    %c0_i32 = arith.constant 0 : i32
    %c0_i32_0 = arith.constant 0 : i32
    %c0_i32_1 = arith.constant 0 : i32
    %c0_i32_2 = arith.constant 0 : i32
    return %c0_i32, %c0_i32_0, %c0_i32_1 : i32, i32, i32
  }
  func.func @transform_5(%arg0: i32) -> (i32, i32, i32) {
    %c0_i32 = arith.constant 0 : i32
    %c0_i32_0 = arith.constant 0 : i32
    %c0_i32_1 = arith.constant 0 : i32
    %c0_i32_2 = arith.constant 0 : i32
    return %c0_i32, %c0_i32_0, %c0_i32_1 : i32, i32, i32
  }
  func.func @transform_6(%arg0: i32) -> (i32, i32, i32) {
    %c0_i32 = arith.constant 0 : i32
    %c0_i32_0 = arith.constant 0 : i32
    %c0_i32_1 = arith.constant 0 : i32
    %c0_i32_2 = arith.constant 0 : i32
    return %c0_i32, %c0_i32_0, %c0_i32_1 : i32, i32, i32
  }
  func.func @transform_7(%arg0: i32) -> (i32, i32, i32) {
    %c0_i32 = arith.constant 0 : i32
    %c0_i32_0 = arith.constant 0 : i32
    %c0_i32_1 = arith.constant 0 : i32
    %c0_i32_2 = arith.constant 0 : i32
    return %c0_i32, %c0_i32_0, %c0_i32_1 : i32, i32, i32
  }
  func.func @transform_8(%arg0: i32) -> (i32, i32, i32) {
    %c0_i32 = arith.constant 0 : i32
    %c0_i32_0 = arith.constant 0 : i32
    %c0_i32_1 = arith.constant 0 : i32
    %c0_i32_2 = arith.constant 0 : i32
    return %c0_i32, %c0_i32_0, %c0_i32_1 : i32, i32, i32
  }
  func.func @transform_9(%arg0: i32) -> (i32, i32, i32) {
    %c0_i32 = arith.constant 0 : i32
    %c0_i32_0 = arith.constant 0 : i32
    %c0_i32_1 = arith.constant 0 : i32
    %c0_i32_2 = arith.constant 0 : i32
    return %c0_i32, %c0_i32_0, %c0_i32_1 : i32, i32, i32
  }
  func.func @transform_10(%arg0: i32) -> (i32, i32, i32) {
    %c0_i32 = arith.constant 0 : i32
    %c0_i32_0 = arith.constant 0 : i32
    %c0_i32_1 = arith.constant 0 : i32
    %c0_i32_2 = arith.constant 0 : i32
    return %c0_i32, %c0_i32_0, %c0_i32_1 : i32, i32, i32
  }
  func.func @transform_11(%arg0: i32) -> (i32, i32, i32) {
    %c0_i32 = arith.constant 0 : i32
    %c0_i32_0 = arith.constant 0 : i32
    %c0_i32_1 = arith.constant 0 : i32
    return %arg0, %c0_i32, %c0_i32_0 : i32, i32, i32
  }
}

</mosaic_0001>

<llo_original>
// kernel: spectrogram_forward.1
$region0: #{spectrogram_forward.1}
  #allocation0 [shape = 'u32[]', space=smem, size = 0x4, offset = 0x4, fixed_abs, tag = 'smem constant byte address 0x4 - core index']
  #allocation1 [shape = 'u32[72,128]{1,0:T(1,128)}', space=vmem, size = 0x9000, scoped, tag = 'internal scratch']
  %s0 = inlined_call_operand.vmem [shape: bf16[2,9,256], index: 0, kind: input, shape index: {}]
  %s1 = inlined_call_operand.vmem [shape: bf16[32,9], index: 1, kind: input, shape index: {}]
  %s2 = inlined_call_operand.vmem [shape: bf16[18,32,288], index: 2, kind: input, shape index: {}]
  %s3 = inlined_call_operand.vmem [shape: f32[19,32,1], index: 3, kind: input, shape index: {}]
  %s4 = inlined_call_operand.vmem [shape: f32[19,32,1], index: 4, kind: input, shape index: {}]
  %s5 = inlined_call_operand.vmem [shape: bf16[9,256,256], index: 5, kind: input, shape index: {}]
  %s6 = inlined_call_operand.hbm [shape: bf16[9,256,36], index: 6, kind: input, shape index: {}]
  %s7 = inlined_call_operand.hbm [shape: bf16[9,36,36], index: 7, kind: input, shape index: {}]
  %s8 = inlined_call_operand.hbm [shape: bf16[9,36,4], index: 8, kind: input, shape index: {}]
  %s9 = inlined_call_operand.hbm [shape: bf16[9,4,4], index: 9, kind: input, shape index: {}]
  %s10 = inlined_call_operand.hbm [shape: bf16[9,4,1], index: 10, kind: input, shape index: {}]
  %s11 = inlined_call_operand.vmem [shape: f32[2,32,1], index: 11, kind: output, shape index: {}]
  %s12 = sld [smem:[#allocation0]]
  $region97: #{spectrogram_forward.1} parent=0
    _
  %s14 = ssub.s32 1, %s12
  %s15 = scalar_select 0, %s14, %s12
  $region1: #{spectrogram_forward.1} parent=0
    #allocation2 [shape = 'u8[589824]{0}', space=vmem, size = 0x90000, scoped, tag = 'input window, operand 6, single buffered']
    #allocation3 [shape = 's32[2]{0}', space=sflag, size = 0x8, scoped, tag = 'scoped memory for spectrogram_forward.1']
    #allocation4 [shape = 'u8[92160]{0}', space=vmem, size = 0x16800, scoped, tag = 'input window, operand 7, single buffered']
    #allocation5 [shape = 's32[1]{0}', space=sflag, size = 0x4, scoped, tag = 'scoped memory for spectrogram_forward.1']
    #allocation6 [shape = 'u8[92160]{0}', space=vmem, size = 0x16800, scoped, tag = 'input window, operand 8, single buffered']
    #allocation7 [shape = 'u8[9216]{0}', space=vmem, size = 0x2400, scoped, tag = 'input window, operand 9, single buffered']
    #allocation8 [shape = 's32[1]{0}', space=sflag, size = 0x4, scoped, tag = 'scoped memory for spectrogram_forward.1']
    #allocation9 [shape = 'u8[9216]{0}', space=vmem, size = 0x2400, scoped, tag = 'input window, operand 10, single buffered']
    %16 = vsyncpa [#allocation3], 0
    %17 = vsyncpa [#allocation5], 0
    %18 = vsyncpa [#allocation8], 0
    loop: start=0, step=1, limit=4
    $region2: #{spectrogram_forward.1} parent=1 // loop_pre_header
      _
    $region3: #{spectrogram_forward.1} parent=1 // loop_header
      %s20 = sphi 0, %s24
      %p21 = scmp.ge.s32.totalorder %s20, 4
      %s30 = sphi 0, %s32
      %s33 = sphi 0, %s30
      %s34 = sphi 0, %s33
      %s50 = sphi 0, %s34
      %s54 = sphi 0, %s54
      %s56 = sphi 0, %s54
      %s57 = sphi 0, %s56
      %s71 = sphi 0, %s57
      %s75 = sphi 0, %s75
      %s77 = sphi 0, %s75
      %s78 = sphi 0, %s77
      %s92 = sphi 0, %s78
      %s96 = sphi 0, %s96
      %s98 = sphi 0, %s96
      %s99 = sphi 0, %s98
      %s113 = sphi 0, %s99
      %s117 = sphi 0, %s117
      %s119 = sphi 0, %s117
      %s120 = sphi 0, %s119
      %s134 = sphi 0, %s120
      %s138 = sphi 0, %s138
      %s140 = sphi 0, %s138
      %s141 = sphi 0, %s140
      %s155 = sphi 0, %s141
      %s159 = sphi 0, %s159
      %s161 = sphi 0, %s159
      %s162 = sphi 0, %s161
      %s176 = sphi 0, %s162
      %s180 = sphi 0, %s180
      %s182 = sphi 0, %s180
      %s183 = sphi 0, %s182
      %s197 = sphi 0, %s183
      %s201 = sphi 0, %s201
      %s203 = sphi 0, %s201
      %s204 = sphi 0, %s203
      %s218 = sphi 0, %s204
      %s222 = sphi 0, %s222
      %s224 = sphi 0, %s222
      %s225 = sphi 0, %s224
      %s239 = sphi 0, %s225
      %s243 = sphi 0, %s243
      %s245 = sphi 0, %s243
      %s246 = sphi 0, %s245
      %s260 = sphi 0, %s246
      %s266 = sphi 0, %s268
      %s269 = sphi 0, %s266
      %s270 = sphi 0, %s269
      %s286 = sphi 0, %s270
    $region4: #{spectrogram_forward.1} parent=1 // loop_header_branch
      %23 = sbr.rel (%p21) target = $region8
    $region5: #{spectrogram_forward.1} parent=1 // loop_body
      %s25 = ssub.s32 %s20, 1
      %s26 = ssub.s32 %s20, 2
      %s27 = sadd.s32 %s20, 1
      %s28 = ssub.s32 %s20, %s27
      %p29 = scmp.eq.s32.totalorder %s28, 0
      %s31 = sadd.s32 %s30, 1
      %s32 = scalar_select %p29, %s30, %s31
      %p35 = pneg %p29
      %p36 = scmp.eq.s32.totalorder %s20, 1
      %p37 = por %p35, %p36
      %p38 = scmp.ne.s32.totalorder %s30, %s33
      %p39 = scmp.eq.s32.totalorder %s20, 0
      %p40 = por %p38, %p39
      %p41 = scmp.ne.s32.totalorder %s30, %s33
      %p42 = scmp.eq.s32.totalorder %s25, 1
      %p43 = por %p41, %p42
      %p44 = scmp.ne.s32.totalorder %s33, %s34
      %p45 = scmp.eq.s32.totalorder %s25, 0
      %p46 = por %p44, %p45
      %p47 = scmp.ne.s32.totalorder %s33, %s34
      %p48 = scmp.eq.s32.totalorder %s26, 1
      %p49 = por %p47, %p48
      %p51 = scmp.ne.s32.totalorder %s34, %s50
      %p52 = scmp.eq.s32.totalorder %s26, 0
      %p53 = por %p51, %p52
      %s55 = sadd.s32 %s54, 1
      %p58 = scmp.eq.s32.totalorder %s20, 1
      %p59 = scmp.ne.s32.totalorder %s54, %s56
      %p60 = scmp.eq.s32.totalorder %s20, 0
      %p61 = por %p59, %p60
      %p62 = scmp.ne.s32.totalorder %s54, %s56
      %p63 = scmp.eq.s32.totalorder %s25, 1
      %p64 = por %p62, %p63
      %p65 = scmp.ne.s32.totalorder %s56, %s57
      %p66 = scmp.eq.s32.totalorder %s25, 0
      %p67 = por %p65, %p66
      %p68 = scmp.ne.s32.totalorder %s56, %s57
      %p69 = scmp.eq.s32.totalorder %s26, 1
      %p70 = por %p68, %p69
      %p72 = scmp.ne.s32.totalorder %s57, %s71
      %p73 = scmp.eq.s32.totalorder %s26, 0
      %p74 = por %p72, %p73
      %s76 = sadd.s32 %s75, 1
      %p79 = scmp.eq.s32.totalorder %s20, 1
      %p80 = scmp.ne.s32.totalorder %s75, %s77
      %p81 = scmp.eq.s32.totalorder %s20, 0
      %p82 = por %p80, %p81
      %p83 = scmp.ne.s32.totalorder %s75, %s77
      %p84 = scmp.eq.s32.totalorder %s25, 1
      %p85 = por %p83, %p84
      %p86 = scmp.ne.s32.totalorder %s77, %s78
      %p87 = scmp.eq.s32.totalorder %s25, 0
      %p88 = por %p86, %p87
      %p89 = scmp.ne.s32.totalorder %s77, %s78
      %p90 = scmp.eq.s32.totalorder %s26, 1
      %p91 = por %p89, %p90
      %p93 = scmp.ne.s32.totalorder %s78, %s92
      %p94 = scmp.eq.s32.totalorder %s26, 0
      %p95 = por %p93, %p94
      %s97 = sadd.s32 %s96, 1
      %p100 = scmp.eq.s32.totalorder %s20, 1
      %p101 = scmp.ne.s32.totalorder %s96, %s98
      %p102 = scmp.eq.s32.totalorder %s20, 0
      %p103 = por %p101, %p102
      %p104 = scmp.ne.s32.totalorder %s96, %s98
      %p105 = scmp.eq.s32.totalorder %s25, 1
      %p106 = por %p104, %p105
      %p107 = scmp.ne.s32.totalorder %s98, %s99
      %p108 = scmp.eq.s32.totalorder %s25, 0
      %p109 = por %p107, %p108
      %p110 = scmp.ne.s32.totalorder %s98, %s99
      %p111 = scmp.eq.s32.totalorder %s26, 1
      %p112 = por %p110, %p111
      %p114 = scmp.ne.s32.totalorder %s99, %s113
      %p115 = scmp.eq.s32.totalorder %s26, 0
      %p116 = por %p114, %p115
      %s118 = sadd.s32 %s117, 1
      %p121 = scmp.eq.s32.totalorder %s20, 1
      %p122 = scmp.ne.s32.totalorder %s117, %s119
      %p123 = scmp.eq.s32.totalorder %s20, 0
      %p124 = por %p122, %p123
      %p125 = scmp.ne.s32.totalorder %s117, %s119
      %p126 = scmp.eq.s32.totalorder %s25, 1
      %p127 = por %p125, %p126
      %p128 = scmp.ne.s32.totalorder %s119, %s120
      %p129 = scmp.eq.s32.totalorder %s25, 0
      %p130 = por %p128, %p129
      %p131 = scmp.ne.s32.totalorder %s119, %s120
      %p132 = scmp.eq.s32.totalorder %s26, 1
      %p133 = por %p131, %p132
      %p135 = scmp.ne.s32.totalorder %s120, %s134
      %p136 = scmp.eq.s32.totalorder %s26, 0
      %p137 = por %p135, %p136
      %s139 = sadd.s32 %s138, 1
      %p142 = scmp.eq.s32.totalorder %s20, 1
      %p143 = scmp.ne.s32.totalorder %s138, %s140
      %p144 = scmp.eq.s32.totalorder %s20, 0
      %p145 = por %p143, %p144
      %p146 = scmp.ne.s32.totalorder %s138, %s140
      %p147 = scmp.eq.s32.totalorder %s25, 1
      %p148 = por %p146, %p147
      %p149 = scmp.ne.s32.totalorder %s140, %s141
      %p150 = scmp.eq.s32.totalorder %s25, 0
      %p151 = por %p149, %p150
      %p152 = scmp.ne.s32.totalorder %s140, %s141
      %p153 = scmp.eq.s32.totalorder %s26, 1
      %p154 = por %p152, %p153
      %p156 = scmp.ne.s32.totalorder %s141, %s155
      %p157 = scmp.eq.s32.totalorder %s26, 0
      %p158 = por %p156, %p157
      %s160 = sadd.s32 %s159, 1
      %p163 = scmp.eq.s32.totalorder %s20, 1
      %p164 = scmp.ne.s32.totalorder %s159, %s161
      %p165 = scmp.eq.s32.totalorder %s20, 0
      %p166 = por %p164, %p165
      %p167 = scmp.ne.s32.totalorder %s159, %s161
      %p168 = scmp.eq.s32.totalorder %s25, 1
      %p169 = por %p167, %p168
      %p170 = scmp.ne.s32.totalorder %s161, %s162
      %p171 = scmp.eq.s32.totalorder %s25, 0
      %p172 = por %p170, %p171
      %p173 = scmp.ne.s32.totalorder %s161, %s162
      %p174 = scmp.eq.s32.totalorder %s26, 1
      %p175 = por %p173, %p174
      %p177 = scmp.ne.s32.totalorder %s162, %s176
      %p178 = scmp.eq.s32.totalorder %s26, 0
      %p179 = por %p177, %p178
      %s181 = sadd.s32 %s180, 1
      %p184 = scmp.eq.s32.totalorder %s20, 1
      %p185 = scmp.ne.s32.totalorder %s180, %s182
      %p186 = scmp.eq.s32.totalorder %s20, 0
      %p187 = por %p185, %p186
      %p188 = scmp.ne.s32.totalorder %s180, %s182
      %p189 = scmp.eq.s32.totalorder %s25, 1
      %p190 = por %p188, %p189
      %p191 = scmp.ne.s32.totalorder %s182, %s183
      %p192 = scmp.eq.s32.totalorder %s25, 0
      %p193 = por %p191, %p192
      %p194 = scmp.ne.s32.totalorder %s182, %s183
      %p195 = scmp.eq.s32.totalorder %s26, 1
      %p196 = por %p194, %p195
      %p198 = scmp.ne.s32.totalorder %s183, %s197
      %p199 = scmp.eq.s32.totalorder %s26, 0
      %p200 = por %p198, %p199
      %s202 = sadd.s32 %s201, 1
      %p205 = scmp.eq.s32.totalorder %s20, 1
      %p206 = scmp.ne.s32.totalorder %s201, %s203
      %p207 = scmp.eq.s32.totalorder %s20, 0
      %p208 = por %p206, %p207
      %p209 = scmp.ne.s32.totalorder %s201, %s203
      %p210 = scmp.eq.s32.totalorder %s25, 1
      %p211 = por %p209, %p210
      %p212 = scmp.ne.s32.totalorder %s203, %s204
      %p213 = scmp.eq.s32.totalorder %s25, 0
      %p214 = por %p212, %p213
      %p215 = scmp.ne.s32.totalorder %s203, %s204
      %p216 = scmp.eq.s32.totalorder %s26, 1
      %p217 = por %p215, %p216
      %p219 = scmp.ne.s32.totalorder %s204, %s218
      %p220 = scmp.eq.s32.totalorder %s26, 0
      %p221 = por %p219, %p220
      %s223 = sadd.s32 %s222, 1
      %p226 = scmp.eq.s32.totalorder %s20, 1
      %p227 = scmp.ne.s32.totalorder %s222, %s224
      %p228 = scmp.eq.s32.totalorder %s20, 0
      %p229 = por %p227, %p228
      %p230 = scmp.ne.s32.totalorder %s222, %s224
      %p231 = scmp.eq.s32.totalorder %s25, 1
      %p232 = por %p230, %p231
      %p233 = scmp.ne.s32.totalorder %s224, %s225
      %p234 = scmp.eq.s32.totalorder %s25, 0
      %p235 = por %p233, %p234
      %p236 = scmp.ne.s32.totalorder %s224, %s225
      %p237 = scmp.eq.s32.totalorder %s26, 1
      %p238 = por %p236, %p237
      %p240 = scmp.ne.s32.totalorder %s225, %s239
      %p241 = scmp.eq.s32.totalorder %s26, 0
      %p242 = por %p240, %p241
      %s244 = sadd.s32 %s243, 1
      %p247 = scmp.eq.s32.totalorder %s20, 1
      %p248 = scmp.ne.s32.totalorder %s243, %s245
      %p249 = scmp.eq.s32.totalorder %s20, 0
      %p250 = por %p248, %p249
      %p251 = scmp.ne.s32.totalorder %s243, %s245
      %p252 = scmp.eq.s32.totalorder %s25, 1
      %p253 = por %p251, %p252
      %p254 = scmp.ne.s32.totalorder %s245, %s246
      %p255 = scmp.eq.s32.totalorder %s25, 0
      %p256 = por %p254, %p255
      %p257 = scmp.ne.s32.totalorder %s245, %s246
      %p258 = scmp.eq.s32.totalorder %s26, 1
      %p259 = por %p257, %p258
      %p261 = scmp.ne.s32.totalorder %s246, %s260
      %p262 = scmp.eq.s32.totalorder %s26, 0
      %p263 = por %p261, %p262
      %s264 = ssub.s32 %s20, %s27
      %p265 = scmp.eq.s32.totalorder %s264, 0
      %s267 = sadd.s32 %s266, 1
      %s268 = scalar_select %p265, %s266, %s267
      %p271 = pneg %p265
      %p272 = scmp.eq.s32.totalorder %s20, 1
      %p273 = por %p271, %p272
      %p274 = scmp.ne.s32.totalorder %s266, %s269
      %p275 = scmp.eq.s32.totalorder %s20, 0
      %p276 = por %p274, %p275
      %p277 = scmp.ne.s32.totalorder %s266, %s269
      %p278 = scmp.eq.s32.totalorder %s25, 1
      %p279 = por %p277, %p278
      %p280 = scmp.ne.s32.totalorder %s269, %s270
      %p281 = scmp.eq.s32.totalorder %s25, 0
      %p282 = por %p280, %p281
      %p283 = scmp.ne.s32.totalorder %s269, %s270
      %p284 = scmp.eq.s32.totalorder %s26, 1
      %p285 = por %p283, %p284
      %p287 = scmp.ne.s32.totalorder %s270, %s286
      %p288 = scmp.eq.s32.totalorder %s26, 0
      %p289 = por %p287, %p288
      %p290 = scmp.le.s32.totalorder 1, %s20
      %p291 = scmp.lt.s32.totalorder %s20, 3
      %p292 = pnand %p290, %p291
      %p293 = pneg %p292
      // Predicated region
      $region9: #{spectrogram_forward.1} parent=5 // pred_check
        _
      $region10: #{spectrogram_forward.1} parent=5 // pred_check_branch
        %295 = sbr.rel (%p292) target = $region12
      $region11: #{spectrogram_forward.1} parent=5 // pred_region
        %s296 = ssub.s32 %s20, 1
        // Predicated region
        $region13: #{spectrogram_forward.1} parent=11 // pred_check
          %p297 = pneg %p67
        $region14: #{spectrogram_forward.1} parent=11 // pred_check_branch
          %299 = sbr.rel (%p297) target = $region16
        $region15: #{spectrogram_forward.1} parent=11 // pred_region
          _
        $region16: #{spectrogram_forward.1} parent=11 // pred_fallthru
          _
        // Predicated region
        $region17: #{spectrogram_forward.1} parent=11 // pred_check
          %p300 = pneg %p88
        $region18: #{spectrogram_forward.1} parent=11 // pred_check_branch
          %302 = sbr.rel (%p300) target = $region20
        $region19: #{spectrogram_forward.1} parent=11 // pred_region
          _
        $region20: #{spectrogram_forward.1} parent=11 // pred_fallthru
          _
        // Predicated region
        $region21: #{spectrogram_forward.1} parent=11 // pred_check
          %p303 = pneg %p109
        $region22: #{spectrogram_forward.1} parent=11 // pred_check_branch
          %305 = sbr.rel (%p303) target = $region24
        $region23: #{spectrogram_forward.1} parent=11 // pred_region
          _
        $region24: #{spectrogram_forward.1} parent=11 // pred_fallthru
          _
        // Predicated region
        $region25: #{spectrogram_forward.1} parent=11 // pred_check
          %p306 = pneg %p130
        $region26: #{spectrogram_forward.1} parent=11 // pred_check_branch
          %308 = sbr.rel (%p306) target = $region28
        $region27: #{spectrogram_forward.1} parent=11 // pred_region
          _
        $region28: #{spectrogram_forward.1} parent=11 // pred_fallthru
          _
        // Predicated region
        $region29: #{spectrogram_forward.1} parent=11 // pred_check
          %p309 = pneg %p151
        $region30: #{spectrogram_forward.1} parent=11 // pred_check_branch
          %311 = sbr.rel (%p309) target = $region32
        $region31: #{spectrogram_forward.1} parent=11 // pred_region
          _
        $region32: #{spectrogram_forward.1} parent=11 // pred_fallthru
          _
        // Predicated region
        $region33: #{spectrogram_forward.1} parent=11 // pred_check
          %p312 = pneg %p172
        $region34: #{spectrogram_forward.1} parent=11 // pred_check_branch
          %314 = sbr.rel (%p312) target = $region36
        $region35: #{spectrogram_forward.1} parent=11 // pred_region
          %316 = vsyncadd [#allocation3], 0
          %s317 = sshll.u32 %s6, 4
          %s318 = int_to_ptr.hbm [resolvable:$true] %s317
          %s319 = sshll.u32 [#allocation2], 4
          %s320 = int_to_ptr.vmem [resolvable:$true] %s319
          %325 = dma.hbm_to_vmem [thread:$0]  %s318, 18432, %s320, [#allocation3], 64, 64, 4
        $region36: #{spectrogram_forward.1} parent=11 // pred_fallthru
          _
        // Predicated region
        $region37: #{spectrogram_forward.1} parent=11 // pred_check
          %p326 = pneg %p193
        $region38: #{spectrogram_forward.1} parent=11 // pred_check_branch
          %328 = sbr.rel (%p326) target = $region40
        $region39: #{spectrogram_forward.1} parent=11 // pred_region
          %330 = vsyncadd [#allocation5], 0
          %s331 = sshll.u32 %s7, 4
          %s332 = int_to_ptr.hbm [resolvable:$true] %s331
          %s333 = sshll.u32 [#allocation4], 4
          %s334 = int_to_ptr.vmem [resolvable:$true] %s333
          %339 = dma.hbm_to_vmem [thread:$0]  %s332, 2880, %s334, [#allocation5], 64, 64, 4
        $region40: #{spectrogram_forward.1} parent=11 // pred_fallthru
          _
        // Predicated region
        $region41: #{spectrogram_forward.1} parent=11 // pred_check
          %p340 = pneg %p214
        $region42: #{spectrogram_forward.1} parent=11 // pred_check_branch
          %342 = sbr.rel (%p340) target = $region44
        $region43: #{spectrogram_forward.1} parent=11 // pred_region
          %344 = vsyncadd [#allocation5], 0
          %s345 = sshll.u32 %s8, 4
          %s346 = int_to_ptr.hbm [resolvable:$true] %s345
          %s347 = sshll.u32 [#allocation6], 4
          %s348 = int_to_ptr.vmem [resolvable:$true] %s347
          %353 = dma.hbm_to_vmem [thread:$0]  %s346, 2880, %s348, [#allocation5], 64, 64, 4
        $region44: #{spectrogram_forward.1} parent=11 // pred_fallthru
          _
        // Predicated region
        $region45: #{spectrogram_forward.1} parent=11 // pred_check
          %p354 = pneg %p235
        $region46: #{spectrogram_forward.1} parent=11 // pred_check_branch
          %356 = sbr.rel (%p354) target = $region48
        $region47: #{spectrogram_forward.1} parent=11 // pred_region
          %358 = vsyncadd [#allocation8], 0
          %s359 = sshll.u32 %s9, 4
          %s360 = int_to_ptr.hbm [resolvable:$true] %s359
          %s361 = sshll.u32 [#allocation7], 4
          %s362 = int_to_ptr.vmem [resolvable:$true] %s361
          %367 = dma.hbm_to_vmem [thread:$0]  %s360, 288, %s362, [#allocation8], 32, 32, 2
        $region48: #{spectrogram_forward.1} parent=11 // pred_fallthru
          _
        // Predicated region
        $region49: #{spectrogram_forward.1} parent=11 // pred_check
          %p368 = pneg %p256
        $region50: #{spectrogram_forward.1} parent=11 // pred_check_branch
          %370 = sbr.rel (%p368) target = $region52
        $region51: #{spectrogram_forward.1} parent=11 // pred_region
          %372 = vsyncadd [#allocation8], 0
          %s373 = sshll.u32 %s10, 4
          %s374 = int_to_ptr.hbm [resolvable:$true] %s373
          %s375 = sshll.u32 [#allocation9], 4
          %s376 = int_to_ptr.vmem [resolvable:$true] %s375
          %381 = dma.hbm_to_vmem [thread:$0]  %s374, 288, %s376, [#allocation8], 32, 32, 2
        $region52: #{spectrogram_forward.1} parent=11 // pred_fallthru
          _
      $region12: #{spectrogram_forward.1} parent=5 // pred_fallthru
        _
      %p382 = scmp.lt.s32.totalorder %s20, 2
      // Predicated region
      $region53: #{spectrogram_forward.1} parent=5 // pred_check
        %p383 = pneg %p382
      $region54: #{spectrogram_forward.1} parent=5 // pred_check_branch
        %385 = sbr.rel (%p383) target = $region56
      $region55: #{spectrogram_forward.1} parent=5 // pred_region
        // Predicated region
        $region57: #{spectrogram_forward.1} parent=55 // pred_check
          %p386 = pneg %p40
        $region58: #{spectrogram_forward.1} parent=55 // pred_check_branch
          %388 = sbr.rel (%p386) target = $region60
        $region59: #{spectrogram_forward.1} parent=55 // pred_region
          %p389 = scmp.lt.s32.totalorder %s20, 1
          %s390 = scalar_select %p389, %s20, 1
          %s391 = smul.addr %s390, 4
          %s392 = smul.addr %s391, 4
          %s393 = scalar_lea.vmem %s0, %s392
        $region60: #{spectrogram_forward.1} parent=55 // pred_fallthru
          _
      $region56: #{spectrogram_forward.1} parent=5 // pred_fallthru
        _
      %p394 = scmp.le.s32.totalorder 1, %s20
      %p395 = scmp.lt.s32.totalorder %s20, 3
      %p396 = pnand %p394, %p395
      %p397 = pneg %p396
      // Predicated region
      $region61: #{spectrogram_forward.1} parent=5 // pred_check
        _
      $region62: #{spectrogram_forward.1} parent=5 // pred_check_branch
        %399 = sbr.rel (%p396) target = $region64
      $region63: #{spectrogram_forward.1} parent=5 // pred_region
        %s400 = ssub.s32 %s20, 1
        // Predicated region
        $region65: #{spectrogram_forward.1} parent=63 // pred_check
          %p401 = pneg %p172
        $region66: #{spectrogram_forward.1} parent=63 // pred_check_branch
          %403 = sbr.rel (%p401) target = $region68
        $region67: #{spectrogram_forward.1} parent=63 // pred_region
          %405 = dma.done [#allocation3], 18432
        $region68: #{spectrogram_forward.1} parent=63 // pred_fallthru
          _
        // Predicated region
        $region69: #{spectrogram_forward.1} parent=63 // pred_check
          %p406 = pneg %p193
        $region70: #{spectrogram_forward.1} parent=63 // pred_check_branch
          %408 = sbr.rel (%p406) target = $region72
        $region71: #{spectrogram_forward.1} parent=63 // pred_region
          %410 = dma.done [#allocation5], 2880
        $region72: #{spectrogram_forward.1} parent=63 // pred_fallthru
          _
        // Predicated region
        $region73: #{spectrogram_forward.1} parent=63 // pred_check
          %p411 = pneg %p214
        $region74: #{spectrogram_forward.1} parent=63 // pred_check_branch
          %413 = sbr.rel (%p411) target = $region76
        $region75: #{spectrogram_forward.1} parent=63 // pred_region
          %415 = dma.done [#allocation5], 2880
        $region76: #{spectrogram_forward.1} parent=63 // pred_fallthru
          _
        // Predicated region
        $region77: #{spectrogram_forward.1} parent=63 // pred_check
          %p416 = pneg %p235
        $region78: #{spectrogram_forward.1} parent=63 // pred_check_branch
          %418 = sbr.rel (%p416) target = $region80
        $region79: #{spectrogram_forward.1} parent=63 // pred_region
          %420 = dma.done [#allocation8], 288
        $region80: #{spectrogram_forward.1} parent=63 // pred_fallthru
          _
        // Predicated region
        $region81: #{spectrogram_forward.1} parent=63 // pred_check
          %p421 = pneg %p256
        $region82: #{spectrogram_forward.1} parent=63 // pred_check_branch
          %423 = sbr.rel (%p421) target = $region84
        $region83: #{spectrogram_forward.1} parent=63 // pred_region
          %425 = dma.done [#allocation8], 288
        $region84: #{spectrogram_forward.1} parent=63 // pred_fallthru
          _
        %p426 = scmp.lt.s32.totalorder %s25, 1
        %s427 = scalar_select %p426, %s25, 1
        %s428 = smul.addr %s427, 4
        %s429 = smul.addr %s428, 4
        %s430 = scalar_lea.vmem %s0, %s429
        %p431 = pneg %p46
        %p432 = pneg %p43
        %p433 = pneg %p67
        %p434 = pneg %p64
        %p435 = pneg %p88
        %p436 = pneg %p85
        %p437 = pneg %p109
        %p438 = pneg %p106
        %p439 = pneg %p130
        %p440 = pneg %p127
        %p441 = pneg %p151
        %p442 = pneg %p148
        %p443 = pneg %p172
        %p444 = pneg %p169
        %p445 = pneg %p193
        %p446 = pneg %p190
        %p447 = pneg %p214
        %p448 = pneg %p211
        %p449 = pneg %p235
        %p450 = pneg %p232
        %p451 = pneg %p256
        %p452 = pneg %p253
        %p453 = pneg %p282
        %p454 = pneg %p279
        %p455 = scmp.lt.s32.totalorder %s25, 1
        %s456 = scalar_select %p455, %s25, 1
        %s457 = smul.addr %s456, 4
        %s458 = smul.addr %s457, 8
        %s459 = scalar_lea.vmem %s11, %s458
        %p460 = scmp.lt.s32.totalorder %s25, 1
        %s461 = scalar_select %p460, %s25, 1
        %s462 = smul.addr %s461, 4
        %s463 = smul.addr %s462, 4
        %s464 = scalar_lea.vmem %s0, %s463
        %p465 = scmp.lt.s32.totalorder %s25, 1
        %s466 = scalar_select %p465, %s25, 1
        %s467 = smul.addr %s466, 4
        %s468 = smul.addr %s467, 8
        %s469 = scalar_lea.vmem %s11, %s468
        %v471 = vld [vmem:[%s1] sm:$0xf]
        %v472 = vld [vmem:[%s1 + $0x4] sm:$0xf]
        %v473 = vld [vmem:[%s1 + $0x8] sm:$0xf]
        %v474 = vld [vmem:[%s1 + $0xc] sm:$0xf]
        %v475 = vld [vmem:[%s464] sm:$0xff]
        %v476 = vld [vmem:[%s464 + $0x8] sm:$0x11]
        %v481 = vunpack.c.l.b16 %v471
        %v482 = vunpack.c.l.b16 %v472
        %v483 = vunpack.c.l.b16 %v473
        %v484 = vunpack.c.l.b16 %v474
        %v485 = vpack.c.b16 %v482, %v481
        %v486 = vpack.c.b16 %v484, %v483
        %v489 = vunpack.c.l.b16 %v475
        %v490 = vunpack.c.h.b16 %v475
        %v491 = vunpack.c.l.b16 %v476
        %v492 = vunpack.c.h.b16 %v476
        %v493 = vpack.c.b16 %v491, %v489
        %v494 = vpack.c.b16 %v492, %v490
        %vm495 = vcmask 72704
        %v497 = vsel %vm495, %v485, 0
        %v500 = vsel %vm495, %v486, 0
        %vm502 = vcmask 1043456
        %vm503 = vcmask 1044480
        %v504 = vsel %vm502, 4294967295, 65535
        %v505 = vsel %vm503, %v504, 0
        %v507 = vand.u32 %v493, %v505
        %v510 = vand.u32 %v494, %v505
        %512 = vmatpush.bf16.msra.mxu0 0
        %513 = vmatpush.bf16.msra.mxu0 0
        %514 = vmatpush.bf16.msra.mxu0 0
        %515 = vmatpush.bf16.msra.mxu0 0
        %516 = vmatpush.bf16.msra.mxu0 0
        %517 = vmatpush.bf16.msra.mxu0 0
        %518 = vmatpush.bf16.msra.mxu0 0
        %519 = vmatpush.bf16.msra.mxu0 %v507
        %520 = vmatmul.bf16.gmra.mxu0 %v497
        %v521 = vpop.f32.mrf.mxu0
        %v522 = vadd.f32 0.0, %v521
        %v523 = vpop.f32.mrf.mxu0
        %v524 = vadd.f32 0.0, %v523
        %525 = vmatmul.bf16.gmra.mxu0 %v500
        %v526 = vpop.f32.mrf.mxu0
        %v527 = vadd.f32 0.0, %v526
        %v528 = vpop.f32.mrf.mxu0
        %v529 = vadd.f32 0.0, %v528
        %530 = vdwg.mxu0
        %531 = vmatpush.bf16.msra.mxu0 0
        %532 = vmatpush.bf16.msra.mxu0 0
        %533 = vmatpush.bf16.msra.mxu0 0
        %534 = vmatpush.bf16.msra.mxu0 0
        %535 = vmatpush.bf16.msra.mxu0 0
        %536 = vmatpush.bf16.msra.mxu0 0
        %537 = vmatpush.bf16.msra.mxu0 0
        %538 = vmatpush.bf16.msra.mxu0 %v510
        %539 = vmatmul.bf16.gmra.mxu0 %v497
        %v540 = vpop.f32.mrf.mxu0
        %v541 = vadd.f32 0.0, %v540
        %v542 = vpop.f32.mrf.mxu0
        %v543 = vadd.f32 0.0, %v542
        %544 = vmatmul.bf16.gmra.mxu0 %v500
        %v545 = vpop.f32.mrf.mxu0
        %v546 = vadd.f32 0.0, %v545
        %v547 = vpop.f32.mrf.mxu0
        %v548 = vadd.f32 0.0, %v547
        %549 = vdwg.mxu0
        %v550 = vld [vmem:[%s3] sm:$0xff]
        %v551 = vld [vmem:[%s3 + $0x8] sm:$0xff]
        %v552 = vld [vmem:[%s3 + $0x10] sm:$0xff]
        %v553 = vld [vmem:[%s3 + $0x18] sm:$0xff]
        %555 = vset.pattern.permute.xlu0 0
        %556 = vperm.xlu0 %555, %v550
        %v557 = vpop.permute.xlu0 %556
        %560 = vset.pattern.permute.xlu0 0
        %561 = vperm.xlu0 %560, %v551
        %v562 = vpop.permute.xlu0 %561
        %565 = vset.pattern.permute.xlu0 0
        %566 = vperm.xlu0 %565, %v552
        %v567 = vpop.permute.xlu0 %566
        %570 = vset.pattern.permute.xlu0 0
        %571 = vperm.xlu0 %570, %v553
        %v572 = vpop.permute.xlu0 %571
        %v574 = vmul.f32 %v522, %v557
        %v575 = vmul.f32 %v541, %v557
        %v576 = vmul.f32 %v524, %v562
        %v577 = vmul.f32 %v543, %v562
        %v578 = vmul.f32 %v527, %v567
        %v579 = vmul.f32 %v546, %v567
        %v580 = vmul.f32 %v529, %v572
        %v581 = vmul.f32 %v548, %v572
        %v582 = vld [vmem:[%s4] sm:$0xff]
        %v583 = vld [vmem:[%s4 + $0x8] sm:$0xff]
        %v584 = vld [vmem:[%s4 + $0x10] sm:$0xff]
        %v585 = vld [vmem:[%s4 + $0x18] sm:$0xff]
        %587 = vset.pattern.permute.xlu0 0
        %588 = vperm.xlu0 %587, %v582
        %v589 = vpop.permute.xlu0 %588
        %592 = vset.pattern.permute.xlu0 0
        %593 = vperm.xlu0 %592, %v583
        %v594 = vpop.permute.xlu0 %593
        %597 = vset.pattern.permute.xlu0 0
        %598 = vperm.xlu0 %597, %v584
        %v599 = vpop.permute.xlu0 %598
        %602 = vset.pattern.permute.xlu0 0
        %603 = vperm.xlu0 %602, %v585
        %v604 = vpop.permute.xlu0 %603
        %v606 = vadd.f32 %v574, %v589
        %v607 = vadd.f32 %v575, %v589
        %v608 = vadd.f32 %v576, %v594
        %v609 = vadd.f32 %v577, %v594
        %v610 = vadd.f32 %v578, %v599
        %v611 = vadd.f32 %v579, %v599
        %v612 = vadd.f32 %v580, %v604
        %v613 = vadd.f32 %v581, %v604
        %v614 = vpack.c.bf16 %v608, %v606
        %v615 = vpack.c.bf16 %v609, %v607
        %v616 = vpack.c.bf16 %v612, %v610
        %v617 = vpack.c.bf16 %v613, %v611
        %v618 = vld [vmem:[#allocation2] sm:$0xf]
        %v619 = vld [vmem:[#allocation2 + $0x4] sm:$0xf]
        %v620 = vld [vmem:[#allocation2 + $0x8] sm:$0xf]
        %v621 = vld [vmem:[#allocation2 + $0xc] sm:$0xf]
        %v622 = vld [vmem:[#allocation2 + $0x10] sm:$0xf]
        %v623 = vld [vmem:[#allocation2 + $0x14] sm:$0xf]
        %v624 = vld [vmem:[#allocation2 + $0x18] sm:$0xf]
        %v625 = vld [vmem:[#allocation2 + $0x1c] sm:$0xf]
        %v626 = vld [vmem:[#allocation2 + $0x20] sm:$0xf]
        %v627 = vld [vmem:[#allocation2 + $0x24] sm:$0xf]
        %v628 = vld [vmem:[#allocation2 + $0x28] sm:$0xf]
        %v629 = vld [vmem:[#allocation2 + $0x2c] sm:$0xf]
        %v630 = vld [vmem:[#allocation2 + $0x30] sm:$0xf]
        %v631 = vld [vmem:[#allocation2 + $0x34] sm:$0xf]
        %v632 = vld [vmem:[#allocation2 + $0x38] sm:$0xf]
        %v633 = vld [vmem:[#allocation2 + $0x3c] sm:$0xf]
        %v634 = vld [vmem:[#allocation2 + $0x40] sm:$0xf]
        %v635 = vld [vmem:[#allocation2 + $0x44] sm:$0xf]
        %v636 = vld [vmem:[#allocation2 + $0x48] sm:$0xf]
        %v637 = vld [vmem:[#allocation2 + $0x4c] sm:$0xf]
        %v638 = vld [vmem:[#allocation2 + $0x50] sm:$0xf]
        %v639 = vld [vmem:[#allocation2 + $0x54] sm:$0xf]
        %v640 = vld [vmem:[#allocation2 + $0x58] sm:$0xf]
        %v641 = vld [vmem:[#allocation2 + $0x5c] sm:$0xf]
        %v642 = vld [vmem:[#allocation2 + $0x60] sm:$0xf]
        %v643 = vld [vmem:[#allocation2 + $0x64] sm:$0xf]
        %v644 = vld [vmem:[#allocation2 + $0x68] sm:$0xf]
        %v645 = vld [vmem:[#allocation2 + $0x6c] sm:$0xf]
        %v646 = vld [vmem:[#allocation2 + $0x70] sm:$0xf]
        %v647 = vld [vmem:[#allocation2 + $0x74] sm:$0xf]
        %v648 = vld [vmem:[#allocation2 + $0x78] sm:$0xf]
        %v649 = vld [vmem:[#allocation2 + $0x7c] sm:$0xf]
        %v682 = vunpack.c.l.b16 %v618
        %v683 = vunpack.c.l.b16 %v619
        %v684 = vunpack.c.l.b16 %v620
        %v685 = vunpack.c.l.b16 %v621
        %v686 = vunpack.c.l.b16 %v622
        %v687 = vunpack.c.l.b16 %v623
        %v688 = vunpack.c.l.b16 %v624
        %v689 = vunpack.c.l.b16 %v625
        %v690 = vunpack.c.l.b16 %v626
        %v691 = vunpack.c.l.b16 %v627
        %v692 = vunpack.c.l.b16 %v628
        %v693 = vunpack.c.l.b16 %v629
        %v694 = vunpack.c.l.b16 %v630
        %v695 = vunpack.c.l.b16 %v631
        %v696 = vunpack.c.l.b16 %v632
        %v697 = vunpack.c.l.b16 %v633
        %v698 = vunpack.c.l.b16 %v634
        %v699 = vunpack.c.l.b16 %v635
        %v700 = vunpack.c.l.b16 %v636
        %v701 = vunpack.c.l.b16 %v637
        %v702 = vunpack.c.l.b16 %v638
        %v703 = vunpack.c.l.b16 %v639
        %v704 = vunpack.c.l.b16 %v640
        %v705 = vunpack.c.l.b16 %v641
        %v706 = vunpack.c.l.b16 %v642
        %v707 = vunpack.c.l.b16 %v643
        %v708 = vunpack.c.l.b16 %v644
        %v709 = vunpack.c.l.b16 %v645
        %v710 = vunpack.c.l.b16 %v646
        %v711 = vunpack.c.l.b16 %v647
        %v712 = vunpack.c.l.b16 %v648
        %v713 = vunpack.c.l.b16 %v649
        %v714 = vpack.c.b16 %v683, %v682
        %v715 = vpack.c.b16 %v685, %v684
        %v716 = vpack.c.b16 %v687, %v686
        %v717 = vpack.c.b16 %v689, %v688
        %v718 = vpack.c.b16 %v691, %v690
        %v719 = vpack.c.b16 %v693, %v692
        %v720 = vpack.c.b16 %v695, %v694
        %v721 = vpack.c.b16 %v697, %v696
        %v722 = vpack.c.b16 %v699, %v698
        %v723 = vpack.c.b16 %v701, %v700
        %v724 = vpack.c.b16 %v703, %v702
        %v725 = vpack.c.b16 %v705, %v704
        %v726 = vpack.c.b16 %v707, %v706
        %v727 = vpack.c.b16 %v709, %v708
        %v728 = vpack.c.b16 %v711, %v710
        %v729 = vpack.c.b16 %v713, %v712
        %746 = vmatpush.bf16.msra.mxu0 %v721
        %747 = vmatpush.bf16.msra.mxu0 %v720
        %748 = vmatpush.bf16.msra.mxu0 %v719
        %749 = vmatpush.bf16.msra.mxu0 %v718
        %750 = vmatpush.bf16.msra.mxu0 %v717
        %751 = vmatpush.bf16.msra.mxu0 %v716
        %752 = vmatpush.bf16.msra.mxu0 %v715
        %753 = vmatpush.bf16.msra.mxu0 %v714
        %754 = vmatmul.bf16.gmra.mxu0 %v614
        %v755 = vpop.f32.mrf.mxu0
        %v756 = vadd.f32 0.0, %v755
        %v757 = vpop.f32.mrf.mxu0
        %v758 = vadd.f32 0.0, %v757
        %759 = vmatmul.bf16.gmra.mxu0 %v616
        %v760 = vpop.f32.mrf.mxu0
        %v761 = vadd.f32 0.0, %v760
        %v762 = vpop.f32.mrf.mxu0
        %v763 = vadd.f32 0.0, %v762
        %764 = vdwg.mxu0
        %765 = vmatpush.bf16.msra.mxu0 %v729
        %766 = vmatpush.bf16.msra.mxu0 %v728
        %767 = vmatpush.bf16.msra.mxu0 %v727
        %768 = vmatpush.bf16.msra.mxu0 %v726
        %769 = vmatpush.bf16.msra.mxu0 %v725
        %770 = vmatpush.bf16.msra.mxu0 %v724
        %771 = vmatpush.bf16.msra.mxu0 %v723
        %772 = vmatpush.bf16.msra.mxu0 %v722
        %773 = vmatmul.bf16.gmra.mxu0 %v615
        %v774 = vpop.f32.mrf.mxu0
        %v775 = vadd.f32 %v756, %v774
        %v776 = vpop.f32.mrf.mxu0
        %v777 = vadd.f32 %v758, %v776
        %778 = vmatmul.bf16.gmra.mxu0 %v617
        %v779 = vpop.f32.mrf.mxu0
        %v780 = vadd.f32 %v761, %v779
        %v781 = vpop.f32.mrf.mxu0
        %v782 = vadd.f32 %v763, %v781
        %783 = vdwg.mxu0
        %v784 = vpack.c.bf16 %v775, %v775
        %v785 = vpack.c.bf16 %v777, %v777
        %v786 = vpack.c.bf16 %v780, %v780
        %v787 = vpack.c.bf16 %v782, %v782
        %s788 = scalar_lea.vmem [#allocation2], 128
        %v789 = vld [vmem:[%s788] sm:$0xf]
        %v790 = vld [vmem:[%s788 + $0x4] sm:$0xf]
        %v791 = vld [vmem:[%s788 + $0x8] sm:$0xf]
        %v792 = vld [vmem:[%s788 + $0xc] sm:$0xf]
        %v793 = vld [vmem:[%s788 + $0x10] sm:$0xf]
        %v794 = vld [vmem:[%s788 + $0x14] sm:$0xf]
        %v795 = vld [vmem:[%s788 + $0x18] sm:$0xf]
        %v796 = vld [vmem:[%s788 + $0x1c] sm:$0xf]
        %v797 = vld [vmem:[%s788 + $0x20] sm:$0xf]
        %v798 = vld [vmem:[%s788 + $0x24] sm:$0xf]
        %v799 = vld [vmem:[%s788 + $0x28] sm:$0xf]
        %v800 = vld [vmem:[%s788 + $0x2c] sm:$0xf]
        %v801 = vld [vmem:[%s788 + $0x30] sm:$0xf]
        %v802 = vld [vmem:[%s788 + $0x34] sm:$0xf]
        %v803 = vld [vmem:[%s788 + $0x38] sm:$0xf]
        %v804 = vld [vmem:[%s788 + $0x3c] sm:$0xf]
        %v805 = vld [vmem:[%s788 + $0x40] sm:$0xf]
        %v806 = vld [vmem:[%s788 + $0x44] sm:$0xf]
        %v807 = vld [vmem:[%s788 + $0x48] sm:$0xf]
        %v808 = vld [vmem:[%s788 + $0x4c] sm:$0xf]
        %v809 = vld [vmem:[%s788 + $0x50] sm:$0xf]
        %v810 = vld [vmem:[%s788 + $0x54] sm:$0xf]
        %v811 = vld [vmem:[%s788 + $0x58] sm:$0xf]
        %v812 = vld [vmem:[%s788 + $0x5c] sm:$0xf]
        %v813 = vld [vmem:[%s788 + $0x60] sm:$0xf]
        %v814 = vld [vmem:[%s788 + $0x64] sm:$0xf]
        %v815 = vld [vmem:[%s788 + $0x68] sm:$0xf]
        %v816 = vld [vmem:[%s788 + $0x6c] sm:$0xf]
        %v817 = vld [vmem:[%s788 + $0x70] sm:$0xf]
        %v818 = vld [vmem:[%s788 + $0x74] sm:$0xf]
        %v819 = vld [vmem:[%s788 + $0x78] sm:$0xf]
        %v820 = vld [vmem:[%s788 + $0x7c] sm:$0xf]
        %v853 = vunpack.c.l.b16 %v789
        %v854 = vunpack.c.l.b16 %v790
        %v855 = vunpack.c.l.b16 %v791
        %v856 = vunpack.c.l.b16 %v792
        %v857 = vunpack.c.l.b16 %v793
        %v858 = vunpack.c.l.b16 %v794
        %v859 = vunpack.c.l.b16 %v795
        %v860 = vunpack.c.l.b16 %v796
        %v861 = vunpack.c.l.b16 %v797
        %v862 = vunpack.c.l.b16 %v798
        %v863 = vunpack.c.l.b16 %v799
        %v864 = vunpack.c.l.b16 %v800
        %v865 = vunpack.c.l.b16 %v801
        %v866 = vunpack.c.l.b16 %v802
        %v867 = vunpack.c.l.b16 %v803
        %v868 = vunpack.c.l.b16 %v804
        %v869 = vunpack.c.l.b16 %v805
        %v870 = vunpack.c.l.b16 %v806
        %v871 = vunpack.c.l.b16 %v807
        %v872 = vunpack.c.l.b16 %v808
        %v873 = vunpack.c.l.b16 %v809
        %v874 = vunpack.c.l.b16 %v810
        %v875 = vunpack.c.l.b16 %v811
        %v876 = vunpack.c.l.b16 %v812
        %v877 = vunpack.c.l.b16 %v813
        %v878 = vunpack.c.l.b16 %v814
        %v879 = vunpack.c.l.b16 %v815
        %v880 = vunpack.c.l.b16 %v816
        %v881 = vunpack.c.l.b16 %v817
        %v882 = vunpack.c.l.b16 %v818
        %v883 = vunpack.c.l.b16 %v819
        %v884 = vunpack.c.l.b16 %v820
        %v885 = vpack.c.b16 %v854, %v853
        %v886 = vpack.c.b16 %v856, %v855
        %v887 = vpack.c.b16 %v858, %v857
        %v888 = vpack.c.b16 %v860, %v859
        %v889 = vpack.c.b16 %v862, %v861
        %v890 = vpack.c.b16 %v864, %v863
        %v891 = vpack.c.b16 %v866, %v865
        %v892 = vpack.c.b16 %v868, %v867
        %v893 = vpack.c.b16 %v870, %v869
        %v894 = vpack.c.b16 %v872, %v871
        %v895 = vpack.c.b16 %v874, %v873
        %v896 = vpack.c.b16 %v876, %v875
        %v897 = vpack.c.b16 %v878, %v877
        %v898 = vpack.c.b16 %v880, %v879
        %v899 = vpack.c.b16 %v882, %v881
        %v900 = vpack.c.b16 %v884, %v883
        %917 = vmatpush.bf16.msra.mxu0 %v892
        %918 = vmatpush.bf16.msra.mxu0 %v891
        %919 = vmatpush.bf16.msra.mxu0 %v890
        %920 = vmatpush.bf16.msra.mxu0 %v889
        %921 = vmatpush.bf16.msra.mxu0 %v888
        %922 = vmatpush.bf16.msra.mxu0 %v887
        %923 = vmatpush.bf16.msra.mxu0 %v886
        %924 = vmatpush.bf16.msra.mxu0 %v885
        %925 = vmatmul.bf16.gmra.mxu0 %v614
        %v926 = vpop.f32.mrf.mxu0
        %v927 = vadd.f32 0.0, %v926
        %v928 = vpop.f32.mrf.mxu0
        %v929 = vadd.f32 0.0, %v928
        %930 = vmatmul.bf16.gmra.mxu0 %v616
        %v931 = vpop.f32.mrf.mxu0
        %v932 = vadd.f32 0.0, %v931
        %v933 = vpop.f32.mrf.mxu0
        %v934 = vadd.f32 0.0, %v933
        %935 = vdwg.mxu0
        %936 = vmatpush.bf16.msra.mxu0 %v900
        %937 = vmatpush.bf16.msra.mxu0 %v899
        %938 = vmatpush.bf16.msra.mxu0 %v898
        %939 = vmatpush.bf16.msra.mxu0 %v897
        %940 = vmatpush.bf16.msra.mxu0 %v896
        %941 = vmatpush.bf16.msra.mxu0 %v895
        %942 = vmatpush.bf16.msra.mxu0 %v894
        %943 = vmatpush.bf16.msra.mxu0 %v893
        %944 = vmatmul.bf16.gmra.mxu0 %v615
        %v945 = vpop.f32.mrf.mxu0
        %v946 = vadd.f32 %v927, %v945
        %v947 = vpop.f32.mrf.mxu0
        %v948 = vadd.f32 %v929, %v947
        %949 = vmatmul.bf16.gmra.mxu0 %v617
        %v950 = vpop.f32.mrf.mxu0
        %v951 = vadd.f32 %v932, %v950
        %v952 = vpop.f32.mrf.mxu0
        %v953 = vadd.f32 %v934, %v952
        %954 = vdwg.mxu0
        %v955 = vpack.c.bf16 %v946, %v946
        %v956 = vpack.c.bf16 %v948, %v948
        %v957 = vpack.c.bf16 %v951, %v951
        %v958 = vpack.c.bf16 %v953, %v953
        %s959 = scalar_lea.vmem [#allocation2], 256
        %v960 = vld [vmem:[%s959] sm:$0xf]
        %v961 = vld [vmem:[%s959 + $0x4] sm:$0xf]
        %v962 = vld [vmem:[%s959 + $0x8] sm:$0xf]
        %v963 = vld [vmem:[%s959 + $0xc] sm:$0xf]
        %v964 = vld [vmem:[%s959 + $0x10] sm:$0xf]
        %v965 = vld [vmem:[%s959 + $0x14] sm:$0xf]
        %v966 = vld [vmem:[%s959 + $0x18] sm:$0xf]
        %v967 = vld [vmem:[%s959 + $0x1c] sm:$0xf]
        %v968 = vld [vmem:[%s959 + $0x20] sm:$0xf]
        %v969 = vld [vmem:[%s959 + $0x24] sm:$0xf]
        %v970 = vld [vmem:[%s959 + $0x28] sm:$0xf]
        %v971 = vld [vmem:[%s959 + $0x2c] sm:$0xf]
        %v972 = vld [vmem:[%s959 + $0x30] sm:$0xf]
        %v973 = vld [vmem:[%s959 + $0x34] sm:$0xf]
        %v974 = vld [vmem:[%s959 + $0x38] sm:$0xf]
        %v975 = vld [vmem:[%s959 + $0x3c] sm:$0xf]
        %v976 = vld [vmem:[%s959 + $0x40] sm:$0xf]
        %v977 = vld [vmem:[%s959 + $0x44] sm:$0xf]
        %v978 = vld [vmem:[%s959 + $0x48] sm:$0xf]
        %v979 = vld [vmem:[%s959 + $0x4c] sm:$0xf]
        %v980 = vld [vmem:[%s959 + $0x50] sm:$0xf]
        %v981 = vld [vmem:[%s959 + $0x54] sm:$0xf]
        %v982 = vld [vmem:[%s959 + $0x58] sm:$0xf]
        %v983 = vld [vmem:[%s959 + $0x5c] sm:$0xf]
        %v984 = vld [vmem:[%s959 + $0x60] sm:$0xf]
        %v985 = vld [vmem:[%s959 + $0x64] sm:$0xf]
        %v986 = vld [vmem:[%s959 + $0x68] sm:$0xf]
        %v987 = vld [vmem:[%s959 + $0x6c] sm:$0xf]
        %v988 = vld [vmem:[%s959 + $0x70] sm:$0xf]
        %v989 = vld [vmem:[%s959 + $0x74] sm:$0xf]
        %v990 = vld [vmem:[%s959 + $0x78] sm:$0xf]
        %v991 = vld [vmem:[%s959 + $0x7c] sm:$0xf]
        %v1024 = vunpack.c.l.b16 %v960
        %v1025 = vunpack.c.l.b16 %v961
        %v1026 = vunpack.c.l.b16 %v962
        %v1027 = vunpack.c.l.b16 %v963
        %v1028 = vunpack.c.l.b16 %v964
        %v1029 = vunpack.c.l.b16 %v965
        %v1030 = vunpack.c.l.b16 %v966
        %v1031 = vunpack.c.l.b16 %v967
        %v1032 = vunpack.c.l.b16 %v968
        %v1033 = vunpack.c.l.b16 %v969
        %v1034 = vunpack.c.l.b16 %v970
        %v1035 = vunpack.c.l.b16 %v971
        %v1036 = vunpack.c.l.b16 %v972
        %v1037 = vunpack.c.l.b16 %v973
        %v1038 = vunpack.c.l.b16 %v974
        %v1039 = vunpack.c.l.b16 %v975
        %v1040 = vunpack.c.l.b16 %v976
        %v1041 = vunpack.c.l.b16 %v977
        %v1042 = vunpack.c.l.b16 %v978
        %v1043 = vunpack.c.l.b16 %v979
        %v1044 = vunpack.c.l.b16 %v980
        %v1045 = vunpack.c.l.b16 %v981
        %v1046 = vunpack.c.l.b16 %v982
        %v1047 = vunpack.c.l.b16 %v983
        %v1048 = vunpack.c.l.b16 %v984
        %v1049 = vunpack.c.l.b16 %v985
        %v1050 = vunpack.c.l.b16 %v986
        %v1051 = vunpack.c.l.b16 %v987
        %v1052 = vunpack.c.l.b16 %v988
        %v1053 = vunpack.c.l.b16 %v989
        %v1054 = vunpack.c.l.b16 %v990
        %v1055 = vunpack.c.l.b16 %v991
        %v1056 = vpack.c.b16 %v1025, %v1024
        %v1057 = vpack.c.b16 %v1027, %v1026
        %v1058 = vpack.c.b16 %v1029, %v1028
        %v1059 = vpack.c.b16 %v1031, %v1030
        %v1060 = vpack.c.b16 %v1033, %v1032
        %v1061 = vpack.c.b16 %v1035, %v1034
        %v1062 = vpack.c.b16 %v1037, %v1036
        %v1063 = vpack.c.b16 %v1039, %v1038
        %v1064 = vpack.c.b16 %v1041, %v1040
        %v1065 = vpack.c.b16 %v1043, %v1042
        %v1066 = vpack.c.b16 %v1045, %v1044
        %v1067 = vpack.c.b16 %v1047, %v1046
        %v1068 = vpack.c.b16 %v1049, %v1048
        %v1069 = vpack.c.b16 %v1051, %v1050
        %v1070 = vpack.c.b16 %v1053, %v1052
        %v1071 = vpack.c.b16 %v1055, %v1054
        %1088 = vmatpush.bf16.msra.mxu0 %v1063
        %1089 = vmatpush.bf16.msra.mxu0 %v1062
        %1090 = vmatpush.bf16.msra.mxu0 %v1061
        %1091 = vmatpush.bf16.msra.mxu0 %v1060
        %1092 = vmatpush.bf16.msra.mxu0 %v1059
        %1093 = vmatpush.bf16.msra.mxu0 %v1058
        %1094 = vmatpush.bf16.msra.mxu0 %v1057
        %1095 = vmatpush.bf16.msra.mxu0 %v1056
        %1096 = vmatmul.bf16.gmra.mxu0 %v614
        %v1097 = vpop.f32.mrf.mxu0
        %v1098 = vadd.f32 0.0, %v1097
        %v1099 = vpop.f32.mrf.mxu0
        %v1100 = vadd.f32 0.0, %v1099
        %1101 = vmatmul.bf16.gmra.mxu0 %v616
        %v1102 = vpop.f32.mrf.mxu0
        %v1103 = vadd.f32 0.0, %v1102
        %v1104 = vpop.f32.mrf.mxu0
        %v1105 = vadd.f32 0.0, %v1104
        %1106 = vdwg.mxu0
        %1107 = vmatpush.bf16.msra.mxu0 %v1071
        %1108 = vmatpush.bf16.msra.mxu0 %v1070
        %1109 = vmatpush.bf16.msra.mxu0 %v1069
        %1110 = vmatpush.bf16.msra.mxu0 %v1068
        %1111 = vmatpush.bf16.msra.mxu0 %v1067
        %1112 = vmatpush.bf16.msra.mxu0 %v1066
        %1113 = vmatpush.bf16.msra.mxu0 %v1065
        %1114 = vmatpush.bf16.msra.mxu0 %v1064
        %1115 = vmatmul.bf16.gmra.mxu0 %v615
        %v1116 = vpop.f32.mrf.mxu0
        %v1117 = vadd.f32 %v1098, %v1116
        %v1118 = vpop.f32.mrf.mxu0
        %v1119 = vadd.f32 %v1100, %v1118
        %1120 = vmatmul.bf16.gmra.mxu0 %v617
        %v1121 = vpop.f32.mrf.mxu0
        %v1122 = vadd.f32 %v1103, %v1121
        %v1123 = vpop.f32.mrf.mxu0
        %v1124 = vadd.f32 %v1105, %v1123
        %1125 = vdwg.mxu0
        %v1126 = vpack.c.bf16 %v1117, %v1117
        %v1127 = vpack.c.bf16 %v1119, %v1119
        %v1128 = vpack.c.bf16 %v1122, %v1122
        %v1129 = vpack.c.bf16 %v1124, %v1124
        %s1130 = scalar_lea.vmem [#allocation2], 384
        %v1131 = vld [vmem:[%s1130] sm:$0xf]
        %v1132 = vld [vmem:[%s1130 + $0x4] sm:$0xf]
        %v1133 = vld [vmem:[%s1130 + $0x8] sm:$0xf]
        %v1134 = vld [vmem:[%s1130 + $0xc] sm:$0xf]
        %v1135 = vld [vmem:[%s1130 + $0x10] sm:$0xf]
        %v1136 = vld [vmem:[%s1130 + $0x14] sm:$0xf]
        %v1137 = vld [vmem:[%s1130 + $0x18] sm:$0xf]
        %v1138 = vld [vmem:[%s1130 + $0x1c] sm:$0xf]
        %v1139 = vld [vmem:[%s1130 + $0x20] sm:$0xf]
        %v1140 = vld [vmem:[%s1130 + $0x24] sm:$0xf]
        %v1141 = vld [vmem:[%s1130 + $0x28] sm:$0xf]
        %v1142 = vld [vmem:[%s1130 + $0x2c] sm:$0xf]
        %v1143 = vld [vmem:[%s1130 + $0x30] sm:$0xf]
        %v1144 = vld [vmem:[%s1130 + $0x34] sm:$0xf]
        %v1145 = vld [vmem:[%s1130 + $0x38] sm:$0xf]
        %v1146 = vld [vmem:[%s1130 + $0x3c] sm:$0xf]
        %v1147 = vld [vmem:[%s1130 + $0x40] sm:$0xf]
        %v1148 = vld [vmem:[%s1130 + $0x44] sm:$0xf]
        %v1149 = vld [vmem:[%s1130 + $0x48] sm:$0xf]
        %v1150 = vld [vmem:[%s1130 + $0x4c] sm:$0xf]
        %v1151 = vld [vmem:[%s1130 + $0x50] sm:$0xf]
        %v1152 = vld [vmem:[%s1130 + $0x54] sm:$0xf]
        %v1153 = vld [vmem:[%s1130 + $0x58] sm:$0xf]
        %v1154 = vld [vmem:[%s1130 + $0x5c] sm:$0xf]
        %v1155 = vld [vmem:[%s1130 + $0x60] sm:$0xf]
        %v1156 = vld [vmem:[%s1130 + $0x64] sm:$0xf]
        %v1157 = vld [vmem:[%s1130 + $0x68] sm:$0xf]
        %v1158 = vld [vmem:[%s1130 + $0x6c] sm:$0xf]
        %v1159 = vld [vmem:[%s1130 + $0x70] sm:$0xf]
        %v1160 = vld [vmem:[%s1130 + $0x74] sm:$0xf]
        %v1161 = vld [vmem:[%s1130 + $0x78] sm:$0xf]
        %v1162 = vld [vmem:[%s1130 + $0x7c] sm:$0xf]
        %v1195 = vunpack.c.l.b16 %v1131
        %v1196 = vunpack.c.l.b16 %v1132
        %v1197 = vunpack.c.l.b16 %v1133
        %v1198 = vunpack.c.l.b16 %v1134
        %v1199 = vunpack.c.l.b16 %v1135
        %v1200 = vunpack.c.l.b16 %v1136
        %v1201 = vunpack.c.l.b16 %v1137
        %v1202 = vunpack.c.l.b16 %v1138
        %v1203 = vunpack.c.l.b16 %v1139
        %v1204 = vunpack.c.l.b16 %v1140
        %v1205 = vunpack.c.l.b16 %v1141
        %v1206 = vunpack.c.l.b16 %v1142
        %v1207 = vunpack.c.l.b16 %v1143
        %v1208 = vunpack.c.l.b16 %v1144
        %v1209 = vunpack.c.l.b16 %v1145
        %v1210 = vunpack.c.l.b16 %v1146
        %v1211 = vunpack.c.l.b16 %v1147
        %v1212 = vunpack.c.l.b16 %v1148
        %v1213 = vunpack.c.l.b16 %v1149
        %v1214 = vunpack.c.l.b16 %v1150
        %v1215 = vunpack.c.l.b16 %v1151
        %v1216 = vunpack.c.l.b16 %v1152
        %v1217 = vunpack.c.l.b16 %v1153
        %v1218 = vunpack.c.l.b16 %v1154
        %v1219 = vunpack.c.l.b16 %v1155
        %v1220 = vunpack.c.l.b16 %v1156
        %v1221 = vunpack.c.l.b16 %v1157
        %v1222 = vunpack.c.l.b16 %v1158
        %v1223 = vunpack.c.l.b16 %v1159
        %v1224 = vunpack.c.l.b16 %v1160
        %v1225 = vunpack.c.l.b16 %v1161
        %v1226 = vunpack.c.l.b16 %v1162
        %v1227 = vpack.c.b16 %v1196, %v1195
        %v1228 = vpack.c.b16 %v1198, %v1197
        %v1229 = vpack.c.b16 %v1200, %v1199
        %v1230 = vpack.c.b16 %v1202, %v1201
        %v1231 = vpack.c.b16 %v1204, %v1203
        %v1232 = vpack.c.b16 %v1206, %v1205
        %v1233 = vpack.c.b16 %v1208, %v1207
        %v1234 = vpack.c.b16 %v1210, %v1209
        %v1235 = vpack.c.b16 %v1212, %v1211
        %v1236 = vpack.c.b16 %v1214, %v1213
        %v1237 = vpack.c.b16 %v1216, %v1215
        %v1238 = vpack.c.b16 %v1218, %v1217
        %v1239 = vpack.c.b16 %v1220, %v1219
        %v1240 = vpack.c.b16 %v1222, %v1221
        %v1241 = vpack.c.b16 %v1224, %v1223
        %v1242 = vpack.c.b16 %v1226, %v1225
        %1259 = vmatpush.bf16.msra.mxu0 %v1234
        %1260 = vmatpush.bf16.msra.mxu0 %v1233
        %1261 = vmatpush.bf16.msra.mxu0 %v1232
        %1262 = vmatpush.bf16.msra.mxu0 %v1231
        %1263 = vmatpush.bf16.msra.mxu0 %v1230
        %1264 = vmatpush.bf16.msra.mxu0 %v1229
        %1265 = vmatpush.bf16.msra.mxu0 %v1228
        %1266 = vmatpush.bf16.msra.mxu0 %v1227
        %1267 = vmatmul.bf16.gmra.mxu0 %v614
        %v1268 = vpop.f32.mrf.mxu0
        %v1269 = vadd.f32 0.0, %v1268
        %v1270 = vpop.f32.mrf.mxu0
        %v1271 = vadd.f32 0.0, %v1270
        %1272 = vmatmul.bf16.gmra.mxu0 %v616
        %v1273 = vpop.f32.mrf.mxu0
        %v1274 = vadd.f32 0.0, %v1273
        %v1275 = vpop.f32.mrf.mxu0
        %v1276 = vadd.f32 0.0, %v1275
        %1277 = vdwg.mxu0
        %1278 = vmatpush.bf16.msra.mxu0 %v1242
        %1279 = vmatpush.bf16.msra.mxu0 %v1241
        %1280 = vmatpush.bf16.msra.mxu0 %v1240
        %1281 = vmatpush.bf16.msra.mxu0 %v1239
        %1282 = vmatpush.bf16.msra.mxu0 %v1238
        %1283 = vmatpush.bf16.msra.mxu0 %v1237
        %1284 = vmatpush.bf16.msra.mxu0 %v1236
        %1285 = vmatpush.bf16.msra.mxu0 %v1235
        %1286 = vmatmul.bf16.gmra.mxu0 %v615
        %v1287 = vpop.f32.mrf.mxu0
        %v1288 = vadd.f32 %v1269, %v1287
        %v1289 = vpop.f32.mrf.mxu0
        %v1290 = vadd.f32 %v1271, %v1289
        %1291 = vmatmul.bf16.gmra.mxu0 %v617
        %v1292 = vpop.f32.mrf.mxu0
        %v1293 = vadd.f32 %v1274, %v1292
        %v1294 = vpop.f32.mrf.mxu0
        %v1295 = vadd.f32 %v1276, %v1294
        %1296 = vdwg.mxu0
        %v1297 = vpack.c.bf16 %v1288, %v1288
        %v1298 = vpack.c.bf16 %v1290, %v1290
        %v1299 = vpack.c.bf16 %v1293, %v1293
        %v1300 = vpack.c.bf16 %v1295, %v1295
        %s1301 = scalar_lea.vmem [#allocation2], 512
        %v1302 = vld [vmem:[%s1301] sm:$0xf]
        %v1303 = vld [vmem:[%s1301 + $0x4] sm:$0xf]
        %v1304 = vld [vmem:[%s1301 + $0x8] sm:$0xf]
        %v1305 = vld [vmem:[%s1301 + $0xc] sm:$0xf]
        %v1306 = vld [vmem:[%s1301 + $0x10] sm:$0xf]
        %v1307 = vld [vmem:[%s1301 + $0x14] sm:$0xf]
        %v1308 = vld [vmem:[%s1301 + $0x18] sm:$0xf]
        %v1309 = vld [vmem:[%s1301 + $0x1c] sm:$0xf]
        %v1310 = vld [vmem:[%s1301 + $0x20] sm:$0xf]
        %v1311 = vld [vmem:[%s1301 + $0x24] sm:$0xf]
        %v1312 = vld [vmem:[%s1301 + $0x28] sm:$0xf]
        %v1313 = vld [vmem:[%s1301 + $0x2c] sm:$0xf]
        %v1314 = vld [vmem:[%s1301 + $0x30] sm:$0xf]
        %v1315 = vld [vmem:[%s1301 + $0x34] sm:$0xf]
        %v1316 = vld [vmem:[%s1301 + $0x38] sm:$0xf]
        %v1317 = vld [vmem:[%s1301 + $0x3c] sm:$0xf]
        %v1318 = vld [vmem:[%s1301 + $0x40] sm:$0xf]
        %v1319 = vld [vmem:[%s1301 + $0x44] sm:$0xf]
        %v1320 = vld [vmem:[%s1301 + $0x48] sm:$0xf]
        %v1321 = vld [vmem:[%s1301 + $0x4c] sm:$0xf]
        %v1322 = vld [vmem:[%s1301 + $0x50] sm:$0xf]
        %v1323 = vld [vmem:[%s1301 + $0x54] sm:$0xf]
        %v1324 = vld [vmem:[%s1301 + $0x58] sm:$0xf]
        %v1325 = vld [vmem:[%s1301 + $0x5c] sm:$0xf]
        %v1326 = vld [vmem:[%s1301 + $0x60] sm:$0xf]
        %v1327 = vld [vmem:[%s1301 + $0x64] sm:$0xf]
        %v1328 = vld [vmem:[%s1301 + $0x68] sm:$0xf]
        %v1329 = vld [vmem:[%s1301 + $0x6c] sm:$0xf]
        %v1330 = vld [vmem:[%s1301 + $0x70] sm:$0xf]
        %v1331 = vld [vmem:[%s1301 + $0x74] sm:$0xf]
        %v1332 = vld [vmem:[%s1301 + $0x78] sm:$0xf]
        %v1333 = vld [vmem:[%s1301 + $0x7c] sm:$0xf]
        %v1366 = vunpack.c.l.b16 %v1302
        %v1367 = vunpack.c.l.b16 %v1303
        %v1368 = vunpack.c.l.b16 %v1304
        %v1369 = vunpack.c.l.b16 %v1305
        %v1370 = vunpack.c.l.b16 %v1306
        %v1371 = vunpack.c.l.b16 %v1307
        %v1372 = vunpack.c.l.b16 %v1308
        %v1373 = vunpack.c.l.b16 %v1309
        %v1374 = vunpack.c.l.b16 %v1310
        %v1375 = vunpack.c.l.b16 %v1311
        %v1376 = vunpack.c.l.b16 %v1312
        %v1377 = vunpack.c.l.b16 %v1313
        %v1378 = vunpack.c.l.b16 %v1314
        %v1379 = vunpack.c.l.b16 %v1315
        %v1380 = vunpack.c.l.b16 %v1316
        %v1381 = vunpack.c.l.b16 %v1317
        %v1382 = vunpack.c.l.b16 %v1318
        %v1383 = vunpack.c.l.b16 %v1319
        %v1384 = vunpack.c.l.b16 %v1320
        %v1385 = vunpack.c.l.b16 %v1321
        %v1386 = vunpack.c.l.b16 %v1322
        %v1387 = vunpack.c.l.b16 %v1323
        %v1388 = vunpack.c.l.b16 %v1324
        %v1389 = vunpack.c.l.b16 %v1325
        %v1390 = vunpack.c.l.b16 %v1326
        %v1391 = vunpack.c.l.b16 %v1327
        %v1392 = vunpack.c.l.b16 %v1328
        %v1393 = vunpack.c.l.b16 %v1329
        %v1394 = vunpack.c.l.b16 %v1330
        %v1395 = vunpack.c.l.b16 %v1331
        %v1396 = vunpack.c.l.b16 %v1332
        %v1397 = vunpack.c.l.b16 %v1333
        %v1398 = vpack.c.b16 %v1367, %v1366
        %v1399 = vpack.c.b16 %v1369, %v1368
        %v1400 = vpack.c.b16 %v1371, %v1370
        %v1401 = vpack.c.b16 %v1373, %v1372
        %v1402 = vpack.c.b16 %v1375, %v1374
        %v1403 = vpack.c.b16 %v1377, %v1376
        %v1404 = vpack.c.b16 %v1379, %v1378
        %v1405 = vpack.c.b16 %v1381, %v1380
        %v1406 = vpack.c.b16 %v1383, %v1382
        %v1407 = vpack.c.b16 %v1385, %v1384
        %v1408 = vpack.c.b16 %v1387, %v1386
        %v1409 = vpack.c.b16 %v1389, %v1388
        %v1410 = vpack.c.b16 %v1391, %v1390
        %v1411 = vpack.c.b16 %v1393, %v1392
        %v1412 = vpack.c.b16 %v1395, %v1394
        %v1413 = vpack.c.b16 %v1397, %v1396
        %1430 = vmatpush.bf16.msra.mxu0 %v1405
        %1431 = vmatpush.bf16.msra.mxu0 %v1404
        %1432 = vmatpush.bf16.msra.mxu0 %v1403
        %1433 = vmatpush.bf16.msra.mxu0 %v1402
        %1434 = vmatpush.bf16.msra.mxu0 %v1401
        %1435 = vmatpush.bf16.msra.mxu0 %v1400
        %1436 = vmatpush.bf16.msra.mxu0 %v1399
        %1437 = vmatpush.bf16.msra.mxu0 %v1398
        %1438 = vmatmul.bf16.gmra.mxu0 %v614
        %v1439 = vpop.f32.mrf.mxu0
        %v1440 = vadd.f32 0.0, %v1439
        %v1441 = vpop.f32.mrf.mxu0
        %v1442 = vadd.f32 0.0, %v1441
        %1443 = vmatmul.bf16.gmra.mxu0 %v616
        %v1444 = vpop.f32.mrf.mxu0
        %v1445 = vadd.f32 0.0, %v1444
        %v1446 = vpop.f32.mrf.mxu0
        %v1447 = vadd.f32 0.0, %v1446
        %1448 = vdwg.mxu0
        %1449 = vmatpush.bf16.msra.mxu0 %v1413
        %1450 = vmatpush.bf16.msra.mxu0 %v1412
        %1451 = vmatpush.bf16.msra.mxu0 %v1411
        %1452 = vmatpush.bf16.msra.mxu0 %v1410
        %1453 = vmatpush.bf16.msra.mxu0 %v1409
        %1454 = vmatpush.bf16.msra.mxu0 %v1408
        %1455 = vmatpush.bf16.msra.mxu0 %v1407
        %1456 = vmatpush.bf16.msra.mxu0 %v1406
        %1457 = vmatmul.bf16.gmra.mxu0 %v615
        %v1458 = vpop.f32.mrf.mxu0
        %v1459 = vadd.f32 %v1440, %v1458
        %v1460 = vpop.f32.mrf.mxu0
        %v1461 = vadd.f32 %v1442, %v1460
        %1462 = vmatmul.bf16.gmra.mxu0 %v617
        %v1463 = vpop.f32.mrf.mxu0
        %v1464 = vadd.f32 %v1445, %v1463
        %v1465 = vpop.f32.mrf.mxu0
        %v1466 = vadd.f32 %v1447, %v1465
        %1467 = vdwg.mxu0
        %v1468 = vpack.c.bf16 %v1459, %v1459
        %v1469 = vpack.c.bf16 %v1461, %v1461
        %v1470 = vpack.c.bf16 %v1464, %v1464
        %v1471 = vpack.c.bf16 %v1466, %v1466
        %s1472 = scalar_lea.vmem [#allocation2], 640
        %v1473 = vld [vmem:[%s1472] sm:$0xf]
        %v1474 = vld [vmem:[%s1472 + $0x4] sm:$0xf]
        %v1475 = vld [vmem:[%s1472 + $0x8] sm:$0xf]
        %v1476 = vld [vmem:[%s1472 + $0xc] sm:$0xf]
        %v1477 = vld [vmem:[%s1472 + $0x10] sm:$0xf]
        %v1478 = vld [vmem:[%s1472 + $0x14] sm:$0xf]
        %v1479 = vld [vmem:[%s1472 + $0x18] sm:$0xf]
        %v1480 = vld [vmem:[%s1472 + $0x1c] sm:$0xf]
        %v1481 = vld [vmem:[%s1472 + $0x20] sm:$0xf]
        %v1482 = vld [vmem:[%s1472 + $0x24] sm:$0xf]
        %v1483 = vld [vmem:[%s1472 + $0x28] sm:$0xf]
        %v1484 = vld [vmem:[%s1472 + $0x2c] sm:$0xf]
        %v1485 = vld [vmem:[%s1472 + $0x30] sm:$0xf]
        %v1486 = vld [vmem:[%s1472 + $0x34] sm:$0xf]
        %v1487 = vld [vmem:[%s1472 + $0x38] sm:$0xf]
        %v1488 = vld [vmem:[%s1472 + $0x3c] sm:$0xf]
        %v1489 = vld [vmem:[%s1472 + $0x40] sm:$0xf]
        %v1490 = vld [vmem:[%s1472 + $0x44] sm:$0xf]
        %v1491 = vld [vmem:[%s1472 + $0x48] sm:$0xf]
        %v1492 = vld [vmem:[%s1472 + $0x4c] sm:$0xf]
        %v1493 = vld [vmem:[%s1472 + $0x50] sm:$0xf]
        %v1494 = vld [vmem:[%s1472 + $0x54] sm:$0xf]
        %v1495 = vld [vmem:[%s1472 + $0x58] sm:$0xf]
        %v1496 = vld [vmem:[%s1472 + $0x5c] sm:$0xf]
        %v1497 = vld [vmem:[%s1472 + $0x60] sm:$0xf]
        %v1498 = vld [vmem:[%s1472 + $0x64] sm:$0xf]
        %v1499 = vld [vmem:[%s1472 + $0x68] sm:$0xf]
        %v1500 = vld [vmem:[%s1472 + $0x6c] sm:$0xf]
        %v1501 = vld [vmem:[%s1472 + $0x70] sm:$0xf]
        %v1502 = vld [vmem:[%s1472 + $0x74] sm:$0xf]
        %v1503 = vld [vmem:[%s1472 + $0x78] sm:$0xf]
        %v1504 = vld [vmem:[%s1472 + $0x7c] sm:$0xf]
        %v1537 = vunpack.c.l.b16 %v1473
        %v1538 = vunpack.c.l.b16 %v1474
        %v1539 = vunpack.c.l.b16 %v1475
        %v1540 = vunpack.c.l.b16 %v1476
        %v1541 = vunpack.c.l.b16 %v1477
        %v1542 = vunpack.c.l.b16 %v1478
        %v1543 = vunpack.c.l.b16 %v1479
        %v1544 = vunpack.c.l.b16 %v1480
        %v1545 = vunpack.c.l.b16 %v1481
        %v1546 = vunpack.c.l.b16 %v1482
        %v1547 = vunpack.c.l.b16 %v1483
        %v1548 = vunpack.c.l.b16 %v1484
        %v1549 = vunpack.c.l.b16 %v1485
        %v1550 = vunpack.c.l.b16 %v1486
        %v1551 = vunpack.c.l.b16 %v1487
        %v1552 = vunpack.c.l.b16 %v1488
        %v1553 = vunpack.c.l.b16 %v1489
        %v1554 = vunpack.c.l.b16 %v1490
        %v1555 = vunpack.c.l.b16 %v1491
        %v1556 = vunpack.c.l.b16 %v1492
        %v1557 = vunpack.c.l.b16 %v1493
        %v1558 = vunpack.c.l.b16 %v1494
        %v1559 = vunpack.c.l.b16 %v1495
        %v1560 = vunpack.c.l.b16 %v1496
        %v1561 = vunpack.c.l.b16 %v1497
        %v1562 = vunpack.c.l.b16 %v1498
        %v1563 = vunpack.c.l.b16 %v1499
        %v1564 = vunpack.c.l.b16 %v1500
        %v1565 = vunpack.c.l.b16 %v1501
        %v1566 = vunpack.c.l.b16 %v1502
        %v1567 = vunpack.c.l.b16 %v1503
        %v1568 = vunpack.c.l.b16 %v1504
        %v1569 = vpack.c.b16 %v1538, %v1537
        %v1570 = vpack.c.b16 %v1540, %v1539
        %v1571 = vpack.c.b16 %v1542, %v1541
        %v1572 = vpack.c.b16 %v1544, %v1543
        %v1573 = vpack.c.b16 %v1546, %v1545
        %v1574 = vpack.c.b16 %v1548, %v1547
        %v1575 = vpack.c.b16 %v1550, %v1549
        %v1576 = vpack.c.b16 %v1552, %v1551
        %v1577 = vpack.c.b16 %v1554, %v1553
        %v1578 = vpack.c.b16 %v1556, %v1555
        %v1579 = vpack.c.b16 %v1558, %v1557
        %v1580 = vpack.c.b16 %v1560, %v1559
        %v1581 = vpack.c.b16 %v1562, %v1561
        %v1582 = vpack.c.b16 %v1564, %v1563
        %v1583 = vpack.c.b16 %v1566, %v1565
        %v1584 = vpack.c.b16 %v1568, %v1567
        %1601 = vmatpush.bf16.msra.mxu0 %v1576
        %1602 = vmatpush.bf16.msra.mxu0 %v1575
        %1603 = vmatpush.bf16.msra.mxu0 %v1574
        %1604 = vmatpush.bf16.msra.mxu0 %v1573
        %1605 = vmatpush.bf16.msra.mxu0 %v1572
        %1606 = vmatpush.bf16.msra.mxu0 %v1571
        %1607 = vmatpush.bf16.msra.mxu0 %v1570
        %1608 = vmatpush.bf16.msra.mxu0 %v1569
        %1609 = vmatmul.bf16.gmra.mxu0 %v614
        %v1610 = vpop.f32.mrf.mxu0
        %v1611 = vadd.f32 0.0, %v1610
        %v1612 = vpop.f32.mrf.mxu0
        %v1613 = vadd.f32 0.0, %v1612
        %1614 = vmatmul.bf16.gmra.mxu0 %v616
        %v1615 = vpop.f32.mrf.mxu0
        %v1616 = vadd.f32 0.0, %v1615
        %v1617 = vpop.f32.mrf.mxu0
        %v1618 = vadd.f32 0.0, %v1617
        %1619 = vdwg.mxu0
        %1620 = vmatpush.bf16.msra.mxu0 %v1584
        %1621 = vmatpush.bf16.msra.mxu0 %v1583
        %1622 = vmatpush.bf16.msra.mxu0 %v1582
        %1623 = vmatpush.bf16.msra.mxu0 %v1581
        %1624 = vmatpush.bf16.msra.mxu0 %v1580
        %1625 = vmatpush.bf16.msra.mxu0 %v1579
        %1626 = vmatpush.bf16.msra.mxu0 %v1578
        %1627 = vmatpush.bf16.msra.mxu0 %v1577
        %1628 = vmatmul.bf16.gmra.mxu0 %v615
        %v1629 = vpop.f32.mrf.mxu0
        %v1630 = vadd.f32 %v1611, %v1629
        %v1631 = vpop.f32.mrf.mxu0
        %v1632 = vadd.f32 %v1613, %v1631
        %1633 = vmatmul.bf16.gmra.mxu0 %v617
        %v1634 = vpop.f32.mrf.mxu0
        %v1635 = vadd.f32 %v1616, %v1634
        %v1636 = vpop.f32.mrf.mxu0
        %v1637 = vadd.f32 %v1618, %v1636
        %1638 = vdwg.mxu0
        %v1639 = vpack.c.bf16 %v1630, %v1630
        %v1640 = vpack.c.bf16 %v1632, %v1632
        %v1641 = vpack.c.bf16 %v1635, %v1635
        %v1642 = vpack.c.bf16 %v1637, %v1637
        %s1643 = scalar_lea.vmem [#allocation2], 768
        %v1644 = vld [vmem:[%s1643] sm:$0xf]
        %v1645 = vld [vmem:[%s1643 + $0x4] sm:$0xf]
        %v1646 = vld [vmem:[%s1643 + $0x8] sm:$0xf]
        %v1647 = vld [vmem:[%s1643 + $0xc] sm:$0xf]
        %v1648 = vld [vmem:[%s1643 + $0x10] sm:$0xf]
        %v1649 = vld [vmem:[%s1643 + $0x14] sm:$0xf]
        %v1650 = vld [vmem:[%s1643 + $0x18] sm:$0xf]
        %v1651 = vld [vmem:[%s1643 + $0x1c] sm:$0xf]
        %v1652 = vld [vmem:[%s1643 + $0x20] sm:$0xf]
        %v1653 = vld [vmem:[%s1643 + $0x24] sm:$0xf]
        %v1654 = vld [vmem:[%s1643 + $0x28] sm:$0xf]
        %v1655 = vld [vmem:[%s1643 + $0x2c] sm:$0xf]
        %v1656 = vld [vmem:[%s1643 + $0x30] sm:$0xf]
        %v1657 = vld [vmem:[%s1643 + $0x34] sm:$0xf]
        %v1658 = vld [vmem:[%s1643 + $0x38] sm:$0xf]
        %v1659 = vld [vmem:[%s1643 + $0x3c] sm:$0xf]
        %v1660 = vld [vmem:[%s1643 + $0x40] sm:$0xf]
        %v1661 = vld [vmem:[%s1643 + $0x44] sm:$0xf]
        %v1662 = vld [vmem:[%s1643 + $0x48] sm:$0xf]
        %v1663 = vld [vmem:[%s1643 + $0x4c] sm:$0xf]
        %v1664 = vld [vmem:[%s1643 + $0x50] sm:$0xf]
        %v1665 = vld [vmem:[%s1643 + $0x54] sm:$0xf]
        %v1666 = vld [vmem:[%s1643 + $0x58] sm:$0xf]
        %v1667 = vld [vmem:[%s1643 + $0x5c] sm:$0xf]
        %v1668 = vld [vmem:[%s1643 + $0x60] sm:$0xf]
        %v1669 = vld [vmem:[%s1643 + $0x64] sm:$0xf]
        %v1670 = vld [vmem:[%s1643 + $0x68] sm:$0xf]
        %v1671 = vld [vmem:[%s1643 + $0x6c] sm:$0xf]
        %v1672 = vld [vmem:[%s1643 + $0x70] sm:$0xf]
        %v1673 = vld [vmem:[%s1643 + $0x74] sm:$0xf]
        %v1674 = vld [vmem:[%s1643 + $0x78] sm:$0xf]
        %v1675 = vld [vmem:[%s1643 + $0x7c] sm:$0xf]
        %v1708 = vunpack.c.l.b16 %v1644
        %v1709 = vunpack.c.l.b16 %v1645
        %v1710 = vunpack.c.l.b16 %v1646
        %v1711 = vunpack.c.l.b16 %v1647
        %v1712 = vunpack.c.l.b16 %v1648
        %v1713 = vunpack.c.l.b16 %v1649
        %v1714 = vunpack.c.l.b16 %v1650
        %v1715 = vunpack.c.l.b16 %v1651
        %v1716 = vunpack.c.l.b16 %v1652
        %v1717 = vunpack.c.l.b16 %v1653
        %v1718 = vunpack.c.l.b16 %v1654
        %v1719 = vunpack.c.l.b16 %v1655
        %v1720 = vunpack.c.l.b16 %v1656
        %v1721 = vunpack.c.l.b16 %v1657
        %v1722 = vunpack.c.l.b16 %v1658
        %v1723 = vunpack.c.l.b16 %v1659
        %v1724 = vunpack.c.l.b16 %v1660
        %v1725 = vunpack.c.l.b16 %v1661
        %v1726 = vunpack.c.l.b16 %v1662
        %v1727 = vunpack.c.l.b16 %v1663
        %v1728 = vunpack.c.l.b16 %v1664
        %v1729 = vunpack.c.l.b16 %v1665
        %v1730 = vunpack.c.l.b16 %v1666
        %v1731 = vunpack.c.l.b16 %v1667
        %v1732 = vunpack.c.l.b16 %v1668
        %v1733 = vunpack.c.l.b16 %v1669
        %v1734 = vunpack.c.l.b16 %v1670
        %v1735 = vunpack.c.l.b16 %v1671
        %v1736 = vunpack.c.l.b16 %v1672
        %v1737 = vunpack.c.l.b16 %v1673
        %v1738 = vunpack.c.l.b16 %v1674
        %v1739 = vunpack.c.l.b16 %v1675
        %v1740 = vpack.c.b16 %v1709, %v1708
        %v1741 = vpack.c.b16 %v1711, %v1710
        %v1742 = vpack.c.b16 %v1713, %v1712
        %v1743 = vpack.c.b16 %v1715, %v1714
        %v1744 = vpack.c.b16 %v1717, %v1716
        %v1745 = vpack.c.b16 %v1719, %v1718
        %v1746 = vpack.c.b16 %v1721, %v1720
        %v1747 = vpack.c.b16 %v1723, %v1722
        %v1748 = vpack.c.b16 %v1725, %v1724
        %v1749 = vpack.c.b16 %v1727, %v1726
        %v1750 = vpack.c.b16 %v1729, %v1728
        %v1751 = vpack.c.b16 %v1731, %v1730
        %v1752 = vpack.c.b16 %v1733, %v1732
        %v1753 = vpack.c.b16 %v1735, %v1734
        %v1754 = vpack.c.b16 %v1737, %v1736
        %v1755 = vpack.c.b16 %v1739, %v1738
        %1772 = vmatpush.bf16.msra.mxu0 %v1747
        %1773 = vmatpush.bf16.msra.mxu0 %v1746
        %1774 = vmatpush.bf16.msra.mxu0 %v1745
        %1775 = vmatpush.bf16.msra.mxu0 %v1744
        %1776 = vmatpush.bf16.msra.mxu0 %v1743
        %1777 = vmatpush.bf16.msra.mxu0 %v1742
        %1778 = vmatpush.bf16.msra.mxu0 %v1741
        %1779 = vmatpush.bf16.msra.mxu0 %v1740
        %1780 = vmatmul.bf16.gmra.mxu0 %v614
        %v1781 = vpop.f32.mrf.mxu0
        %v1782 = vadd.f32 0.0, %v1781
        %v1783 = vpop.f32.mrf.mxu0
        %v1784 = vadd.f32 0.0, %v1783
        %1785 = vmatmul.bf16.gmra.mxu0 %v616
        %v1786 = vpop.f32.mrf.mxu0
        %v1787 = vadd.f32 0.0, %v1786
        %v1788 = vpop.f32.mrf.mxu0
        %v1789 = vadd.f32 0.0, %v1788
        %1790 = vdwg.mxu0
        %1791 = vmatpush.bf16.msra.mxu0 %v1755
        %1792 = vmatpush.bf16.msra.mxu0 %v1754
        %1793 = vmatpush.bf16.msra.mxu0 %v1753
        %1794 = vmatpush.bf16.msra.mxu0 %v1752
        %1795 = vmatpush.bf16.msra.mxu0 %v1751
        %1796 = vmatpush.bf16.msra.mxu0 %v1750
        %1797 = vmatpush.bf16.msra.mxu0 %v1749
        %1798 = vmatpush.bf16.msra.mxu0 %v1748
        %1799 = vmatmul.bf16.gmra.mxu0 %v615
        %v1800 = vpop.f32.mrf.mxu0
        %v1801 = vadd.f32 %v1782, %v1800
        %v1802 = vpop.f32.mrf.mxu0
        %v1803 = vadd.f32 %v1784, %v1802
        %1804 = vmatmul.bf16.gmra.mxu0 %v617
        %v1805 = vpop.f32.mrf.mxu0
        %v1806 = vadd.f32 %v1787, %v1805
        %v1807 = vpop.f32.mrf.mxu0
        %v1808 = vadd.f32 %v1789, %v1807
        %1809 = vdwg.mxu0
        %v1810 = vpack.c.bf16 %v1801, %v1801
        %v1811 = vpack.c.bf16 %v1803, %v1803
        %v1812 = vpack.c.bf16 %v1806, %v1806
        %v1813 = vpack.c.bf16 %v1808, %v1808
        %s1814 = scalar_lea.vmem [#allocation2], 896
        %v1815 = vld [vmem:[%s1814] sm:$0xf]
        %v1816 = vld [vmem:[%s1814 + $0x4] sm:$0xf]
        %v1817 = vld [vmem:[%s1814 + $0x8] sm:$0xf]
        %v1818 = vld [vmem:[%s1814 + $0xc] sm:$0xf]
        %v1819 = vld [vmem:[%s1814 + $0x10] sm:$0xf]
        %v1820 = vld [vmem:[%s1814 + $0x14] sm:$0xf]
        %v1821 = vld [vmem:[%s1814 + $0x18] sm:$0xf]
        %v1822 = vld [vmem:[%s1814 + $0x1c] sm:$0xf]
        %v1823 = vld [vmem:[%s1814 + $0x20] sm:$0xf]
        %v1824 = vld [vmem:[%s1814 + $0x24] sm:$0xf]
        %v1825 = vld [vmem:[%s1814 + $0x28] sm:$0xf]
        %v1826 = vld [vmem:[%s1814 + $0x2c] sm:$0xf]
        %v1827 = vld [vmem:[%s1814 + $0x30] sm:$0xf]
        %v1828 = vld [vmem:[%s1814 + $0x34] sm:$0xf]
        %v1829 = vld [vmem:[%s1814 + $0x38] sm:$0xf]
        %v1830 = vld [vmem:[%s1814 + $0x3c] sm:$0xf]
        %v1831 = vld [vmem:[%s1814 + $0x40] sm:$0xf]
        %v1832 = vld [vmem:[%s1814 + $0x44] sm:$0xf]
        %v1833 = vld [vmem:[%s1814 + $0x48] sm:$0xf]
        %v1834 = vld [vmem:[%s1814 + $0x4c] sm:$0xf]
        %v1835 = vld [vmem:[%s1814 + $0x50] sm:$0xf]
        %v1836 = vld [vmem:[%s1814 + $0x54] sm:$0xf]
        %v1837 = vld [vmem:[%s1814 + $0x58] sm:$0xf]
        %v1838 = vld [vmem:[%s1814 + $0x5c] sm:$0xf]
        %v1839 = vld [vmem:[%s1814 + $0x60] sm:$0xf]
        %v1840 = vld [vmem:[%s1814 + $0x64] sm:$0xf]
        %v1841 = vld [vmem:[%s1814 + $0x68] sm:$0xf]
        %v1842 = vld [vmem:[%s1814 + $0x6c] sm:$0xf]
        %v1843 = vld [vmem:[%s1814 + $0x70] sm:$0xf]
        %v1844 = vld [vmem:[%s1814 + $0x74] sm:$0xf]
        %v1845 = vld [vmem:[%s1814 + $0x78] sm:$0xf]
        %v1846 = vld [vmem:[%s1814 + $0x7c] sm:$0xf]
        %v1879 = vunpack.c.l.b16 %v1815
        %v1880 = vunpack.c.l.b16 %v1816
        %v1881 = vunpack.c.l.b16 %v1817
        %v1882 = vunpack.c.l.b16 %v1818
        %v1883 = vunpack.c.l.b16 %v1819
        %v1884 = vunpack.c.l.b16 %v1820
        %v1885 = vunpack.c.l.b16 %v1821
        %v1886 = vunpack.c.l.b16 %v1822
        %v1887 = vunpack.c.l.b16 %v1823
        %v1888 = vunpack.c.l.b16 %v1824
        %v1889 = vunpack.c.l.b16 %v1825
        %v1890 = vunpack.c.l.b16 %v1826
        %v1891 = vunpack.c.l.b16 %v1827
        %v1892 = vunpack.c.l.b16 %v1828
        %v1893 = vunpack.c.l.b16 %v1829
        %v1894 = vunpack.c.l.b16 %v1830
        %v1895 = vunpack.c.l.b16 %v1831
        %v1896 = vunpack.c.l.b16 %v1832
        %v1897 = vunpack.c.l.b16 %v1833
        %v1898 = vunpack.c.l.b16 %v1834
        %v1899 = vunpack.c.l.b16 %v1835
        %v1900 = vunpack.c.l.b16 %v1836
        %v1901 = vunpack.c.l.b16 %v1837
        %v1902 = vunpack.c.l.b16 %v1838
        %v1903 = vunpack.c.l.b16 %v1839
        %v1904 = vunpack.c.l.b16 %v1840
        %v1905 = vunpack.c.l.b16 %v1841
        %v1906 = vunpack.c.l.b16 %v1842
        %v1907 = vunpack.c.l.b16 %v1843
        %v1908 = vunpack.c.l.b16 %v1844
        %v1909 = vunpack.c.l.b16 %v1845
        %v1910 = vunpack.c.l.b16 %v1846
        %v1911 = vpack.c.b16 %v1880, %v1879
        %v1912 = vpack.c.b16 %v1882, %v1881
        %v1913 = vpack.c.b16 %v1884, %v1883
        %v1914 = vpack.c.b16 %v1886, %v1885
        %v1915 = vpack.c.b16 %v1888, %v1887
        %v1916 = vpack.c.b16 %v1890, %v1889
        %v1917 = vpack.c.b16 %v1892, %v1891
        %v1918 = vpack.c.b16 %v1894, %v1893
        %v1919 = vpack.c.b16 %v1896, %v1895
        %v1920 = vpack.c.b16 %v1898, %v1897
        %v1921 = vpack.c.b16 %v1900, %v1899
        %v1922 = vpack.c.b16 %v1902, %v1901
        %v1923 = vpack.c.b16 %v1904, %v1903
        %v1924 = vpack.c.b16 %v1906, %v1905
        %v1925 = vpack.c.b16 %v1908, %v1907
        %v1926 = vpack.c.b16 %v1910, %v1909
        %1943 = vmatpush.bf16.msra.mxu0 %v1918
        %1944 = vmatpush.bf16.msra.mxu0 %v1917
        %1945 = vmatpush.bf16.msra.mxu0 %v1916
        %1946 = vmatpush.bf16.msra.mxu0 %v1915
        %1947 = vmatpush.bf16.msra.mxu0 %v1914
        %1948 = vmatpush.bf16.msra.mxu0 %v1913
        %1949 = vmatpush.bf16.msra.mxu0 %v1912
        %1950 = vmatpush.bf16.msra.mxu0 %v1911
        %1951 = vmatmul.bf16.gmra.mxu0 %v614
        %v1952 = vpop.f32.mrf.mxu0
        %v1953 = vadd.f32 0.0, %v1952
        %v1954 = vpop.f32.mrf.mxu0
        %v1955 = vadd.f32 0.0, %v1954
        %1956 = vmatmul.bf16.gmra.mxu0 %v616
        %v1957 = vpop.f32.mrf.mxu0
        %v1958 = vadd.f32 0.0, %v1957
        %v1959 = vpop.f32.mrf.mxu0
        %v1960 = vadd.f32 0.0, %v1959
        %1961 = vdwg.mxu0
        %1962 = vmatpush.bf16.msra.mxu0 %v1926
        %1963 = vmatpush.bf16.msra.mxu0 %v1925
        %1964 = vmatpush.bf16.msra.mxu0 %v1924
        %1965 = vmatpush.bf16.msra.mxu0 %v1923
        %1966 = vmatpush.bf16.msra.mxu0 %v1922
        %1967 = vmatpush.bf16.msra.mxu0 %v1921
        %1968 = vmatpush.bf16.msra.mxu0 %v1920
        %1969 = vmatpush.bf16.msra.mxu0 %v1919
        %1970 = vmatmul.bf16.gmra.mxu0 %v615
        %v1971 = vpop.f32.mrf.mxu0
        %v1972 = vadd.f32 %v1953, %v1971
        %v1973 = vpop.f32.mrf.mxu0
        %v1974 = vadd.f32 %v1955, %v1973
        %1975 = vmatmul.bf16.gmra.mxu0 %v617
        %v1976 = vpop.f32.mrf.mxu0
        %v1977 = vadd.f32 %v1958, %v1976
        %v1978 = vpop.f32.mrf.mxu0
        %v1979 = vadd.f32 %v1960, %v1978
        %1980 = vdwg.mxu0
        %v1981 = vpack.c.bf16 %v1972, %v1972
        %v1982 = vpack.c.bf16 %v1974, %v1974
        %v1983 = vpack.c.bf16 %v1977, %v1977
        %v1984 = vpack.c.bf16 %v1979, %v1979
        %s1985 = scalar_lea.vmem [#allocation2], 1024
        %v1986 = vld [vmem:[%s1985] sm:$0xf]
        %v1987 = vld [vmem:[%s1985 + $0x4] sm:$0xf]
        %v1988 = vld [vmem:[%s1985 + $0x8] sm:$0xf]
        %v1989 = vld [vmem:[%s1985 + $0xc] sm:$0xf]
        %v1990 = vld [vmem:[%s1985 + $0x10] sm:$0xf]
        %v1991 = vld [vmem:[%s1985 + $0x14] sm:$0xf]
        %v1992 = vld [vmem:[%s1985 + $0x18] sm:$0xf]
        %v1993 = vld [vmem:[%s1985 + $0x1c] sm:$0xf]
        %v1994 = vld [vmem:[%s1985 + $0x20] sm:$0xf]
        %v1995 = vld [vmem:[%s1985 + $0x24] sm:$0xf]
        %v1996 = vld [vmem:[%s1985 + $0x28] sm:$0xf]
        %v1997 = vld [vmem:[%s1985 + $0x2c] sm:$0xf]
        %v1998 = vld [vmem:[%s1985 + $0x30] sm:$0xf]
        %v1999 = vld [vmem:[%s1985 + $0x34] sm:$0xf]
        %v2000 = vld [vmem:[%s1985 + $0x38] sm:$0xf]
        %v2001 = vld [vmem:[%s1985 + $0x3c] sm:$0xf]
        %v2002 = vld [vmem:[%s1985 + $0x40] sm:$0xf]
        %v2003 = vld [vmem:[%s1985 + $0x44] sm:$0xf]
        %v2004 = vld [vmem:[%s1985 + $0x48] sm:$0xf]
        %v2005 = vld [vmem:[%s1985 + $0x4c] sm:$0xf]
        %v2006 = vld [vmem:[%s1985 + $0x50] sm:$0xf]
        %v2007 = vld [vmem:[%s1985 + $0x54] sm:$0xf]
        %v2008 = vld [vmem:[%s1985 + $0x58] sm:$0xf]
        %v2009 = vld [vmem:[%s1985 + $0x5c] sm:$0xf]
        %v2010 = vld [vmem:[%s1985 + $0x60] sm:$0xf]
        %v2011 = vld [vmem:[%s1985 + $0x64] sm:$0xf]
        %v2012 = vld [vmem:[%s1985 + $0x68] sm:$0xf]
        %v2013 = vld [vmem:[%s1985 + $0x6c] sm:$0xf]
        %v2014 = vld [vmem:[%s1985 + $0x70] sm:$0xf]
        %v2015 = vld [vmem:[%s1985 + $0x74] sm:$0xf]
        %v2016 = vld [vmem:[%s1985 + $0x78] sm:$0xf]
        %v2017 = vld [vmem:[%s1985 + $0x7c] sm:$0xf]
        %v2050 = vunpack.c.l.b16 %v1986
        %v2051 = vunpack.c.l.b16 %v1987
        %v2052 = vunpack.c.l.b16 %v1988
        %v2053 = vunpack.c.l.b16 %v1989
        %v2054 = vunpack.c.l.b16 %v1990
        %v2055 = vunpack.c.l.b16 %v1991
        %v2056 = vunpack.c.l.b16 %v1992
        %v2057 = vunpack.c.l.b16 %v1993
        %v2058 = vunpack.c.l.b16 %v1994
        %v2059 = vunpack.c.l.b16 %v1995
        %v2060 = vunpack.c.l.b16 %v1996
        %v2061 = vunpack.c.l.b16 %v1997
        %v2062 = vunpack.c.l.b16 %v1998
        %v2063 = vunpack.c.l.b16 %v1999
        %v2064 = vunpack.c.l.b16 %v2000
        %v2065 = vunpack.c.l.b16 %v2001
        %v2066 = vunpack.c.l.b16 %v2002
        %v2067 = vunpack.c.l.b16 %v2003
        %v2068 = vunpack.c.l.b16 %v2004
        %v2069 = vunpack.c.l.b16 %v2005
        %v2070 = vunpack.c.l.b16 %v2006
        %v2071 = vunpack.c.l.b16 %v2007
        %v2072 = vunpack.c.l.b16 %v2008
        %v2073 = vunpack.c.l.b16 %v2009
        %v2074 = vunpack.c.l.b16 %v2010
        %v2075 = vunpack.c.l.b16 %v2011
        %v2076 = vunpack.c.l.b16 %v2012
        %v2077 = vunpack.c.l.b16 %v2013
        %v2078 = vunpack.c.l.b16 %v2014
        %v2079 = vunpack.c.l.b16 %v2015
        %v2080 = vunpack.c.l.b16 %v2016
        %v2081 = vunpack.c.l.b16 %v2017
        %v2082 = vpack.c.b16 %v2051, %v2050
        %v2083 = vpack.c.b16 %v2053, %v2052
        %v2084 = vpack.c.b16 %v2055, %v2054
        %v2085 = vpack.c.b16 %v2057, %v2056
        %v2086 = vpack.c.b16 %v2059, %v2058
        %v2087 = vpack.c.b16 %v2061, %v2060
        %v2088 = vpack.c.b16 %v2063, %v2062
        %v2089 = vpack.c.b16 %v2065, %v2064
        %v2090 = vpack.c.b16 %v2067, %v2066
        %v2091 = vpack.c.b16 %v2069, %v2068
        %v2092 = vpack.c.b16 %v2071, %v2070
        %v2093 = vpack.c.b16 %v2073, %v2072
        %v2094 = vpack.c.b16 %v2075, %v2074
        %v2095 = vpack.c.b16 %v2077, %v2076
        %v2096 = vpack.c.b16 %v2079, %v2078
        %v2097 = vpack.c.b16 %v2081, %v2080
        %2114 = vmatpush.bf16.msra.mxu0 %v2089
        %2115 = vmatpush.bf16.msra.mxu0 %v2088
        %2116 = vmatpush.bf16.msra.mxu0 %v2087
        %2117 = vmatpush.bf16.msra.mxu0 %v2086
        %2118 = vmatpush.bf16.msra.mxu0 %v2085
        %2119 = vmatpush.bf16.msra.mxu0 %v2084
        %2120 = vmatpush.bf16.msra.mxu0 %v2083
        %2121 = vmatpush.bf16.msra.mxu0 %v2082
        %2122 = vmatmul.bf16.gmra.mxu0 %v614
        %v2123 = vpop.f32.mrf.mxu0
        %v2124 = vadd.f32 0.0, %v2123
        %v2125 = vpop.f32.mrf.mxu0
        %v2126 = vadd.f32 0.0, %v2125
        %2127 = vmatmul.bf16.gmra.mxu0 %v616
        %v2128 = vpop.f32.mrf.mxu0
        %v2129 = vadd.f32 0.0, %v2128
        %v2130 = vpop.f32.mrf.mxu0
        %v2131 = vadd.f32 0.0, %v2130
        %2132 = vdwg.mxu0
        %2133 = vmatpush.bf16.msra.mxu0 %v2097
        %2134 = vmatpush.bf16.msra.mxu0 %v2096
        %2135 = vmatpush.bf16.msra.mxu0 %v2095
        %2136 = vmatpush.bf16.msra.mxu0 %v2094
        %2137 = vmatpush.bf16.msra.mxu0 %v2093
        %2138 = vmatpush.bf16.msra.mxu0 %v2092
        %2139 = vmatpush.bf16.msra.mxu0 %v2091
        %2140 = vmatpush.bf16.msra.mxu0 %v2090
        %2141 = vmatmul.bf16.gmra.mxu0 %v615
        %v2142 = vpop.f32.mrf.mxu0
        %v2143 = vadd.f32 %v2124, %v2142
        %v2144 = vpop.f32.mrf.mxu0
        %v2145 = vadd.f32 %v2126, %v2144
        %2146 = vmatmul.bf16.gmra.mxu0 %v617
        %v2147 = vpop.f32.mrf.mxu0
        %v2148 = vadd.f32 %v2129, %v2147
        %v2149 = vpop.f32.mrf.mxu0
        %v2150 = vadd.f32 %v2131, %v2149
        %2151 = vdwg.mxu0
        %v2152 = vpack.c.bf16 %v2143, %v2143
        %v2153 = vpack.c.bf16 %v2145, %v2145
        %v2154 = vpack.c.bf16 %v2148, %v2148
        %v2155 = vpack.c.bf16 %v2150, %v2150
        %v2160 = vunpack.c.l.b16 %v784
        %v2161 = vunpack.c.l.b16 %v785
        %v2162 = vunpack.c.l.b16 %v786
        %v2163 = vunpack.c.l.b16 %v787
        %v2164 = vpack.c.b16 %v2161, %v2160
        %v2165 = vpack.c.b16 %v2163, %v2162
        %v2172 = vunpack.c.l.b16 %v955
        %v2173 = vunpack.c.l.b16 %v956
        %v2174 = vunpack.c.l.b16 %v957
        %v2175 = vunpack.c.l.b16 %v958
        %v2176 = vpack.c.b16 %v2173, %v2172
        %v2177 = vpack.c.b16 %v2175, %v2174
        %v2184 = vunpack.c.l.b16 %v1126
        %v2185 = vunpack.c.l.b16 %v1127
        %v2186 = vunpack.c.l.b16 %v1128
        %v2187 = vunpack.c.l.b16 %v1129
        %v2188 = vpack.c.b16 %v2185, %v2184
        %v2189 = vpack.c.b16 %v2187, %v2186
        %v2196 = vunpack.c.l.b16 %v1297
        %v2197 = vunpack.c.l.b16 %v1298
        %v2198 = vunpack.c.l.b16 %v1299
        %v2199 = vunpack.c.l.b16 %v1300
        %v2200 = vpack.c.b16 %v2197, %v2196
        %v2201 = vpack.c.b16 %v2199, %v2198
        %v2208 = vunpack.c.l.b16 %v1468
        %v2209 = vunpack.c.l.b16 %v1469
        %v2210 = vunpack.c.l.b16 %v1470
        %v2211 = vunpack.c.l.b16 %v1471
        %v2212 = vpack.c.b16 %v2209, %v2208
        %v2213 = vpack.c.b16 %v2211, %v2210
        %v2220 = vunpack.c.l.b16 %v1639
        %v2221 = vunpack.c.l.b16 %v1640
        %v2222 = vunpack.c.l.b16 %v1641
        %v2223 = vunpack.c.l.b16 %v1642
        %v2224 = vpack.c.b16 %v2221, %v2220
        %v2225 = vpack.c.b16 %v2223, %v2222
        %v2232 = vunpack.c.l.b16 %v1810
        %v2233 = vunpack.c.l.b16 %v1811
        %v2234 = vunpack.c.l.b16 %v1812
        %v2235 = vunpack.c.l.b16 %v1813
        %v2236 = vpack.c.b16 %v2233, %v2232
        %v2237 = vpack.c.b16 %v2235, %v2234
        %v2244 = vunpack.c.l.b16 %v1981
        %v2245 = vunpack.c.l.b16 %v1982
        %v2246 = vunpack.c.l.b16 %v1983
        %v2247 = vunpack.c.l.b16 %v1984
        %v2248 = vpack.c.b16 %v2245, %v2244
        %v2249 = vpack.c.b16 %v2247, %v2246
        %v2256 = vunpack.c.l.b16 %v2152
        %v2257 = vunpack.c.l.b16 %v2153
        %v2258 = vunpack.c.l.b16 %v2154
        %v2259 = vunpack.c.l.b16 %v2155
        %v2260 = vpack.c.b16 %v2257, %v2256
        %v2261 = vpack.c.b16 %v2259, %v2258
        %v2264 = vld [vmem:[%s2] sm:$0xff]
        %v2265 = vld [vmem:[%s2 + $0x8] sm:$0xf]
        %v2266 = vld [vmem:[%s2 + $0xc] sm:$0xff]
        %v2267 = vld [vmem:[%s2 + $0x14] sm:$0xf]
        %v2268 = vld [vmem:[%s2 + $0x18] sm:$0xff]
        %v2269 = vld [vmem:[%s2 + $0x20] sm:$0xf]
        %v2270 = vld [vmem:[%s2 + $0x24] sm:$0xff]
        %v2271 = vld [vmem:[%s2 + $0x2c] sm:$0xf]
        %v2280 = vunpack.c.l.b16 %v2264
        %v2281 = vunpack.c.h.b16 %v2264
        %v2282 = vunpack.c.l.b16 %v2265
        %v2283 = vunpack.c.l.b16 %v2266
        %v2284 = vunpack.c.h.b16 %v2266
        %v2285 = vunpack.c.l.b16 %v2267
        %v2286 = vunpack.c.l.b16 %v2268
        %v2287 = vunpack.c.h.b16 %v2268
        %v2288 = vunpack.c.l.b16 %v2269
        %v2289 = vunpack.c.l.b16 %v2270
        %v2290 = vunpack.c.h.b16 %v2270
        %v2291 = vunpack.c.l.b16 %v2271
        %v2292 = vpack.c.b16 %v2283, %v2280
        %v2293 = vpack.c.b16 %v2284, %v2281
        %v2294 = vpack.c.b16 %v2285, %v2282
        %v2295 = vpack.c.b16 %v2289, %v2286
        %v2296 = vpack.c.b16 %v2290, %v2287
        %v2297 = vpack.c.b16 %v2291, %v2288
        %vm2302 = vcmask 261120
        %v2304 = vsel %vm2302, %v2294, 0
        %v2307 = vsel %vm2302, %v2297, 0
        %2309 = vmatpush.bf16.msra.mxu0 %v2201
        %2310 = vmatpush.bf16.msra.mxu0 %v2200
        %2311 = vmatpush.bf16.msra.mxu0 %v2189
        %2312 = vmatpush.bf16.msra.mxu0 %v2188
        %2313 = vmatpush.bf16.msra.mxu0 %v2177
        %2314 = vmatpush.bf16.msra.mxu0 %v2176
        %2315 = vmatpush.bf16.msra.mxu0 %v2165
        %2316 = vmatpush.bf16.msra.mxu0 %v2164
        %2317 = vmatmul.bf16.gmra.mxu0 %v2292
        %v2318 = vpop.f32.mrf.mxu0
        %v2319 = vadd.f32 0.0, %v2318
        %v2320 = vpop.f32.mrf.mxu0
        %v2321 = vadd.f32 0.0, %v2320
        %2322 = vmatmul.bf16.gmra.mxu0 %v2295
        %v2323 = vpop.f32.mrf.mxu0
        %v2324 = vadd.f32 0.0, %v2323
        %v2325 = vpop.f32.mrf.mxu0
        %v2326 = vadd.f32 0.0, %v2325
        %2327 = vdwg.mxu0
        %2328 = vmatpush.bf16.msra.mxu0 %v2249
        %2329 = vmatpush.bf16.msra.mxu0 %v2248
        %2330 = vmatpush.bf16.msra.mxu0 %v2237
        %2331 = vmatpush.bf16.msra.mxu0 %v2236
        %2332 = vmatpush.bf16.msra.mxu0 %v2225
        %2333 = vmatpush.bf16.msra.mxu0 %v2224
        %2334 = vmatpush.bf16.msra.mxu0 %v2213
        %2335 = vmatpush.bf16.msra.mxu0 %v2212
        %2336 = vmatmul.bf16.gmra.mxu0 %v2293
        %v2337 = vpop.f32.mrf.mxu0
        %v2338 = vadd.f32 %v2319, %v2337
        %v2339 = vpop.f32.mrf.mxu0
        %v2340 = vadd.f32 %v2321, %v2339
        %2341 = vmatmul.bf16.gmra.mxu0 %v2296
        %v2342 = vpop.f32.mrf.mxu0
        %v2343 = vadd.f32 %v2324, %v2342
        %v2344 = vpop.f32.mrf.mxu0
        %v2345 = vadd.f32 %v2326, %v2344
        %2346 = vdwg.mxu0
        %2347 = vmatpush.bf16.msra.mxu0 0
        %2348 = vmatpush.bf16.msra.mxu0 0
        %2349 = vmatpush.bf16.msra.mxu0 0
        %2350 = vmatpush.bf16.msra.mxu0 0
        %2351 = vmatpush.bf16.msra.mxu0 0
        %2352 = vmatpush.bf16.msra.mxu0 0
        %2353 = vmatpush.bf16.msra.mxu0 %v2261
        %2354 = vmatpush.bf16.msra.mxu0 %v2260
        %2355 = vmatmul.bf16.gmra.mxu0 %v2304
        %v2356 = vpop.f32.mrf.mxu0
        %v2357 = vadd.f32 %v2338, %v2356
        %v2358 = vpop.f32.mrf.mxu0
        %v2359 = vadd.f32 %v2340, %v2358
        %2360 = vmatmul.bf16.gmra.mxu0 %v2307
        %v2361 = vpop.f32.mrf.mxu0
        %v2362 = vadd.f32 %v2343, %v2361
        %v2363 = vpop.f32.mrf.mxu0
        %v2364 = vadd.f32 %v2345, %v2363
        %2365 = vdwg.mxu0
        %s2366 = scalar_lea.vmem %s3, 32
        %v2367 = vld [vmem:[%s2366] sm:$0xff]
        %v2368 = vld [vmem:[%s2366 + $0x8] sm:$0xff]
        %v2369 = vld [vmem:[%s2366 + $0x10] sm:$0xff]
        %v2370 = vld [vmem:[%s2366 + $0x18] sm:$0xff]
        %2372 = vset.pattern.permute.xlu0 0
        %2373 = vperm.xlu0 %2372, %v2367
        %v2374 = vpop.permute.xlu0 %2373
        %2377 = vset.pattern.permute.xlu0 0
        %2378 = vperm.xlu0 %2377, %v2368
        %v2379 = vpop.permute.xlu0 %2378
        %2382 = vset.pattern.permute.xlu0 0
        %2383 = vperm.xlu0 %2382, %v2369
        %v2384 = vpop.permute.xlu0 %2383
        %2387 = vset.pattern.permute.xlu0 0
        %2388 = vperm.xlu0 %2387, %v2370
        %v2389 = vpop.permute.xlu0 %2388
        %v2391 = vmul.f32 %v2357, %v2374
        %v2392 = vmul.f32 %v2359, %v2379
        %v2393 = vmul.f32 %v2362, %v2384
        %v2394 = vmul.f32 %v2364, %v2389
        %s2395 = scalar_lea.vmem %s4, 32
        %v2396 = vld [vmem:[%s2395] sm:$0xff]
        %v2397 = vld [vmem:[%s2395 + $0x8] sm:$0xff]
        %v2398 = vld [vmem:[%s2395 + $0x10] sm:$0xff]
        %v2399 = vld [vmem:[%s2395 + $0x18] sm:$0xff]
        %2401 = vset.pattern.permute.xlu0 0
        %2402 = vperm.xlu0 %2401, %v2396
        %v2403 = vpop.permute.xlu0 %2402
        %2406 = vset.pattern.permute.xlu0 0
        %2407 = vperm.xlu0 %2406, %v2397
        %v2408 = vpop.permute.xlu0 %2407
        %2411 = vset.pattern.permute.xlu0 0
        %2412 = vperm.xlu0 %2411, %v2398
        %v2413 = vpop.permute.xlu0 %2412
        %2416 = vset.pattern.permute.xlu0 0
        %2417 = vperm.xlu0 %2416, %v2399
        %v2418 = vpop.permute.xlu0 %2417
        %v2420 = vadd.f32 %v2391, %v2403
        %v2421 = vadd.f32 %v2392, %v2408
        %v2422 = vadd.f32 %v2393, %v2413
        %v2423 = vadd.f32 %v2394, %v2418
        %v2424 = vld [vmem:[%s5] sm:$0xff]
        %v2425 = vld [vmem:[%s5 + $0x8] sm:$0xff]
        %v2426 = vld [vmem:[%s5 + $0x10] sm:$0xff]
        %v2427 = vld [vmem:[%s5 + $0x18] sm:$0xff]
        %v2428 = vld [vmem:[%s5 + $0x20] sm:$0xff]
        %v2429 = vld [vmem:[%s5 + $0x28] sm:$0xff]
        %v2430 = vld [vmem:[%s5 + $0x30] sm:$0xff]
        %v2431 = vld [vmem:[%s5 + $0x38] sm:$0xff]
        %v2432 = vld [vmem:[%s5 + $0x40] sm:$0xff]
        %v2433 = vld [vmem:[%s5 + $0x48] sm:$0xff]
        %v2434 = vld [vmem:[%s5 + $0x50] sm:$0xff]
        %v2435 = vld [vmem:[%s5 + $0x58] sm:$0xff]
        %v2436 = vld [vmem:[%s5 + $0x60] sm:$0xff]
        %v2437 = vld [vmem:[%s5 + $0x68] sm:$0xff]
        %v2438 = vld [vmem:[%s5 + $0x70] sm:$0xff]
        %v2439 = vld [vmem:[%s5 + $0x78] sm:$0xff]
        %v2440 = vld [vmem:[%s5 + $0x80] sm:$0xff]
        %v2441 = vld [vmem:[%s5 + $0x88] sm:$0xff]
        %v2442 = vld [vmem:[%s5 + $0x90] sm:$0xff]
        %v2443 = vld [vmem:[%s5 + $0x98] sm:$0xff]
        %v2444 = vld [vmem:[%s5 + $0xa0] sm:$0xff]
        %v2445 = vld [vmem:[%s5 + $0xa8] sm:$0xff]
        %v2446 = vld [vmem:[%s5 + $0xb0] sm:$0xff]
        %v2447 = vld [vmem:[%s5 + $0xb8] sm:$0xff]
        %v2448 = vld [vmem:[%s5 + $0xc0] sm:$0xff]
        %v2449 = vld [vmem:[%s5 + $0xc8] sm:$0xff]
        %v2450 = vld [vmem:[%s5 + $0xd0] sm:$0xff]
        %v2451 = vld [vmem:[%s5 + $0xd8] sm:$0xff]
        %v2452 = vld [vmem:[%s5 + $0xe0] sm:$0xff]
        %v2453 = vld [vmem:[%s5 + $0xe8] sm:$0xff]
        %v2454 = vld [vmem:[%s5 + $0xf0] sm:$0xff]
        %v2455 = vld [vmem:[%s5 + $0xf8] sm:$0xff]
        %v2488 = vunpack.c.l.b16 %v2424
        %v2489 = vunpack.c.h.b16 %v2424
        %v2490 = vunpack.c.l.b16 %v2425
        %v2491 = vunpack.c.h.b16 %v2425
        %v2492 = vunpack.c.l.b16 %v2426
        %v2493 = vunpack.c.h.b16 %v2426
        %v2494 = vunpack.c.l.b16 %v2427
        %v2495 = vunpack.c.h.b16 %v2427
        %v2496 = vunpack.c.l.b16 %v2428
        %v2497 = vunpack.c.h.b16 %v2428
        %v2498 = vunpack.c.l.b16 %v2429
        %v2499 = vunpack.c.h.b16 %v2429
        %v2500 = vunpack.c.l.b16 %v2430
        %v2501 = vunpack.c.h.b16 %v2430
        %v2502 = vunpack.c.l.b16 %v2431
        %v2503 = vunpack.c.h.b16 %v2431
        %v2504 = vunpack.c.l.b16 %v2432
        %v2505 = vunpack.c.h.b16 %v2432
        %v2506 = vunpack.c.l.b16 %v2433
        %v2507 = vunpack.c.h.b16 %v2433
        %v2508 = vunpack.c.l.b16 %v2434
        %v2509 = vunpack.c.h.b16 %v2434
        %v2510 = vunpack.c.l.b16 %v2435
        %v2511 = vunpack.c.h.b16 %v2435
        %v2512 = vunpack.c.l.b16 %v2436
        %v2513 = vunpack.c.h.b16 %v2436
        %v2514 = vunpack.c.l.b16 %v2437
        %v2515 = vunpack.c.h.b16 %v2437
        %v2516 = vunpack.c.l.b16 %v2438
        %v2517 = vunpack.c.h.b16 %v2438
        %v2518 = vunpack.c.l.b16 %v2439
        %v2519 = vunpack.c.h.b16 %v2439
        %v2520 = vunpack.c.l.b16 %v2440
        %v2521 = vunpack.c.h.b16 %v2440
        %v2522 = vunpack.c.l.b16 %v2441
        %v2523 = vunpack.c.h.b16 %v2441
        %v2524 = vunpack.c.l.b16 %v2442
        %v2525 = vunpack.c.h.b16 %v2442
        %v2526 = vunpack.c.l.b16 %v2443
        %v2527 = vunpack.c.h.b16 %v2443
        %v2528 = vunpack.c.l.b16 %v2444
        %v2529 = vunpack.c.h.b16 %v2444
        %v2530 = vunpack.c.l.b16 %v2445
        %v2531 = vunpack.c.h.b16 %v2445
        %v2532 = vunpack.c.l.b16 %v2446
        %v2533 = vunpack.c.h.b16 %v2446
        %v2534 = vunpack.c.l.b16 %v2447
        %v2535 = vunpack.c.h.b16 %v2447
        %v2536 = vunpack.c.l.b16 %v2448
        %v2537 = vunpack.c.h.b16 %v2448
        %v2538 = vunpack.c.l.b16 %v2449
        %v2539 = vunpack.c.h.b16 %v2449
        %v2540 = vunpack.c.l.b16 %v2450
        %v2541 = vunpack.c.h.b16 %v2450
        %v2542 = vunpack.c.l.b16 %v2451
        %v2543 = vunpack.c.h.b16 %v2451
        %v2544 = vunpack.c.l.b16 %v2452
        %v2545 = vunpack.c.h.b16 %v2452
        %v2546 = vunpack.c.l.b16 %v2453
        %v2547 = vunpack.c.h.b16 %v2453
        %v2548 = vunpack.c.l.b16 %v2454
        %v2549 = vunpack.c.h.b16 %v2454
        %v2550 = vunpack.c.l.b16 %v2455
        %v2551 = vunpack.c.h.b16 %v2455
        %v2552 = vpack.c.b16 %v2490, %v2488
        %v2553 = vpack.c.b16 %v2491, %v2489
        %v2554 = vpack.c.b16 %v2494, %v2492
        %v2555 = vpack.c.b16 %v2495, %v2493
        %v2556 = vpack.c.b16 %v2498, %v2496
        %v2557 = vpack.c.b16 %v2499, %v2497
        %v2558 = vpack.c.b16 %v2502, %v2500
        %v2559 = vpack.c.b16 %v2503, %v2501
        %v2560 = vpack.c.b16 %v2506, %v2504
        %v2561 = vpack.c.b16 %v2507, %v2505
        %v2562 = vpack.c.b16 %v2510, %v2508
        %v2563 = vpack.c.b16 %v2511, %v2509
        %v2564 = vpack.c.b16 %v2514, %v2512
        %v2565 = vpack.c.b16 %v2515, %v2513
        %v2566 = vpack.c.b16 %v2518, %v2516
        %v2567 = vpack.c.b16 %v2519, %v2517
        %v2568 = vpack.c.b16 %v2522, %v2520
        %v2569 = vpack.c.b16 %v2523, %v2521
        %v2570 = vpack.c.b16 %v2526, %v2524
        %v2571 = vpack.c.b16 %v2527, %v2525
        %v2572 = vpack.c.b16 %v2530, %v2528
        %v2573 = vpack.c.b16 %v2531, %v2529
        %v2574 = vpack.c.b16 %v2534, %v2532
        %v2575 = vpack.c.b16 %v2535, %v2533
        %v2576 = vpack.c.b16 %v2538, %v2536
        %v2577 = vpack.c.b16 %v2539, %v2537
        %v2578 = vpack.c.b16 %v2542, %v2540
        %v2579 = vpack.c.b16 %v2543, %v2541
        %v2580 = vpack.c.b16 %v2546, %v2544
        %v2581 = vpack.c.b16 %v2547, %v2545
        %v2582 = vpack.c.b16 %v2550, %v2548
        %v2583 = vpack.c.b16 %v2551, %v2549
        %2616 = vmatpush.bf16.msra.mxu0 %v2566
        %2617 = vmatpush.bf16.msra.mxu0 %v2564
        %2618 = vmatpush.bf16.msra.mxu0 %v2562
        %2619 = vmatpush.bf16.msra.mxu0 %v2560
        %2620 = vmatpush.bf16.msra.mxu0 %v2558
        %2621 = vmatpush.bf16.msra.mxu0 %v2556
        %2622 = vmatpush.bf16.msra.mxu0 %v2554
        %2623 = vmatpush.bf16.msra.mxu0 %v2552
        %2624 = vmatmul.bf16.gmra.mxu0 %v614
        %v2625 = vpop.f32.mrf.mxu0
        %v2626 = vadd.f32 0.0, %v2625
        %v2627 = vpop.f32.mrf.mxu0
        %v2628 = vadd.f32 0.0, %v2627
        %2629 = vmatmul.bf16.gmra.mxu0 %v616
        %v2630 = vpop.f32.mrf.mxu0
        %v2631 = vadd.f32 0.0, %v2630
        %v2632 = vpop.f32.mrf.mxu0
        %v2633 = vadd.f32 0.0, %v2632
        %2634 = vdwg.mxu0
        %2635 = vmatpush.bf16.msra.mxu0 %v2582
        %2636 = vmatpush.bf16.msra.mxu0 %v2580
        %2637 = vmatpush.bf16.msra.mxu0 %v2578
        %2638 = vmatpush.bf16.msra.mxu0 %v2576
        %2639 = vmatpush.bf16.msra.mxu0 %v2574
        %2640 = vmatpush.bf16.msra.mxu0 %v2572
        %2641 = vmatpush.bf16.msra.mxu0 %v2570
        %2642 = vmatpush.bf16.msra.mxu0 %v2568
        %2643 = vmatmul.bf16.gmra.mxu0 %v615
        %v2644 = vpop.f32.mrf.mxu0
        %v2645 = vadd.f32 %v2626, %v2644
        %v2646 = vpop.f32.mrf.mxu0
        %v2647 = vadd.f32 %v2628, %v2646
        %2648 = vmatmul.bf16.gmra.mxu0 %v617
        %v2649 = vpop.f32.mrf.mxu0
        %v2650 = vadd.f32 %v2631, %v2649
        %v2651 = vpop.f32.mrf.mxu0
        %v2652 = vadd.f32 %v2633, %v2651
        %2653 = vdwg.mxu0
        %2654 = vmatpush.bf16.msra.mxu0 %v2567
        %2655 = vmatpush.bf16.msra.mxu0 %v2565
        %2656 = vmatpush.bf16.msra.mxu0 %v2563
        %2657 = vmatpush.bf16.msra.mxu0 %v2561
        %2658 = vmatpush.bf16.msra.mxu0 %v2559
        %2659 = vmatpush.bf16.msra.mxu0 %v2557
        %2660 = vmatpush.bf16.msra.mxu0 %v2555
        %2661 = vmatpush.bf16.msra.mxu0 %v2553
        %2662 = vmatmul.bf16.gmra.mxu0 %v614
        %v2663 = vpop.f32.mrf.mxu0
        %v2664 = vadd.f32 0.0, %v2663
        %v2665 = vpop.f32.mrf.mxu0
        %v2666 = vadd.f32 0.0, %v2665
        %2667 = vmatmul.bf16.gmra.mxu0 %v616
        %v2668 = vpop.f32.mrf.mxu0
        %v2669 = vadd.f32 0.0, %v2668
        %v2670 = vpop.f32.mrf.mxu0
        %v2671 = vadd.f32 0.0, %v2670
        %2672 = vdwg.mxu0
        %2673 = vmatpush.bf16.msra.mxu0 %v2583
        %2674 = vmatpush.bf16.msra.mxu0 %v2581
        %2675 = vmatpush.bf16.msra.mxu0 %v2579
        %2676 = vmatpush.bf16.msra.mxu0 %v2577
        %2677 = vmatpush.bf16.msra.mxu0 %v2575
        %2678 = vmatpush.bf16.msra.mxu0 %v2573
        %2679 = vmatpush.bf16.msra.mxu0 %v2571
        %2680 = vmatpush.bf16.msra.mxu0 %v2569
        %2681 = vmatmul.bf16.gmra.mxu0 %v615
        %v2682 = vpop.f32.mrf.mxu0
        %v2683 = vadd.f32 %v2664, %v2682
        %v2684 = vpop.f32.mrf.mxu0
        %v2685 = vadd.f32 %v2666, %v2684
        %2686 = vmatmul.bf16.gmra.mxu0 %v617
        %v2687 = vpop.f32.mrf.mxu0
        %v2688 = vadd.f32 %v2669, %v2687
        %v2689 = vpop.f32.mrf.mxu0
        %v2690 = vadd.f32 %v2671, %v2689
        %2691 = vdwg.mxu0
        %v2692 = vpack.c.bf16 %v2683, %v2645
        %v2693 = vpack.c.bf16 %v2685, %v2647
        %v2694 = vpack.c.bf16 %v2688, %v2650
        %v2695 = vpack.c.bf16 %v2690, %v2652
        %s2696 = scalar_lea.vmem %s5, 256
        %v2697 = vld [vmem:[%s2696] sm:$0xff]
        %v2698 = vld [vmem:[%s2696 + $0x8] sm:$0xff]
        %v2699 = vld [vmem:[%s2696 + $0x10] sm:$0xff]
        %v2700 = vld [vmem:[%s2696 + $0x18] sm:$0xff]
        %v2701 = vld [vmem:[%s2696 + $0x20] sm:$0xff]
        %v2702 = vld [vmem:[%s2696 + $0x28] sm:$0xff]
        %v2703 = vld [vmem:[%s2696 + $0x30] sm:$0xff]
        %v2704 = vld [vmem:[%s2696 + $0x38] sm:$0xff]
        %v2705 = vld [vmem:[%s2696 + $0x40] sm:$0xff]
        %v2706 = vld [vmem:[%s2696 + $0x48] sm:$0xff]
        %v2707 = vld [vmem:[%s2696 + $0x50] sm:$0xff]
        %v2708 = vld [vmem:[%s2696 + $0x58] sm:$0xff]
        %v2709 = vld [vmem:[%s2696 + $0x60] sm:$0xff]
        %v2710 = vld [vmem:[%s2696 + $0x68] sm:$0xff]
        %v2711 = vld [vmem:[%s2696 + $0x70] sm:$0xff]
        %v2712 = vld [vmem:[%s2696 + $0x78] sm:$0xff]
        %v2713 = vld [vmem:[%s2696 + $0x80] sm:$0xff]
        %v2714 = vld [vmem:[%s2696 + $0x88] sm:$0xff]
        %v2715 = vld [vmem:[%s2696 + $0x90] sm:$0xff]
        %v2716 = vld [vmem:[%s2696 + $0x98] sm:$0xff]
        %v2717 = vld [vmem:[%s2696 + $0xa0] sm:$0xff]
        %v2718 = vld [vmem:[%s2696 + $0xa8] sm:$0xff]
        %v2719 = vld [vmem:[%s2696 + $0xb0] sm:$0xff]
        %v2720 = vld [vmem:[%s2696 + $0xb8] sm:$0xff]
        %v2721 = vld [vmem:[%s2696 + $0xc0] sm:$0xff]
        %v2722 = vld [vmem:[%s2696 + $0xc8] sm:$0xff]
        %v2723 = vld [vmem:[%s2696 + $0xd0] sm:$0xff]
        %v2724 = vld [vmem:[%s2696 + $0xd8] sm:$0xff]
        %v2725 = vld [vmem:[%s2696 + $0xe0] sm:$0xff]
        %v2726 = vld [vmem:[%s2696 + $0xe8] sm:$0xff]
        %v2727 = vld [vmem:[%s2696 + $0xf0] sm:$0xff]
        %v2728 = vld [vmem:[%s2696 + $0xf8] sm:$0xff]
        %v2761 = vunpack.c.l.b16 %v2697
        %v2762 = vunpack.c.h.b16 %v2697
        %v2763 = vunpack.c.l.b16 %v2698
        %v2764 = vunpack.c.h.b16 %v2698
        %v2765 = vunpack.c.l.b16 %v2699
        %v2766 = vunpack.c.h.b16 %v2699
        %v2767 = vunpack.c.l.b16 %v2700
        %v2768 = vunpack.c.h.b16 %v2700
        %v2769 = vunpack.c.l.b16 %v2701
        %v2770 = vunpack.c.h.b16 %v2701
        %v2771 = vunpack.c.l.b16 %v2702
        %v2772 = vunpack.c.h.b16 %v2702
        %v2773 = vunpack.c.l.b16 %v2703
        %v2774 = vunpack.c.h.b16 %v2703
        %v2775 = vunpack.c.l.b16 %v2704
        %v2776 = vunpack.c.h.b16 %v2704
        %v2777 = vunpack.c.l.b16 %v2705
        %v2778 = vunpack.c.h.b16 %v2705
        %v2779 = vunpack.c.l.b16 %v2706
        %v2780 = vunpack.c.h.b16 %v2706
        %v2781 = vunpack.c.l.b16 %v2707
        %v2782 = vunpack.c.h.b16 %v2707
        %v2783 = vunpack.c.l.b16 %v2708
        %v2784 = vunpack.c.h.b16 %v2708
        %v2785 = vunpack.c.l.b16 %v2709
        %v2786 = vunpack.c.h.b16 %v2709
        %v2787 = vunpack.c.l.b16 %v2710
        %v2788 = vunpack.c.h.b16 %v2710
        %v2789 = vunpack.c.l.b16 %v2711
        %v2790 = vunpack.c.h.b16 %v2711
        %v2791 = vunpack.c.l.b16 %v2712
        %v2792 = vunpack.c.h.b16 %v2712
        %v2793 = vunpack.c.l.b16 %v2713
        %v2794 = vunpack.c.h.b16 %v2713
        %v2795 = vunpack.c.l.b16 %v2714
        %v2796 = vunpack.c.h.b16 %v2714
        %v2797 = vunpack.c.l.b16 %v2715
        %v2798 = vunpack.c.h.b16 %v2715
        %v2799 = vunpack.c.l.b16 %v2716
        %v2800 = vunpack.c.h.b16 %v2716
        %v2801 = vunpack.c.l.b16 %v2717
        %v2802 = vunpack.c.h.b16 %v2717
        %v2803 = vunpack.c.l.b16 %v2718
        %v2804 = vunpack.c.h.b16 %v2718
        %v2805 = vunpack.c.l.b16 %v2719
        %v2806 = vunpack.c.h.b16 %v2719
        %v2807 = vunpack.c.l.b16 %v2720
        %v2808 = vunpack.c.h.b16 %v2720
        %v2809 = vunpack.c.l.b16 %v2721
        %v2810 = vunpack.c.h.b16 %v2721
        %v2811 = vunpack.c.l.b16 %v2722
        %v2812 = vunpack.c.h.b16 %v2722
        %v2813 = vunpack.c.l.b16 %v2723
        %v2814 = vunpack.c.h.b16 %v2723
        %v2815 = vunpack.c.l.b16 %v2724
        %v2816 = vunpack.c.h.b16 %v2724
        %v2817 = vunpack.c.l.b16 %v2725
        %v2818 = vunpack.c.h.b16 %v2725
        %v2819 = vunpack.c.l.b16 %v2726
        %v2820 = vunpack.c.h.b16 %v2726
        %v2821 = vunpack.c.l.b16 %v2727
        %v2822 = vunpack.c.h.b16 %v2727
        %v2823 = vunpack.c.l.b16 %v2728
        %v2824 = vunpack.c.h.b16 %v2728
        %v2825 = vpack.c.b16 %v2763, %v2761
        %v2826 = vpack.c.b16 %v2764, %v2762
        %v2827 = vpack.c.b16 %v2767, %v2765
        %v2828 = vpack.c.b16 %v2768, %v2766
        %v2829 = vpack.c.b16 %v2771, %v2769
        %v2830 = vpack.c.b16 %v2772, %v2770
        %v2831 = vpack.c.b16 %v2775, %v2773
        %v2832 = vpack.c.b16 %v2776, %v2774
        %v2833 = vpack.c.b16 %v2779, %v2777
        %v2834 = vpack.c.b16 %v2780, %v2778
        %v2835 = vpack.c.b16 %v2783, %v2781
        %v2836 = vpack.c.b16 %v2784, %v2782
        %v2837 = vpack.c.b16 %v2787, %v2785
        %v2838 = vpack.c.b16 %v2788, %v2786
        %v2839 = vpack.c.b16 %v2791, %v2789
        %v2840 = vpack.c.b16 %v2792, %v2790
        %v2841 = vpack.c.b16 %v2795, %v2793
        %v2842 = vpack.c.b16 %v2796, %v2794
        %v2843 = vpack.c.b16 %v2799, %v2797
        %v2844 = vpack.c.b16 %v2800, %v2798
        %v2845 = vpack.c.b16 %v2803, %v2801
        %v2846 = vpack.c.b16 %v2804, %v2802
        %v2847 = vpack.c.b16 %v2807, %v2805
        %v2848 = vpack.c.b16 %v2808, %v2806
        %v2849 = vpack.c.b16 %v2811, %v2809
        %v2850 = vpack.c.b16 %v2812, %v2810
        %v2851 = vpack.c.b16 %v2815, %v2813
        %v2852 = vpack.c.b16 %v2816, %v2814
        %v2853 = vpack.c.b16 %v2819, %v2817
        %v2854 = vpack.c.b16 %v2820, %v2818
        %v2855 = vpack.c.b16 %v2823, %v2821
        %v2856 = vpack.c.b16 %v2824, %v2822
        %2889 = vmatpush.bf16.msra.mxu0 %v2839
        %2890 = vmatpush.bf16.msra.mxu0 %v2837
        %2891 = vmatpush.bf16.msra.mxu0 %v2835
        %2892 = vmatpush.bf16.msra.mxu0 %v2833
        %2893 = vmatpush.bf16.msra.mxu0 %v2831
        %2894 = vmatpush.bf16.msra.mxu0 %v2829
        %2895 = vmatpush.bf16.msra.mxu0 %v2827
        %2896 = vmatpush.bf16.msra.mxu0 %v2825
        %2897 = vmatmul.bf16.gmra.mxu0 %v614
        %v2898 = vpop.f32.mrf.mxu0
        %v2899 = vadd.f32 0.0, %v2898
        %v2900 = vpop.f32.mrf.mxu0
        %v2901 = vadd.f32 0.0, %v2900
        %2902 = vmatmul.bf16.gmra.mxu0 %v616
        %v2903 = vpop.f32.mrf.mxu0
        %v2904 = vadd.f32 0.0, %v2903
        %v2905 = vpop.f32.mrf.mxu0
        %v2906 = vadd.f32 0.0, %v2905
        %2907 = vdwg.mxu0
        %2908 = vmatpush.bf16.msra.mxu0 %v2855
        %2909 = vmatpush.bf16.msra.mxu0 %v2853
        %2910 = vmatpush.bf16.msra.mxu0 %v2851
        %2911 = vmatpush.bf16.msra.mxu0 %v2849
        %2912 = vmatpush.bf16.msra.mxu0 %v2847
        %2913 = vmatpush.bf16.msra.mxu0 %v2845
        %2914 = vmatpush.bf16.msra.mxu0 %v2843
        %2915 = vmatpush.bf16.msra.mxu0 %v2841
        %2916 = vmatmul.bf16.gmra.mxu0 %v615
        %v2917 = vpop.f32.mrf.mxu0
        %v2918 = vadd.f32 %v2899, %v2917
        %v2919 = vpop.f32.mrf.mxu0
        %v2920 = vadd.f32 %v2901, %v2919
        %2921 = vmatmul.bf16.gmra.mxu0 %v617
        %v2922 = vpop.f32.mrf.mxu0
        %v2923 = vadd.f32 %v2904, %v2922
        %v2924 = vpop.f32.mrf.mxu0
        %v2925 = vadd.f32 %v2906, %v2924
        %2926 = vdwg.mxu0
        %2927 = vmatpush.bf16.msra.mxu0 %v2840
        %2928 = vmatpush.bf16.msra.mxu0 %v2838
        %2929 = vmatpush.bf16.msra.mxu0 %v2836
        %2930 = vmatpush.bf16.msra.mxu0 %v2834
        %2931 = vmatpush.bf16.msra.mxu0 %v2832
        %2932 = vmatpush.bf16.msra.mxu0 %v2830
        %2933 = vmatpush.bf16.msra.mxu0 %v2828
        %2934 = vmatpush.bf16.msra.mxu0 %v2826
        %2935 = vmatmul.bf16.gmra.mxu0 %v614
        %v2936 = vpop.f32.mrf.mxu0
        %v2937 = vadd.f32 0.0, %v2936
        %v2938 = vpop.f32.mrf.mxu0
        %v2939 = vadd.f32 0.0, %v2938
        %2940 = vmatmul.bf16.gmra.mxu0 %v616
        %v2941 = vpop.f32.mrf.mxu0
        %v2942 = vadd.f32 0.0, %v2941
        %v2943 = vpop.f32.mrf.mxu0
        %v2944 = vadd.f32 0.0, %v2943
        %2945 = vdwg.mxu0
        %2946 = vmatpush.bf16.msra.mxu0 %v2856
        %2947 = vmatpush.bf16.msra.mxu0 %v2854
        %2948 = vmatpush.bf16.msra.mxu0 %v2852
        %2949 = vmatpush.bf16.msra.mxu0 %v2850
        %2950 = vmatpush.bf16.msra.mxu0 %v2848
        %2951 = vmatpush.bf16.msra.mxu0 %v2846
        %2952 = vmatpush.bf16.msra.mxu0 %v2844
        %2953 = vmatpush.bf16.msra.mxu0 %v2842
        %2954 = vmatmul.bf16.gmra.mxu0 %v615
        %v2955 = vpop.f32.mrf.mxu0
        %v2956 = vadd.f32 %v2937, %v2955
        %v2957 = vpop.f32.mrf.mxu0
        %v2958 = vadd.f32 %v2939, %v2957
        %2959 = vmatmul.bf16.gmra.mxu0 %v617
        %v2960 = vpop.f32.mrf.mxu0
        %v2961 = vadd.f32 %v2942, %v2960
        %v2962 = vpop.f32.mrf.mxu0
        %v2963 = vadd.f32 %v2944, %v2962
        %2964 = vdwg.mxu0
        %v2965 = vpack.c.bf16 %v2956, %v2918
        %v2966 = vpack.c.bf16 %v2958, %v2920
        %v2967 = vpack.c.bf16 %v2961, %v2923
        %v2968 = vpack.c.bf16 %v2963, %v2925
        %s2969 = scalar_lea.vmem %s5, 512
        %v2970 = vld [vmem:[%s2969] sm:$0xff]
        %v2971 = vld [vmem:[%s2969 + $0x8] sm:$0xff]
        %v2972 = vld [vmem:[%s2969 + $0x10] sm:$0xff]
        %v2973 = vld [vmem:[%s2969 + $0x18] sm:$0xff]
        %v2974 = vld [vmem:[%s2969 + $0x20] sm:$0xff]
        %v2975 = vld [vmem:[%s2969 + $0x28] sm:$0xff]
        %v2976 = vld [vmem:[%s2969 + $0x30] sm:$0xff]
        %v2977 = vld [vmem:[%s2969 + $0x38] sm:$0xff]
        %v2978 = vld [vmem:[%s2969 + $0x40] sm:$0xff]
        %v2979 = vld [vmem:[%s2969 + $0x48] sm:$0xff]
        %v2980 = vld [vmem:[%s2969 + $0x50] sm:$0xff]
        %v2981 = vld [vmem:[%s2969 + $0x58] sm:$0xff]
        %v2982 = vld [vmem:[%s2969 + $0x60] sm:$0xff]
        %v2983 = vld [vmem:[%s2969 + $0x68] sm:$0xff]
        %v2984 = vld [vmem:[%s2969 + $0x70] sm:$0xff]
        %v2985 = vld [vmem:[%s2969 + $0x78] sm:$0xff]
        %v2986 = vld [vmem:[%s2969 + $0x80] sm:$0xff]
        %v2987 = vld [vmem:[%s2969 + $0x88] sm:$0xff]
        %v2988 = vld [vmem:[%s2969 + $0x90] sm:$0xff]
        %v2989 = vld [vmem:[%s2969 + $0x98] sm:$0xff]
        %v2990 = vld [vmem:[%s2969 + $0xa0] sm:$0xff]
        %v2991 = vld [vmem:[%s2969 + $0xa8] sm:$0xff]
        %v2992 = vld [vmem:[%s2969 + $0xb0] sm:$0xff]
        %v2993 = vld [vmem:[%s2969 + $0xb8] sm:$0xff]
        %v2994 = vld [vmem:[%s2969 + $0xc0] sm:$0xff]
        %v2995 = vld [vmem:[%s2969 + $0xc8] sm:$0xff]
        %v2996 = vld [vmem:[%s2969 + $0xd0] sm:$0xff]
        %v2997 = vld [vmem:[%s2969 + $0xd8] sm:$0xff]
        %v2998 = vld [vmem:[%s2969 + $0xe0] sm:$0xff]
        %v2999 = vld [vmem:[%s2969 + $0xe8] sm:$0xff]
        %v3000 = vld [vmem:[%s2969 + $0xf0] sm:$0xff]
        %v3001 = vld [vmem:[%s2969 + $0xf8] sm:$0xff]
        %v3034 = vunpack.c.l.b16 %v2970
        %v3035 = vunpack.c.h.b16 %v2970
        %v3036 = vunpack.c.l.b16 %v2971
        %v3037 = vunpack.c.h.b16 %v2971
        %v3038 = vunpack.c.l.b16 %v2972
        %v3039 = vunpack.c.h.b16 %v2972
        %v3040 = vunpack.c.l.b16 %v2973
        %v3041 = vunpack.c.h.b16 %v2973
        %v3042 = vunpack.c.l.b16 %v2974
        %v3043 = vunpack.c.h.b16 %v2974
        %v3044 = vunpack.c.l.b16 %v2975
        %v3045 = vunpack.c.h.b16 %v2975
        %v3046 = vunpack.c.l.b16 %v2976
        %v3047 = vunpack.c.h.b16 %v2976
        %v3048 = vunpack.c.l.b16 %v2977
        %v3049 = vunpack.c.h.b16 %v2977
        %v3050 = vunpack.c.l.b16 %v2978
        %v3051 = vunpack.c.h.b16 %v2978
        %v3052 = vunpack.c.l.b16 %v2979
        %v3053 = vunpack.c.h.b16 %v2979
        %v3054 = vunpack.c.l.b16 %v2980
        %v3055 = vunpack.c.h.b16 %v2980
        %v3056 = vunpack.c.l.b16 %v2981
        %v3057 = vunpack.c.h.b16 %v2981
        %v3058 = vunpack.c.l.b16 %v2982
        %v3059 = vunpack.c.h.b16 %v2982
        %v3060 = vunpack.c.l.b16 %v2983
        %v3061 = vunpack.c.h.b16 %v2983
        %v3062 = vunpack.c.l.b16 %v2984
        %v3063 = vunpack.c.h.b16 %v2984
        %v3064 = vunpack.c.l.b16 %v2985
        %v3065 = vunpack.c.h.b16 %v2985
        %v3066 = vunpack.c.l.b16 %v2986
        %v3067 = vunpack.c.h.b16 %v2986
        %v3068 = vunpack.c.l.b16 %v2987
        %v3069 = vunpack.c.h.b16 %v2987
        %v3070 = vunpack.c.l.b16 %v2988
        %v3071 = vunpack.c.h.b16 %v2988
        %v3072 = vunpack.c.l.b16 %v2989
        %v3073 = vunpack.c.h.b16 %v2989
        %v3074 = vunpack.c.l.b16 %v2990
        %v3075 = vunpack.c.h.b16 %v2990
        %v3076 = vunpack.c.l.b16 %v2991
        %v3077 = vunpack.c.h.b16 %v2991
        %v3078 = vunpack.c.l.b16 %v2992
        %v3079 = vunpack.c.h.b16 %v2992
        %v3080 = vunpack.c.l.b16 %v2993
        %v3081 = vunpack.c.h.b16 %v2993
        %v3082 = vunpack.c.l.b16 %v2994
        %v3083 = vunpack.c.h.b16 %v2994
        %v3084 = vunpack.c.l.b16 %v2995
        %v3085 = vunpack.c.h.b16 %v2995
        %v3086 = vunpack.c.l.b16 %v2996
        %v3087 = vunpack.c.h.b16 %v2996
        %v3088 = vunpack.c.l.b16 %v2997
        %v3089 = vunpack.c.h.b16 %v2997
        %v3090 = vunpack.c.l.b16 %v2998
        %v3091 = vunpack.c.h.b16 %v2998
        %v3092 = vunpack.c.l.b16 %v2999
        %v3093 = vunpack.c.h.b16 %v2999
        %v3094 = vunpack.c.l.b16 %v3000
        %v3095 = vunpack.c.h.b16 %v3000
        %v3096 = vunpack.c.l.b16 %v3001
        %v3097 = vunpack.c.h.b16 %v3001
        %v3098 = vpack.c.b16 %v3036, %v3034
        %v3099 = vpack.c.b16 %v3037, %v3035
        %v3100 = vpack.c.b16 %v3040, %v3038
        %v3101 = vpack.c.b16 %v3041, %v3039
        %v3102 = vpack.c.b16 %v3044, %v3042
        %v3103 = vpack.c.b16 %v3045, %v3043
        %v3104 = vpack.c.b16 %v3048, %v3046
        %v3105 = vpack.c.b16 %v3049, %v3047
        %v3106 = vpack.c.b16 %v3052, %v3050
        %v3107 = vpack.c.b16 %v3053, %v3051
        %v3108 = vpack.c.b16 %v3056, %v3054
        %v3109 = vpack.c.b16 %v3057, %v3055
        %v3110 = vpack.c.b16 %v3060, %v3058
        %v3111 = vpack.c.b16 %v3061, %v3059
        %v3112 = vpack.c.b16 %v3064, %v3062
        %v3113 = vpack.c.b16 %v3065, %v3063
        %v3114 = vpack.c.b16 %v3068, %v3066
        %v3115 = vpack.c.b16 %v3069, %v3067
        %v3116 = vpack.c.b16 %v3072, %v3070
        %v3117 = vpack.c.b16 %v3073, %v3071
        %v3118 = vpack.c.b16 %v3076, %v3074
        %v3119 = vpack.c.b16 %v3077, %v3075
        %v3120 = vpack.c.b16 %v3080, %v3078
        %v3121 = vpack.c.b16 %v3081, %v3079
        %v3122 = vpack.c.b16 %v3084, %v3082
        %v3123 = vpack.c.b16 %v3085, %v3083
        %v3124 = vpack.c.b16 %v3088, %v3086
        %v3125 = vpack.c.b16 %v3089, %v3087
        %v3126 = vpack.c.b16 %v3092, %v3090
        %v3127 = vpack.c.b16 %v3093, %v3091
        %v3128 = vpack.c.b16 %v3096, %v3094
        %v3129 = vpack.c.b16 %v3097, %v3095
        %3162 = vmatpush.bf16.msra.mxu0 %v3112
        %3163 = vmatpush.bf16.msra.mxu0 %v3110
        %3164 = vmatpush.bf16.msra.mxu0 %v3108
        %3165 = vmatpush.bf16.msra.mxu0 %v3106
        %3166 = vmatpush.bf16.msra.mxu0 %v3104
        %3167 = vmatpush.bf16.msra.mxu0 %v3102
        %3168 = vmatpush.bf16.msra.mxu0 %v3100
        %3169 = vmatpush.bf16.msra.mxu0 %v3098
        %3170 = vmatmul.bf16.gmra.mxu0 %v614
        %v3171 = vpop.f32.mrf.mxu0
        %v3172 = vadd.f32 0.0, %v3171
        %v3173 = vpop.f32.mrf.mxu0
        %v3174 = vadd.f32 0.0, %v3173
        %3175 = vmatmul.bf16.gmra.mxu0 %v616
        %v3176 = vpop.f32.mrf.mxu0
        %v3177 = vadd.f32 0.0, %v3176
        %v3178 = vpop.f32.mrf.mxu0
        %v3179 = vadd.f32 0.0, %v3178
        %3180 = vdwg.mxu0
        %3181 = vmatpush.bf16.msra.mxu0 %v3128
        %3182 = vmatpush.bf16.msra.mxu0 %v3126
        %3183 = vmatpush.bf16.msra.mxu0 %v3124
        %3184 = vmatpush.bf16.msra.mxu0 %v3122
        %3185 = vmatpush.bf16.msra.mxu0 %v3120
        %3186 = vmatpush.bf16.msra.mxu0 %v3118
        %3187 = vmatpush.bf16.msra.mxu0 %v3116
        %3188 = vmatpush.bf16.msra.mxu0 %v3114
        %3189 = vmatmul.bf16.gmra.mxu0 %v615
        %v3190 = vpop.f32.mrf.mxu0
        %v3191 = vadd.f32 %v3172, %v3190
        %v3192 = vpop.f32.mrf.mxu0
        %v3193 = vadd.f32 %v3174, %v3192
        %3194 = vmatmul.bf16.gmra.mxu0 %v617
        %v3195 = vpop.f32.mrf.mxu0
        %v3196 = vadd.f32 %v3177, %v3195
        %v3197 = vpop.f32.mrf.mxu0
        %v3198 = vadd.f32 %v3179, %v3197
        %3199 = vdwg.mxu0
        %3200 = vmatpush.bf16.msra.mxu0 %v3113
        %3201 = vmatpush.bf16.msra.mxu0 %v3111
        %3202 = vmatpush.bf16.msra.mxu0 %v3109
        %3203 = vmatpush.bf16.msra.mxu0 %v3107
        %3204 = vmatpush.bf16.msra.mxu0 %v3105
        %3205 = vmatpush.bf16.msra.mxu0 %v3103
        %3206 = vmatpush.bf16.msra.mxu0 %v3101
        %3207 = vmatpush.bf16.msra.mxu0 %v3099
        %3208 = vmatmul.bf16.gmra.mxu0 %v614
        %v3209 = vpop.f32.mrf.mxu0
        %v3210 = vadd.f32 0.0, %v3209
        %v3211 = vpop.f32.mrf.mxu0
        %v3212 = vadd.f32 0.0, %v3211
        %3213 = vmatmul.bf16.gmra.mxu0 %v616
        %v3214 = vpop.f32.mrf.mxu0
        %v3215 = vadd.f32 0.0, %v3214
        %v3216 = vpop.f32.mrf.mxu0
        %v3217 = vadd.f32 0.0, %v3216
        %3218 = vdwg.mxu0
        %3219 = vmatpush.bf16.msra.mxu0 %v3129
        %3220 = vmatpush.bf16.msra.mxu0 %v3127
        %3221 = vmatpush.bf16.msra.mxu0 %v3125
        %3222 = vmatpush.bf16.msra.mxu0 %v3123
        %3223 = vmatpush.bf16.msra.mxu0 %v3121
        %3224 = vmatpush.bf16.msra.mxu0 %v3119
        %3225 = vmatpush.bf16.msra.mxu0 %v3117
        %3226 = vmatpush.bf16.msra.mxu0 %v3115
        %3227 = vmatmul.bf16.gmra.mxu0 %v615
        %v3228 = vpop.f32.mrf.mxu0
        %v3229 = vadd.f32 %v3210, %v3228
        %v3230 = vpop.f32.mrf.mxu0
        %v3231 = vadd.f32 %v3212, %v3230
        %3232 = vmatmul.bf16.gmra.mxu0 %v617
        %v3233 = vpop.f32.mrf.mxu0
        %v3234 = vadd.f32 %v3215, %v3233
        %v3235 = vpop.f32.mrf.mxu0
        %v3236 = vadd.f32 %v3217, %v3235
        %3237 = vdwg.mxu0
        %v3238 = vpack.c.bf16 %v3229, %v3191
        %v3239 = vpack.c.bf16 %v3231, %v3193
        %v3240 = vpack.c.bf16 %v3234, %v3196
        %v3241 = vpack.c.bf16 %v3236, %v3198
        %s3242 = scalar_lea.vmem %s5, 768
        %v3243 = vld [vmem:[%s3242] sm:$0xff]
        %v3244 = vld [vmem:[%s3242 + $0x8] sm:$0xff]
        %v3245 = vld [vmem:[%s3242 + $0x10] sm:$0xff]
        %v3246 = vld [vmem:[%s3242 + $0x18] sm:$0xff]
        %v3247 = vld [vmem:[%s3242 + $0x20] sm:$0xff]
        %v3248 = vld [vmem:[%s3242 + $0x28] sm:$0xff]
        %v3249 = vld [vmem:[%s3242 + $0x30] sm:$0xff]
        %v3250 = vld [vmem:[%s3242 + $0x38] sm:$0xff]
        %v3251 = vld [vmem:[%s3242 + $0x40] sm:$0xff]
        %v3252 = vld [vmem:[%s3242 + $0x48] sm:$0xff]
        %v3253 = vld [vmem:[%s3242 + $0x50] sm:$0xff]
        %v3254 = vld [vmem:[%s3242 + $0x58] sm:$0xff]
        %v3255 = vld [vmem:[%s3242 + $0x60] sm:$0xff]
        %v3256 = vld [vmem:[%s3242 + $0x68] sm:$0xff]
        %v3257 = vld [vmem:[%s3242 + $0x70] sm:$0xff]
        %v3258 = vld [vmem:[%s3242 + $0x78] sm:$0xff]
        %v3259 = vld [vmem:[%s3242 + $0x80] sm:$0xff]
        %v3260 = vld [vmem:[%s3242 + $0x88] sm:$0xff]
        %v3261 = vld [vmem:[%s3242 + $0x90] sm:$0xff]
        %v3262 = vld [vmem:[%s3242 + $0x98] sm:$0xff]
        %v3263 = vld [vmem:[%s3242 + $0xa0] sm:$0xff]
        %v3264 = vld [vmem:[%s3242 + $0xa8] sm:$0xff]
        %v3265 = vld [vmem:[%s3242 + $0xb0] sm:$0xff]
        %v3266 = vld [vmem:[%s3242 + $0xb8] sm:$0xff]
        %v3267 = vld [vmem:[%s3242 + $0xc0] sm:$0xff]
        %v3268 = vld [vmem:[%s3242 + $0xc8] sm:$0xff]
        %v3269 = vld [vmem:[%s3242 + $0xd0] sm:$0xff]
        %v3270 = vld [vmem:[%s3242 + $0xd8] sm:$0xff]
        %v3271 = vld [vmem:[%s3242 + $0xe0] sm:$0xff]
        %v3272 = vld [vmem:[%s3242 + $0xe8] sm:$0xff]
        %v3273 = vld [vmem:[%s3242 + $0xf0] sm:$0xff]
        %v3274 = vld [vmem:[%s3242 + $0xf8] sm:$0xff]
        %v3307 = vunpack.c.l.b16 %v3243
        %v3308 = vunpack.c.h.b16 %v3243
        %v3309 = vunpack.c.l.b16 %v3244
        %v3310 = vunpack.c.h.b16 %v3244
        %v3311 = vunpack.c.l.b16 %v3245
        %v3312 = vunpack.c.h.b16 %v3245
        %v3313 = vunpack.c.l.b16 %v3246
        %v3314 = vunpack.c.h.b16 %v3246
        %v3315 = vunpack.c.l.b16 %v3247
        %v3316 = vunpack.c.h.b16 %v3247
        %v3317 = vunpack.c.l.b16 %v3248
        %v3318 = vunpack.c.h.b16 %v3248
        %v3319 = vunpack.c.l.b16 %v3249
        %v3320 = vunpack.c.h.b16 %v3249
        %v3321 = vunpack.c.l.b16 %v3250
        %v3322 = vunpack.c.h.b16 %v3250
        %v3323 = vunpack.c.l.b16 %v3251
        %v3324 = vunpack.c.h.b16 %v3251
        %v3325 = vunpack.c.l.b16 %v3252
        %v3326 = vunpack.c.h.b16 %v3252
        %v3327 = vunpack.c.l.b16 %v3253
        %v3328 = vunpack.c.h.b16 %v3253
        %v3329 = vunpack.c.l.b16 %v3254
        %v3330 = vunpack.c.h.b16 %v3254
        %v3331 = vunpack.c.l.b16 %v3255
        %v3332 = vunpack.c.h.b16 %v3255
        %v3333 = vunpack.c.l.b16 %v3256
        %v3334 = vunpack.c.h.b16 %v3256
        %v3335 = vunpack.c.l.b16 %v3257
        %v3336 = vunpack.c.h.b16 %v3257
        %v3337 = vunpack.c.l.b16 %v3258
        %v3338 = vunpack.c.h.b16 %v3258
        %v3339 = vunpack.c.l.b16 %v3259
        %v3340 = vunpack.c.h.b16 %v3259
        %v3341 = vunpack.c.l.b16 %v3260
        %v3342 = vunpack.c.h.b16 %v3260
        %v3343 = vunpack.c.l.b16 %v3261
        %v3344 = vunpack.c.h.b16 %v3261
        %v3345 = vunpack.c.l.b16 %v3262
        %v3346 = vunpack.c.h.b16 %v3262
        %v3347 = vunpack.c.l.b16 %v3263
        %v3348 = vunpack.c.h.b16 %v3263
        %v3349 = vunpack.c.l.b16 %v3264
        %v3350 = vunpack.c.h.b16 %v3264
        %v3351 = vunpack.c.l.b16 %v3265
        %v3352 = vunpack.c.h.b16 %v3265
        %v3353 = vunpack.c.l.b16 %v3266
        %v3354 = vunpack.c.h.b16 %v3266
        %v3355 = vunpack.c.l.b16 %v3267
        %v3356 = vunpack.c.h.b16 %v3267
        %v3357 = vunpack.c.l.b16 %v3268
        %v3358 = vunpack.c.h.b16 %v3268
        %v3359 = vunpack.c.l.b16 %v3269
        %v3360 = vunpack.c.h.b16 %v3269
        %v3361 = vunpack.c.l.b16 %v3270
        %v3362 = vunpack.c.h.b16 %v3270
        %v3363 = vunpack.c.l.b16 %v3271
        %v3364 = vunpack.c.h.b16 %v3271
        %v3365 = vunpack.c.l.b16 %v3272
        %v3366 = vunpack.c.h.b16 %v3272
        %v3367 = vunpack.c.l.b16 %v3273
        %v3368 = vunpack.c.h.b16 %v3273
        %v3369 = vunpack.c.l.b16 %v3274
        %v3370 = vunpack.c.h.b16 %v3274
        %v3371 = vpack.c.b16 %v3309, %v3307
        %v3372 = vpack.c.b16 %v3310, %v3308
        %v3373 = vpack.c.b16 %v3313, %v3311
        %v3374 = vpack.c.b16 %v3314, %v3312
        %v3375 = vpack.c.b16 %v3317, %v3315
        %v3376 = vpack.c.b16 %v3318, %v3316
        %v3377 = vpack.c.b16 %v3321, %v3319
        %v3378 = vpack.c.b16 %v3322, %v3320
        %v3379 = vpack.c.b16 %v3325, %v3323
        %v3380 = vpack.c.b16 %v3326, %v3324
        %v3381 = vpack.c.b16 %v3329, %v3327
        %v3382 = vpack.c.b16 %v3330, %v3328
        %v3383 = vpack.c.b16 %v3333, %v3331
        %v3384 = vpack.c.b16 %v3334, %v3332
        %v3385 = vpack.c.b16 %v3337, %v3335
        %v3386 = vpack.c.b16 %v3338, %v3336
        %v3387 = vpack.c.b16 %v3341, %v3339
        %v3388 = vpack.c.b16 %v3342, %v3340
        %v3389 = vpack.c.b16 %v3345, %v3343
        %v3390 = vpack.c.b16 %v3346, %v3344
        %v3391 = vpack.c.b16 %v3349, %v3347
        %v3392 = vpack.c.b16 %v3350, %v3348
        %v3393 = vpack.c.b16 %v3353, %v3351
        %v3394 = vpack.c.b16 %v3354, %v3352
        %v3395 = vpack.c.b16 %v3357, %v3355
        %v3396 = vpack.c.b16 %v3358, %v3356
        %v3397 = vpack.c.b16 %v3361, %v3359
        %v3398 = vpack.c.b16 %v3362, %v3360
        %v3399 = vpack.c.b16 %v3365, %v3363
        %v3400 = vpack.c.b16 %v3366, %v3364
        %v3401 = vpack.c.b16 %v3369, %v3367
        %v3402 = vpack.c.b16 %v3370, %v3368
        %3435 = vmatpush.bf16.msra.mxu0 %v3385
        %3436 = vmatpush.bf16.msra.mxu0 %v3383
        %3437 = vmatpush.bf16.msra.mxu0 %v3381
        %3438 = vmatpush.bf16.msra.mxu0 %v3379
        %3439 = vmatpush.bf16.msra.mxu0 %v3377
        %3440 = vmatpush.bf16.msra.mxu0 %v3375
        %3441 = vmatpush.bf16.msra.mxu0 %v3373
        %3442 = vmatpush.bf16.msra.mxu0 %v3371
        %3443 = vmatmul.bf16.gmra.mxu0 %v614
        %v3444 = vpop.f32.mrf.mxu0
        %v3445 = vadd.f32 0.0, %v3444
        %v3446 = vpop.f32.mrf.mxu0
        %v3447 = vadd.f32 0.0, %v3446
        %3448 = vmatmul.bf16.gmra.mxu0 %v616
        %v3449 = vpop.f32.mrf.mxu0
        %v3450 = vadd.f32 0.0, %v3449
        %v3451 = vpop.f32.mrf.mxu0
        %v3452 = vadd.f32 0.0, %v3451
        %3453 = vdwg.mxu0
        %3454 = vmatpush.bf16.msra.mxu0 %v3401
        %3455 = vmatpush.bf16.msra.mxu0 %v3399
        %3456 = vmatpush.bf16.msra.mxu0 %v3397
        %3457 = vmatpush.bf16.msra.mxu0 %v3395
        %3458 = vmatpush.bf16.msra.mxu0 %v3393
        %3459 = vmatpush.bf16.msra.mxu0 %v3391
        %3460 = vmatpush.bf16.msra.mxu0 %v3389
        %3461 = vmatpush.bf16.msra.mxu0 %v3387
        %3462 = vmatmul.bf16.gmra.mxu0 %v615
        %v3463 = vpop.f32.mrf.mxu0
        %v3464 = vadd.f32 %v3445, %v3463
        %v3465 = vpop.f32.mrf.mxu0
        %v3466 = vadd.f32 %v3447, %v3465
        %3467 = vmatmul.bf16.gmra.mxu0 %v617
        %v3468 = vpop.f32.mrf.mxu0
        %v3469 = vadd.f32 %v3450, %v3468
        %v3470 = vpop.f32.mrf.mxu0
        %v3471 = vadd.f32 %v3452, %v3470
        %3472 = vdwg.mxu0
        %3473 = vmatpush.bf16.msra.mxu0 %v3386
        %3474 = vmatpush.bf16.msra.mxu0 %v3384
        %3475 = vmatpush.bf16.msra.mxu0 %v3382
        %3476 = vmatpush.bf16.msra.mxu0 %v3380
        %3477 = vmatpush.bf16.msra.mxu0 %v3378
        %3478 = vmatpush.bf16.msra.mxu0 %v3376
        %3479 = vmatpush.bf16.msra.mxu0 %v3374
        %3480 = vmatpush.bf16.msra.mxu0 %v3372
        %3481 = vmatmul.bf16.gmra.mxu0 %v614
        %v3482 = vpop.f32.mrf.mxu0
        %v3483 = vadd.f32 0.0, %v3482
        %v3484 = vpop.f32.mrf.mxu0
        %v3485 = vadd.f32 0.0, %v3484
        %3486 = vmatmul.bf16.gmra.mxu0 %v616
        %v3487 = vpop.f32.mrf.mxu0
        %v3488 = vadd.f32 0.0, %v3487
        %v3489 = vpop.f32.mrf.mxu0
        %v3490 = vadd.f32 0.0, %v3489
        %3491 = vdwg.mxu0
        %3492 = vmatpush.bf16.msra.mxu0 %v3402
        %3493 = vmatpush.bf16.msra.mxu0 %v3400
        %3494 = vmatpush.bf16.msra.mxu0 %v3398
        %3495 = vmatpush.bf16.msra.mxu0 %v3396
        %3496 = vmatpush.bf16.msra.mxu0 %v3394
        %3497 = vmatpush.bf16.msra.mxu0 %v3392
        %3498 = vmatpush.bf16.msra.mxu0 %v3390
        %3499 = vmatpush.bf16.msra.mxu0 %v3388
        %3500 = vmatmul.bf16.gmra.mxu0 %v615
        %v3501 = vpop.f32.mrf.mxu0
        %v3502 = vadd.f32 %v3483, %v3501
        %v3503 = vpop.f32.mrf.mxu0
        %v3504 = vadd.f32 %v3485, %v3503
        %3505 = vmatmul.bf16.gmra.mxu0 %v617
        %v3506 = vpop.f32.mrf.mxu0
        %v3507 = vadd.f32 %v3488, %v3506
        %v3508 = vpop.f32.mrf.mxu0
        %v3509 = vadd.f32 %v3490, %v3508
        %3510 = vdwg.mxu0
        %v3511 = vpack.c.bf16 %v3502, %v3464
        %v3512 = vpack.c.bf16 %v3504, %v3466
        %v3513 = vpack.c.bf16 %v3507, %v3469
        %v3514 = vpack.c.bf16 %v3509, %v3471
        %s3515 = scalar_lea.vmem %s5, 1024
        %v3516 = vld [vmem:[%s3515] sm:$0xff]
        %v3517 = vld [vmem:[%s3515 + $0x8] sm:$0xff]
        %v3518 = vld [vmem:[%s3515 + $0x10] sm:$0xff]
        %v3519 = vld [vmem:[%s3515 + $0x18] sm:$0xff]
        %v3520 = vld [vmem:[%s3515 + $0x20] sm:$0xff]
        %v3521 = vld [vmem:[%s3515 + $0x28] sm:$0xff]
        %v3522 = vld [vmem:[%s3515 + $0x30] sm:$0xff]
        %v3523 = vld [vmem:[%s3515 + $0x38] sm:$0xff]
        %v3524 = vld [vmem:[%s3515 + $0x40] sm:$0xff]
        %v3525 = vld [vmem:[%s3515 + $0x48] sm:$0xff]
        %v3526 = vld [vmem:[%s3515 + $0x50] sm:$0xff]
        %v3527 = vld [vmem:[%s3515 + $0x58] sm:$0xff]
        %v3528 = vld [vmem:[%s3515 + $0x60] sm:$0xff]
        %v3529 = vld [vmem:[%s3515 + $0x68] sm:$0xff]
        %v3530 = vld [vmem:[%s3515 + $0x70] sm:$0xff]
        %v3531 = vld [vmem:[%s3515 + $0x78] sm:$0xff]
        %v3532 = vld [vmem:[%s3515 + $0x80] sm:$0xff]
        %v3533 = vld [vmem:[%s3515 + $0x88] sm:$0xff]
        %v3534 = vld [vmem:[%s3515 + $0x90] sm:$0xff]
        %v3535 = vld [vmem:[%s3515 + $0x98] sm:$0xff]
        %v3536 = vld [vmem:[%s3515 + $0xa0] sm:$0xff]
        %v3537 = vld [vmem:[%s3515 + $0xa8] sm:$0xff]
        %v3538 = vld [vmem:[%s3515 + $0xb0] sm:$0xff]
        %v3539 = vld [vmem:[%s3515 + $0xb8] sm:$0xff]
        %v3540 = vld [vmem:[%s3515 + $0xc0] sm:$0xff]
        %v3541 = vld [vmem:[%s3515 + $0xc8] sm:$0xff]
        %v3542 = vld [vmem:[%s3515 + $0xd0] sm:$0xff]
        %v3543 = vld [vmem:[%s3515 + $0xd8] sm:$0xff]
        %v3544 = vld [vmem:[%s3515 + $0xe0] sm:$0xff]
        %v3545 = vld [vmem:[%s3515 + $0xe8] sm:$0xff]
        %v3546 = vld [vmem:[%s3515 + $0xf0] sm:$0xff]
        %v3547 = vld [vmem:[%s3515 + $0xf8] sm:$0xff]
        %v3580 = vunpack.c.l.b16 %v3516
        %v3581 = vunpack.c.h.b16 %v3516
        %v3582 = vunpack.c.l.b16 %v3517
        %v3583 = vunpack.c.h.b16 %v3517
        %v3584 = vunpack.c.l.b16 %v3518
        %v3585 = vunpack.c.h.b16 %v3518
        %v3586 = vunpack.c.l.b16 %v3519
        %v3587 = vunpack.c.h.b16 %v3519
        %v3588 = vunpack.c.l.b16 %v3520
        %v3589 = vunpack.c.h.b16 %v3520
        %v3590 = vunpack.c.l.b16 %v3521
        %v3591 = vunpack.c.h.b16 %v3521
        %v3592 = vunpack.c.l.b16 %v3522
        %v3593 = vunpack.c.h.b16 %v3522
        %v3594 = vunpack.c.l.b16 %v3523
        %v3595 = vunpack.c.h.b16 %v3523
        %v3596 = vunpack.c.l.b16 %v3524
        %v3597 = vunpack.c.h.b16 %v3524
        %v3598 = vunpack.c.l.b16 %v3525
        %v3599 = vunpack.c.h.b16 %v3525
        %v3600 = vunpack.c.l.b16 %v3526
        %v3601 = vunpack.c.h.b16 %v3526
        %v3602 = vunpack.c.l.b16 %v3527
        %v3603 = vunpack.c.h.b16 %v3527
        %v3604 = vunpack.c.l.b16 %v3528
        %v3605 = vunpack.c.h.b16 %v3528
        %v3606 = vunpack.c.l.b16 %v3529
        %v3607 = vunpack.c.h.b16 %v3529
        %v3608 = vunpack.c.l.b16 %v3530
        %v3609 = vunpack.c.h.b16 %v3530
        %v3610 = vunpack.c.l.b16 %v3531
        %v3611 = vunpack.c.h.b16 %v3531
        %v3612 = vunpack.c.l.b16 %v3532
        %v3613 = vunpack.c.h.b16 %v3532
        %v3614 = vunpack.c.l.b16 %v3533
        %v3615 = vunpack.c.h.b16 %v3533
        %v3616 = vunpack.c.l.b16 %v3534
        %v3617 = vunpack.c.h.b16 %v3534
        %v3618 = vunpack.c.l.b16 %v3535
        %v3619 = vunpack.c.h.b16 %v3535
        %v3620 = vunpack.c.l.b16 %v3536
        %v3621 = vunpack.c.h.b16 %v3536
        %v3622 = vunpack.c.l.b16 %v3537
        %v3623 = vunpack.c.h.b16 %v3537
        %v3624 = vunpack.c.l.b16 %v3538
        %v3625 = vunpack.c.h.b16 %v3538
        %v3626 = vunpack.c.l.b16 %v3539
        %v3627 = vunpack.c.h.b16 %v3539
        %v3628 = vunpack.c.l.b16 %v3540
        %v3629 = vunpack.c.h.b16 %v3540
        %v3630 = vunpack.c.l.b16 %v3541
        %v3631 = vunpack.c.h.b16 %v3541
        %v3632 = vunpack.c.l.b16 %v3542
        %v3633 = vunpack.c.h.b16 %v3542
        %v3634 = vunpack.c.l.b16 %v3543
        %v3635 = vunpack.c.h.b16 %v3543
        %v3636 = vunpack.c.l.b16 %v3544
        %v3637 = vunpack.c.h.b16 %v3544
        %v3638 = vunpack.c.l.b16 %v3545
        %v3639 = vunpack.c.h.b16 %v3545
        %v3640 = vunpack.c.l.b16 %v3546
        %v3641 = vunpack.c.h.b16 %v3546
        %v3642 = vunpack.c.l.b16 %v3547
        %v3643 = vunpack.c.h.b16 %v3547
        %v3644 = vpack.c.b16 %v3582, %v3580
        %v3645 = vpack.c.b16 %v3583, %v3581
        %v3646 = vpack.c.b16 %v3586, %v3584
        %v3647 = vpack.c.b16 %v3587, %v3585
        %v3648 = vpack.c.b16 %v3590, %v3588
        %v3649 = vpack.c.b16 %v3591, %v3589
        %v3650 = vpack.c.b16 %v3594, %v3592
        %v3651 = vpack.c.b16 %v3595, %v3593
        %v3652 = vpack.c.b16 %v3598, %v3596
        %v3653 = vpack.c.b16 %v3599, %v3597
        %v3654 = vpack.c.b16 %v3602, %v3600
        %v3655 = vpack.c.b16 %v3603, %v3601
        %v3656 = vpack.c.b16 %v3606, %v3604
        %v3657 = vpack.c.b16 %v3607, %v3605
        %v3658 = vpack.c.b16 %v3610, %v3608
        %v3659 = vpack.c.b16 %v3611, %v3609
        %v3660 = vpack.c.b16 %v3614, %v3612
        %v3661 = vpack.c.b16 %v3615, %v3613
        %v3662 = vpack.c.b16 %v3618, %v3616
        %v3663 = vpack.c.b16 %v3619, %v3617
        %v3664 = vpack.c.b16 %v3622, %v3620
        %v3665 = vpack.c.b16 %v3623, %v3621
        %v3666 = vpack.c.b16 %v3626, %v3624
        %v3667 = vpack.c.b16 %v3627, %v3625
        %v3668 = vpack.c.b16 %v3630, %v3628
        %v3669 = vpack.c.b16 %v3631, %v3629
        %v3670 = vpack.c.b16 %v3634, %v3632
        %v3671 = vpack.c.b16 %v3635, %v3633
        %v3672 = vpack.c.b16 %v3638, %v3636
        %v3673 = vpack.c.b16 %v3639, %v3637
        %v3674 = vpack.c.b16 %v3642, %v3640
        %v3675 = vpack.c.b16 %v3643, %v3641
        %3708 = vmatpush.bf16.msra.mxu0 %v3658
        %3709 = vmatpush.bf16.msra.mxu0 %v3656
        %3710 = vmatpush.bf16.msra.mxu0 %v3654
        %3711 = vmatpush.bf16.msra.mxu0 %v3652
        %3712 = vmatpush.bf16.msra.mxu0 %v3650
        %3713 = vmatpush.bf16.msra.mxu0 %v3648
        %3714 = vmatpush.bf16.msra.mxu0 %v3646
        %3715 = vmatpush.bf16.msra.mxu0 %v3644
        %3716 = vmatmul.bf16.gmra.mxu0 %v614
        %v3717 = vpop.f32.mrf.mxu0
        %v3718 = vadd.f32 0.0, %v3717
        %v3719 = vpop.f32.mrf.mxu0
        %v3720 = vadd.f32 0.0, %v3719
        %3721 = vmatmul.bf16.gmra.mxu0 %v616
        %v3722 = vpop.f32.mrf.mxu0
        %v3723 = vadd.f32 0.0, %v3722
        %v3724 = vpop.f32.mrf.mxu0
        %v3725 = vadd.f32 0.0, %v3724
        %3726 = vdwg.mxu0
        %3727 = vmatpush.bf16.msra.mxu0 %v3674
        %3728 = vmatpush.bf16.msra.mxu0 %v3672
        %3729 = vmatpush.bf16.msra.mxu0 %v3670
        %3730 = vmatpush.bf16.msra.mxu0 %v3668
        %3731 = vmatpush.bf16.msra.mxu0 %v3666
        %3732 = vmatpush.bf16.msra.mxu0 %v3664
        %3733 = vmatpush.bf16.msra.mxu0 %v3662
        %3734 = vmatpush.bf16.msra.mxu0 %v3660
        %3735 = vmatmul.bf16.gmra.mxu0 %v615
        %v3736 = vpop.f32.mrf.mxu0
        %v3737 = vadd.f32 %v3718, %v3736
        %v3738 = vpop.f32.mrf.mxu0
        %v3739 = vadd.f32 %v3720, %v3738
        %3740 = vmatmul.bf16.gmra.mxu0 %v617
        %v3741 = vpop.f32.mrf.mxu0
        %v3742 = vadd.f32 %v3723, %v3741
        %v3743 = vpop.f32.mrf.mxu0
        %v3744 = vadd.f32 %v3725, %v3743
        %3745 = vdwg.mxu0
        %3746 = vmatpush.bf16.msra.mxu0 %v3659
        %3747 = vmatpush.bf16.msra.mxu0 %v3657
        %3748 = vmatpush.bf16.msra.mxu0 %v3655
        %3749 = vmatpush.bf16.msra.mxu0 %v3653
        %3750 = vmatpush.bf16.msra.mxu0 %v3651
        %3751 = vmatpush.bf16.msra.mxu0 %v3649
        %3752 = vmatpush.bf16.msra.mxu0 %v3647
        %3753 = vmatpush.bf16.msra.mxu0 %v3645
        %3754 = vmatmul.bf16.gmra.mxu0 %v614
        %v3755 = vpop.f32.mrf.mxu0
        %v3756 = vadd.f32 0.0, %v3755
        %v3757 = vpop.f32.mrf.mxu0
        %v3758 = vadd.f32 0.0, %v3757
        %3759 = vmatmul.bf16.gmra.mxu0 %v616
        %v3760 = vpop.f32.mrf.mxu0
        %v3761 = vadd.f32 0.0, %v3760
        %v3762 = vpop.f32.mrf.mxu0
        %v3763 = vadd.f32 0.0, %v3762
        %3764 = vdwg.mxu0
        %3765 = vmatpush.bf16.msra.mxu0 %v3675
        %3766 = vmatpush.bf16.msra.mxu0 %v3673
        %3767 = vmatpush.bf16.msra.mxu0 %v3671
        %3768 = vmatpush.bf16.msra.mxu0 %v3669
        %3769 = vmatpush.bf16.msra.mxu0 %v3667
        %3770 = vmatpush.bf16.msra.mxu0 %v3665
        %3771 = vmatpush.bf16.msra.mxu0 %v3663
        %3772 = vmatpush.bf16.msra.mxu0 %v3661
        %3773 = vmatmul.bf16.gmra.mxu0 %v615
        %v3774 = vpop.f32.mrf.mxu0
        %v3775 = vadd.f32 %v3756, %v3774
        %v3776 = vpop.f32.mrf.mxu0
        %v3777 = vadd.f32 %v3758, %v3776
        %3778 = vmatmul.bf16.gmra.mxu0 %v617
        %v3779 = vpop.f32.mrf.mxu0
        %v3780 = vadd.f32 %v3761, %v3779
        %v3781 = vpop.f32.mrf.mxu0
        %v3782 = vadd.f32 %v3763, %v3781
        %3783 = vdwg.mxu0
        %v3784 = vpack.c.bf16 %v3775, %v3737
        %v3785 = vpack.c.bf16 %v3777, %v3739
        %v3786 = vpack.c.bf16 %v3780, %v3742
        %v3787 = vpack.c.bf16 %v3782, %v3744
        %s3788 = scalar_lea.vmem %s5, 1280
        %v3789 = vld [vmem:[%s3788] sm:$0xff]
        %v3790 = vld [vmem:[%s3788 + $0x8] sm:$0xff]
        %v3791 = vld [vmem:[%s3788 + $0x10] sm:$0xff]
        %v3792 = vld [vmem:[%s3788 + $0x18] sm:$0xff]
        %v3793 = vld [vmem:[%s3788 + $0x20] sm:$0xff]
        %v3794 = vld [vmem:[%s3788 + $0x28] sm:$0xff]
        %v3795 = vld [vmem:[%s3788 + $0x30] sm:$0xff]
        %v3796 = vld [vmem:[%s3788 + $0x38] sm:$0xff]
        %v3797 = vld [vmem:[%s3788 + $0x40] sm:$0xff]
        %v3798 = vld [vmem:[%s3788 + $0x48] sm:$0xff]
        %v3799 = vld [vmem:[%s3788 + $0x50] sm:$0xff]
        %v3800 = vld [vmem:[%s3788 + $0x58] sm:$0xff]
        %v3801 = vld [vmem:[%s3788 + $0x60] sm:$0xff]
        %v3802 = vld [vmem:[%s3788 + $0x68] sm:$0xff]
        %v3803 = vld [vmem:[%s3788 + $0x70] sm:$0xff]
        %v3804 = vld [vmem:[%s3788 + $0x78] sm:$0xff]
        %v3805 = vld [vmem:[%s3788 + $0x80] sm:$0xff]
        %v3806 = vld [vmem:[%s3788 + $0x88] sm:$0xff]
        %v3807 = vld [vmem:[%s3788 + $0x90] sm:$0xff]
        %v3808 = vld [vmem:[%s3788 + $0x98] sm:$0xff]
        %v3809 = vld [vmem:[%s3788 + $0xa0] sm:$0xff]
        %v3810 = vld [vmem:[%s3788 + $0xa8] sm:$0xff]
        %v3811 = vld [vmem:[%s3788 + $0xb0] sm:$0xff]
        %v3812 = vld [vmem:[%s3788 + $0xb8] sm:$0xff]
        %v3813 = vld [vmem:[%s3788 + $0xc0] sm:$0xff]
        %v3814 = vld [vmem:[%s3788 + $0xc8] sm:$0xff]
        %v3815 = vld [vmem:[%s3788 + $0xd0] sm:$0xff]
        %v3816 = vld [vmem:[%s3788 + $0xd8] sm:$0xff]
        %v3817 = vld [vmem:[%s3788 + $0xe0] sm:$0xff]
        %v3818 = vld [vmem:[%s3788 + $0xe8] sm:$0xff]
        %v3819 = vld [vmem:[%s3788 + $0xf0] sm:$0xff]
        %v3820 = vld [vmem:[%s3788 + $0xf8] sm:$0xff]
        %v3853 = vunpack.c.l.b16 %v3789
        %v3854 = vunpack.c.h.b16 %v3789
        %v3855 = vunpack.c.l.b16 %v3790
        %v3856 = vunpack.c.h.b16 %v3790
        %v3857 = vunpack.c.l.b16 %v3791
        %v3858 = vunpack.c.h.b16 %v3791
        %v3859 = vunpack.c.l.b16 %v3792
        %v3860 = vunpack.c.h.b16 %v3792
        %v3861 = vunpack.c.l.b16 %v3793
        %v3862 = vunpack.c.h.b16 %v3793
        %v3863 = vunpack.c.l.b16 %v3794
        %v3864 = vunpack.c.h.b16 %v3794
        %v3865 = vunpack.c.l.b16 %v3795
        %v3866 = vunpack.c.h.b16 %v3795
        %v3867 = vunpack.c.l.b16 %v3796
        %v3868 = vunpack.c.h.b16 %v3796
        %v3869 = vunpack.c.l.b16 %v3797
        %v3870 = vunpack.c.h.b16 %v3797
        %v3871 = vunpack.c.l.b16 %v3798
        %v3872 = vunpack.c.h.b16 %v3798
        %v3873 = vunpack.c.l.b16 %v3799
        %v3874 = vunpack.c.h.b16 %v3799
        %v3875 = vunpack.c.l.b16 %v3800
        %v3876 = vunpack.c.h.b16 %v3800
        %v3877 = vunpack.c.l.b16 %v3801
        %v3878 = vunpack.c.h.b16 %v3801
        %v3879 = vunpack.c.l.b16 %v3802
        %v3880 = vunpack.c.h.b16 %v3802
        %v3881 = vunpack.c.l.b16 %v3803
        %v3882 = vunpack.c.h.b16 %v3803
        %v3883 = vunpack.c.l.b16 %v3804
        %v3884 = vunpack.c.h.b16 %v3804
        %v3885 = vunpack.c.l.b16 %v3805
        %v3886 = vunpack.c.h.b16 %v3805
        %v3887 = vunpack.c.l.b16 %v3806
        %v3888 = vunpack.c.h.b16 %v3806
        %v3889 = vunpack.c.l.b16 %v3807
        %v3890 = vunpack.c.h.b16 %v3807
        %v3891 = vunpack.c.l.b16 %v3808
        %v3892 = vunpack.c.h.b16 %v3808
        %v3893 = vunpack.c.l.b16 %v3809
        %v3894 = vunpack.c.h.b16 %v3809
        %v3895 = vunpack.c.l.b16 %v3810
        %v3896 = vunpack.c.h.b16 %v3810
        %v3897 = vunpack.c.l.b16 %v3811
        %v3898 = vunpack.c.h.b16 %v3811
        %v3899 = vunpack.c.l.b16 %v3812
        %v3900 = vunpack.c.h.b16 %v3812
        %v3901 = vunpack.c.l.b16 %v3813
        %v3902 = vunpack.c.h.b16 %v3813
        %v3903 = vunpack.c.l.b16 %v3814
        %v3904 = vunpack.c.h.b16 %v3814
        %v3905 = vunpack.c.l.b16 %v3815
        %v3906 = vunpack.c.h.b16 %v3815
        %v3907 = vunpack.c.l.b16 %v3816
        %v3908 = vunpack.c.h.b16 %v3816
        %v3909 = vunpack.c.l.b16 %v3817
        %v3910 = vunpack.c.h.b16 %v3817
        %v3911 = vunpack.c.l.b16 %v3818
        %v3912 = vunpack.c.h.b16 %v3818
        %v3913 = vunpack.c.l.b16 %v3819
        %v3914 = vunpack.c.h.b16 %v3819
        %v3915 = vunpack.c.l.b16 %v3820
        %v3916 = vunpack.c.h.b16 %v3820
        %v3917 = vpack.c.b16 %v3855, %v3853
        %v3918 = vpack.c.b16 %v3856, %v3854
        %v3919 = vpack.c.b16 %v3859, %v3857
        %v3920 = vpack.c.b16 %v3860, %v3858
        %v3921 = vpack.c.b16 %v3863, %v3861
        %v3922 = vpack.c.b16 %v3864, %v3862
        %v3923 = vpack.c.b16 %v3867, %v3865
        %v3924 = vpack.c.b16 %v3868, %v3866
        %v3925 = vpack.c.b16 %v3871, %v3869
        %v3926 = vpack.c.b16 %v3872, %v3870
        %v3927 = vpack.c.b16 %v3875, %v3873
        %v3928 = vpack.c.b16 %v3876, %v3874
        %v3929 = vpack.c.b16 %v3879, %v3877
        %v3930 = vpack.c.b16 %v3880, %v3878
        %v3931 = vpack.c.b16 %v3883, %v3881
        %v3932 = vpack.c.b16 %v3884, %v3882
        %v3933 = vpack.c.b16 %v3887, %v3885
        %v3934 = vpack.c.b16 %v3888, %v3886
        %v3935 = vpack.c.b16 %v3891, %v3889
        %v3936 = vpack.c.b16 %v3892, %v3890
        %v3937 = vpack.c.b16 %v3895, %v3893
        %v3938 = vpack.c.b16 %v3896, %v3894
        %v3939 = vpack.c.b16 %v3899, %v3897
        %v3940 = vpack.c.b16 %v3900, %v3898
        %v3941 = vpack.c.b16 %v3903, %v3901
        %v3942 = vpack.c.b16 %v3904, %v3902
        %v3943 = vpack.c.b16 %v3907, %v3905
        %v3944 = vpack.c.b16 %v3908, %v3906
        %v3945 = vpack.c.b16 %v3911, %v3909
        %v3946 = vpack.c.b16 %v3912, %v3910
        %v3947 = vpack.c.b16 %v3915, %v3913
        %v3948 = vpack.c.b16 %v3916, %v3914
        %3981 = vmatpush.bf16.msra.mxu0 %v3931
        %3982 = vmatpush.bf16.msra.mxu0 %v3929
        %3983 = vmatpush.bf16.msra.mxu0 %v3927
        %3984 = vmatpush.bf16.msra.mxu0 %v3925
        %3985 = vmatpush.bf16.msra.mxu0 %v3923
        %3986 = vmatpush.bf16.msra.mxu0 %v3921
        %3987 = vmatpush.bf16.msra.mxu0 %v3919
        %3988 = vmatpush.bf16.msra.mxu0 %v3917
        %3989 = vmatmul.bf16.gmra.mxu0 %v614
        %v3990 = vpop.f32.mrf.mxu0
        %v3991 = vadd.f32 0.0, %v3990
        %v3992 = vpop.f32.mrf.mxu0
        %v3993 = vadd.f32 0.0, %v3992
        %3994 = vmatmul.bf16.gmra.mxu0 %v616
        %v3995 = vpop.f32.mrf.mxu0
        %v3996 = vadd.f32 0.0, %v3995
        %v3997 = vpop.f32.mrf.mxu0
        %v3998 = vadd.f32 0.0, %v3997
        %3999 = vdwg.mxu0
        %4000 = vmatpush.bf16.msra.mxu0 %v3947
        %4001 = vmatpush.bf16.msra.mxu0 %v3945
        %4002 = vmatpush.bf16.msra.mxu0 %v3943
        %4003 = vmatpush.bf16.msra.mxu0 %v3941
        %4004 = vmatpush.bf16.msra.mxu0 %v3939
        %4005 = vmatpush.bf16.msra.mxu0 %v3937
        %4006 = vmatpush.bf16.msra.mxu0 %v3935
        %4007 = vmatpush.bf16.msra.mxu0 %v3933
        %4008 = vmatmul.bf16.gmra.mxu0 %v615
        %v4009 = vpop.f32.mrf.mxu0
        %v4010 = vadd.f32 %v3991, %v4009
        %v4011 = vpop.f32.mrf.mxu0
        %v4012 = vadd.f32 %v3993, %v4011
        %4013 = vmatmul.bf16.gmra.mxu0 %v617
        %v4014 = vpop.f32.mrf.mxu0
        %v4015 = vadd.f32 %v3996, %v4014
        %v4016 = vpop.f32.mrf.mxu0
        %v4017 = vadd.f32 %v3998, %v4016
        %4018 = vdwg.mxu0
        %4019 = vmatpush.bf16.msra.mxu0 %v3932
        %4020 = vmatpush.bf16.msra.mxu0 %v3930
        %4021 = vmatpush.bf16.msra.mxu0 %v3928
        %4022 = vmatpush.bf16.msra.mxu0 %v3926
        %4023 = vmatpush.bf16.msra.mxu0 %v3924
        %4024 = vmatpush.bf16.msra.mxu0 %v3922
        %4025 = vmatpush.bf16.msra.mxu0 %v3920
        %4026 = vmatpush.bf16.msra.mxu0 %v3918
        %4027 = vmatmul.bf16.gmra.mxu0 %v614
        %v4028 = vpop.f32.mrf.mxu0
        %v4029 = vadd.f32 0.0, %v4028
        %v4030 = vpop.f32.mrf.mxu0
        %v4031 = vadd.f32 0.0, %v4030
        %4032 = vmatmul.bf16.gmra.mxu0 %v616
        %v4033 = vpop.f32.mrf.mxu0
        %v4034 = vadd.f32 0.0, %v4033
        %v4035 = vpop.f32.mrf.mxu0
        %v4036 = vadd.f32 0.0, %v4035
        %4037 = vdwg.mxu0
        %4038 = vmatpush.bf16.msra.mxu0 %v3948
        %4039 = vmatpush.bf16.msra.mxu0 %v3946
        %4040 = vmatpush.bf16.msra.mxu0 %v3944
        %4041 = vmatpush.bf16.msra.mxu0 %v3942
        %4042 = vmatpush.bf16.msra.mxu0 %v3940
        %4043 = vmatpush.bf16.msra.mxu0 %v3938
        %4044 = vmatpush.bf16.msra.mxu0 %v3936
        %4045 = vmatpush.bf16.msra.mxu0 %v3934
        %4046 = vmatmul.bf16.gmra.mxu0 %v615
        %v4047 = vpop.f32.mrf.mxu0
        %v4048 = vadd.f32 %v4029, %v4047
        %v4049 = vpop.f32.mrf.mxu0
        %v4050 = vadd.f32 %v4031, %v4049
        %4051 = vmatmul.bf16.gmra.mxu0 %v617
        %v4052 = vpop.f32.mrf.mxu0
        %v4053 = vadd.f32 %v4034, %v4052
        %v4054 = vpop.f32.mrf.mxu0
        %v4055 = vadd.f32 %v4036, %v4054
        %4056 = vdwg.mxu0
        %v4057 = vpack.c.bf16 %v4048, %v4010
        %v4058 = vpack.c.bf16 %v4050, %v4012
        %v4059 = vpack.c.bf16 %v4053, %v4015
        %v4060 = vpack.c.bf16 %v4055, %v4017
        %s4061 = scalar_lea.vmem %s5, 1536
        %v4062 = vld [vmem:[%s4061] sm:$0xff]
        %v4063 = vld [vmem:[%s4061 + $0x8] sm:$0xff]
        %v4064 = vld [vmem:[%s4061 + $0x10] sm:$0xff]
        %v4065 = vld [vmem:[%s4061 + $0x18] sm:$0xff]
        %v4066 = vld [vmem:[%s4061 + $0x20] sm:$0xff]
        %v4067 = vld [vmem:[%s4061 + $0x28] sm:$0xff]
        %v4068 = vld [vmem:[%s4061 + $0x30] sm:$0xff]
        %v4069 = vld [vmem:[%s4061 + $0x38] sm:$0xff]
        %v4070 = vld [vmem:[%s4061 + $0x40] sm:$0xff]
        %v4071 = vld [vmem:[%s4061 + $0x48] sm:$0xff]
        %v4072 = vld [vmem:[%s4061 + $0x50] sm:$0xff]
        %v4073 = vld [vmem:[%s4061 + $0x58] sm:$0xff]
        %v4074 = vld [vmem:[%s4061 + $0x60] sm:$0xff]
        %v4075 = vld [vmem:[%s4061 + $0x68] sm:$0xff]
        %v4076 = vld [vmem:[%s4061 + $0x70] sm:$0xff]
        %v4077 = vld [vmem:[%s4061 + $0x78] sm:$0xff]
        %v4078 = vld [vmem:[%s4061 + $0x80] sm:$0xff]
        %v4079 = vld [vmem:[%s4061 + $0x88] sm:$0xff]
        %v4080 = vld [vmem:[%s4061 + $0x90] sm:$0xff]
        %v4081 = vld [vmem:[%s4061 + $0x98] sm:$0xff]
        %v4082 = vld [vmem:[%s4061 + $0xa0] sm:$0xff]
        %v4083 = vld [vmem:[%s4061 + $0xa8] sm:$0xff]
        %v4084 = vld [vmem:[%s4061 + $0xb0] sm:$0xff]
        %v4085 = vld [vmem:[%s4061 + $0xb8] sm:$0xff]
        %v4086 = vld [vmem:[%s4061 + $0xc0] sm:$0xff]
        %v4087 = vld [vmem:[%s4061 + $0xc8] sm:$0xff]
        %v4088 = vld [vmem:[%s4061 + $0xd0] sm:$0xff]
        %v4089 = vld [vmem:[%s4061 + $0xd8] sm:$0xff]
        %v4090 = vld [vmem:[%s4061 + $0xe0] sm:$0xff]
        %v4091 = vld [vmem:[%s4061 + $0xe8] sm:$0xff]
        %v4092 = vld [vmem:[%s4061 + $0xf0] sm:$0xff]
        %v4093 = vld [vmem:[%s4061 + $0xf8] sm:$0xff]
        %v4126 = vunpack.c.l.b16 %v4062
        %v4127 = vunpack.c.h.b16 %v4062
        %v4128 = vunpack.c.l.b16 %v4063
        %v4129 = vunpack.c.h.b16 %v4063
        %v4130 = vunpack.c.l.b16 %v4064
        %v4131 = vunpack.c.h.b16 %v4064
        %v4132 = vunpack.c.l.b16 %v4065
        %v4133 = vunpack.c.h.b16 %v4065
        %v4134 = vunpack.c.l.b16 %v4066
        %v4135 = vunpack.c.h.b16 %v4066
        %v4136 = vunpack.c.l.b16 %v4067
        %v4137 = vunpack.c.h.b16 %v4067
        %v4138 = vunpack.c.l.b16 %v4068
        %v4139 = vunpack.c.h.b16 %v4068
        %v4140 = vunpack.c.l.b16 %v4069
        %v4141 = vunpack.c.h.b16 %v4069
        %v4142 = vunpack.c.l.b16 %v4070
        %v4143 = vunpack.c.h.b16 %v4070
        %v4144 = vunpack.c.l.b16 %v4071
        %v4145 = vunpack.c.h.b16 %v4071
        %v4146 = vunpack.c.l.b16 %v4072
        %v4147 = vunpack.c.h.b16 %v4072
        %v4148 = vunpack.c.l.b16 %v4073
        %v4149 = vunpack.c.h.b16 %v4073
        %v4150 = vunpack.c.l.b16 %v4074
        %v4151 = vunpack.c.h.b16 %v4074
        %v4152 = vunpack.c.l.b16 %v4075
        %v4153 = vunpack.c.h.b16 %v4075
        %v4154 = vunpack.c.l.b16 %v4076
        %v4155 = vunpack.c.h.b16 %v4076
        %v4156 = vunpack.c.l.b16 %v4077
        %v4157 = vunpack.c.h.b16 %v4077
        %v4158 = vunpack.c.l.b16 %v4078
        %v4159 = vunpack.c.h.b16 %v4078
        %v4160 = vunpack.c.l.b16 %v4079
        %v4161 = vunpack.c.h.b16 %v4079
        %v4162 = vunpack.c.l.b16 %v4080
        %v4163 = vunpack.c.h.b16 %v4080
        %v4164 = vunpack.c.l.b16 %v4081
        %v4165 = vunpack.c.h.b16 %v4081
        %v4166 = vunpack.c.l.b16 %v4082
        %v4167 = vunpack.c.h.b16 %v4082
        %v4168 = vunpack.c.l.b16 %v4083
        %v4169 = vunpack.c.h.b16 %v4083
        %v4170 = vunpack.c.l.b16 %v4084
        %v4171 = vunpack.c.h.b16 %v4084
        %v4172 = vunpack.c.l.b16 %v4085
        %v4173 = vunpack.c.h.b16 %v4085
        %v4174 = vunpack.c.l.b16 %v4086
        %v4175 = vunpack.c.h.b16 %v4086
        %v4176 = vunpack.c.l.b16 %v4087
        %v4177 = vunpack.c.h.b16 %v4087
        %v4178 = vunpack.c.l.b16 %v4088
        %v4179 = vunpack.c.h.b16 %v4088
        %v4180 = vunpack.c.l.b16 %v4089
        %v4181 = vunpack.c.h.b16 %v4089
        %v4182 = vunpack.c.l.b16 %v4090
        %v4183 = vunpack.c.h.b16 %v4090
        %v4184 = vunpack.c.l.b16 %v4091
        %v4185 = vunpack.c.h.b16 %v4091
        %v4186 = vunpack.c.l.b16 %v4092
        %v4187 = vunpack.c.h.b16 %v4092
        %v4188 = vunpack.c.l.b16 %v4093
        %v4189 = vunpack.c.h.b16 %v4093
        %v4190 = vpack.c.b16 %v4128, %v4126
        %v4191 = vpack.c.b16 %v4129, %v4127
        %v4192 = vpack.c.b16 %v4132, %v4130
        %v4193 = vpack.c.b16 %v4133, %v4131
        %v4194 = vpack.c.b16 %v4136, %v4134
        %v4195 = vpack.c.b16 %v4137, %v4135
        %v4196 = vpack.c.b16 %v4140, %v4138
        %v4197 = vpack.c.b16 %v4141, %v4139
        %v4198 = vpack.c.b16 %v4144, %v4142
        %v4199 = vpack.c.b16 %v4145, %v4143
        %v4200 = vpack.c.b16 %v4148, %v4146
        %v4201 = vpack.c.b16 %v4149, %v4147
        %v4202 = vpack.c.b16 %v4152, %v4150
        %v4203 = vpack.c.b16 %v4153, %v4151
        %v4204 = vpack.c.b16 %v4156, %v4154
        %v4205 = vpack.c.b16 %v4157, %v4155
        %v4206 = vpack.c.b16 %v4160, %v4158
        %v4207 = vpack.c.b16 %v4161, %v4159
        %v4208 = vpack.c.b16 %v4164, %v4162
        %v4209 = vpack.c.b16 %v4165, %v4163
        %v4210 = vpack.c.b16 %v4168, %v4166
        %v4211 = vpack.c.b16 %v4169, %v4167
        %v4212 = vpack.c.b16 %v4172, %v4170
        %v4213 = vpack.c.b16 %v4173, %v4171
        %v4214 = vpack.c.b16 %v4176, %v4174
        %v4215 = vpack.c.b16 %v4177, %v4175
        %v4216 = vpack.c.b16 %v4180, %v4178
        %v4217 = vpack.c.b16 %v4181, %v4179
        %v4218 = vpack.c.b16 %v4184, %v4182
        %v4219 = vpack.c.b16 %v4185, %v4183
        %v4220 = vpack.c.b16 %v4188, %v4186
        %v4221 = vpack.c.b16 %v4189, %v4187
        %4254 = vmatpush.bf16.msra.mxu0 %v4204
        %4255 = vmatpush.bf16.msra.mxu0 %v4202
        %4256 = vmatpush.bf16.msra.mxu0 %v4200
        %4257 = vmatpush.bf16.msra.mxu0 %v4198
        %4258 = vmatpush.bf16.msra.mxu0 %v4196
        %4259 = vmatpush.bf16.msra.mxu0 %v4194
        %4260 = vmatpush.bf16.msra.mxu0 %v4192
        %4261 = vmatpush.bf16.msra.mxu0 %v4190
        %4262 = vmatmul.bf16.gmra.mxu0 %v614
        %v4263 = vpop.f32.mrf.mxu0
        %v4264 = vadd.f32 0.0, %v4263
        %v4265 = vpop.f32.mrf.mxu0
        %v4266 = vadd.f32 0.0, %v4265
        %4267 = vmatmul.bf16.gmra.mxu0 %v616
        %v4268 = vpop.f32.mrf.mxu0
        %v4269 = vadd.f32 0.0, %v4268
        %v4270 = vpop.f32.mrf.mxu0
        %v4271 = vadd.f32 0.0, %v4270
        %4272 = vdwg.mxu0
        %4273 = vmatpush.bf16.msra.mxu0 %v4220
        %4274 = vmatpush.bf16.msra.mxu0 %v4218
        %4275 = vmatpush.bf16.msra.mxu0 %v4216
        %4276 = vmatpush.bf16.msra.mxu0 %v4214
        %4277 = vmatpush.bf16.msra.mxu0 %v4212
        %4278 = vmatpush.bf16.msra.mxu0 %v4210
        %4279 = vmatpush.bf16.msra.mxu0 %v4208
        %4280 = vmatpush.bf16.msra.mxu0 %v4206
        %4281 = vmatmul.bf16.gmra.mxu0 %v615
        %v4282 = vpop.f32.mrf.mxu0
        %v4283 = vadd.f32 %v4264, %v4282
        %v4284 = vpop.f32.mrf.mxu0
        %v4285 = vadd.f32 %v4266, %v4284
        %4286 = vmatmul.bf16.gmra.mxu0 %v617
        %v4287 = vpop.f32.mrf.mxu0
        %v4288 = vadd.f32 %v4269, %v4287
        %v4289 = vpop.f32.mrf.mxu0
        %v4290 = vadd.f32 %v4271, %v4289
        %4291 = vdwg.mxu0
        %4292 = vmatpush.bf16.msra.mxu0 %v4205
        %4293 = vmatpush.bf16.msra.mxu0 %v4203
        %4294 = vmatpush.bf16.msra.mxu0 %v4201
        %4295 = vmatpush.bf16.msra.mxu0 %v4199
        %4296 = vmatpush.bf16.msra.mxu0 %v4197
        %4297 = vmatpush.bf16.msra.mxu0 %v4195
        %4298 = vmatpush.bf16.msra.mxu0 %v4193
        %4299 = vmatpush.bf16.msra.mxu0 %v4191
        %4300 = vmatmul.bf16.gmra.mxu0 %v614
        %v4301 = vpop.f32.mrf.mxu0
        %v4302 = vadd.f32 0.0, %v4301
        %v4303 = vpop.f32.mrf.mxu0
        %v4304 = vadd.f32 0.0, %v4303
        %4305 = vmatmul.bf16.gmra.mxu0 %v616
        %v4306 = vpop.f32.mrf.mxu0
        %v4307 = vadd.f32 0.0, %v4306
        %v4308 = vpop.f32.mrf.mxu0
        %v4309 = vadd.f32 0.0, %v4308
        %4310 = vdwg.mxu0
        %4311 = vmatpush.bf16.msra.mxu0 %v4221
        %4312 = vmatpush.bf16.msra.mxu0 %v4219
        %4313 = vmatpush.bf16.msra.mxu0 %v4217
        %4314 = vmatpush.bf16.msra.mxu0 %v4215
        %4315 = vmatpush.bf16.msra.mxu0 %v4213
        %4316 = vmatpush.bf16.msra.mxu0 %v4211
        %4317 = vmatpush.bf16.msra.mxu0 %v4209
        %4318 = vmatpush.bf16.msra.mxu0 %v4207
        %4319 = vmatmul.bf16.gmra.mxu0 %v615
        %v4320 = vpop.f32.mrf.mxu0
        %v4321 = vadd.f32 %v4302, %v4320
        %v4322 = vpop.f32.mrf.mxu0
        %v4323 = vadd.f32 %v4304, %v4322
        %4324 = vmatmul.bf16.gmra.mxu0 %v617
        %v4325 = vpop.f32.mrf.mxu0
        %v4326 = vadd.f32 %v4307, %v4325
        %v4327 = vpop.f32.mrf.mxu0
        %v4328 = vadd.f32 %v4309, %v4327
        %4329 = vdwg.mxu0
        %v4330 = vpack.c.bf16 %v4321, %v4283
        %v4331 = vpack.c.bf16 %v4323, %v4285
        %v4332 = vpack.c.bf16 %v4326, %v4288
        %v4333 = vpack.c.bf16 %v4328, %v4290
        %s4334 = scalar_lea.vmem %s5, 1792
        %v4335 = vld [vmem:[%s4334] sm:$0xff]
        %v4336 = vld [vmem:[%s4334 + $0x8] sm:$0xff]
        %v4337 = vld [vmem:[%s4334 + $0x10] sm:$0xff]
        %v4338 = vld [vmem:[%s4334 + $0x18] sm:$0xff]
        %v4339 = vld [vmem:[%s4334 + $0x20] sm:$0xff]
        %v4340 = vld [vmem:[%s4334 + $0x28] sm:$0xff]
        %v4341 = vld [vmem:[%s4334 + $0x30] sm:$0xff]
        %v4342 = vld [vmem:[%s4334 + $0x38] sm:$0xff]
        %v4343 = vld [vmem:[%s4334 + $0x40] sm:$0xff]
        %v4344 = vld [vmem:[%s4334 + $0x48] sm:$0xff]
        %v4345 = vld [vmem:[%s4334 + $0x50] sm:$0xff]
        %v4346 = vld [vmem:[%s4334 + $0x58] sm:$0xff]
        %v4347 = vld [vmem:[%s4334 + $0x60] sm:$0xff]
        %v4348 = vld [vmem:[%s4334 + $0x68] sm:$0xff]
        %v4349 = vld [vmem:[%s4334 + $0x70] sm:$0xff]
        %v4350 = vld [vmem:[%s4334 + $0x78] sm:$0xff]
        %v4351 = vld [vmem:[%s4334 + $0x80] sm:$0xff]
        %v4352 = vld [vmem:[%s4334 + $0x88] sm:$0xff]
        %v4353 = vld [vmem:[%s4334 + $0x90] sm:$0xff]
        %v4354 = vld [vmem:[%s4334 + $0x98] sm:$0xff]
        %v4355 = vld [vmem:[%s4334 + $0xa0] sm:$0xff]
        %v4356 = vld [vmem:[%s4334 + $0xa8] sm:$0xff]
        %v4357 = vld [vmem:[%s4334 + $0xb0] sm:$0xff]
        %v4358 = vld [vmem:[%s4334 + $0xb8] sm:$0xff]
        %v4359 = vld [vmem:[%s4334 + $0xc0] sm:$0xff]
        %v4360 = vld [vmem:[%s4334 + $0xc8] sm:$0xff]
        %v4361 = vld [vmem:[%s4334 + $0xd0] sm:$0xff]
        %v4362 = vld [vmem:[%s4334 + $0xd8] sm:$0xff]
        %v4363 = vld [vmem:[%s4334 + $0xe0] sm:$0xff]
        %v4364 = vld [vmem:[%s4334 + $0xe8] sm:$0xff]
        %v4365 = vld [vmem:[%s4334 + $0xf0] sm:$0xff]
        %v4366 = vld [vmem:[%s4334 + $0xf8] sm:$0xff]
        %v4399 = vunpack.c.l.b16 %v4335
        %v4400 = vunpack.c.h.b16 %v4335
        %v4401 = vunpack.c.l.b16 %v4336
        %v4402 = vunpack.c.h.b16 %v4336
        %v4403 = vunpack.c.l.b16 %v4337
        %v4404 = vunpack.c.h.b16 %v4337
        %v4405 = vunpack.c.l.b16 %v4338
        %v4406 = vunpack.c.h.b16 %v4338
        %v4407 = vunpack.c.l.b16 %v4339
        %v4408 = vunpack.c.h.b16 %v4339
        %v4409 = vunpack.c.l.b16 %v4340
        %v4410 = vunpack.c.h.b16 %v4340
        %v4411 = vunpack.c.l.b16 %v4341
        %v4412 = vunpack.c.h.b16 %v4341
        %v4413 = vunpack.c.l.b16 %v4342
        %v4414 = vunpack.c.h.b16 %v4342
        %v4415 = vunpack.c.l.b16 %v4343
        %v4416 = vunpack.c.h.b16 %v4343
        %v4417 = vunpack.c.l.b16 %v4344
        %v4418 = vunpack.c.h.b16 %v4344
        %v4419 = vunpack.c.l.b16 %v4345
        %v4420 = vunpack.c.h.b16 %v4345
        %v4421 = vunpack.c.l.b16 %v4346
        %v4422 = vunpack.c.h.b16 %v4346
        %v4423 = vunpack.c.l.b16 %v4347
        %v4424 = vunpack.c.h.b16 %v4347
        %v4425 = vunpack.c.l.b16 %v4348
        %v4426 = vunpack.c.h.b16 %v4348
        %v4427 = vunpack.c.l.b16 %v4349
        %v4428 = vunpack.c.h.b16 %v4349
        %v4429 = vunpack.c.l.b16 %v4350
        %v4430 = vunpack.c.h.b16 %v4350
        %v4431 = vunpack.c.l.b16 %v4351
        %v4432 = vunpack.c.h.b16 %v4351
        %v4433 = vunpack.c.l.b16 %v4352
        %v4434 = vunpack.c.h.b16 %v4352
        %v4435 = vunpack.c.l.b16 %v4353
        %v4436 = vunpack.c.h.b16 %v4353
        %v4437 = vunpack.c.l.b16 %v4354
        %v4438 = vunpack.c.h.b16 %v4354
        %v4439 = vunpack.c.l.b16 %v4355
        %v4440 = vunpack.c.h.b16 %v4355
        %v4441 = vunpack.c.l.b16 %v4356
        %v4442 = vunpack.c.h.b16 %v4356
        %v4443 = vunpack.c.l.b16 %v4357
        %v4444 = vunpack.c.h.b16 %v4357
        %v4445 = vunpack.c.l.b16 %v4358
        %v4446 = vunpack.c.h.b16 %v4358
        %v4447 = vunpack.c.l.b16 %v4359
        %v4448 = vunpack.c.h.b16 %v4359
        %v4449 = vunpack.c.l.b16 %v4360
        %v4450 = vunpack.c.h.b16 %v4360
        %v4451 = vunpack.c.l.b16 %v4361
        %v4452 = vunpack.c.h.b16 %v4361
        %v4453 = vunpack.c.l.b16 %v4362
        %v4454 = vunpack.c.h.b16 %v4362
        %v4455 = vunpack.c.l.b16 %v4363
        %v4456 = vunpack.c.h.b16 %v4363
        %v4457 = vunpack.c.l.b16 %v4364
        %v4458 = vunpack.c.h.b16 %v4364
        %v4459 = vunpack.c.l.b16 %v4365
        %v4460 = vunpack.c.h.b16 %v4365
        %v4461 = vunpack.c.l.b16 %v4366
        %v4462 = vunpack.c.h.b16 %v4366
        %v4463 = vpack.c.b16 %v4401, %v4399
        %v4464 = vpack.c.b16 %v4402, %v4400
        %v4465 = vpack.c.b16 %v4405, %v4403
        %v4466 = vpack.c.b16 %v4406, %v4404
        %v4467 = vpack.c.b16 %v4409, %v4407
        %v4468 = vpack.c.b16 %v4410, %v4408
        %v4469 = vpack.c.b16 %v4413, %v4411
        %v4470 = vpack.c.b16 %v4414, %v4412
        %v4471 = vpack.c.b16 %v4417, %v4415
        %v4472 = vpack.c.b16 %v4418, %v4416
        %v4473 = vpack.c.b16 %v4421, %v4419
        %v4474 = vpack.c.b16 %v4422, %v4420
        %v4475 = vpack.c.b16 %v4425, %v4423
        %v4476 = vpack.c.b16 %v4426, %v4424
        %v4477 = vpack.c.b16 %v4429, %v4427
        %v4478 = vpack.c.b16 %v4430, %v4428
        %v4479 = vpack.c.b16 %v4433, %v4431
        %v4480 = vpack.c.b16 %v4434, %v4432
        %v4481 = vpack.c.b16 %v4437, %v4435
        %v4482 = vpack.c.b16 %v4438, %v4436
        %v4483 = vpack.c.b16 %v4441, %v4439
        %v4484 = vpack.c.b16 %v4442, %v4440
        %v4485 = vpack.c.b16 %v4445, %v4443
        %v4486 = vpack.c.b16 %v4446, %v4444
        %v4487 = vpack.c.b16 %v4449, %v4447
        %v4488 = vpack.c.b16 %v4450, %v4448
        %v4489 = vpack.c.b16 %v4453, %v4451
        %v4490 = vpack.c.b16 %v4454, %v4452
        %v4491 = vpack.c.b16 %v4457, %v4455
        %v4492 = vpack.c.b16 %v4458, %v4456
        %v4493 = vpack.c.b16 %v4461, %v4459
        %v4494 = vpack.c.b16 %v4462, %v4460
        %4527 = vmatpush.bf16.msra.mxu0 %v4477
        %4528 = vmatpush.bf16.msra.mxu0 %v4475
        %4529 = vmatpush.bf16.msra.mxu0 %v4473
        %4530 = vmatpush.bf16.msra.mxu0 %v4471
        %4531 = vmatpush.bf16.msra.mxu0 %v4469
        %4532 = vmatpush.bf16.msra.mxu0 %v4467
        %4533 = vmatpush.bf16.msra.mxu0 %v4465
        %4534 = vmatpush.bf16.msra.mxu0 %v4463
        %4535 = vmatmul.bf16.gmra.mxu0 %v614
        %v4536 = vpop.f32.mrf.mxu0
        %v4537 = vadd.f32 0.0, %v4536
        %v4538 = vpop.f32.mrf.mxu0
        %v4539 = vadd.f32 0.0, %v4538
        %4540 = vmatmul.bf16.gmra.mxu0 %v616
        %v4541 = vpop.f32.mrf.mxu0
        %v4542 = vadd.f32 0.0, %v4541
        %v4543 = vpop.f32.mrf.mxu0
        %v4544 = vadd.f32 0.0, %v4543
        %4545 = vdwg.mxu0
        %4546 = vmatpush.bf16.msra.mxu0 %v4493
        %4547 = vmatpush.bf16.msra.mxu0 %v4491
        %4548 = vmatpush.bf16.msra.mxu0 %v4489
        %4549 = vmatpush.bf16.msra.mxu0 %v4487
        %4550 = vmatpush.bf16.msra.mxu0 %v4485
        %4551 = vmatpush.bf16.msra.mxu0 %v4483
        %4552 = vmatpush.bf16.msra.mxu0 %v4481
        %4553 = vmatpush.bf16.msra.mxu0 %v4479
        %4554 = vmatmul.bf16.gmra.mxu0 %v615
        %v4555 = vpop.f32.mrf.mxu0
        %v4556 = vadd.f32 %v4537, %v4555
        %v4557 = vpop.f32.mrf.mxu0
        %v4558 = vadd.f32 %v4539, %v4557
        %4559 = vmatmul.bf16.gmra.mxu0 %v617
        %v4560 = vpop.f32.mrf.mxu0
        %v4561 = vadd.f32 %v4542, %v4560
        %v4562 = vpop.f32.mrf.mxu0
        %v4563 = vadd.f32 %v4544, %v4562
        %4564 = vdwg.mxu0
        %4565 = vmatpush.bf16.msra.mxu0 %v4478
        %4566 = vmatpush.bf16.msra.mxu0 %v4476
        %4567 = vmatpush.bf16.msra.mxu0 %v4474
        %4568 = vmatpush.bf16.msra.mxu0 %v4472
        %4569 = vmatpush.bf16.msra.mxu0 %v4470
        %4570 = vmatpush.bf16.msra.mxu0 %v4468
        %4571 = vmatpush.bf16.msra.mxu0 %v4466
        %4572 = vmatpush.bf16.msra.mxu0 %v4464
        %4573 = vmatmul.bf16.gmra.mxu0 %v614
        %v4574 = vpop.f32.mrf.mxu0
        %v4575 = vadd.f32 0.0, %v4574
        %v4576 = vpop.f32.mrf.mxu0
        %v4577 = vadd.f32 0.0, %v4576
        %4578 = vmatmul.bf16.gmra.mxu0 %v616
        %v4579 = vpop.f32.mrf.mxu0
        %v4580 = vadd.f32 0.0, %v4579
        %v4581 = vpop.f32.mrf.mxu0
        %v4582 = vadd.f32 0.0, %v4581
        %4583 = vdwg.mxu0
        %4584 = vmatpush.bf16.msra.mxu0 %v4494
        %4585 = vmatpush.bf16.msra.mxu0 %v4492
        %4586 = vmatpush.bf16.msra.mxu0 %v4490
        %4587 = vmatpush.bf16.msra.mxu0 %v4488
        %4588 = vmatpush.bf16.msra.mxu0 %v4486
        %4589 = vmatpush.bf16.msra.mxu0 %v4484
        %4590 = vmatpush.bf16.msra.mxu0 %v4482
        %4591 = vmatpush.bf16.msra.mxu0 %v4480
        %4592 = vmatmul.bf16.gmra.mxu0 %v615
        %v4593 = vpop.f32.mrf.mxu0
        %v4594 = vadd.f32 %v4575, %v4593
        %v4595 = vpop.f32.mrf.mxu0
        %v4596 = vadd.f32 %v4577, %v4595
        %4597 = vmatmul.bf16.gmra.mxu0 %v617
        %v4598 = vpop.f32.mrf.mxu0
        %v4599 = vadd.f32 %v4580, %v4598
        %v4600 = vpop.f32.mrf.mxu0
        %v4601 = vadd.f32 %v4582, %v4600
        %4602 = vdwg.mxu0
        %v4603 = vpack.c.bf16 %v4594, %v4556
        %v4604 = vpack.c.bf16 %v4596, %v4558
        %v4605 = vpack.c.bf16 %v4599, %v4561
        %v4606 = vpack.c.bf16 %v4601, %v4563
        %s4607 = scalar_lea.vmem %s5, 2048
        %v4608 = vld [vmem:[%s4607] sm:$0xff]
        %v4609 = vld [vmem:[%s4607 + $0x8] sm:$0xff]
        %v4610 = vld [vmem:[%s4607 + $0x10] sm:$0xff]
        %v4611 = vld [vmem:[%s4607 + $0x18] sm:$0xff]
        %v4612 = vld [vmem:[%s4607 + $0x20] sm:$0xff]
        %v4613 = vld [vmem:[%s4607 + $0x28] sm:$0xff]
        %v4614 = vld [vmem:[%s4607 + $0x30] sm:$0xff]
        %v4615 = vld [vmem:[%s4607 + $0x38] sm:$0xff]
        %v4616 = vld [vmem:[%s4607 + $0x40] sm:$0xff]
        %v4617 = vld [vmem:[%s4607 + $0x48] sm:$0xff]
        %v4618 = vld [vmem:[%s4607 + $0x50] sm:$0xff]
        %v4619 = vld [vmem:[%s4607 + $0x58] sm:$0xff]
        %v4620 = vld [vmem:[%s4607 + $0x60] sm:$0xff]
        %v4621 = vld [vmem:[%s4607 + $0x68] sm:$0xff]
        %v4622 = vld [vmem:[%s4607 + $0x70] sm:$0xff]
        %v4623 = vld [vmem:[%s4607 + $0x78] sm:$0xff]
        %v4624 = vld [vmem:[%s4607 + $0x80] sm:$0xff]
        %v4625 = vld [vmem:[%s4607 + $0x88] sm:$0xff]
        %v4626 = vld [vmem:[%s4607 + $0x90] sm:$0xff]
        %v4627 = vld [vmem:[%s4607 + $0x98] sm:$0xff]
        %v4628 = vld [vmem:[%s4607 + $0xa0] sm:$0xff]
        %v4629 = vld [vmem:[%s4607 + $0xa8] sm:$0xff]
        %v4630 = vld [vmem:[%s4607 + $0xb0] sm:$0xff]
        %v4631 = vld [vmem:[%s4607 + $0xb8] sm:$0xff]
        %v4632 = vld [vmem:[%s4607 + $0xc0] sm:$0xff]
        %v4633 = vld [vmem:[%s4607 + $0xc8] sm:$0xff]
        %v4634 = vld [vmem:[%s4607 + $0xd0] sm:$0xff]
        %v4635 = vld [vmem:[%s4607 + $0xd8] sm:$0xff]
        %v4636 = vld [vmem:[%s4607 + $0xe0] sm:$0xff]
        %v4637 = vld [vmem:[%s4607 + $0xe8] sm:$0xff]
        %v4638 = vld [vmem:[%s4607 + $0xf0] sm:$0xff]
        %v4639 = vld [vmem:[%s4607 + $0xf8] sm:$0xff]
        %v4672 = vunpack.c.l.b16 %v4608
        %v4673 = vunpack.c.h.b16 %v4608
        %v4674 = vunpack.c.l.b16 %v4609
        %v4675 = vunpack.c.h.b16 %v4609
        %v4676 = vunpack.c.l.b16 %v4610
        %v4677 = vunpack.c.h.b16 %v4610
        %v4678 = vunpack.c.l.b16 %v4611
        %v4679 = vunpack.c.h.b16 %v4611
        %v4680 = vunpack.c.l.b16 %v4612
        %v4681 = vunpack.c.h.b16 %v4612
        %v4682 = vunpack.c.l.b16 %v4613
        %v4683 = vunpack.c.h.b16 %v4613
        %v4684 = vunpack.c.l.b16 %v4614
        %v4685 = vunpack.c.h.b16 %v4614
        %v4686 = vunpack.c.l.b16 %v4615
        %v4687 = vunpack.c.h.b16 %v4615
        %v4688 = vunpack.c.l.b16 %v4616
        %v4689 = vunpack.c.h.b16 %v4616
        %v4690 = vunpack.c.l.b16 %v4617
        %v4691 = vunpack.c.h.b16 %v4617
        %v4692 = vunpack.c.l.b16 %v4618
        %v4693 = vunpack.c.h.b16 %v4618
        %v4694 = vunpack.c.l.b16 %v4619
        %v4695 = vunpack.c.h.b16 %v4619
        %v4696 = vunpack.c.l.b16 %v4620
        %v4697 = vunpack.c.h.b16 %v4620
        %v4698 = vunpack.c.l.b16 %v4621
        %v4699 = vunpack.c.h.b16 %v4621
        %v4700 = vunpack.c.l.b16 %v4622
        %v4701 = vunpack.c.h.b16 %v4622
        %v4702 = vunpack.c.l.b16 %v4623
        %v4703 = vunpack.c.h.b16 %v4623
        %v4704 = vunpack.c.l.b16 %v4624
        %v4705 = vunpack.c.h.b16 %v4624
        %v4706 = vunpack.c.l.b16 %v4625
        %v4707 = vunpack.c.h.b16 %v4625
        %v4708 = vunpack.c.l.b16 %v4626
        %v4709 = vunpack.c.h.b16 %v4626
        %v4710 = vunpack.c.l.b16 %v4627
        %v4711 = vunpack.c.h.b16 %v4627
        %v4712 = vunpack.c.l.b16 %v4628
        %v4713 = vunpack.c.h.b16 %v4628
        %v4714 = vunpack.c.l.b16 %v4629
        %v4715 = vunpack.c.h.b16 %v4629
        %v4716 = vunpack.c.l.b16 %v4630
        %v4717 = vunpack.c.h.b16 %v4630
        %v4718 = vunpack.c.l.b16 %v4631
        %v4719 = vunpack.c.h.b16 %v4631
        %v4720 = vunpack.c.l.b16 %v4632
        %v4721 = vunpack.c.h.b16 %v4632
        %v4722 = vunpack.c.l.b16 %v4633
        %v4723 = vunpack.c.h.b16 %v4633
        %v4724 = vunpack.c.l.b16 %v4634
        %v4725 = vunpack.c.h.b16 %v4634
        %v4726 = vunpack.c.l.b16 %v4635
        %v4727 = vunpack.c.h.b16 %v4635
        %v4728 = vunpack.c.l.b16 %v4636
        %v4729 = vunpack.c.h.b16 %v4636
        %v4730 = vunpack.c.l.b16 %v4637
        %v4731 = vunpack.c.h.b16 %v4637
        %v4732 = vunpack.c.l.b16 %v4638
        %v4733 = vunpack.c.h.b16 %v4638
        %v4734 = vunpack.c.l.b16 %v4639
        %v4735 = vunpack.c.h.b16 %v4639
        %v4736 = vpack.c.b16 %v4674, %v4672
        %v4737 = vpack.c.b16 %v4675, %v4673
        %v4738 = vpack.c.b16 %v4678, %v4676
        %v4739 = vpack.c.b16 %v4679, %v4677
        %v4740 = vpack.c.b16 %v4682, %v4680
        %v4741 = vpack.c.b16 %v4683, %v4681
        %v4742 = vpack.c.b16 %v4686, %v4684
        %v4743 = vpack.c.b16 %v4687, %v4685
        %v4744 = vpack.c.b16 %v4690, %v4688
        %v4745 = vpack.c.b16 %v4691, %v4689
        %v4746 = vpack.c.b16 %v4694, %v4692
        %v4747 = vpack.c.b16 %v4695, %v4693
        %v4748 = vpack.c.b16 %v4698, %v4696
        %v4749 = vpack.c.b16 %v4699, %v4697
        %v4750 = vpack.c.b16 %v4702, %v4700
        %v4751 = vpack.c.b16 %v4703, %v4701
        %v4752 = vpack.c.b16 %v4706, %v4704
        %v4753 = vpack.c.b16 %v4707, %v4705
        %v4754 = vpack.c.b16 %v4710, %v4708
        %v4755 = vpack.c.b16 %v4711, %v4709
        %v4756 = vpack.c.b16 %v4714, %v4712
        %v4757 = vpack.c.b16 %v4715, %v4713
        %v4758 = vpack.c.b16 %v4718, %v4716
        %v4759 = vpack.c.b16 %v4719, %v4717
        %v4760 = vpack.c.b16 %v4722, %v4720
        %v4761 = vpack.c.b16 %v4723, %v4721
        %v4762 = vpack.c.b16 %v4726, %v4724
        %v4763 = vpack.c.b16 %v4727, %v4725
        %v4764 = vpack.c.b16 %v4730, %v4728
        %v4765 = vpack.c.b16 %v4731, %v4729
        %v4766 = vpack.c.b16 %v4734, %v4732
        %v4767 = vpack.c.b16 %v4735, %v4733
        %4800 = vmatpush.bf16.msra.mxu0 %v4750
        %4801 = vmatpush.bf16.msra.mxu0 %v4748
        %4802 = vmatpush.bf16.msra.mxu0 %v4746
        %4803 = vmatpush.bf16.msra.mxu0 %v4744
        %4804 = vmatpush.bf16.msra.mxu0 %v4742
        %4805 = vmatpush.bf16.msra.mxu0 %v4740
        %4806 = vmatpush.bf16.msra.mxu0 %v4738
        %4807 = vmatpush.bf16.msra.mxu0 %v4736
        %4808 = vmatmul.bf16.gmra.mxu0 %v614
        %v4809 = vpop.f32.mrf.mxu0
        %v4810 = vadd.f32 0.0, %v4809
        %v4811 = vpop.f32.mrf.mxu0
        %v4812 = vadd.f32 0.0, %v4811
        %4813 = vmatmul.bf16.gmra.mxu0 %v616
        %v4814 = vpop.f32.mrf.mxu0
        %v4815 = vadd.f32 0.0, %v4814
        %v4816 = vpop.f32.mrf.mxu0
        %v4817 = vadd.f32 0.0, %v4816
        %4818 = vdwg.mxu0
        %4819 = vmatpush.bf16.msra.mxu0 %v4766
        %4820 = vmatpush.bf16.msra.mxu0 %v4764
        %4821 = vmatpush.bf16.msra.mxu0 %v4762
        %4822 = vmatpush.bf16.msra.mxu0 %v4760
        %4823 = vmatpush.bf16.msra.mxu0 %v4758
        %4824 = vmatpush.bf16.msra.mxu0 %v4756
        %4825 = vmatpush.bf16.msra.mxu0 %v4754
        %4826 = vmatpush.bf16.msra.mxu0 %v4752
        %4827 = vmatmul.bf16.gmra.mxu0 %v615
        %v4828 = vpop.f32.mrf.mxu0
        %v4829 = vadd.f32 %v4810, %v4828
        %v4830 = vpop.f32.mrf.mxu0
        %v4831 = vadd.f32 %v4812, %v4830
        %4832 = vmatmul.bf16.gmra.mxu0 %v617
        %v4833 = vpop.f32.mrf.mxu0
        %v4834 = vadd.f32 %v4815, %v4833
        %v4835 = vpop.f32.mrf.mxu0
        %v4836 = vadd.f32 %v4817, %v4835
        %4837 = vdwg.mxu0
        %4838 = vmatpush.bf16.msra.mxu0 %v4751
        %4839 = vmatpush.bf16.msra.mxu0 %v4749
        %4840 = vmatpush.bf16.msra.mxu0 %v4747
        %4841 = vmatpush.bf16.msra.mxu0 %v4745
        %4842 = vmatpush.bf16.msra.mxu0 %v4743
        %4843 = vmatpush.bf16.msra.mxu0 %v4741
        %4844 = vmatpush.bf16.msra.mxu0 %v4739
        %4845 = vmatpush.bf16.msra.mxu0 %v4737
        %4846 = vmatmul.bf16.gmra.mxu0 %v614
        %v4847 = vpop.f32.mrf.mxu0
        %v4848 = vadd.f32 0.0, %v4847
        %v4849 = vpop.f32.mrf.mxu0
        %v4850 = vadd.f32 0.0, %v4849
        %4851 = vmatmul.bf16.gmra.mxu0 %v616
        %v4852 = vpop.f32.mrf.mxu0
        %v4853 = vadd.f32 0.0, %v4852
        %v4854 = vpop.f32.mrf.mxu0
        %v4855 = vadd.f32 0.0, %v4854
        %4856 = vdwg.mxu0
        %4857 = vmatpush.bf16.msra.mxu0 %v4767
        %4858 = vmatpush.bf16.msra.mxu0 %v4765
        %4859 = vmatpush.bf16.msra.mxu0 %v4763
        %4860 = vmatpush.bf16.msra.mxu0 %v4761
        %4861 = vmatpush.bf16.msra.mxu0 %v4759
        %4862 = vmatpush.bf16.msra.mxu0 %v4757
        %4863 = vmatpush.bf16.msra.mxu0 %v4755
        %4864 = vmatpush.bf16.msra.mxu0 %v4753
        %4865 = vmatmul.bf16.gmra.mxu0 %v615
        %v4866 = vpop.f32.mrf.mxu0
        %v4867 = vadd.f32 %v4848, %v4866
        %v4868 = vpop.f32.mrf.mxu0
        %v4869 = vadd.f32 %v4850, %v4868
        %4870 = vmatmul.bf16.gmra.mxu0 %v617
        %v4871 = vpop.f32.mrf.mxu0
        %v4872 = vadd.f32 %v4853, %v4871
        %v4873 = vpop.f32.mrf.mxu0
        %v4874 = vadd.f32 %v4855, %v4873
        %4875 = vdwg.mxu0
        %v4876 = vpack.c.bf16 %v4867, %v4829
        %v4877 = vpack.c.bf16 %v4869, %v4831
        %v4878 = vpack.c.bf16 %v4872, %v4834
        %v4879 = vpack.c.bf16 %v4874, %v4836
        %v4884 = vunpack.c.l.b16 %v2692
        %v4885 = vunpack.c.h.b16 %v2692
        %v4886 = vunpack.c.l.b16 %v2693
        %v4887 = vunpack.c.h.b16 %v2693
        %v4888 = vunpack.c.l.b16 %v2694
        %v4889 = vunpack.c.h.b16 %v2694
        %v4890 = vunpack.c.l.b16 %v2695
        %v4891 = vunpack.c.h.b16 %v2695
        %v4892 = vpack.c.b16 %v4886, %v4884
        %v4893 = vpack.c.b16 %v4887, %v4885
        %v4894 = vpack.c.b16 %v4890, %v4888
        %v4895 = vpack.c.b16 %v4891, %v4889
        %v4904 = vunpack.c.l.b16 %v2965
        %v4905 = vunpack.c.h.b16 %v2965
        %v4906 = vunpack.c.l.b16 %v2966
        %v4907 = vunpack.c.h.b16 %v2966
        %v4908 = vunpack.c.l.b16 %v2967
        %v4909 = vunpack.c.h.b16 %v2967
        %v4910 = vunpack.c.l.b16 %v2968
        %v4911 = vunpack.c.h.b16 %v2968
        %v4912 = vpack.c.b16 %v4906, %v4904
        %v4913 = vpack.c.b16 %v4907, %v4905
        %v4914 = vpack.c.b16 %v4910, %v4908
        %v4915 = vpack.c.b16 %v4911, %v4909
        %v4924 = vunpack.c.l.b16 %v3238
        %v4925 = vunpack.c.h.b16 %v3238
        %v4926 = vunpack.c.l.b16 %v3239
        %v4927 = vunpack.c.h.b16 %v3239
        %v4928 = vunpack.c.l.b16 %v3240
        %v4929 = vunpack.c.h.b16 %v3240
        %v4930 = vunpack.c.l.b16 %v3241
        %v4931 = vunpack.c.h.b16 %v3241
        %v4932 = vpack.c.b16 %v4926, %v4924
        %v4933 = vpack.c.b16 %v4927, %v4925
        %v4934 = vpack.c.b16 %v4930, %v4928
        %v4935 = vpack.c.b16 %v4931, %v4929
        %v4944 = vunpack.c.l.b16 %v3511
        %v4945 = vunpack.c.h.b16 %v3511
        %v4946 = vunpack.c.l.b16 %v3512
        %v4947 = vunpack.c.h.b16 %v3512
        %v4948 = vunpack.c.l.b16 %v3513
        %v4949 = vunpack.c.h.b16 %v3513
        %v4950 = vunpack.c.l.b16 %v3514
        %v4951 = vunpack.c.h.b16 %v3514
        %v4952 = vpack.c.b16 %v4946, %v4944
        %v4953 = vpack.c.b16 %v4947, %v4945
        %v4954 = vpack.c.b16 %v4950, %v4948
        %v4955 = vpack.c.b16 %v4951, %v4949
        %v4964 = vunpack.c.l.b16 %v3784
        %v4965 = vunpack.c.h.b16 %v3784
        %v4966 = vunpack.c.l.b16 %v3785
        %v4967 = vunpack.c.h.b16 %v3785
        %v4968 = vunpack.c.l.b16 %v3786
        %v4969 = vunpack.c.h.b16 %v3786
        %v4970 = vunpack.c.l.b16 %v3787
        %v4971 = vunpack.c.h.b16 %v3787
        %v4972 = vpack.c.b16 %v4966, %v4964
        %v4973 = vpack.c.b16 %v4967, %v4965
        %v4974 = vpack.c.b16 %v4970, %v4968
        %v4975 = vpack.c.b16 %v4971, %v4969
        %v4984 = vunpack.c.l.b16 %v4057
        %v4985 = vunpack.c.h.b16 %v4057
        %v4986 = vunpack.c.l.b16 %v4058
        %v4987 = vunpack.c.h.b16 %v4058
        %v4988 = vunpack.c.l.b16 %v4059
        %v4989 = vunpack.c.h.b16 %v4059
        %v4990 = vunpack.c.l.b16 %v4060
        %v4991 = vunpack.c.h.b16 %v4060
        %v4992 = vpack.c.b16 %v4986, %v4984
        %v4993 = vpack.c.b16 %v4987, %v4985
        %v4994 = vpack.c.b16 %v4990, %v4988
        %v4995 = vpack.c.b16 %v4991, %v4989
        %v5004 = vunpack.c.l.b16 %v4330
        %v5005 = vunpack.c.h.b16 %v4330
        %v5006 = vunpack.c.l.b16 %v4331
        %v5007 = vunpack.c.h.b16 %v4331
        %v5008 = vunpack.c.l.b16 %v4332
        %v5009 = vunpack.c.h.b16 %v4332
        %v5010 = vunpack.c.l.b16 %v4333
        %v5011 = vunpack.c.h.b16 %v4333
        %v5012 = vpack.c.b16 %v5006, %v5004
        %v5013 = vpack.c.b16 %v5007, %v5005
        %v5014 = vpack.c.b16 %v5010, %v5008
        %v5015 = vpack.c.b16 %v5011, %v5009
        %v5024 = vunpack.c.l.b16 %v4603
        %v5025 = vunpack.c.h.b16 %v4603
        %v5026 = vunpack.c.l.b16 %v4604
        %v5027 = vunpack.c.h.b16 %v4604
        %v5028 = vunpack.c.l.b16 %v4605
        %v5029 = vunpack.c.h.b16 %v4605
        %v5030 = vunpack.c.l.b16 %v4606
        %v5031 = vunpack.c.h.b16 %v4606
        %v5032 = vpack.c.b16 %v5026, %v5024
        %v5033 = vpack.c.b16 %v5027, %v5025
        %v5034 = vpack.c.b16 %v5030, %v5028
        %v5035 = vpack.c.b16 %v5031, %v5029
        %v5044 = vunpack.c.l.b16 %v4876
        %v5045 = vunpack.c.h.b16 %v4876
        %v5046 = vunpack.c.l.b16 %v4877
        %v5047 = vunpack.c.h.b16 %v4877
        %v5048 = vunpack.c.l.b16 %v4878
        %v5049 = vunpack.c.h.b16 %v4878
        %v5050 = vunpack.c.l.b16 %v4879
        %v5051 = vunpack.c.h.b16 %v4879
        %v5052 = vpack.c.b16 %v5046, %v5044
        %v5053 = vpack.c.b16 %v5047, %v5045
        %v5054 = vpack.c.b16 %v5050, %v5048
        %v5055 = vpack.c.b16 %v5051, %v5049
        %s5060 = scalar_lea.vmem %s2, 48
        %v5061 = vld [vmem:[%s5060] sm:$0xff]
        %v5062 = vld [vmem:[%s5060 + $0x8] sm:$0xf]
        %v5063 = vld [vmem:[%s5060 + $0xc] sm:$0xff]
        %v5064 = vld [vmem:[%s5060 + $0x14] sm:$0xf]
        %v5065 = vld [vmem:[%s5060 + $0x18] sm:$0xff]
        %v5066 = vld [vmem:[%s5060 + $0x20] sm:$0xf]
        %v5067 = vld [vmem:[%s5060 + $0x24] sm:$0xff]
        %v5068 = vld [vmem:[%s5060 + $0x2c] sm:$0xf]
        %v5077 = vunpack.c.l.b16 %v5061
        %v5078 = vunpack.c.h.b16 %v5061
        %v5079 = vunpack.c.l.b16 %v5062
        %v5080 = vunpack.c.l.b16 %v5063
        %v5081 = vunpack.c.h.b16 %v5063
        %v5082 = vunpack.c.l.b16 %v5064
        %v5083 = vunpack.c.l.b16 %v5065
        %v5084 = vunpack.c.h.b16 %v5065
        %v5085 = vunpack.c.l.b16 %v5066
        %v5086 = vunpack.c.l.b16 %v5067
        %v5087 = vunpack.c.h.b16 %v5067
        %v5088 = vunpack.c.l.b16 %v5068
        %v5089 = vpack.c.b16 %v5080, %v5077
        %v5090 = vpack.c.b16 %v5081, %v5078
        %v5091 = vpack.c.b16 %v5082, %v5079
        %v5092 = vpack.c.b16 %v5086, %v5083
        %v5093 = vpack.c.b16 %v5087, %v5084
        %v5094 = vpack.c.b16 %v5088, %v5085
        %v5100 = vsel %vm2302, %v5091, 0
        %v5103 = vsel %vm2302, %v5094, 0
        %5105 = vmatpush.bf16.msra.mxu0 %v4954
        %5106 = vmatpush.bf16.msra.mxu0 %v4952
        %5107 = vmatpush.bf16.msra.mxu0 %v4934
        %5108 = vmatpush.bf16.msra.mxu0 %v4932
        %5109 = vmatpush.bf16.msra.mxu0 %v4914
        %5110 = vmatpush.bf16.msra.mxu0 %v4912
        %5111 = vmatpush.bf16.msra.mxu0 %v4894
        %5112 = vmatpush.bf16.msra.mxu0 %v4892
        %5113 = vmatmul.bf16.gmra.mxu0 %v5089
        %v5114 = vpop.f32.mrf.mxu0
        %v5115 = vadd.f32 0.0, %v5114
        %v5116 = vpop.f32.mrf.mxu0
        %v5117 = vadd.f32 0.0, %v5116
        %5118 = vmatmul.bf16.gmra.mxu0 %v5092
        %v5119 = vpop.f32.mrf.mxu0
        %v5120 = vadd.f32 0.0, %v5119
        %v5121 = vpop.f32.mrf.mxu0
        %v5122 = vadd.f32 0.0, %v5121
        %5123 = vdwg.mxu0
        %5124 = vmatpush.bf16.msra.mxu0 %v5034
        %5125 = vmatpush.bf16.msra.mxu0 %v5032
        %5126 = vmatpush.bf16.msra.mxu0 %v5014
        %5127 = vmatpush.bf16.msra.mxu0 %v5012
        %5128 = vmatpush.bf16.msra.mxu0 %v4994
        %5129 = vmatpush.bf16.msra.mxu0 %v4992
        %5130 = vmatpush.bf16.msra.mxu0 %v4974
        %5131 = vmatpush.bf16.msra.mxu0 %v4972
        %5132 = vmatmul.bf16.gmra.mxu0 %v5090
        %v5133 = vpop.f32.mrf.mxu0
        %v5134 = vadd.f32 %v5115, %v5133
        %v5135 = vpop.f32.mrf.mxu0
        %v5136 = vadd.f32 %v5117, %v5135
        %5137 = vmatmul.bf16.gmra.mxu0 %v5093
        %v5138 = vpop.f32.mrf.mxu0
        %v5139 = vadd.f32 %v5120, %v5138
        %v5140 = vpop.f32.mrf.mxu0
        %v5141 = vadd.f32 %v5122, %v5140
        %5142 = vdwg.mxu0
        %5143 = vmatpush.bf16.msra.mxu0 0
        %5144 = vmatpush.bf16.msra.mxu0 0
        %5145 = vmatpush.bf16.msra.mxu0 0
        %5146 = vmatpush.bf16.msra.mxu0 0
        %5147 = vmatpush.bf16.msra.mxu0 0
        %5148 = vmatpush.bf16.msra.mxu0 0
        %5149 = vmatpush.bf16.msra.mxu0 %v5054
        %5150 = vmatpush.bf16.msra.mxu0 %v5052
        %5151 = vmatmul.bf16.gmra.mxu0 %v5100
        %v5152 = vpop.f32.mrf.mxu0
        %v5153 = vadd.f32 %v5134, %v5152
        %v5154 = vpop.f32.mrf.mxu0
        %v5155 = vadd.f32 %v5136, %v5154
        %5156 = vmatmul.bf16.gmra.mxu0 %v5103
        %v5157 = vpop.f32.mrf.mxu0
        %v5158 = vadd.f32 %v5139, %v5157
        %v5159 = vpop.f32.mrf.mxu0
        %v5160 = vadd.f32 %v5141, %v5159
        %5161 = vdwg.mxu0
        %5162 = vmatpush.bf16.msra.mxu0 %v4955
        %5163 = vmatpush.bf16.msra.mxu0 %v4953
        %5164 = vmatpush.bf16.msra.mxu0 %v4935
        %5165 = vmatpush.bf16.msra.mxu0 %v4933
        %5166 = vmatpush.bf16.msra.mxu0 %v4915
        %5167 = vmatpush.bf16.msra.mxu0 %v4913
        %5168 = vmatpush.bf16.msra.mxu0 %v4895
        %5169 = vmatpush.bf16.msra.mxu0 %v4893
        %5170 = vmatmul.bf16.gmra.mxu0 %v5089
        %v5171 = vpop.f32.mrf.mxu0
        %v5172 = vadd.f32 0.0, %v5171
        %v5173 = vpop.f32.mrf.mxu0
        %v5174 = vadd.f32 0.0, %v5173
        %5175 = vmatmul.bf16.gmra.mxu0 %v5092
        %v5176 = vpop.f32.mrf.mxu0
        %v5177 = vadd.f32 0.0, %v5176
        %v5178 = vpop.f32.mrf.mxu0
        %v5179 = vadd.f32 0.0, %v5178
        %5180 = vdwg.mxu0
        %5181 = vmatpush.bf16.msra.mxu0 %v5035
        %5182 = vmatpush.bf16.msra.mxu0 %v5033
        %5183 = vmatpush.bf16.msra.mxu0 %v5015
        %5184 = vmatpush.bf16.msra.mxu0 %v5013
        %5185 = vmatpush.bf16.msra.mxu0 %v4995
        %5186 = vmatpush.bf16.msra.mxu0 %v4993
        %5187 = vmatpush.bf16.msra.mxu0 %v4975
        %5188 = vmatpush.bf16.msra.mxu0 %v4973
        %5189 = vmatmul.bf16.gmra.mxu0 %v5090
        %v5190 = vpop.f32.mrf.mxu0
        %v5191 = vadd.f32 %v5172, %v5190
        %v5192 = vpop.f32.mrf.mxu0
        %v5193 = vadd.f32 %v5174, %v5192
        %5194 = vmatmul.bf16.gmra.mxu0 %v5093
        %v5195 = vpop.f32.mrf.mxu0
        %v5196 = vadd.f32 %v5177, %v5195
        %v5197 = vpop.f32.mrf.mxu0
        %v5198 = vadd.f32 %v5179, %v5197
        %5199 = vdwg.mxu0
        %5200 = vmatpush.bf16.msra.mxu0 0
        %5201 = vmatpush.bf16.msra.mxu0 0
        %5202 = vmatpush.bf16.msra.mxu0 0
        %5203 = vmatpush.bf16.msra.mxu0 0
        %5204 = vmatpush.bf16.msra.mxu0 0
        %5205 = vmatpush.bf16.msra.mxu0 0
        %5206 = vmatpush.bf16.msra.mxu0 %v5055
        %5207 = vmatpush.bf16.msra.mxu0 %v5053
        %5208 = vmatmul.bf16.gmra.mxu0 %v5100
        %v5209 = vpop.f32.mrf.mxu0
        %v5210 = vadd.f32 %v5191, %v5209
        %v5211 = vpop.f32.mrf.mxu0
        %v5212 = vadd.f32 %v5193, %v5211
        %5213 = vmatmul.bf16.gmra.mxu0 %v5103
        %v5214 = vpop.f32.mrf.mxu0
        %v5215 = vadd.f32 %v5196, %v5214
        %v5216 = vpop.f32.mrf.mxu0
        %v5217 = vadd.f32 %v5198, %v5216
        %5218 = vdwg.mxu0
        %s5219 = scalar_lea.vmem %s3, 64
        %v5220 = vld [vmem:[%s5219] sm:$0xff]
        %v5221 = vld [vmem:[%s5219 + $0x8] sm:$0xff]
        %v5222 = vld [vmem:[%s5219 + $0x10] sm:$0xff]
        %v5223 = vld [vmem:[%s5219 + $0x18] sm:$0xff]
        %5225 = vset.pattern.permute.xlu0 0
        %5226 = vperm.xlu0 %5225, %v5220
        %v5227 = vpop.permute.xlu0 %5226
        %5230 = vset.pattern.permute.xlu0 0
        %5231 = vperm.xlu0 %5230, %v5221
        %v5232 = vpop.permute.xlu0 %5231
        %5235 = vset.pattern.permute.xlu0 0
        %5236 = vperm.xlu0 %5235, %v5222
        %v5237 = vpop.permute.xlu0 %5236
        %5240 = vset.pattern.permute.xlu0 0
        %5241 = vperm.xlu0 %5240, %v5223
        %v5242 = vpop.permute.xlu0 %5241
        %v5244 = vmul.f32 %v5153, %v5227
        %v5245 = vmul.f32 %v5210, %v5227
        %v5246 = vmul.f32 %v5155, %v5232
        %v5247 = vmul.f32 %v5212, %v5232
        %v5248 = vmul.f32 %v5158, %v5237
        %v5249 = vmul.f32 %v5215, %v5237
        %v5250 = vmul.f32 %v5160, %v5242
        %v5251 = vmul.f32 %v5217, %v5242
        %s5252 = scalar_lea.vmem %s4, 64
        %v5253 = vld [vmem:[%s5252] sm:$0xff]
        %v5254 = vld [vmem:[%s5252 + $0x8] sm:$0xff]
        %v5255 = vld [vmem:[%s5252 + $0x10] sm:$0xff]
        %v5256 = vld [vmem:[%s5252 + $0x18] sm:$0xff]
        %5258 = vset.pattern.permute.xlu0 0
        %5259 = vperm.xlu0 %5258, %v5253
        %v5260 = vpop.permute.xlu0 %5259
        %5263 = vset.pattern.permute.xlu0 0
        %5264 = vperm.xlu0 %5263, %v5254
        %v5265 = vpop.permute.xlu0 %5264
        %5268 = vset.pattern.permute.xlu0 0
        %5269 = vperm.xlu0 %5268, %v5255
        %v5270 = vpop.permute.xlu0 %5269
        %5273 = vset.pattern.permute.xlu0 0
        %5274 = vperm.xlu0 %5273, %v5256
        %v5275 = vpop.permute.xlu0 %5274
        %v5277 = vadd.f32 %v5244, %v5260
        %v5278 = vadd.f32 %v5245, %v5260
        %v5279 = vadd.f32 %v5246, %v5265
        %v5280 = vadd.f32 %v5247, %v5265
        %v5281 = vadd.f32 %v5248, %v5270
        %v5282 = vadd.f32 %v5249, %v5270
        %v5283 = vadd.f32 %v5250, %v5275
        %v5284 = vadd.f32 %v5251, %v5275
        %vm5285 = vcmp.ge.f32.partialorder %v5277, 0.0
        %vm5286 = vcmp.ge.f32.partialorder %v5278, 0.0
        %vm5287 = vcmp.ge.f32.partialorder %v5279, 0.0
        %vm5288 = vcmp.ge.f32.partialorder %v5280, 0.0
        %vm5289 = vcmp.ge.f32.partialorder %v5281, 0.0
        %vm5290 = vcmp.ge.f32.partialorder %v5282, 0.0
        %vm5291 = vcmp.ge.f32.partialorder %v5283, 0.0
        %vm5292 = vcmp.ge.f32.partialorder %v5284, 0.0
        %v5293 = vmul.f32 %v5277, 0.01
        %v5294 = vmul.f32 %v5278, 0.01
        %v5295 = vmul.f32 %v5279, 0.01
        %v5296 = vmul.f32 %v5280, 0.01
        %v5297 = vmul.f32 %v5281, 0.01
        %v5298 = vmul.f32 %v5282, 0.01
        %v5299 = vmul.f32 %v5283, 0.01
        %v5300 = vmul.f32 %v5284, 0.01
        %v5301 = vsel %vm5285, %v5277, %v5293
        %v5302 = vsel %vm5286, %v5278, %v5294
        %v5303 = vsel %vm5287, %v5279, %v5295
        %v5304 = vsel %vm5288, %v5280, %v5296
        %v5305 = vsel %vm5289, %v5281, %v5297
        %v5306 = vsel %vm5290, %v5282, %v5298
        %v5307 = vsel %vm5291, %v5283, %v5299
        %v5308 = vsel %vm5292, %v5284, %v5300
        %v5309 = vpack.c.bf16 %v5303, %v5301
        %v5310 = vpack.c.bf16 %v5304, %v5302
        %v5311 = vpack.c.bf16 %v5307, %v5305
        %v5312 = vpack.c.bf16 %v5308, %v5306
        %5313 = vmatpush.bf16.msra.mxu0 %v721
        %5314 = vmatpush.bf16.msra.mxu0 %v720
        %5315 = vmatpush.bf16.msra.mxu0 %v719
        %5316 = vmatpush.bf16.msra.mxu0 %v718
        %5317 = vmatpush.bf16.msra.mxu0 %v717
        %5318 = vmatpush.bf16.msra.mxu0 %v716
        %5319 = vmatpush.bf16.msra.mxu0 %v715
        %5320 = vmatpush.bf16.msra.mxu0 %v714
        %5321 = vmatmul.bf16.gmra.mxu0 %v5309
        %v5322 = vpop.f32.mrf.mxu0
        %v5323 = vadd.f32 0.0, %v5322
        %v5324 = vpop.f32.mrf.mxu0
        %v5325 = vadd.f32 0.0, %v5324
        %5326 = vmatmul.bf16.gmra.mxu0 %v5311
        %v5327 = vpop.f32.mrf.mxu0
        %v5328 = vadd.f32 0.0, %v5327
        %v5329 = vpop.f32.mrf.mxu0
        %v5330 = vadd.f32 0.0, %v5329
        %5331 = vdwg.mxu0
        %5332 = vmatpush.bf16.msra.mxu0 %v729
        %5333 = vmatpush.bf16.msra.mxu0 %v728
        %5334 = vmatpush.bf16.msra.mxu0 %v727
        %5335 = vmatpush.bf16.msra.mxu0 %v726
        %5336 = vmatpush.bf16.msra.mxu0 %v725
        %5337 = vmatpush.bf16.msra.mxu0 %v724
        %5338 = vmatpush.bf16.msra.mxu0 %v723
        %5339 = vmatpush.bf16.msra.mxu0 %v722
        %5340 = vmatmul.bf16.gmra.mxu0 %v5310
        %v5341 = vpop.f32.mrf.mxu0
        %v5342 = vadd.f32 %v5323, %v5341
        %v5343 = vpop.f32.mrf.mxu0
        %v5344 = vadd.f32 %v5325, %v5343
        %5345 = vmatmul.bf16.gmra.mxu0 %v5312
        %v5346 = vpop.f32.mrf.mxu0
        %v5347 = vadd.f32 %v5328, %v5346
        %v5348 = vpop.f32.mrf.mxu0
        %v5349 = vadd.f32 %v5330, %v5348
        %5350 = vdwg.mxu0
        %v5351 = vpack.c.bf16 %v5342, %v5342
        %v5352 = vpack.c.bf16 %v5344, %v5344
        %v5353 = vpack.c.bf16 %v5347, %v5347
        %v5354 = vpack.c.bf16 %v5349, %v5349
        %5355 = vmatpush.bf16.msra.mxu0 %v892
        %5356 = vmatpush.bf16.msra.mxu0 %v891
        %5357 = vmatpush.bf16.msra.mxu0 %v890
        %5358 = vmatpush.bf16.msra.mxu0 %v889
        %5359 = vmatpush.bf16.msra.mxu0 %v888
        %5360 = vmatpush.bf16.msra.mxu0 %v887
        %5361 = vmatpush.bf16.msra.mxu0 %v886
        %5362 = vmatpush.bf16.msra.mxu0 %v885
        %5363 = vmatmul.bf16.gmra.mxu0 %v5309
        %v5364 = vpop.f32.mrf.mxu0
        %v5365 = vadd.f32 0.0, %v5364
        %v5366 = vpop.f32.mrf.mxu0
        %v5367 = vadd.f32 0.0, %v5366
        %5368 = vmatmul.bf16.gmra.mxu0 %v5311
        %v5369 = vpop.f32.mrf.mxu0
        %v5370 = vadd.f32 0.0, %v5369
        %v5371 = vpop.f32.mrf.mxu0
        %v5372 = vadd.f32 0.0, %v5371
        %5373 = vdwg.mxu0
        %5374 = vmatpush.bf16.msra.mxu0 %v900
        %5375 = vmatpush.bf16.msra.mxu0 %v899
        %5376 = vmatpush.bf16.msra.mxu0 %v898
        %5377 = vmatpush.bf16.msra.mxu0 %v897
        %5378 = vmatpush.bf16.msra.mxu0 %v896
        %5379 = vmatpush.bf16.msra.mxu0 %v895
        %5380 = vmatpush.bf16.msra.mxu0 %v894
        %5381 = vmatpush.bf16.msra.mxu0 %v893
        %5382 = vmatmul.bf16.gmra.mxu0 %v5310
        %v5383 = vpop.f32.mrf.mxu0
        %v5384 = vadd.f32 %v5365, %v5383
        %v5385 = vpop.f32.mrf.mxu0
        %v5386 = vadd.f32 %v5367, %v5385
        %5387 = vmatmul.bf16.gmra.mxu0 %v5312
        %v5388 = vpop.f32.mrf.mxu0
        %v5389 = vadd.f32 %v5370, %v5388
        %v5390 = vpop.f32.mrf.mxu0
        %v5391 = vadd.f32 %v5372, %v5390
        %5392 = vdwg.mxu0
        %v5393 = vpack.c.bf16 %v5384, %v5384
        %v5394 = vpack.c.bf16 %v5386, %v5386
        %v5395 = vpack.c.bf16 %v5389, %v5389
        %v5396 = vpack.c.bf16 %v5391, %v5391
        %5397 = vmatpush.bf16.msra.mxu0 %v1063
        %5398 = vmatpush.bf16.msra.mxu0 %v1062
        %5399 = vmatpush.bf16.msra.mxu0 %v1061
        %5400 = vmatpush.bf16.msra.mxu0 %v1060
        %5401 = vmatpush.bf16.msra.mxu0 %v1059
        %5402 = vmatpush.bf16.msra.mxu0 %v1058
        %5403 = vmatpush.bf16.msra.mxu0 %v1057
        %5404 = vmatpush.bf16.msra.mxu0 %v1056
        %5405 = vmatmul.bf16.gmra.mxu0 %v5309
        %v5406 = vpop.f32.mrf.mxu0
        %v5407 = vadd.f32 0.0, %v5406
        %v5408 = vpop.f32.mrf.mxu0
        %v5409 = vadd.f32 0.0, %v5408
        %5410 = vmatmul.bf16.gmra.mxu0 %v5311
        %v5411 = vpop.f32.mrf.mxu0
        %v5412 = vadd.f32 0.0, %v5411
        %v5413 = vpop.f32.mrf.mxu0
        %v5414 = vadd.f32 0.0, %v5413
        %5415 = vdwg.mxu0
        %5416 = vmatpush.bf16.msra.mxu0 %v1071
        %5417 = vmatpush.bf16.msra.mxu0 %v1070
        %5418 = vmatpush.bf16.msra.mxu0 %v1069
        %5419 = vmatpush.bf16.msra.mxu0 %v1068
        %5420 = vmatpush.bf16.msra.mxu0 %v1067
        %5421 = vmatpush.bf16.msra.mxu0 %v1066
        %5422 = vmatpush.bf16.msra.mxu0 %v1065
        %5423 = vmatpush.bf16.msra.mxu0 %v1064
        %5424 = vmatmul.bf16.gmra.mxu0 %v5310
        %v5425 = vpop.f32.mrf.mxu0
        %v5426 = vadd.f32 %v5407, %v5425
        %v5427 = vpop.f32.mrf.mxu0
        %v5428 = vadd.f32 %v5409, %v5427
        %5429 = vmatmul.bf16.gmra.mxu0 %v5312
        %v5430 = vpop.f32.mrf.mxu0
        %v5431 = vadd.f32 %v5412, %v5430
        %v5432 = vpop.f32.mrf.mxu0
        %v5433 = vadd.f32 %v5414, %v5432
        %5434 = vdwg.mxu0
        %v5435 = vpack.c.bf16 %v5426, %v5426
        %v5436 = vpack.c.bf16 %v5428, %v5428
        %v5437 = vpack.c.bf16 %v5431, %v5431
        %v5438 = vpack.c.bf16 %v5433, %v5433
        %5439 = vmatpush.bf16.msra.mxu0 %v1234
        %5440 = vmatpush.bf16.msra.mxu0 %v1233
        %5441 = vmatpush.bf16.msra.mxu0 %v1232
        %5442 = vmatpush.bf16.msra.mxu0 %v1231
        %5443 = vmatpush.bf16.msra.mxu0 %v1230
        %5444 = vmatpush.bf16.msra.mxu0 %v1229
        %5445 = vmatpush.bf16.msra.mxu0 %v1228
        %5446 = vmatpush.bf16.msra.mxu0 %v1227
        %5447 = vmatmul.bf16.gmra.mxu0 %v5309
        %v5448 = vpop.f32.mrf.mxu0
        %v5449 = vadd.f32 0.0, %v5448
        %v5450 = vpop.f32.mrf.mxu0
        %v5451 = vadd.f32 0.0, %v5450
        %5452 = vmatmul.bf16.gmra.mxu0 %v5311
        %v5453 = vpop.f32.mrf.mxu0
        %v5454 = vadd.f32 0.0, %v5453
        %v5455 = vpop.f32.mrf.mxu0
        %v5456 = vadd.f32 0.0, %v5455
        %5457 = vdwg.mxu0
        %5458 = vmatpush.bf16.msra.mxu0 %v1242
        %5459 = vmatpush.bf16.msra.mxu0 %v1241
        %5460 = vmatpush.bf16.msra.mxu0 %v1240
        %5461 = vmatpush.bf16.msra.mxu0 %v1239
        %5462 = vmatpush.bf16.msra.mxu0 %v1238
        %5463 = vmatpush.bf16.msra.mxu0 %v1237
        %5464 = vmatpush.bf16.msra.mxu0 %v1236
        %5465 = vmatpush.bf16.msra.mxu0 %v1235
        %5466 = vmatmul.bf16.gmra.mxu0 %v5310
        %v5467 = vpop.f32.mrf.mxu0
        %v5468 = vadd.f32 %v5449, %v5467
        %v5469 = vpop.f32.mrf.mxu0
        %v5470 = vadd.f32 %v5451, %v5469
        %5471 = vmatmul.bf16.gmra.mxu0 %v5312
        %v5472 = vpop.f32.mrf.mxu0
        %v5473 = vadd.f32 %v5454, %v5472
        %v5474 = vpop.f32.mrf.mxu0
        %v5475 = vadd.f32 %v5456, %v5474
        %5476 = vdwg.mxu0
        %v5477 = vpack.c.bf16 %v5468, %v5468
        %v5478 = vpack.c.bf16 %v5470, %v5470
        %v5479 = vpack.c.bf16 %v5473, %v5473
        %v5480 = vpack.c.bf16 %v5475, %v5475
        %5481 = vmatpush.bf16.msra.mxu0 %v1405
        %5482 = vmatpush.bf16.msra.mxu0 %v1404
        %5483 = vmatpush.bf16.msra.mxu0 %v1403
        %5484 = vmatpush.bf16.msra.mxu0 %v1402
        %5485 = vmatpush.bf16.msra.mxu0 %v1401
        %5486 = vmatpush.bf16.msra.mxu0 %v1400
        %5487 = vmatpush.bf16.msra.mxu0 %v1399
        %5488 = vmatpush.bf16.msra.mxu0 %v1398
        %5489 = vmatmul.bf16.gmra.mxu0 %v5309
        %v5490 = vpop.f32.mrf.mxu0
        %v5491 = vadd.f32 0.0, %v5490
        %v5492 = vpop.f32.mrf.mxu0
        %v5493 = vadd.f32 0.0, %v5492
        %5494 = vmatmul.bf16.gmra.mxu0 %v5311
        %v5495 = vpop.f32.mrf.mxu0
        %v5496 = vadd.f32 0.0, %v5495
        %v5497 = vpop.f32.mrf.mxu0
        %v5498 = vadd.f32 0.0, %v5497
        %5499 = vdwg.mxu0
        %5500 = vmatpush.bf16.msra.mxu0 %v1413
        %5501 = vmatpush.bf16.msra.mxu0 %v1412
        %5502 = vmatpush.bf16.msra.mxu0 %v1411
        %5503 = vmatpush.bf16.msra.mxu0 %v1410
        %5504 = vmatpush.bf16.msra.mxu0 %v1409
        %5505 = vmatpush.bf16.msra.mxu0 %v1408
        %5506 = vmatpush.bf16.msra.mxu0 %v1407
        %5507 = vmatpush.bf16.msra.mxu0 %v1406
        %5508 = vmatmul.bf16.gmra.mxu0 %v5310
        %v5509 = vpop.f32.mrf.mxu0
        %v5510 = vadd.f32 %v5491, %v5509
        %v5511 = vpop.f32.mrf.mxu0
        %v5512 = vadd.f32 %v5493, %v5511
        %5513 = vmatmul.bf16.gmra.mxu0 %v5312
        %v5514 = vpop.f32.mrf.mxu0
        %v5515 = vadd.f32 %v5496, %v5514
        %v5516 = vpop.f32.mrf.mxu0
        %v5517 = vadd.f32 %v5498, %v5516
        %5518 = vdwg.mxu0
        %v5519 = vpack.c.bf16 %v5510, %v5510
        %v5520 = vpack.c.bf16 %v5512, %v5512
        %v5521 = vpack.c.bf16 %v5515, %v5515
        %v5522 = vpack.c.bf16 %v5517, %v5517
        %5523 = vmatpush.bf16.msra.mxu0 %v1576
        %5524 = vmatpush.bf16.msra.mxu0 %v1575
        %5525 = vmatpush.bf16.msra.mxu0 %v1574
        %5526 = vmatpush.bf16.msra.mxu0 %v1573
        %5527 = vmatpush.bf16.msra.mxu0 %v1572
        %5528 = vmatpush.bf16.msra.mxu0 %v1571
        %5529 = vmatpush.bf16.msra.mxu0 %v1570
        %5530 = vmatpush.bf16.msra.mxu0 %v1569
        %5531 = vmatmul.bf16.gmra.mxu0 %v5309
        %v5532 = vpop.f32.mrf.mxu0
        %v5533 = vadd.f32 0.0, %v5532
        %v5534 = vpop.f32.mrf.mxu0
        %v5535 = vadd.f32 0.0, %v5534
        %5536 = vmatmul.bf16.gmra.mxu0 %v5311
        %v5537 = vpop.f32.mrf.mxu0
        %v5538 = vadd.f32 0.0, %v5537
        %v5539 = vpop.f32.mrf.mxu0
        %v5540 = vadd.f32 0.0, %v5539
        %5541 = vdwg.mxu0
        %5542 = vmatpush.bf16.msra.mxu0 %v1584
        %5543 = vmatpush.bf16.msra.mxu0 %v1583
        %5544 = vmatpush.bf16.msra.mxu0 %v1582
        %5545 = vmatpush.bf16.msra.mxu0 %v1581
        %5546 = vmatpush.bf16.msra.mxu0 %v1580
        %5547 = vmatpush.bf16.msra.mxu0 %v1579
        %5548 = vmatpush.bf16.msra.mxu0 %v1578
        %5549 = vmatpush.bf16.msra.mxu0 %v1577
        %5550 = vmatmul.bf16.gmra.mxu0 %v5310
        %v5551 = vpop.f32.mrf.mxu0
        %v5552 = vadd.f32 %v5533, %v5551
        %v5553 = vpop.f32.mrf.mxu0
        %v5554 = vadd.f32 %v5535, %v5553
        %5555 = vmatmul.bf16.gmra.mxu0 %v5312
        %v5556 = vpop.f32.mrf.mxu0
        %v5557 = vadd.f32 %v5538, %v5556
        %v5558 = vpop.f32.mrf.mxu0
        %v5559 = vadd.f32 %v5540, %v5558
        %5560 = vdwg.mxu0
        %v5561 = vpack.c.bf16 %v5552, %v5552
        %v5562 = vpack.c.bf16 %v5554, %v5554
        %v5563 = vpack.c.bf16 %v5557, %v5557
        %v5564 = vpack.c.bf16 %v5559, %v5559
        %5565 = vmatpush.bf16.msra.mxu0 %v1747
        %5566 = vmatpush.bf16.msra.mxu0 %v1746
        %5567 = vmatpush.bf16.msra.mxu0 %v1745
        %5568 = vmatpush.bf16.msra.mxu0 %v1744
        %5569 = vmatpush.bf16.msra.mxu0 %v1743
        %5570 = vmatpush.bf16.msra.mxu0 %v1742
        %5571 = vmatpush.bf16.msra.mxu0 %v1741
        %5572 = vmatpush.bf16.msra.mxu0 %v1740
        %5573 = vmatmul.bf16.gmra.mxu0 %v5309
        %v5574 = vpop.f32.mrf.mxu0
        %v5575 = vadd.f32 0.0, %v5574
        %v5576 = vpop.f32.mrf.mxu0
        %v5577 = vadd.f32 0.0, %v5576
        %5578 = vmatmul.bf16.gmra.mxu0 %v5311
        %v5579 = vpop.f32.mrf.mxu0
        %v5580 = vadd.f32 0.0, %v5579
        %v5581 = vpop.f32.mrf.mxu0
        %v5582 = vadd.f32 0.0, %v5581
        %5583 = vdwg.mxu0
        %5584 = vmatpush.bf16.msra.mxu0 %v1755
        %5585 = vmatpush.bf16.msra.mxu0 %v1754
        %5586 = vmatpush.bf16.msra.mxu0 %v1753
        %5587 = vmatpush.bf16.msra.mxu0 %v1752
        %5588 = vmatpush.bf16.msra.mxu0 %v1751
        %5589 = vmatpush.bf16.msra.mxu0 %v1750
        %5590 = vmatpush.bf16.msra.mxu0 %v1749
        %5591 = vmatpush.bf16.msra.mxu0 %v1748
        %5592 = vmatmul.bf16.gmra.mxu0 %v5310
        %v5593 = vpop.f32.mrf.mxu0
        %v5594 = vadd.f32 %v5575, %v5593
        %v5595 = vpop.f32.mrf.mxu0
        %v5596 = vadd.f32 %v5577, %v5595
        %5597 = vmatmul.bf16.gmra.mxu0 %v5312
        %v5598 = vpop.f32.mrf.mxu0
        %v5599 = vadd.f32 %v5580, %v5598
        %v5600 = vpop.f32.mrf.mxu0
        %v5601 = vadd.f32 %v5582, %v5600
        %5602 = vdwg.mxu0
        %v5603 = vpack.c.bf16 %v5594, %v5594
        %v5604 = vpack.c.bf16 %v5596, %v5596
        %v5605 = vpack.c.bf16 %v5599, %v5599
        %v5606 = vpack.c.bf16 %v5601, %v5601
        %5607 = vmatpush.bf16.msra.mxu0 %v1918
        %5608 = vmatpush.bf16.msra.mxu0 %v1917
        %5609 = vmatpush.bf16.msra.mxu0 %v1916
        %5610 = vmatpush.bf16.msra.mxu0 %v1915
        %5611 = vmatpush.bf16.msra.mxu0 %v1914
        %5612 = vmatpush.bf16.msra.mxu0 %v1913
        %5613 = vmatpush.bf16.msra.mxu0 %v1912
        %5614 = vmatpush.bf16.msra.mxu0 %v1911
        %5615 = vmatmul.bf16.gmra.mxu0 %v5309
        %v5616 = vpop.f32.mrf.mxu0
        %v5617 = vadd.f32 0.0, %v5616
        %v5618 = vpop.f32.mrf.mxu0
        %v5619 = vadd.f32 0.0, %v5618
        %5620 = vmatmul.bf16.gmra.mxu0 %v5311
        %v5621 = vpop.f32.mrf.mxu0
        %v5622 = vadd.f32 0.0, %v5621
        %v5623 = vpop.f32.mrf.mxu0
        %v5624 = vadd.f32 0.0, %v5623
        %5625 = vdwg.mxu0
        %5626 = vmatpush.bf16.msra.mxu0 %v1926
        %5627 = vmatpush.bf16.msra.mxu0 %v1925
        %5628 = vmatpush.bf16.msra.mxu0 %v1924
        %5629 = vmatpush.bf16.msra.mxu0 %v1923
        %5630 = vmatpush.bf16.msra.mxu0 %v1922
        %5631 = vmatpush.bf16.msra.mxu0 %v1921
        %5632 = vmatpush.bf16.msra.mxu0 %v1920
        %5633 = vmatpush.bf16.msra.mxu0 %v1919
        %5634 = vmatmul.bf16.gmra.mxu0 %v5310
        %v5635 = vpop.f32.mrf.mxu0
        %v5636 = vadd.f32 %v5617, %v5635
        %v5637 = vpop.f32.mrf.mxu0
        %v5638 = vadd.f32 %v5619, %v5637
        %5639 = vmatmul.bf16.gmra.mxu0 %v5312
        %v5640 = vpop.f32.mrf.mxu0
        %v5641 = vadd.f32 %v5622, %v5640
        %v5642 = vpop.f32.mrf.mxu0
        %v5643 = vadd.f32 %v5624, %v5642
        %5644 = vdwg.mxu0
        %v5645 = vpack.c.bf16 %v5636, %v5636
        %v5646 = vpack.c.bf16 %v5638, %v5638
        %v5647 = vpack.c.bf16 %v5641, %v5641
        %v5648 = vpack.c.bf16 %v5643, %v5643
        %5649 = vmatpush.bf16.msra.mxu0 %v2089
        %5650 = vmatpush.bf16.msra.mxu0 %v2088
        %5651 = vmatpush.bf16.msra.mxu0 %v2087
        %5652 = vmatpush.bf16.msra.mxu0 %v2086
        %5653 = vmatpush.bf16.msra.mxu0 %v2085
        %5654 = vmatpush.bf16.msra.mxu0 %v2084
        %5655 = vmatpush.bf16.msra.mxu0 %v2083
        %5656 = vmatpush.bf16.msra.mxu0 %v2082
        %5657 = vmatmul.bf16.gmra.mxu0 %v5309
        %v5658 = vpop.f32.mrf.mxu0
        %v5659 = vadd.f32 0.0, %v5658
        %v5660 = vpop.f32.mrf.mxu0
        %v5661 = vadd.f32 0.0, %v5660
        %5662 = vmatmul.bf16.gmra.mxu0 %v5311
        %v5663 = vpop.f32.mrf.mxu0
        %v5664 = vadd.f32 0.0, %v5663
        %v5665 = vpop.f32.mrf.mxu0
        %v5666 = vadd.f32 0.0, %v5665
        %5667 = vdwg.mxu0
        %5668 = vmatpush.bf16.msra.mxu0 %v2097
        %5669 = vmatpush.bf16.msra.mxu0 %v2096
        %5670 = vmatpush.bf16.msra.mxu0 %v2095
        %5671 = vmatpush.bf16.msra.mxu0 %v2094
        %5672 = vmatpush.bf16.msra.mxu0 %v2093
        %5673 = vmatpush.bf16.msra.mxu0 %v2092
        %5674 = vmatpush.bf16.msra.mxu0 %v2091
        %5675 = vmatpush.bf16.msra.mxu0 %v2090
        %5676 = vmatmul.bf16.gmra.mxu0 %v5310
        %v5677 = vpop.f32.mrf.mxu0
        %v5678 = vadd.f32 %v5659, %v5677
        %v5679 = vpop.f32.mrf.mxu0
        %v5680 = vadd.f32 %v5661, %v5679
        %5681 = vmatmul.bf16.gmra.mxu0 %v5312
        %v5682 = vpop.f32.mrf.mxu0
        %v5683 = vadd.f32 %v5664, %v5682
        %v5684 = vpop.f32.mrf.mxu0
        %v5685 = vadd.f32 %v5666, %v5684
        %5686 = vdwg.mxu0
        %v5687 = vpack.c.bf16 %v5678, %v5678
        %v5688 = vpack.c.bf16 %v5680, %v5680
        %v5689 = vpack.c.bf16 %v5683, %v5683
        %v5690 = vpack.c.bf16 %v5685, %v5685
        %v5695 = vunpack.c.l.b16 %v5351
        %v5696 = vunpack.c.l.b16 %v5352
        %v5697 = vunpack.c.l.b16 %v5353
        %v5698 = vunpack.c.l.b16 %v5354
        %v5699 = vpack.c.b16 %v5696, %v5695
        %v5700 = vpack.c.b16 %v5698, %v5697
        %v5707 = vunpack.c.l.b16 %v5393
        %v5708 = vunpack.c.l.b16 %v5394
        %v5709 = vunpack.c.l.b16 %v5395
        %v5710 = vunpack.c.l.b16 %v5396
        %v5711 = vpack.c.b16 %v5708, %v5707
        %v5712 = vpack.c.b16 %v5710, %v5709
        %v5719 = vunpack.c.l.b16 %v5435
        %v5720 = vunpack.c.l.b16 %v5436
        %v5721 = vunpack.c.l.b16 %v5437
        %v5722 = vunpack.c.l.b16 %v5438
        %v5723 = vpack.c.b16 %v5720, %v5719
        %v5724 = vpack.c.b16 %v5722, %v5721
        %v5731 = vunpack.c.l.b16 %v5477
        %v5732 = vunpack.c.l.b16 %v5478
        %v5733 = vunpack.c.l.b16 %v5479
        %v5734 = vunpack.c.l.b16 %v5480
        %v5735 = vpack.c.b16 %v5732, %v5731
        %v5736 = vpack.c.b16 %v5734, %v5733
        %v5743 = vunpack.c.l.b16 %v5519
        %v5744 = vunpack.c.l.b16 %v5520
        %v5745 = vunpack.c.l.b16 %v5521
        %v5746 = vunpack.c.l.b16 %v5522
        %v5747 = vpack.c.b16 %v5744, %v5743
        %v5748 = vpack.c.b16 %v5746, %v5745
        %v5755 = vunpack.c.l.b16 %v5561
        %v5756 = vunpack.c.l.b16 %v5562
        %v5757 = vunpack.c.l.b16 %v5563
        %v5758 = vunpack.c.l.b16 %v5564
        %v5759 = vpack.c.b16 %v5756, %v5755
        %v5760 = vpack.c.b16 %v5758, %v5757
        %v5767 = vunpack.c.l.b16 %v5603
        %v5768 = vunpack.c.l.b16 %v5604
        %v5769 = vunpack.c.l.b16 %v5605
        %v5770 = vunpack.c.l.b16 %v5606
        %v5771 = vpack.c.b16 %v5768, %v5767
        %v5772 = vpack.c.b16 %v5770, %v5769
        %v5779 = vunpack.c.l.b16 %v5645
        %v5780 = vunpack.c.l.b16 %v5646
        %v5781 = vunpack.c.l.b16 %v5647
        %v5782 = vunpack.c.l.b16 %v5648
        %v5783 = vpack.c.b16 %v5780, %v5779
        %v5784 = vpack.c.b16 %v5782, %v5781
        %v5791 = vunpack.c.l.b16 %v5687
        %v5792 = vunpack.c.l.b16 %v5688
        %v5793 = vunpack.c.l.b16 %v5689
        %v5794 = vunpack.c.l.b16 %v5690
        %v5795 = vpack.c.b16 %v5792, %v5791
        %v5796 = vpack.c.b16 %v5794, %v5793
        %s5799 = scalar_lea.vmem %s2, 96
        %v5800 = vld [vmem:[%s5799] sm:$0xff]
        %v5801 = vld [vmem:[%s5799 + $0x8] sm:$0xf]
        %v5802 = vld [vmem:[%s5799 + $0xc] sm:$0xff]
        %v5803 = vld [vmem:[%s5799 + $0x14] sm:$0xf]
        %v5804 = vld [vmem:[%s5799 + $0x18] sm:$0xff]
        %v5805 = vld [vmem:[%s5799 + $0x20] sm:$0xf]
        %v5806 = vld [vmem:[%s5799 + $0x24] sm:$0xff]
        %v5807 = vld [vmem:[%s5799 + $0x2c] sm:$0xf]
        %v5816 = vunpack.c.l.b16 %v5800
        %v5817 = vunpack.c.h.b16 %v5800
        %v5818 = vunpack.c.l.b16 %v5801
        %v5819 = vunpack.c.l.b16 %v5802
        %v5820 = vunpack.c.h.b16 %v5802
        %v5821 = vunpack.c.l.b16 %v5803
        %v5822 = vunpack.c.l.b16 %v5804
        %v5823 = vunpack.c.h.b16 %v5804
        %v5824 = vunpack.c.l.b16 %v5805
        %v5825 = vunpack.c.l.b16 %v5806
        %v5826 = vunpack.c.h.b16 %v5806
        %v5827 = vunpack.c.l.b16 %v5807
        %v5828 = vpack.c.b16 %v5819, %v5816
        %v5829 = vpack.c.b16 %v5820, %v5817
        %v5830 = vpack.c.b16 %v5821, %v5818
        %v5831 = vpack.c.b16 %v5825, %v5822
        %v5832 = vpack.c.b16 %v5826, %v5823
        %v5833 = vpack.c.b16 %v5827, %v5824
        %v5839 = vsel %vm2302, %v5830, 0
        %v5842 = vsel %vm2302, %v5833, 0
        %5844 = vmatpush.bf16.msra.mxu0 %v5736
        %5845 = vmatpush.bf16.msra.mxu0 %v5735
        %5846 = vmatpush.bf16.msra.mxu0 %v5724
        %5847 = vmatpush.bf16.msra.mxu0 %v5723
        %5848 = vmatpush.bf16.msra.mxu0 %v5712
        %5849 = vmatpush.bf16.msra.mxu0 %v5711
        %5850 = vmatpush.bf16.msra.mxu0 %v5700
        %5851 = vmatpush.bf16.msra.mxu0 %v5699
        %5852 = vmatmul.bf16.gmra.mxu0 %v5828
        %v5853 = vpop.f32.mrf.mxu0
        %v5854 = vadd.f32 0.0, %v5853
        %v5855 = vpop.f32.mrf.mxu0
        %v5856 = vadd.f32 0.0, %v5855
        %5857 = vmatmul.bf16.gmra.mxu0 %v5831
        %v5858 = vpop.f32.mrf.mxu0
        %v5859 = vadd.f32 0.0, %v5858
        %v5860 = vpop.f32.mrf.mxu0
        %v5861 = vadd.f32 0.0, %v5860
        %5862 = vdwg.mxu0
        %5863 = vmatpush.bf16.msra.mxu0 %v5784
        %5864 = vmatpush.bf16.msra.mxu0 %v5783
        %5865 = vmatpush.bf16.msra.mxu0 %v5772
        %5866 = vmatpush.bf16.msra.mxu0 %v5771
        %5867 = vmatpush.bf16.msra.mxu0 %v5760
        %5868 = vmatpush.bf16.msra.mxu0 %v5759
        %5869 = vmatpush.bf16.msra.mxu0 %v5748
        %5870 = vmatpush.bf16.msra.mxu0 %v5747
        %5871 = vmatmul.bf16.gmra.mxu0 %v5829
        %v5872 = vpop.f32.mrf.mxu0
        %v5873 = vadd.f32 %v5854, %v5872
        %v5874 = vpop.f32.mrf.mxu0
        %v5875 = vadd.f32 %v5856, %v5874
        %5876 = vmatmul.bf16.gmra.mxu0 %v5832
        %v5877 = vpop.f32.mrf.mxu0
        %v5878 = vadd.f32 %v5859, %v5877
        %v5879 = vpop.f32.mrf.mxu0
        %v5880 = vadd.f32 %v5861, %v5879
        %5881 = vdwg.mxu0
        %5882 = vmatpush.bf16.msra.mxu0 0
        %5883 = vmatpush.bf16.msra.mxu0 0
        %5884 = vmatpush.bf16.msra.mxu0 0
        %5885 = vmatpush.bf16.msra.mxu0 0
        %5886 = vmatpush.bf16.msra.mxu0 0
        %5887 = vmatpush.bf16.msra.mxu0 0
        %5888 = vmatpush.bf16.msra.mxu0 %v5796
        %5889 = vmatpush.bf16.msra.mxu0 %v5795
        %5890 = vmatmul.bf16.gmra.mxu0 %v5839
        %v5891 = vpop.f32.mrf.mxu0
        %v5892 = vadd.f32 %v5873, %v5891
        %v5893 = vpop.f32.mrf.mxu0
        %v5894 = vadd.f32 %v5875, %v5893
        %5895 = vmatmul.bf16.gmra.mxu0 %v5842
        %v5896 = vpop.f32.mrf.mxu0
        %v5897 = vadd.f32 %v5878, %v5896
        %v5898 = vpop.f32.mrf.mxu0
        %v5899 = vadd.f32 %v5880, %v5898
        %5900 = vdwg.mxu0
        %s5901 = scalar_lea.vmem %s3, 96
        %v5902 = vld [vmem:[%s5901] sm:$0xff]
        %v5903 = vld [vmem:[%s5901 + $0x8] sm:$0xff]
        %v5904 = vld [vmem:[%s5901 + $0x10] sm:$0xff]
        %v5905 = vld [vmem:[%s5901 + $0x18] sm:$0xff]
        %5907 = vset.pattern.permute.xlu0 0
        %5908 = vperm.xlu0 %5907, %v5902
        %v5909 = vpop.permute.xlu0 %5908
        %5912 = vset.pattern.permute.xlu0 0
        %5913 = vperm.xlu0 %5912, %v5903
        %v5914 = vpop.permute.xlu0 %5913
        %5917 = vset.pattern.permute.xlu0 0
        %5918 = vperm.xlu0 %5917, %v5904
        %v5919 = vpop.permute.xlu0 %5918
        %5922 = vset.pattern.permute.xlu0 0
        %5923 = vperm.xlu0 %5922, %v5905
        %v5924 = vpop.permute.xlu0 %5923
        %v5926 = vmul.f32 %v5892, %v5909
        %v5927 = vmul.f32 %v5894, %v5914
        %v5928 = vmul.f32 %v5897, %v5919
        %v5929 = vmul.f32 %v5899, %v5924
        %s5930 = scalar_lea.vmem %s4, 96
        %v5931 = vld [vmem:[%s5930] sm:$0xff]
        %v5932 = vld [vmem:[%s5930 + $0x8] sm:$0xff]
        %v5933 = vld [vmem:[%s5930 + $0x10] sm:$0xff]
        %v5934 = vld [vmem:[%s5930 + $0x18] sm:$0xff]
        %5936 = vset.pattern.permute.xlu0 0
        %5937 = vperm.xlu0 %5936, %v5931
        %v5938 = vpop.permute.xlu0 %5937
        %5941 = vset.pattern.permute.xlu0 0
        %5942 = vperm.xlu0 %5941, %v5932
        %v5943 = vpop.permute.xlu0 %5942
        %5946 = vset.pattern.permute.xlu0 0
        %5947 = vperm.xlu0 %5946, %v5933
        %v5948 = vpop.permute.xlu0 %5947
        %5951 = vset.pattern.permute.xlu0 0
        %5952 = vperm.xlu0 %5951, %v5934
        %v5953 = vpop.permute.xlu0 %5952
        %v5955 = vadd.f32 %v5926, %v5938
        %v5956 = vadd.f32 %v5927, %v5943
        %v5957 = vadd.f32 %v5928, %v5948
        %v5958 = vadd.f32 %v5929, %v5953
        %v5959 = vadd.f32 %v5955, %v2420
        %v5960 = vadd.f32 %v5956, %v2421
        %v5961 = vadd.f32 %v5957, %v2422
        %v5962 = vadd.f32 %v5958, %v2423
        %v5963 = vpack.c.bf16 %v5960, %v5959
        %v5964 = vpack.c.bf16 %v5962, %v5961
        %v5965 = vld [vmem:[#allocation6] sm:$0xf]
        %v5966 = vld [vmem:[#allocation6 + $0x4] sm:$0xf]
        %v5967 = vld [vmem:[#allocation6 + $0x8] sm:$0xf]
        %v5968 = vld [vmem:[#allocation6 + $0xc] sm:$0xf]
        %v5969 = vld [vmem:[#allocation6 + $0x10] sm:$0x3]
        %v5975 = vunpack.c.l.b16 %v5965
        %v5976 = vunpack.c.l.b16 %v5966
        %v5977 = vunpack.c.l.b16 %v5967
        %v5978 = vunpack.c.l.b16 %v5968
        %v5979 = vunpack.c.l.b16 %v5969
        %v5980 = vpack.c.b16 %v5976, %v5975
        %v5981 = vpack.c.b16 %v5978, %v5977
        %v5982 = vpack.c.b16 %v5979, %v5979
        %vm5985 = vcmask 293888
        %v5987 = vsel %vm5985, %v5963, 0
        %v5990 = vsel %vm5985, %v5964, 0
        %vm5992 = vcmask 1041408
        %v5994 = vsel %vm5992, %v5982, 0
        %5996 = vmatpush.bf16.msra.mxu0 0
        %5997 = vmatpush.bf16.msra.mxu0 0
        %5998 = vmatpush.bf16.msra.mxu0 0
        %5999 = vmatpush.bf16.msra.mxu0 0
        %6000 = vmatpush.bf16.msra.mxu0 0
        %6001 = vmatpush.bf16.msra.mxu0 %v5994
        %6002 = vmatpush.bf16.msra.mxu0 %v5981
        %6003 = vmatpush.bf16.msra.mxu0 %v5980
        %6004 = vmatmul.bf16.gmra.mxu0 %v5987
        %v6005 = vpop.f32.mrf.mxu0
        %v6006 = vadd.f32 0.0, %v6005
        %v6007 = vpop.f32.mrf.mxu0
        %v6008 = vadd.f32 0.0, %v6007
        %6009 = vmatmul.bf16.gmra.mxu0 %v5990
        %v6010 = vpop.f32.mrf.mxu0
        %v6011 = vadd.f32 0.0, %v6010
        %v6012 = vpop.f32.mrf.mxu0
        %v6013 = vadd.f32 0.0, %v6012
        %6014 = vdwg.mxu0
        %v6015 = vpack.c.bf16 %v6006, %v6006
        %v6016 = vpack.c.bf16 %v6008, %v6008
        %v6017 = vpack.c.bf16 %v6011, %v6011
        %v6018 = vpack.c.bf16 %v6013, %v6013
        %s6019 = scalar_lea.vmem [#allocation6], 20
        %v6020 = vld [vmem:[%s6019] sm:$0xf]
        %v6021 = vld [vmem:[%s6019 + $0x4] sm:$0xf]
        %v6022 = vld [vmem:[%s6019 + $0x8] sm:$0xf]
        %v6023 = vld [vmem:[%s6019 + $0xc] sm:$0xf]
        %v6024 = vld [vmem:[%s6019 + $0x10] sm:$0x3]
        %v6030 = vunpack.c.l.b16 %v6020
        %v6031 = vunpack.c.l.b16 %v6021
        %v6032 = vunpack.c.l.b16 %v6022
        %v6033 = vunpack.c.l.b16 %v6023
        %v6034 = vunpack.c.l.b16 %v6024
        %v6035 = vpack.c.b16 %v6031, %v6030
        %v6036 = vpack.c.b16 %v6033, %v6032
        %v6037 = vpack.c.b16 %v6034, %v6034
        %v6041 = vsel %vm5992, %v6037, 0
        %6043 = vmatpush.bf16.msra.mxu0 0
        %6044 = vmatpush.bf16.msra.mxu0 0
        %6045 = vmatpush.bf16.msra.mxu0 0
        %6046 = vmatpush.bf16.msra.mxu0 0
        %6047 = vmatpush.bf16.msra.mxu0 0
        %6048 = vmatpush.bf16.msra.mxu0 %v6041
        %6049 = vmatpush.bf16.msra.mxu0 %v6036
        %6050 = vmatpush.bf16.msra.mxu0 %v6035
        %6051 = vmatmul.bf16.gmra.mxu0 %v5987
        %v6052 = vpop.f32.mrf.mxu0
        %v6053 = vadd.f32 0.0, %v6052
        %v6054 = vpop.f32.mrf.mxu0
        %v6055 = vadd.f32 0.0, %v6054
        %6056 = vmatmul.bf16.gmra.mxu0 %v5990
        %v6057 = vpop.f32.mrf.mxu0
        %v6058 = vadd.f32 0.0, %v6057
        %v6059 = vpop.f32.mrf.mxu0
        %v6060 = vadd.f32 0.0, %v6059
        %6061 = vdwg.mxu0
        %v6062 = vpack.c.bf16 %v6053, %v6053
        %v6063 = vpack.c.bf16 %v6055, %v6055
        %v6064 = vpack.c.bf16 %v6058, %v6058
        %v6065 = vpack.c.bf16 %v6060, %v6060
        %s6066 = scalar_lea.vmem [#allocation6], 40
        %v6067 = vld [vmem:[%s6066] sm:$0xf]
        %v6068 = vld [vmem:[%s6066 + $0x4] sm:$0xf]
        %v6069 = vld [vmem:[%s6066 + $0x8] sm:$0xf]
        %v6070 = vld [vmem:[%s6066 + $0xc] sm:$0xf]
        %v6071 = vld [vmem:[%s6066 + $0x10] sm:$0x3]
        %v6077 = vunpack.c.l.b16 %v6067
        %v6078 = vunpack.c.l.b16 %v6068
        %v6079 = vunpack.c.l.b16 %v6069
        %v6080 = vunpack.c.l.b16 %v6070
        %v6081 = vunpack.c.l.b16 %v6071
        %v6082 = vpack.c.b16 %v6078, %v6077
        %v6083 = vpack.c.b16 %v6080, %v6079
        %v6084 = vpack.c.b16 %v6081, %v6081
        %v6088 = vsel %vm5992, %v6084, 0
        %6090 = vmatpush.bf16.msra.mxu0 0
        %6091 = vmatpush.bf16.msra.mxu0 0
        %6092 = vmatpush.bf16.msra.mxu0 0
        %6093 = vmatpush.bf16.msra.mxu0 0
        %6094 = vmatpush.bf16.msra.mxu0 0
        %6095 = vmatpush.bf16.msra.mxu0 %v6088
        %6096 = vmatpush.bf16.msra.mxu0 %v6083
        %6097 = vmatpush.bf16.msra.mxu0 %v6082
        %6098 = vmatmul.bf16.gmra.mxu0 %v5987
        %v6099 = vpop.f32.mrf.mxu0
        %v6100 = vadd.f32 0.0, %v6099
        %v6101 = vpop.f32.mrf.mxu0
        %v6102 = vadd.f32 0.0, %v6101
        %6103 = vmatmul.bf16.gmra.mxu0 %v5990
        %v6104 = vpop.f32.mrf.mxu0
        %v6105 = vadd.f32 0.0, %v6104
        %v6106 = vpop.f32.mrf.mxu0
        %v6107 = vadd.f32 0.0, %v6106
        %6108 = vdwg.mxu0
        %v6109 = vpack.c.bf16 %v6100, %v6100
        %v6110 = vpack.c.bf16 %v6102, %v6102
        %v6111 = vpack.c.bf16 %v6105, %v6105
        %v6112 = vpack.c.bf16 %v6107, %v6107
        %s6113 = scalar_lea.vmem [#allocation6], 60
        %v6114 = vld [vmem:[%s6113] sm:$0xf]
        %v6115 = vld [vmem:[%s6113 + $0x4] sm:$0xf]
        %v6116 = vld [vmem:[%s6113 + $0x8] sm:$0xf]
        %v6117 = vld [vmem:[%s6113 + $0xc] sm:$0xf]
        %v6118 = vld [vmem:[%s6113 + $0x10] sm:$0x3]
        %v6124 = vunpack.c.l.b16 %v6114
        %v6125 = vunpack.c.l.b16 %v6115
        %v6126 = vunpack.c.l.b16 %v6116
        %v6127 = vunpack.c.l.b16 %v6117
        %v6128 = vunpack.c.l.b16 %v6118
        %v6129 = vpack.c.b16 %v6125, %v6124
        %v6130 = vpack.c.b16 %v6127, %v6126
        %v6131 = vpack.c.b16 %v6128, %v6128
        %v6135 = vsel %vm5992, %v6131, 0
        %6137 = vmatpush.bf16.msra.mxu0 0
        %6138 = vmatpush.bf16.msra.mxu0 0
        %6139 = vmatpush.bf16.msra.mxu0 0
        %6140 = vmatpush.bf16.msra.mxu0 0
        %6141 = vmatpush.bf16.msra.mxu0 0
        %6142 = vmatpush.bf16.msra.mxu0 %v6135
        %6143 = vmatpush.bf16.msra.mxu0 %v6130
        %6144 = vmatpush.bf16.msra.mxu0 %v6129
        %6145 = vmatmul.bf16.gmra.mxu0 %v5987
        %v6146 = vpop.f32.mrf.mxu0
        %v6147 = vadd.f32 0.0, %v6146
        %v6148 = vpop.f32.mrf.mxu0
        %v6149 = vadd.f32 0.0, %v6148
        %6150 = vmatmul.bf16.gmra.mxu0 %v5990
        %v6151 = vpop.f32.mrf.mxu0
        %v6152 = vadd.f32 0.0, %v6151
        %v6153 = vpop.f32.mrf.mxu0
        %v6154 = vadd.f32 0.0, %v6153
        %6155 = vdwg.mxu0
        %v6156 = vpack.c.bf16 %v6147, %v6147
        %v6157 = vpack.c.bf16 %v6149, %v6149
        %v6158 = vpack.c.bf16 %v6152, %v6152
        %v6159 = vpack.c.bf16 %v6154, %v6154
        %s6160 = scalar_lea.vmem [#allocation6], 80
        %v6161 = vld [vmem:[%s6160] sm:$0xf]
        %v6162 = vld [vmem:[%s6160 + $0x4] sm:$0xf]
        %v6163 = vld [vmem:[%s6160 + $0x8] sm:$0xf]
        %v6164 = vld [vmem:[%s6160 + $0xc] sm:$0xf]
        %v6165 = vld [vmem:[%s6160 + $0x10] sm:$0x3]
        %v6171 = vunpack.c.l.b16 %v6161
        %v6172 = vunpack.c.l.b16 %v6162
        %v6173 = vunpack.c.l.b16 %v6163
        %v6174 = vunpack.c.l.b16 %v6164
        %v6175 = vunpack.c.l.b16 %v6165
        %v6176 = vpack.c.b16 %v6172, %v6171
        %v6177 = vpack.c.b16 %v6174, %v6173
        %v6178 = vpack.c.b16 %v6175, %v6175
        %v6182 = vsel %vm5992, %v6178, 0
        %6184 = vmatpush.bf16.msra.mxu0 0
        %6185 = vmatpush.bf16.msra.mxu0 0
        %6186 = vmatpush.bf16.msra.mxu0 0
        %6187 = vmatpush.bf16.msra.mxu0 0
        %6188 = vmatpush.bf16.msra.mxu0 0
        %6189 = vmatpush.bf16.msra.mxu0 %v6182
        %6190 = vmatpush.bf16.msra.mxu0 %v6177
        %6191 = vmatpush.bf16.msra.mxu0 %v6176
        %6192 = vmatmul.bf16.gmra.mxu0 %v5987
        %v6193 = vpop.f32.mrf.mxu0
        %v6194 = vadd.f32 0.0, %v6193
        %v6195 = vpop.f32.mrf.mxu0
        %v6196 = vadd.f32 0.0, %v6195
        %6197 = vmatmul.bf16.gmra.mxu0 %v5990
        %v6198 = vpop.f32.mrf.mxu0
        %v6199 = vadd.f32 0.0, %v6198
        %v6200 = vpop.f32.mrf.mxu0
        %v6201 = vadd.f32 0.0, %v6200
        %6202 = vdwg.mxu0
        %v6203 = vpack.c.bf16 %v6194, %v6194
        %v6204 = vpack.c.bf16 %v6196, %v6196
        %v6205 = vpack.c.bf16 %v6199, %v6199
        %v6206 = vpack.c.bf16 %v6201, %v6201
        %s6207 = scalar_lea.vmem [#allocation6], 100
        %v6208 = vld [vmem:[%s6207] sm:$0xf]
        %v6209 = vld [vmem:[%s6207 + $0x4] sm:$0xf]
        %v6210 = vld [vmem:[%s6207 + $0x8] sm:$0xf]
        %v6211 = vld [vmem:[%s6207 + $0xc] sm:$0xf]
        %v6212 = vld [vmem:[%s6207 + $0x10] sm:$0x3]
        %v6218 = vunpack.c.l.b16 %v6208
        %v6219 = vunpack.c.l.b16 %v6209
        %v6220 = vunpack.c.l.b16 %v6210
        %v6221 = vunpack.c.l.b16 %v6211
        %v6222 = vunpack.c.l.b16 %v6212
        %v6223 = vpack.c.b16 %v6219, %v6218
        %v6224 = vpack.c.b16 %v6221, %v6220
        %v6225 = vpack.c.b16 %v6222, %v6222
        %v6229 = vsel %vm5992, %v6225, 0
        %6231 = vmatpush.bf16.msra.mxu0 0
        %6232 = vmatpush.bf16.msra.mxu0 0
        %6233 = vmatpush.bf16.msra.mxu0 0
        %6234 = vmatpush.bf16.msra.mxu0 0
        %6235 = vmatpush.bf16.msra.mxu0 0
        %6236 = vmatpush.bf16.msra.mxu0 %v6229
        %6237 = vmatpush.bf16.msra.mxu0 %v6224
        %6238 = vmatpush.bf16.msra.mxu0 %v6223
        %6239 = vmatmul.bf16.gmra.mxu0 %v5987
        %v6240 = vpop.f32.mrf.mxu0
        %v6241 = vadd.f32 0.0, %v6240
        %v6242 = vpop.f32.mrf.mxu0
        %v6243 = vadd.f32 0.0, %v6242
        %6244 = vmatmul.bf16.gmra.mxu0 %v5990
        %v6245 = vpop.f32.mrf.mxu0
        %v6246 = vadd.f32 0.0, %v6245
        %v6247 = vpop.f32.mrf.mxu0
        %v6248 = vadd.f32 0.0, %v6247
        %6249 = vdwg.mxu0
        %v6250 = vpack.c.bf16 %v6241, %v6241
        %v6251 = vpack.c.bf16 %v6243, %v6243
        %v6252 = vpack.c.bf16 %v6246, %v6246
        %v6253 = vpack.c.bf16 %v6248, %v6248
        %s6254 = scalar_lea.vmem [#allocation6], 120
        %v6255 = vld [vmem:[%s6254] sm:$0xf]
        %v6256 = vld [vmem:[%s6254 + $0x4] sm:$0xf]
        %v6257 = vld [vmem:[%s6254 + $0x8] sm:$0xf]
        %v6258 = vld [vmem:[%s6254 + $0xc] sm:$0xf]
        %v6259 = vld [vmem:[%s6254 + $0x10] sm:$0x3]
        %v6265 = vunpack.c.l.b16 %v6255
        %v6266 = vunpack.c.l.b16 %v6256
        %v6267 = vunpack.c.l.b16 %v6257
        %v6268 = vunpack.c.l.b16 %v6258
        %v6269 = vunpack.c.l.b16 %v6259
        %v6270 = vpack.c.b16 %v6266, %v6265
        %v6271 = vpack.c.b16 %v6268, %v6267
        %v6272 = vpack.c.b16 %v6269, %v6269
        %v6276 = vsel %vm5992, %v6272, 0
        %6278 = vmatpush.bf16.msra.mxu0 0
        %6279 = vmatpush.bf16.msra.mxu0 0
        %6280 = vmatpush.bf16.msra.mxu0 0
        %6281 = vmatpush.bf16.msra.mxu0 0
        %6282 = vmatpush.bf16.msra.mxu0 0
        %6283 = vmatpush.bf16.msra.mxu0 %v6276
        %6284 = vmatpush.bf16.msra.mxu0 %v6271
        %6285 = vmatpush.bf16.msra.mxu0 %v6270
        %6286 = vmatmul.bf16.gmra.mxu0 %v5987
        %v6287 = vpop.f32.mrf.mxu0
        %v6288 = vadd.f32 0.0, %v6287
        %v6289 = vpop.f32.mrf.mxu0
        %v6290 = vadd.f32 0.0, %v6289
        %6291 = vmatmul.bf16.gmra.mxu0 %v5990
        %v6292 = vpop.f32.mrf.mxu0
        %v6293 = vadd.f32 0.0, %v6292
        %v6294 = vpop.f32.mrf.mxu0
        %v6295 = vadd.f32 0.0, %v6294
        %6296 = vdwg.mxu0
        %v6297 = vpack.c.bf16 %v6288, %v6288
        %v6298 = vpack.c.bf16 %v6290, %v6290
        %v6299 = vpack.c.bf16 %v6293, %v6293
        %v6300 = vpack.c.bf16 %v6295, %v6295
        %s6301 = scalar_lea.vmem [#allocation6], 140
        %v6302 = vld [vmem:[%s6301] sm:$0xf]
        %v6303 = vld [vmem:[%s6301 + $0x4] sm:$0xf]
        %v6304 = vld [vmem:[%s6301 + $0x8] sm:$0xf]
        %v6305 = vld [vmem:[%s6301 + $0xc] sm:$0xf]
        %v6306 = vld [vmem:[%s6301 + $0x10] sm:$0x3]
        %v6312 = vunpack.c.l.b16 %v6302
        %v6313 = vunpack.c.l.b16 %v6303
        %v6314 = vunpack.c.l.b16 %v6304
        %v6315 = vunpack.c.l.b16 %v6305
        %v6316 = vunpack.c.l.b16 %v6306
        %v6317 = vpack.c.b16 %v6313, %v6312
        %v6318 = vpack.c.b16 %v6315, %v6314
        %v6319 = vpack.c.b16 %v6316, %v6316
        %v6323 = vsel %vm5992, %v6319, 0
        %6325 = vmatpush.bf16.msra.mxu0 0
        %6326 = vmatpush.bf16.msra.mxu0 0
        %6327 = vmatpush.bf16.msra.mxu0 0
        %6328 = vmatpush.bf16.msra.mxu0 0
        %6329 = vmatpush.bf16.msra.mxu0 0
        %6330 = vmatpush.bf16.msra.mxu0 %v6323
        %6331 = vmatpush.bf16.msra.mxu0 %v6318
        %6332 = vmatpush.bf16.msra.mxu0 %v6317
        %6333 = vmatmul.bf16.gmra.mxu0 %v5987
        %v6334 = vpop.f32.mrf.mxu0
        %v6335 = vadd.f32 0.0, %v6334
        %v6336 = vpop.f32.mrf.mxu0
        %v6337 = vadd.f32 0.0, %v6336
        %6338 = vmatmul.bf16.gmra.mxu0 %v5990
        %v6339 = vpop.f32.mrf.mxu0
        %v6340 = vadd.f32 0.0, %v6339
        %v6341 = vpop.f32.mrf.mxu0
        %v6342 = vadd.f32 0.0, %v6341
        %6343 = vdwg.mxu0
        %v6344 = vpack.c.bf16 %v6335, %v6335
        %v6345 = vpack.c.bf16 %v6337, %v6337
        %v6346 = vpack.c.bf16 %v6340, %v6340
        %v6347 = vpack.c.bf16 %v6342, %v6342
        %s6348 = scalar_lea.vmem [#allocation6], 160
        %v6349 = vld [vmem:[%s6348] sm:$0xf]
        %v6350 = vld [vmem:[%s6348 + $0x4] sm:$0xf]
        %v6351 = vld [vmem:[%s6348 + $0x8] sm:$0xf]
        %v6352 = vld [vmem:[%s6348 + $0xc] sm:$0xf]
        %v6353 = vld [vmem:[%s6348 + $0x10] sm:$0x3]
        %v6359 = vunpack.c.l.b16 %v6349
        %v6360 = vunpack.c.l.b16 %v6350
        %v6361 = vunpack.c.l.b16 %v6351
        %v6362 = vunpack.c.l.b16 %v6352
        %v6363 = vunpack.c.l.b16 %v6353
        %v6364 = vpack.c.b16 %v6360, %v6359
        %v6365 = vpack.c.b16 %v6362, %v6361
        %v6366 = vpack.c.b16 %v6363, %v6363
        %v6370 = vsel %vm5992, %v6366, 0
        %6372 = vmatpush.bf16.msra.mxu0 0
        %6373 = vmatpush.bf16.msra.mxu0 0
        %6374 = vmatpush.bf16.msra.mxu0 0
        %6375 = vmatpush.bf16.msra.mxu0 0
        %6376 = vmatpush.bf16.msra.mxu0 0
        %6377 = vmatpush.bf16.msra.mxu0 %v6370
        %6378 = vmatpush.bf16.msra.mxu0 %v6365
        %6379 = vmatpush.bf16.msra.mxu0 %v6364
        %6380 = vmatmul.bf16.gmra.mxu0 %v5987
        %v6381 = vpop.f32.mrf.mxu0
        %v6382 = vadd.f32 0.0, %v6381
        %v6383 = vpop.f32.mrf.mxu0
        %v6384 = vadd.f32 0.0, %v6383
        %6385 = vmatmul.bf16.gmra.mxu0 %v5990
        %v6386 = vpop.f32.mrf.mxu0
        %v6387 = vadd.f32 0.0, %v6386
        %v6388 = vpop.f32.mrf.mxu0
        %v6389 = vadd.f32 0.0, %v6388
        %6390 = vdwg.mxu0
        %v6391 = vpack.c.bf16 %v6382, %v6382
        %v6392 = vpack.c.bf16 %v6384, %v6384
        %v6393 = vpack.c.bf16 %v6387, %v6387
        %v6394 = vpack.c.bf16 %v6389, %v6389
        %v6399 = vunpack.c.l.b16 %v6015
        %v6400 = vunpack.c.l.b16 %v6016
        %v6401 = vunpack.c.l.b16 %v6017
        %v6402 = vunpack.c.l.b16 %v6018
        %v6403 = vpack.c.b16 %v6400, %v6399
        %v6404 = vpack.c.b16 %v6402, %v6401
        %v6411 = vunpack.c.l.b16 %v6062
        %v6412 = vunpack.c.l.b16 %v6063
        %v6413 = vunpack.c.l.b16 %v6064
        %v6414 = vunpack.c.l.b16 %v6065
        %v6415 = vpack.c.b16 %v6412, %v6411
        %v6416 = vpack.c.b16 %v6414, %v6413
        %v6423 = vunpack.c.l.b16 %v6109
        %v6424 = vunpack.c.l.b16 %v6110
        %v6425 = vunpack.c.l.b16 %v6111
        %v6426 = vunpack.c.l.b16 %v6112
        %v6427 = vpack.c.b16 %v6424, %v6423
        %v6428 = vpack.c.b16 %v6426, %v6425
        %v6435 = vunpack.c.l.b16 %v6156
        %v6436 = vunpack.c.l.b16 %v6157
        %v6437 = vunpack.c.l.b16 %v6158
        %v6438 = vunpack.c.l.b16 %v6159
        %v6439 = vpack.c.b16 %v6436, %v6435
        %v6440 = vpack.c.b16 %v6438, %v6437
        %v6447 = vunpack.c.l.b16 %v6203
        %v6448 = vunpack.c.l.b16 %v6204
        %v6449 = vunpack.c.l.b16 %v6205
        %v6450 = vunpack.c.l.b16 %v6206
        %v6451 = vpack.c.b16 %v6448, %v6447
        %v6452 = vpack.c.b16 %v6450, %v6449
        %v6459 = vunpack.c.l.b16 %v6250
        %v6460 = vunpack.c.l.b16 %v6251
        %v6461 = vunpack.c.l.b16 %v6252
        %v6462 = vunpack.c.l.b16 %v6253
        %v6463 = vpack.c.b16 %v6460, %v6459
        %v6464 = vpack.c.b16 %v6462, %v6461
        %v6471 = vunpack.c.l.b16 %v6297
        %v6472 = vunpack.c.l.b16 %v6298
        %v6473 = vunpack.c.l.b16 %v6299
        %v6474 = vunpack.c.l.b16 %v6300
        %v6475 = vpack.c.b16 %v6472, %v6471
        %v6476 = vpack.c.b16 %v6474, %v6473
        %v6483 = vunpack.c.l.b16 %v6344
        %v6484 = vunpack.c.l.b16 %v6345
        %v6485 = vunpack.c.l.b16 %v6346
        %v6486 = vunpack.c.l.b16 %v6347
        %v6487 = vpack.c.b16 %v6484, %v6483
        %v6488 = vpack.c.b16 %v6486, %v6485
        %v6495 = vunpack.c.l.b16 %v6391
        %v6496 = vunpack.c.l.b16 %v6392
        %v6497 = vunpack.c.l.b16 %v6393
        %v6498 = vunpack.c.l.b16 %v6394
        %v6499 = vpack.c.b16 %v6496, %v6495
        %v6500 = vpack.c.b16 %v6498, %v6497
        %s6503 = scalar_lea.vmem %s2, 144
        %v6504 = vld [vmem:[%s6503] sm:$0xff]
        %v6505 = vld [vmem:[%s6503 + $0x8] sm:$0xf]
        %v6506 = vld [vmem:[%s6503 + $0xc] sm:$0xff]
        %v6507 = vld [vmem:[%s6503 + $0x14] sm:$0xf]
        %v6508 = vld [vmem:[%s6503 + $0x18] sm:$0xff]
        %v6509 = vld [vmem:[%s6503 + $0x20] sm:$0xf]
        %v6510 = vld [vmem:[%s6503 + $0x24] sm:$0xff]
        %v6511 = vld [vmem:[%s6503 + $0x2c] sm:$0xf]
        %v6520 = vunpack.c.l.b16 %v6504
        %v6521 = vunpack.c.h.b16 %v6504
        %v6522 = vunpack.c.l.b16 %v6505
        %v6523 = vunpack.c.l.b16 %v6506
        %v6524 = vunpack.c.h.b16 %v6506
        %v6525 = vunpack.c.l.b16 %v6507
        %v6526 = vunpack.c.l.b16 %v6508
        %v6527 = vunpack.c.h.b16 %v6508
        %v6528 = vunpack.c.l.b16 %v6509
        %v6529 = vunpack.c.l.b16 %v6510
        %v6530 = vunpack.c.h.b16 %v6510
        %v6531 = vunpack.c.l.b16 %v6511
        %v6532 = vpack.c.b16 %v6523, %v6520
        %v6533 = vpack.c.b16 %v6524, %v6521
        %v6534 = vpack.c.b16 %v6525, %v6522
        %v6535 = vpack.c.b16 %v6529, %v6526
        %v6536 = vpack.c.b16 %v6530, %v6527
        %v6537 = vpack.c.b16 %v6531, %v6528
        %v6543 = vsel %vm2302, %v6534, 0
        %v6546 = vsel %vm2302, %v6537, 0
        %6548 = vmatpush.bf16.msra.mxu0 %v6440
        %6549 = vmatpush.bf16.msra.mxu0 %v6439
        %6550 = vmatpush.bf16.msra.mxu0 %v6428
        %6551 = vmatpush.bf16.msra.mxu0 %v6427
        %6552 = vmatpush.bf16.msra.mxu0 %v6416
        %6553 = vmatpush.bf16.msra.mxu0 %v6415
        %6554 = vmatpush.bf16.msra.mxu0 %v6404
        %6555 = vmatpush.bf16.msra.mxu0 %v6403
        %6556 = vmatmul.bf16.gmra.mxu0 %v6532
        %v6557 = vpop.f32.mrf.mxu0
        %v6558 = vadd.f32 0.0, %v6557
        %v6559 = vpop.f32.mrf.mxu0
        %v6560 = vadd.f32 0.0, %v6559
        %6561 = vmatmul.bf16.gmra.mxu0 %v6535
        %v6562 = vpop.f32.mrf.mxu0
        %v6563 = vadd.f32 0.0, %v6562
        %v6564 = vpop.f32.mrf.mxu0
        %v6565 = vadd.f32 0.0, %v6564
        %6566 = vdwg.mxu0
        %6567 = vmatpush.bf16.msra.mxu0 %v6488
        %6568 = vmatpush.bf16.msra.mxu0 %v6487
        %6569 = vmatpush.bf16.msra.mxu0 %v6476
        %6570 = vmatpush.bf16.msra.mxu0 %v6475
        %6571 = vmatpush.bf16.msra.mxu0 %v6464
        %6572 = vmatpush.bf16.msra.mxu0 %v6463
        %6573 = vmatpush.bf16.msra.mxu0 %v6452
        %6574 = vmatpush.bf16.msra.mxu0 %v6451
        %6575 = vmatmul.bf16.gmra.mxu0 %v6533
        %v6576 = vpop.f32.mrf.mxu0
        %v6577 = vadd.f32 %v6558, %v6576
        %v6578 = vpop.f32.mrf.mxu0
        %v6579 = vadd.f32 %v6560, %v6578
        %6580 = vmatmul.bf16.gmra.mxu0 %v6536
        %v6581 = vpop.f32.mrf.mxu0
        %v6582 = vadd.f32 %v6563, %v6581
        %v6583 = vpop.f32.mrf.mxu0
        %v6584 = vadd.f32 %v6565, %v6583
        %6585 = vdwg.mxu0
        %6586 = vmatpush.bf16.msra.mxu0 0
        %6587 = vmatpush.bf16.msra.mxu0 0
        %6588 = vmatpush.bf16.msra.mxu0 0
        %6589 = vmatpush.bf16.msra.mxu0 0
        %6590 = vmatpush.bf16.msra.mxu0 0
        %6591 = vmatpush.bf16.msra.mxu0 0
        %6592 = vmatpush.bf16.msra.mxu0 %v6500
        %6593 = vmatpush.bf16.msra.mxu0 %v6499
        %6594 = vmatmul.bf16.gmra.mxu0 %v6543
        %v6595 = vpop.f32.mrf.mxu0
        %v6596 = vadd.f32 %v6577, %v6595
        %v6597 = vpop.f32.mrf.mxu0
        %v6598 = vadd.f32 %v6579, %v6597
        %6599 = vmatmul.bf16.gmra.mxu0 %v6546
        %v6600 = vpop.f32.mrf.mxu0
        %v6601 = vadd.f32 %v6582, %v6600
        %v6602 = vpop.f32.mrf.mxu0
        %v6603 = vadd.f32 %v6584, %v6602
        %6604 = vdwg.mxu0
        %s6605 = scalar_lea.vmem %s3, 128
        %v6606 = vld [vmem:[%s6605] sm:$0xff]
        %v6607 = vld [vmem:[%s6605 + $0x8] sm:$0xff]
        %v6608 = vld [vmem:[%s6605 + $0x10] sm:$0xff]
        %v6609 = vld [vmem:[%s6605 + $0x18] sm:$0xff]
        %6611 = vset.pattern.permute.xlu0 0
        %6612 = vperm.xlu0 %6611, %v6606
        %v6613 = vpop.permute.xlu0 %6612
        %6616 = vset.pattern.permute.xlu0 0
        %6617 = vperm.xlu0 %6616, %v6607
        %v6618 = vpop.permute.xlu0 %6617
        %6621 = vset.pattern.permute.xlu0 0
        %6622 = vperm.xlu0 %6621, %v6608
        %v6623 = vpop.permute.xlu0 %6622
        %6626 = vset.pattern.permute.xlu0 0
        %6627 = vperm.xlu0 %6626, %v6609
        %v6628 = vpop.permute.xlu0 %6627
        %v6630 = vmul.f32 %v6596, %v6613
        %v6631 = vmul.f32 %v6598, %v6618
        %v6632 = vmul.f32 %v6601, %v6623
        %v6633 = vmul.f32 %v6603, %v6628
        %s6634 = scalar_lea.vmem %s4, 128
        %v6635 = vld [vmem:[%s6634] sm:$0xff]
        %v6636 = vld [vmem:[%s6634 + $0x8] sm:$0xff]
        %v6637 = vld [vmem:[%s6634 + $0x10] sm:$0xff]
        %v6638 = vld [vmem:[%s6634 + $0x18] sm:$0xff]
        %6640 = vset.pattern.permute.xlu0 0
        %6641 = vperm.xlu0 %6640, %v6635
        %v6642 = vpop.permute.xlu0 %6641
        %6645 = vset.pattern.permute.xlu0 0
        %6646 = vperm.xlu0 %6645, %v6636
        %v6647 = vpop.permute.xlu0 %6646
        %6650 = vset.pattern.permute.xlu0 0
        %6651 = vperm.xlu0 %6650, %v6637
        %v6652 = vpop.permute.xlu0 %6651
        %6655 = vset.pattern.permute.xlu0 0
        %6656 = vperm.xlu0 %6655, %v6638
        %v6657 = vpop.permute.xlu0 %6656
        %v6659 = vadd.f32 %v6630, %v6642
        %v6660 = vadd.f32 %v6631, %v6647
        %v6661 = vadd.f32 %v6632, %v6652
        %v6662 = vadd.f32 %v6633, %v6657
        %v6663 = vld [vmem:[#allocation4] sm:$0xf]
        %v6664 = vld [vmem:[#allocation4 + $0x4] sm:$0xf]
        %v6665 = vld [vmem:[#allocation4 + $0x8] sm:$0xf]
        %v6666 = vld [vmem:[#allocation4 + $0xc] sm:$0xf]
        %v6667 = vld [vmem:[#allocation4 + $0x10] sm:$0x3]
        %v6673 = vunpack.c.l.b16 %v6663
        %v6674 = vunpack.c.l.b16 %v6664
        %v6675 = vunpack.c.l.b16 %v6665
        %v6676 = vunpack.c.l.b16 %v6666
        %v6677 = vunpack.c.l.b16 %v6667
        %v6678 = vpack.c.b16 %v6674, %v6673
        %v6679 = vpack.c.b16 %v6676, %v6675
        %v6680 = vpack.c.b16 %v6677, %v6677
        %v6684 = vsel %vm5992, %v6680, 0
        %6686 = vmatpush.bf16.msra.mxu0 0
        %6687 = vmatpush.bf16.msra.mxu0 0
        %6688 = vmatpush.bf16.msra.mxu0 0
        %6689 = vmatpush.bf16.msra.mxu0 0
        %6690 = vmatpush.bf16.msra.mxu0 0
        %6691 = vmatpush.bf16.msra.mxu0 %v6684
        %6692 = vmatpush.bf16.msra.mxu0 %v6679
        %6693 = vmatpush.bf16.msra.mxu0 %v6678
        %6694 = vmatmul.bf16.gmra.mxu0 %v5987
        %v6695 = vpop.f32.mrf.mxu0
        %v6696 = vadd.f32 0.0, %v6695
        %v6697 = vpop.f32.mrf.mxu0
        %v6698 = vadd.f32 0.0, %v6697
        %6699 = vmatmul.bf16.gmra.mxu0 %v5990
        %v6700 = vpop.f32.mrf.mxu0
        %v6701 = vadd.f32 0.0, %v6700
        %v6702 = vpop.f32.mrf.mxu0
        %v6703 = vadd.f32 0.0, %v6702
        %6704 = vdwg.mxu0
        %v6705 = vpack.c.bf16 %v6696, %v6696
        %v6706 = vpack.c.bf16 %v6698, %v6698
        %v6707 = vpack.c.bf16 %v6701, %v6701
        %v6708 = vpack.c.bf16 %v6703, %v6703
        %s6709 = scalar_lea.vmem [#allocation4], 20
        %v6710 = vld [vmem:[%s6709] sm:$0xf]
        %v6711 = vld [vmem:[%s6709 + $0x4] sm:$0xf]
        %v6712 = vld [vmem:[%s6709 + $0x8] sm:$0xf]
        %v6713 = vld [vmem:[%s6709 + $0xc] sm:$0xf]
        %v6714 = vld [vmem:[%s6709 + $0x10] sm:$0x3]
        %v6720 = vunpack.c.l.b16 %v6710
        %v6721 = vunpack.c.l.b16 %v6711
        %v6722 = vunpack.c.l.b16 %v6712
        %v6723 = vunpack.c.l.b16 %v6713
        %v6724 = vunpack.c.l.b16 %v6714
        %v6725 = vpack.c.b16 %v6721, %v6720
        %v6726 = vpack.c.b16 %v6723, %v6722
        %v6727 = vpack.c.b16 %v6724, %v6724
        %v6731 = vsel %vm5992, %v6727, 0
        %6733 = vmatpush.bf16.msra.mxu0 0
        %6734 = vmatpush.bf16.msra.mxu0 0
        %6735 = vmatpush.bf16.msra.mxu0 0
        %6736 = vmatpush.bf16.msra.mxu0 0
        %6737 = vmatpush.bf16.msra.mxu0 0
        %6738 = vmatpush.bf16.msra.mxu0 %v6731
        %6739 = vmatpush.bf16.msra.mxu0 %v6726
        %6740 = vmatpush.bf16.msra.mxu0 %v6725
        %6741 = vmatmul.bf16.gmra.mxu0 %v5987
        %v6742 = vpop.f32.mrf.mxu0
        %v6743 = vadd.f32 0.0, %v6742
        %v6744 = vpop.f32.mrf.mxu0
        %v6745 = vadd.f32 0.0, %v6744
        %6746 = vmatmul.bf16.gmra.mxu0 %v5990
        %v6747 = vpop.f32.mrf.mxu0
        %v6748 = vadd.f32 0.0, %v6747
        %v6749 = vpop.f32.mrf.mxu0
        %v6750 = vadd.f32 0.0, %v6749
        %6751 = vdwg.mxu0
        %v6752 = vpack.c.bf16 %v6743, %v6743
        %v6753 = vpack.c.bf16 %v6745, %v6745
        %v6754 = vpack.c.bf16 %v6748, %v6748
        %v6755 = vpack.c.bf16 %v6750, %v6750
        %s6756 = scalar_lea.vmem [#allocation4], 40
        %v6757 = vld [vmem:[%s6756] sm:$0xf]
        %v6758 = vld [vmem:[%s6756 + $0x4] sm:$0xf]
        %v6759 = vld [vmem:[%s6756 + $0x8] sm:$0xf]
        %v6760 = vld [vmem:[%s6756 + $0xc] sm:$0xf]
        %v6761 = vld [vmem:[%s6756 + $0x10] sm:$0x3]
        %v6767 = vunpack.c.l.b16 %v6757
        %v6768 = vunpack.c.l.b16 %v6758
        %v6769 = vunpack.c.l.b16 %v6759
        %v6770 = vunpack.c.l.b16 %v6760
        %v6771 = vunpack.c.l.b16 %v6761
        %v6772 = vpack.c.b16 %v6768, %v6767
        %v6773 = vpack.c.b16 %v6770, %v6769
        %v6774 = vpack.c.b16 %v6771, %v6771
        %v6778 = vsel %vm5992, %v6774, 0
        %6780 = vmatpush.bf16.msra.mxu0 0
        %6781 = vmatpush.bf16.msra.mxu0 0
        %6782 = vmatpush.bf16.msra.mxu0 0
        %6783 = vmatpush.bf16.msra.mxu0 0
        %6784 = vmatpush.bf16.msra.mxu0 0
        %6785 = vmatpush.bf16.msra.mxu0 %v6778
        %6786 = vmatpush.bf16.msra.mxu0 %v6773
        %6787 = vmatpush.bf16.msra.mxu0 %v6772
        %6788 = vmatmul.bf16.gmra.mxu0 %v5987
        %v6789 = vpop.f32.mrf.mxu0
        %v6790 = vadd.f32 0.0, %v6789
        %v6791 = vpop.f32.mrf.mxu0
        %v6792 = vadd.f32 0.0, %v6791
        %6793 = vmatmul.bf16.gmra.mxu0 %v5990
        %v6794 = vpop.f32.mrf.mxu0
        %v6795 = vadd.f32 0.0, %v6794
        %v6796 = vpop.f32.mrf.mxu0
        %v6797 = vadd.f32 0.0, %v6796
        %6798 = vdwg.mxu0
        %v6799 = vpack.c.bf16 %v6790, %v6790
        %v6800 = vpack.c.bf16 %v6792, %v6792
        %v6801 = vpack.c.bf16 %v6795, %v6795
        %v6802 = vpack.c.bf16 %v6797, %v6797
        %s6803 = scalar_lea.vmem [#allocation4], 60
        %v6804 = vld [vmem:[%s6803] sm:$0xf]
        %v6805 = vld [vmem:[%s6803 + $0x4] sm:$0xf]
        %v6806 = vld [vmem:[%s6803 + $0x8] sm:$0xf]
        %v6807 = vld [vmem:[%s6803 + $0xc] sm:$0xf]
        %v6808 = vld [vmem:[%s6803 + $0x10] sm:$0x3]
        %v6814 = vunpack.c.l.b16 %v6804
        %v6815 = vunpack.c.l.b16 %v6805
        %v6816 = vunpack.c.l.b16 %v6806
        %v6817 = vunpack.c.l.b16 %v6807
        %v6818 = vunpack.c.l.b16 %v6808
        %v6819 = vpack.c.b16 %v6815, %v6814
        %v6820 = vpack.c.b16 %v6817, %v6816
        %v6821 = vpack.c.b16 %v6818, %v6818
        %v6825 = vsel %vm5992, %v6821, 0
        %6827 = vmatpush.bf16.msra.mxu0 0
        %6828 = vmatpush.bf16.msra.mxu0 0
        %6829 = vmatpush.bf16.msra.mxu0 0
        %6830 = vmatpush.bf16.msra.mxu0 0
        %6831 = vmatpush.bf16.msra.mxu0 0
        %6832 = vmatpush.bf16.msra.mxu0 %v6825
        %6833 = vmatpush.bf16.msra.mxu0 %v6820
        %6834 = vmatpush.bf16.msra.mxu0 %v6819
        %6835 = vmatmul.bf16.gmra.mxu0 %v5987
        %v6836 = vpop.f32.mrf.mxu0
        %v6837 = vadd.f32 0.0, %v6836
        %v6838 = vpop.f32.mrf.mxu0
        %v6839 = vadd.f32 0.0, %v6838
        %6840 = vmatmul.bf16.gmra.mxu0 %v5990
        %v6841 = vpop.f32.mrf.mxu0
        %v6842 = vadd.f32 0.0, %v6841
        %v6843 = vpop.f32.mrf.mxu0
        %v6844 = vadd.f32 0.0, %v6843
        %6845 = vdwg.mxu0
        %v6846 = vpack.c.bf16 %v6837, %v6837
        %v6847 = vpack.c.bf16 %v6839, %v6839
        %v6848 = vpack.c.bf16 %v6842, %v6842
        %v6849 = vpack.c.bf16 %v6844, %v6844
        %s6850 = scalar_lea.vmem [#allocation4], 80
        %v6851 = vld [vmem:[%s6850] sm:$0xf]
        %v6852 = vld [vmem:[%s6850 + $0x4] sm:$0xf]
        %v6853 = vld [vmem:[%s6850 + $0x8] sm:$0xf]
        %v6854 = vld [vmem:[%s6850 + $0xc] sm:$0xf]
        %v6855 = vld [vmem:[%s6850 + $0x10] sm:$0x3]
        %v6861 = vunpack.c.l.b16 %v6851
        %v6862 = vunpack.c.l.b16 %v6852
        %v6863 = vunpack.c.l.b16 %v6853
        %v6864 = vunpack.c.l.b16 %v6854
        %v6865 = vunpack.c.l.b16 %v6855
        %v6866 = vpack.c.b16 %v6862, %v6861
        %v6867 = vpack.c.b16 %v6864, %v6863
        %v6868 = vpack.c.b16 %v6865, %v6865
        %v6872 = vsel %vm5992, %v6868, 0
        %6874 = vmatpush.bf16.msra.mxu0 0
        %6875 = vmatpush.bf16.msra.mxu0 0
        %6876 = vmatpush.bf16.msra.mxu0 0
        %6877 = vmatpush.bf16.msra.mxu0 0
        %6878 = vmatpush.bf16.msra.mxu0 0
        %6879 = vmatpush.bf16.msra.mxu0 %v6872
        %6880 = vmatpush.bf16.msra.mxu0 %v6867
        %6881 = vmatpush.bf16.msra.mxu0 %v6866
        %6882 = vmatmul.bf16.gmra.mxu0 %v5987
        %v6883 = vpop.f32.mrf.mxu0
        %v6884 = vadd.f32 0.0, %v6883
        %v6885 = vpop.f32.mrf.mxu0
        %v6886 = vadd.f32 0.0, %v6885
        %6887 = vmatmul.bf16.gmra.mxu0 %v5990
        %v6888 = vpop.f32.mrf.mxu0
        %v6889 = vadd.f32 0.0, %v6888
        %v6890 = vpop.f32.mrf.mxu0
        %v6891 = vadd.f32 0.0, %v6890
        %6892 = vdwg.mxu0
        %v6893 = vpack.c.bf16 %v6884, %v6884
        %v6894 = vpack.c.bf16 %v6886, %v6886
        %v6895 = vpack.c.bf16 %v6889, %v6889
        %v6896 = vpack.c.bf16 %v6891, %v6891
        %s6897 = scalar_lea.vmem [#allocation4], 100
        %v6898 = vld [vmem:[%s6897] sm:$0xf]
        %v6899 = vld [vmem:[%s6897 + $0x4] sm:$0xf]
        %v6900 = vld [vmem:[%s6897 + $0x8] sm:$0xf]
        %v6901 = vld [vmem:[%s6897 + $0xc] sm:$0xf]
        %v6902 = vld [vmem:[%s6897 + $0x10] sm:$0x3]
        %v6908 = vunpack.c.l.b16 %v6898
        %v6909 = vunpack.c.l.b16 %v6899
        %v6910 = vunpack.c.l.b16 %v6900
        %v6911 = vunpack.c.l.b16 %v6901
        %v6912 = vunpack.c.l.b16 %v6902
        %v6913 = vpack.c.b16 %v6909, %v6908
        %v6914 = vpack.c.b16 %v6911, %v6910
        %v6915 = vpack.c.b16 %v6912, %v6912
        %v6919 = vsel %vm5992, %v6915, 0
        %6921 = vmatpush.bf16.msra.mxu0 0
        %6922 = vmatpush.bf16.msra.mxu0 0
        %6923 = vmatpush.bf16.msra.mxu0 0
        %6924 = vmatpush.bf16.msra.mxu0 0
        %6925 = vmatpush.bf16.msra.mxu0 0
        %6926 = vmatpush.bf16.msra.mxu0 %v6919
        %6927 = vmatpush.bf16.msra.mxu0 %v6914
        %6928 = vmatpush.bf16.msra.mxu0 %v6913
        %6929 = vmatmul.bf16.gmra.mxu0 %v5987
        %v6930 = vpop.f32.mrf.mxu0
        %v6931 = vadd.f32 0.0, %v6930
        %v6932 = vpop.f32.mrf.mxu0
        %v6933 = vadd.f32 0.0, %v6932
        %6934 = vmatmul.bf16.gmra.mxu0 %v5990
        %v6935 = vpop.f32.mrf.mxu0
        %v6936 = vadd.f32 0.0, %v6935
        %v6937 = vpop.f32.mrf.mxu0
        %v6938 = vadd.f32 0.0, %v6937
        %6939 = vdwg.mxu0
        %v6940 = vpack.c.bf16 %v6931, %v6931
        %v6941 = vpack.c.bf16 %v6933, %v6933
        %v6942 = vpack.c.bf16 %v6936, %v6936
        %v6943 = vpack.c.bf16 %v6938, %v6938
        %s6944 = scalar_lea.vmem [#allocation4], 120
        %v6945 = vld [vmem:[%s6944] sm:$0xf]
        %v6946 = vld [vmem:[%s6944 + $0x4] sm:$0xf]
        %v6947 = vld [vmem:[%s6944 + $0x8] sm:$0xf]
        %v6948 = vld [vmem:[%s6944 + $0xc] sm:$0xf]
        %v6949 = vld [vmem:[%s6944 + $0x10] sm:$0x3]
        %v6955 = vunpack.c.l.b16 %v6945
        %v6956 = vunpack.c.l.b16 %v6946
        %v6957 = vunpack.c.l.b16 %v6947
        %v6958 = vunpack.c.l.b16 %v6948
        %v6959 = vunpack.c.l.b16 %v6949
        %v6960 = vpack.c.b16 %v6956, %v6955
        %v6961 = vpack.c.b16 %v6958, %v6957
        %v6962 = vpack.c.b16 %v6959, %v6959
        %v6966 = vsel %vm5992, %v6962, 0
        %6968 = vmatpush.bf16.msra.mxu0 0
        %6969 = vmatpush.bf16.msra.mxu0 0
        %6970 = vmatpush.bf16.msra.mxu0 0
        %6971 = vmatpush.bf16.msra.mxu0 0
        %6972 = vmatpush.bf16.msra.mxu0 0
        %6973 = vmatpush.bf16.msra.mxu0 %v6966
        %6974 = vmatpush.bf16.msra.mxu0 %v6961
        %6975 = vmatpush.bf16.msra.mxu0 %v6960
        %6976 = vmatmul.bf16.gmra.mxu0 %v5987
        %v6977 = vpop.f32.mrf.mxu0
        %v6978 = vadd.f32 0.0, %v6977
        %v6979 = vpop.f32.mrf.mxu0
        %v6980 = vadd.f32 0.0, %v6979
        %6981 = vmatmul.bf16.gmra.mxu0 %v5990
        %v6982 = vpop.f32.mrf.mxu0
        %v6983 = vadd.f32 0.0, %v6982
        %v6984 = vpop.f32.mrf.mxu0
        %v6985 = vadd.f32 0.0, %v6984
        %6986 = vdwg.mxu0
        %v6987 = vpack.c.bf16 %v6978, %v6978
        %v6988 = vpack.c.bf16 %v6980, %v6980
        %v6989 = vpack.c.bf16 %v6983, %v6983
        %v6990 = vpack.c.bf16 %v6985, %v6985
        %s6991 = scalar_lea.vmem [#allocation4], 140
        %v6992 = vld [vmem:[%s6991] sm:$0xf]
        %v6993 = vld [vmem:[%s6991 + $0x4] sm:$0xf]
        %v6994 = vld [vmem:[%s6991 + $0x8] sm:$0xf]
        %v6995 = vld [vmem:[%s6991 + $0xc] sm:$0xf]
        %v6996 = vld [vmem:[%s6991 + $0x10] sm:$0x3]
        %v7002 = vunpack.c.l.b16 %v6992
        %v7003 = vunpack.c.l.b16 %v6993
        %v7004 = vunpack.c.l.b16 %v6994
        %v7005 = vunpack.c.l.b16 %v6995
        %v7006 = vunpack.c.l.b16 %v6996
        %v7007 = vpack.c.b16 %v7003, %v7002
        %v7008 = vpack.c.b16 %v7005, %v7004
        %v7009 = vpack.c.b16 %v7006, %v7006
        %v7013 = vsel %vm5992, %v7009, 0
        %7015 = vmatpush.bf16.msra.mxu0 0
        %7016 = vmatpush.bf16.msra.mxu0 0
        %7017 = vmatpush.bf16.msra.mxu0 0
        %7018 = vmatpush.bf16.msra.mxu0 0
        %7019 = vmatpush.bf16.msra.mxu0 0
        %7020 = vmatpush.bf16.msra.mxu0 %v7013
        %7021 = vmatpush.bf16.msra.mxu0 %v7008
        %7022 = vmatpush.bf16.msra.mxu0 %v7007
        %7023 = vmatmul.bf16.gmra.mxu0 %v5987
        %v7024 = vpop.f32.mrf.mxu0
        %v7025 = vadd.f32 0.0, %v7024
        %v7026 = vpop.f32.mrf.mxu0
        %v7027 = vadd.f32 0.0, %v7026
        %7028 = vmatmul.bf16.gmra.mxu0 %v5990
        %v7029 = vpop.f32.mrf.mxu0
        %v7030 = vadd.f32 0.0, %v7029
        %v7031 = vpop.f32.mrf.mxu0
        %v7032 = vadd.f32 0.0, %v7031
        %7033 = vdwg.mxu0
        %v7034 = vpack.c.bf16 %v7025, %v7025
        %v7035 = vpack.c.bf16 %v7027, %v7027
        %v7036 = vpack.c.bf16 %v7030, %v7030
        %v7037 = vpack.c.bf16 %v7032, %v7032
        %s7038 = scalar_lea.vmem [#allocation4], 160
        %v7039 = vld [vmem:[%s7038] sm:$0xf]
        %v7040 = vld [vmem:[%s7038 + $0x4] sm:$0xf]
        %v7041 = vld [vmem:[%s7038 + $0x8] sm:$0xf]
        %v7042 = vld [vmem:[%s7038 + $0xc] sm:$0xf]
        %v7043 = vld [vmem:[%s7038 + $0x10] sm:$0x3]
        %v7049 = vunpack.c.l.b16 %v7039
        %v7050 = vunpack.c.l.b16 %v7040
        %v7051 = vunpack.c.l.b16 %v7041
        %v7052 = vunpack.c.l.b16 %v7042
        %v7053 = vunpack.c.l.b16 %v7043
        %v7054 = vpack.c.b16 %v7050, %v7049
        %v7055 = vpack.c.b16 %v7052, %v7051
        %v7056 = vpack.c.b16 %v7053, %v7053
        %v7060 = vsel %vm5992, %v7056, 0
        %7062 = vmatpush.bf16.msra.mxu0 0
        %7063 = vmatpush.bf16.msra.mxu0 0
        %7064 = vmatpush.bf16.msra.mxu0 0
        %7065 = vmatpush.bf16.msra.mxu0 0
        %7066 = vmatpush.bf16.msra.mxu0 0
        %7067 = vmatpush.bf16.msra.mxu0 %v7060
        %7068 = vmatpush.bf16.msra.mxu0 %v7055
        %7069 = vmatpush.bf16.msra.mxu0 %v7054
        %7070 = vmatmul.bf16.gmra.mxu0 %v5987
        %v7071 = vpop.f32.mrf.mxu0
        %v7072 = vadd.f32 0.0, %v7071
        %v7073 = vpop.f32.mrf.mxu0
        %v7074 = vadd.f32 0.0, %v7073
        %7075 = vmatmul.bf16.gmra.mxu0 %v5990
        %v7076 = vpop.f32.mrf.mxu0
        %v7077 = vadd.f32 0.0, %v7076
        %v7078 = vpop.f32.mrf.mxu0
        %v7079 = vadd.f32 0.0, %v7078
        %7080 = vdwg.mxu0
        %v7081 = vpack.c.bf16 %v7072, %v7072
        %v7082 = vpack.c.bf16 %v7074, %v7074
        %v7083 = vpack.c.bf16 %v7077, %v7077
        %v7084 = vpack.c.bf16 %v7079, %v7079
        %v7089 = vunpack.c.l.b16 %v6705
        %v7090 = vunpack.c.l.b16 %v6706
        %v7091 = vunpack.c.l.b16 %v6707
        %v7092 = vunpack.c.l.b16 %v6708
        %v7093 = vpack.c.b16 %v7090, %v7089
        %v7094 = vpack.c.b16 %v7092, %v7091
        %v7101 = vunpack.c.l.b16 %v6752
        %v7102 = vunpack.c.l.b16 %v6753
        %v7103 = vunpack.c.l.b16 %v6754
        %v7104 = vunpack.c.l.b16 %v6755
        %v7105 = vpack.c.b16 %v7102, %v7101
        %v7106 = vpack.c.b16 %v7104, %v7103
        %v7113 = vunpack.c.l.b16 %v6799
        %v7114 = vunpack.c.l.b16 %v6800
        %v7115 = vunpack.c.l.b16 %v6801
        %v7116 = vunpack.c.l.b16 %v6802
        %v7117 = vpack.c.b16 %v7114, %v7113
        %v7118 = vpack.c.b16 %v7116, %v7115
        %v7125 = vunpack.c.l.b16 %v6846
        %v7126 = vunpack.c.l.b16 %v6847
        %v7127 = vunpack.c.l.b16 %v6848
        %v7128 = vunpack.c.l.b16 %v6849
        %v7129 = vpack.c.b16 %v7126, %v7125
        %v7130 = vpack.c.b16 %v7128, %v7127
        %v7137 = vunpack.c.l.b16 %v6893
        %v7138 = vunpack.c.l.b16 %v6894
        %v7139 = vunpack.c.l.b16 %v6895
        %v7140 = vunpack.c.l.b16 %v6896
        %v7141 = vpack.c.b16 %v7138, %v7137
        %v7142 = vpack.c.b16 %v7140, %v7139
        %v7149 = vunpack.c.l.b16 %v6940
        %v7150 = vunpack.c.l.b16 %v6941
        %v7151 = vunpack.c.l.b16 %v6942
        %v7152 = vunpack.c.l.b16 %v6943
        %v7153 = vpack.c.b16 %v7150, %v7149
        %v7154 = vpack.c.b16 %v7152, %v7151
        %v7161 = vunpack.c.l.b16 %v6987
        %v7162 = vunpack.c.l.b16 %v6988
        %v7163 = vunpack.c.l.b16 %v6989
        %v7164 = vunpack.c.l.b16 %v6990
        %v7165 = vpack.c.b16 %v7162, %v7161
        %v7166 = vpack.c.b16 %v7164, %v7163
        %v7173 = vunpack.c.l.b16 %v7034
        %v7174 = vunpack.c.l.b16 %v7035
        %v7175 = vunpack.c.l.b16 %v7036
        %v7176 = vunpack.c.l.b16 %v7037
        %v7177 = vpack.c.b16 %v7174, %v7173
        %v7178 = vpack.c.b16 %v7176, %v7175
        %v7185 = vunpack.c.l.b16 %v7081
        %v7186 = vunpack.c.l.b16 %v7082
        %v7187 = vunpack.c.l.b16 %v7083
        %v7188 = vunpack.c.l.b16 %v7084
        %v7189 = vpack.c.b16 %v7186, %v7185
        %v7190 = vpack.c.b16 %v7188, %v7187
        %s7193 = scalar_lea.vmem %s2, 192
        %v7194 = vld [vmem:[%s7193] sm:$0xff]
        %v7195 = vld [vmem:[%s7193 + $0x8] sm:$0xf]
        %v7196 = vld [vmem:[%s7193 + $0xc] sm:$0xff]
        %v7197 = vld [vmem:[%s7193 + $0x14] sm:$0xf]
        %v7198 = vld [vmem:[%s7193 + $0x18] sm:$0xff]
        %v7199 = vld [vmem:[%s7193 + $0x20] sm:$0xf]
        %v7200 = vld [vmem:[%s7193 + $0x24] sm:$0xff]
        %v7201 = vld [vmem:[%s7193 + $0x2c] sm:$0xf]
        %v7210 = vunpack.c.l.b16 %v7194
        %v7211 = vunpack.c.h.b16 %v7194
        %v7212 = vunpack.c.l.b16 %v7195
        %v7213 = vunpack.c.l.b16 %v7196
        %v7214 = vunpack.c.h.b16 %v7196
        %v7215 = vunpack.c.l.b16 %v7197
        %v7216 = vunpack.c.l.b16 %v7198
        %v7217 = vunpack.c.h.b16 %v7198
        %v7218 = vunpack.c.l.b16 %v7199
        %v7219 = vunpack.c.l.b16 %v7200
        %v7220 = vunpack.c.h.b16 %v7200
        %v7221 = vunpack.c.l.b16 %v7201
        %v7222 = vpack.c.b16 %v7213, %v7210
        %v7223 = vpack.c.b16 %v7214, %v7211
        %v7224 = vpack.c.b16 %v7215, %v7212
        %v7225 = vpack.c.b16 %v7219, %v7216
        %v7226 = vpack.c.b16 %v7220, %v7217
        %v7227 = vpack.c.b16 %v7221, %v7218
        %v7233 = vsel %vm2302, %v7224, 0
        %v7236 = vsel %vm2302, %v7227, 0
        %7238 = vmatpush.bf16.msra.mxu0 %v7130
        %7239 = vmatpush.bf16.msra.mxu0 %v7129
        %7240 = vmatpush.bf16.msra.mxu0 %v7118
        %7241 = vmatpush.bf16.msra.mxu0 %v7117
        %7242 = vmatpush.bf16.msra.mxu0 %v7106
        %7243 = vmatpush.bf16.msra.mxu0 %v7105
        %7244 = vmatpush.bf16.msra.mxu0 %v7094
        %7245 = vmatpush.bf16.msra.mxu0 %v7093
        %7246 = vmatmul.bf16.gmra.mxu0 %v7222
        %v7247 = vpop.f32.mrf.mxu0
        %v7248 = vadd.f32 0.0, %v7247
        %v7249 = vpop.f32.mrf.mxu0
        %v7250 = vadd.f32 0.0, %v7249
        %7251 = vmatmul.bf16.gmra.mxu0 %v7225
        %v7252 = vpop.f32.mrf.mxu0
        %v7253 = vadd.f32 0.0, %v7252
        %v7254 = vpop.f32.mrf.mxu0
        %v7255 = vadd.f32 0.0, %v7254
        %7256 = vdwg.mxu0
        %7257 = vmatpush.bf16.msra.mxu0 %v7178
        %7258 = vmatpush.bf16.msra.mxu0 %v7177
        %7259 = vmatpush.bf16.msra.mxu0 %v7166
        %7260 = vmatpush.bf16.msra.mxu0 %v7165
        %7261 = vmatpush.bf16.msra.mxu0 %v7154
        %7262 = vmatpush.bf16.msra.mxu0 %v7153
        %7263 = vmatpush.bf16.msra.mxu0 %v7142
        %7264 = vmatpush.bf16.msra.mxu0 %v7141
        %7265 = vmatmul.bf16.gmra.mxu0 %v7223
        %v7266 = vpop.f32.mrf.mxu0
        %v7267 = vadd.f32 %v7248, %v7266
        %v7268 = vpop.f32.mrf.mxu0
        %v7269 = vadd.f32 %v7250, %v7268
        %7270 = vmatmul.bf16.gmra.mxu0 %v7226
        %v7271 = vpop.f32.mrf.mxu0
        %v7272 = vadd.f32 %v7253, %v7271
        %v7273 = vpop.f32.mrf.mxu0
        %v7274 = vadd.f32 %v7255, %v7273
        %7275 = vdwg.mxu0
        %7276 = vmatpush.bf16.msra.mxu0 0
        %7277 = vmatpush.bf16.msra.mxu0 0
        %7278 = vmatpush.bf16.msra.mxu0 0
        %7279 = vmatpush.bf16.msra.mxu0 0
        %7280 = vmatpush.bf16.msra.mxu0 0
        %7281 = vmatpush.bf16.msra.mxu0 0
        %7282 = vmatpush.bf16.msra.mxu0 %v7190
        %7283 = vmatpush.bf16.msra.mxu0 %v7189
        %7284 = vmatmul.bf16.gmra.mxu0 %v7233
        %v7285 = vpop.f32.mrf.mxu0
        %v7286 = vadd.f32 %v7267, %v7285
        %v7287 = vpop.f32.mrf.mxu0
        %v7288 = vadd.f32 %v7269, %v7287
        %7289 = vmatmul.bf16.gmra.mxu0 %v7236
        %v7290 = vpop.f32.mrf.mxu0
        %v7291 = vadd.f32 %v7272, %v7290
        %v7292 = vpop.f32.mrf.mxu0
        %v7293 = vadd.f32 %v7274, %v7292
        %7294 = vdwg.mxu0
        %s7295 = scalar_lea.vmem %s3, 160
        %v7296 = vld [vmem:[%s7295] sm:$0xff]
        %v7297 = vld [vmem:[%s7295 + $0x8] sm:$0xff]
        %v7298 = vld [vmem:[%s7295 + $0x10] sm:$0xff]
        %v7299 = vld [vmem:[%s7295 + $0x18] sm:$0xff]
        %7301 = vset.pattern.permute.xlu0 0
        %7302 = vperm.xlu0 %7301, %v7296
        %v7303 = vpop.permute.xlu0 %7302
        %7306 = vset.pattern.permute.xlu0 0
        %7307 = vperm.xlu0 %7306, %v7297
        %v7308 = vpop.permute.xlu0 %7307
        %7311 = vset.pattern.permute.xlu0 0
        %7312 = vperm.xlu0 %7311, %v7298
        %v7313 = vpop.permute.xlu0 %7312
        %7316 = vset.pattern.permute.xlu0 0
        %7317 = vperm.xlu0 %7316, %v7299
        %v7318 = vpop.permute.xlu0 %7317
        %v7320 = vmul.f32 %v7286, %v7303
        %v7321 = vmul.f32 %v7288, %v7308
        %v7322 = vmul.f32 %v7291, %v7313
        %v7323 = vmul.f32 %v7293, %v7318
        %s7324 = scalar_lea.vmem %s4, 160
        %v7325 = vld [vmem:[%s7324] sm:$0xff]
        %v7326 = vld [vmem:[%s7324 + $0x8] sm:$0xff]
        %v7327 = vld [vmem:[%s7324 + $0x10] sm:$0xff]
        %v7328 = vld [vmem:[%s7324 + $0x18] sm:$0xff]
        %7330 = vset.pattern.permute.xlu0 0
        %7331 = vperm.xlu0 %7330, %v7325
        %v7332 = vpop.permute.xlu0 %7331
        %7335 = vset.pattern.permute.xlu0 0
        %7336 = vperm.xlu0 %7335, %v7326
        %v7337 = vpop.permute.xlu0 %7336
        %7340 = vset.pattern.permute.xlu0 0
        %7341 = vperm.xlu0 %7340, %v7327
        %v7342 = vpop.permute.xlu0 %7341
        %7345 = vset.pattern.permute.xlu0 0
        %7346 = vperm.xlu0 %7345, %v7328
        %v7347 = vpop.permute.xlu0 %7346
        %v7349 = vadd.f32 %v7320, %v7332
        %v7350 = vadd.f32 %v7321, %v7337
        %v7351 = vadd.f32 %v7322, %v7342
        %v7352 = vadd.f32 %v7323, %v7347
        %vm7353 = vcmp.ge.f32.partialorder %v7349, 0.0
        %vm7354 = vcmp.ge.f32.partialorder %v7350, 0.0
        %vm7355 = vcmp.ge.f32.partialorder %v7351, 0.0
        %vm7356 = vcmp.ge.f32.partialorder %v7352, 0.0
        %v7357 = vmul.f32 %v7349, 0.01
        %v7358 = vmul.f32 %v7350, 0.01
        %v7359 = vmul.f32 %v7351, 0.01
        %v7360 = vmul.f32 %v7352, 0.01
        %v7361 = vsel %vm7353, %v7349, %v7357
        %v7362 = vsel %vm7354, %v7350, %v7358
        %v7363 = vsel %vm7355, %v7351, %v7359
        %v7364 = vsel %vm7356, %v7352, %v7360
        %v7365 = vpack.c.bf16 %v7362, %v7361
        %v7366 = vpack.c.bf16 %v7364, %v7363
        %v7368 = vsel %vm5985, %v7365, 0
        %v7371 = vsel %vm5985, %v7366, 0
        %7373 = vmatpush.bf16.msra.mxu0 0
        %7374 = vmatpush.bf16.msra.mxu0 0
        %7375 = vmatpush.bf16.msra.mxu0 0
        %7376 = vmatpush.bf16.msra.mxu0 0
        %7377 = vmatpush.bf16.msra.mxu0 0
        %7378 = vmatpush.bf16.msra.mxu0 %v5994
        %7379 = vmatpush.bf16.msra.mxu0 %v5981
        %7380 = vmatpush.bf16.msra.mxu0 %v5980
        %7381 = vmatmul.bf16.gmra.mxu0 %v7368
        %v7382 = vpop.f32.mrf.mxu0
        %v7383 = vadd.f32 0.0, %v7382
        %v7384 = vpop.f32.mrf.mxu0
        %v7385 = vadd.f32 0.0, %v7384
        %7386 = vmatmul.bf16.gmra.mxu0 %v7371
        %v7387 = vpop.f32.mrf.mxu0
        %v7388 = vadd.f32 0.0, %v7387
        %v7389 = vpop.f32.mrf.mxu0
        %v7390 = vadd.f32 0.0, %v7389
        %7391 = vdwg.mxu0
        %v7392 = vpack.c.bf16 %v7383, %v7383
        %v7393 = vpack.c.bf16 %v7385, %v7385
        %v7394 = vpack.c.bf16 %v7388, %v7388
        %v7395 = vpack.c.bf16 %v7390, %v7390
        %7396 = vmatpush.bf16.msra.mxu0 0
        %7397 = vmatpush.bf16.msra.mxu0 0
        %7398 = vmatpush.bf16.msra.mxu0 0
        %7399 = vmatpush.bf16.msra.mxu0 0
        %7400 = vmatpush.bf16.msra.mxu0 0
        %7401 = vmatpush.bf16.msra.mxu0 %v6041
        %7402 = vmatpush.bf16.msra.mxu0 %v6036
        %7403 = vmatpush.bf16.msra.mxu0 %v6035
        %7404 = vmatmul.bf16.gmra.mxu0 %v7368
        %v7405 = vpop.f32.mrf.mxu0
        %v7406 = vadd.f32 0.0, %v7405
        %v7407 = vpop.f32.mrf.mxu0
        %v7408 = vadd.f32 0.0, %v7407
        %7409 = vmatmul.bf16.gmra.mxu0 %v7371
        %v7410 = vpop.f32.mrf.mxu0
        %v7411 = vadd.f32 0.0, %v7410
        %v7412 = vpop.f32.mrf.mxu0
        %v7413 = vadd.f32 0.0, %v7412
        %7414 = vdwg.mxu0
        %v7415 = vpack.c.bf16 %v7406, %v7406
        %v7416 = vpack.c.bf16 %v7408, %v7408
        %v7417 = vpack.c.bf16 %v7411, %v7411
        %v7418 = vpack.c.bf16 %v7413, %v7413
        %7419 = vmatpush.bf16.msra.mxu0 0
        %7420 = vmatpush.bf16.msra.mxu0 0
        %7421 = vmatpush.bf16.msra.mxu0 0
        %7422 = vmatpush.bf16.msra.mxu0 0
        %7423 = vmatpush.bf16.msra.mxu0 0
        %7424 = vmatpush.bf16.msra.mxu0 %v6088
        %7425 = vmatpush.bf16.msra.mxu0 %v6083
        %7426 = vmatpush.bf16.msra.mxu0 %v6082
        %7427 = vmatmul.bf16.gmra.mxu0 %v7368
        %v7428 = vpop.f32.mrf.mxu0
        %v7429 = vadd.f32 0.0, %v7428
        %v7430 = vpop.f32.mrf.mxu0
        %v7431 = vadd.f32 0.0, %v7430
        %7432 = vmatmul.bf16.gmra.mxu0 %v7371
        %v7433 = vpop.f32.mrf.mxu0
        %v7434 = vadd.f32 0.0, %v7433
        %v7435 = vpop.f32.mrf.mxu0
        %v7436 = vadd.f32 0.0, %v7435
        %7437 = vdwg.mxu0
        %v7438 = vpack.c.bf16 %v7429, %v7429
        %v7439 = vpack.c.bf16 %v7431, %v7431
        %v7440 = vpack.c.bf16 %v7434, %v7434
        %v7441 = vpack.c.bf16 %v7436, %v7436
        %7442 = vmatpush.bf16.msra.mxu0 0
        %7443 = vmatpush.bf16.msra.mxu0 0
        %7444 = vmatpush.bf16.msra.mxu0 0
        %7445 = vmatpush.bf16.msra.mxu0 0
        %7446 = vmatpush.bf16.msra.mxu0 0
        %7447 = vmatpush.bf16.msra.mxu0 %v6135
        %7448 = vmatpush.bf16.msra.mxu0 %v6130
        %7449 = vmatpush.bf16.msra.mxu0 %v6129
        %7450 = vmatmul.bf16.gmra.mxu0 %v7368
        %v7451 = vpop.f32.mrf.mxu0
        %v7452 = vadd.f32 0.0, %v7451
        %v7453 = vpop.f32.mrf.mxu0
        %v7454 = vadd.f32 0.0, %v7453
        %7455 = vmatmul.bf16.gmra.mxu0 %v7371
        %v7456 = vpop.f32.mrf.mxu0
        %v7457 = vadd.f32 0.0, %v7456
        %v7458 = vpop.f32.mrf.mxu0
        %v7459 = vadd.f32 0.0, %v7458
        %7460 = vdwg.mxu0
        %v7461 = vpack.c.bf16 %v7452, %v7452
        %v7462 = vpack.c.bf16 %v7454, %v7454
        %v7463 = vpack.c.bf16 %v7457, %v7457
        %v7464 = vpack.c.bf16 %v7459, %v7459
        %7465 = vmatpush.bf16.msra.mxu0 0
        %7466 = vmatpush.bf16.msra.mxu0 0
        %7467 = vmatpush.bf16.msra.mxu0 0
        %7468 = vmatpush.bf16.msra.mxu0 0
        %7469 = vmatpush.bf16.msra.mxu0 0
        %7470 = vmatpush.bf16.msra.mxu0 %v6182
        %7471 = vmatpush.bf16.msra.mxu0 %v6177
        %7472 = vmatpush.bf16.msra.mxu0 %v6176
        %7473 = vmatmul.bf16.gmra.mxu0 %v7368
        %v7474 = vpop.f32.mrf.mxu0
        %v7475 = vadd.f32 0.0, %v7474
        %v7476 = vpop.f32.mrf.mxu0
        %v7477 = vadd.f32 0.0, %v7476
        %7478 = vmatmul.bf16.gmra.mxu0 %v7371
        %v7479 = vpop.f32.mrf.mxu0
        %v7480 = vadd.f32 0.0, %v7479
        %v7481 = vpop.f32.mrf.mxu0
        %v7482 = vadd.f32 0.0, %v7481
        %7483 = vdwg.mxu0
        %v7484 = vpack.c.bf16 %v7475, %v7475
        %v7485 = vpack.c.bf16 %v7477, %v7477
        %v7486 = vpack.c.bf16 %v7480, %v7480
        %v7487 = vpack.c.bf16 %v7482, %v7482
        %7488 = vmatpush.bf16.msra.mxu0 0
        %7489 = vmatpush.bf16.msra.mxu0 0
        %7490 = vmatpush.bf16.msra.mxu0 0
        %7491 = vmatpush.bf16.msra.mxu0 0
        %7492 = vmatpush.bf16.msra.mxu0 0
        %7493 = vmatpush.bf16.msra.mxu0 %v6229
        %7494 = vmatpush.bf16.msra.mxu0 %v6224
        %7495 = vmatpush.bf16.msra.mxu0 %v6223
        %7496 = vmatmul.bf16.gmra.mxu0 %v7368
        %v7497 = vpop.f32.mrf.mxu0
        %v7498 = vadd.f32 0.0, %v7497
        %v7499 = vpop.f32.mrf.mxu0
        %v7500 = vadd.f32 0.0, %v7499
        %7501 = vmatmul.bf16.gmra.mxu0 %v7371
        %v7502 = vpop.f32.mrf.mxu0
        %v7503 = vadd.f32 0.0, %v7502
        %v7504 = vpop.f32.mrf.mxu0
        %v7505 = vadd.f32 0.0, %v7504
        %7506 = vdwg.mxu0
        %v7507 = vpack.c.bf16 %v7498, %v7498
        %v7508 = vpack.c.bf16 %v7500, %v7500
        %v7509 = vpack.c.bf16 %v7503, %v7503
        %v7510 = vpack.c.bf16 %v7505, %v7505
        %7511 = vmatpush.bf16.msra.mxu0 0
        %7512 = vmatpush.bf16.msra.mxu0 0
        %7513 = vmatpush.bf16.msra.mxu0 0
        %7514 = vmatpush.bf16.msra.mxu0 0
        %7515 = vmatpush.bf16.msra.mxu0 0
        %7516 = vmatpush.bf16.msra.mxu0 %v6276
        %7517 = vmatpush.bf16.msra.mxu0 %v6271
        %7518 = vmatpush.bf16.msra.mxu0 %v6270
        %7519 = vmatmul.bf16.gmra.mxu0 %v7368
        %v7520 = vpop.f32.mrf.mxu0
        %v7521 = vadd.f32 0.0, %v7520
        %v7522 = vpop.f32.mrf.mxu0
        %v7523 = vadd.f32 0.0, %v7522
        %7524 = vmatmul.bf16.gmra.mxu0 %v7371
        %v7525 = vpop.f32.mrf.mxu0
        %v7526 = vadd.f32 0.0, %v7525
        %v7527 = vpop.f32.mrf.mxu0
        %v7528 = vadd.f32 0.0, %v7527
        %7529 = vdwg.mxu0
        %v7530 = vpack.c.bf16 %v7521, %v7521
        %v7531 = vpack.c.bf16 %v7523, %v7523
        %v7532 = vpack.c.bf16 %v7526, %v7526
        %v7533 = vpack.c.bf16 %v7528, %v7528
        %7534 = vmatpush.bf16.msra.mxu0 0
        %7535 = vmatpush.bf16.msra.mxu0 0
        %7536 = vmatpush.bf16.msra.mxu0 0
        %7537 = vmatpush.bf16.msra.mxu0 0
        %7538 = vmatpush.bf16.msra.mxu0 0
        %7539 = vmatpush.bf16.msra.mxu0 %v6323
        %7540 = vmatpush.bf16.msra.mxu0 %v6318
        %7541 = vmatpush.bf16.msra.mxu0 %v6317
        %7542 = vmatmul.bf16.gmra.mxu0 %v7368
        %v7543 = vpop.f32.mrf.mxu0
        %v7544 = vadd.f32 0.0, %v7543
        %v7545 = vpop.f32.mrf.mxu0
        %v7546 = vadd.f32 0.0, %v7545
        %7547 = vmatmul.bf16.gmra.mxu0 %v7371
        %v7548 = vpop.f32.mrf.mxu0
        %v7549 = vadd.f32 0.0, %v7548
        %v7550 = vpop.f32.mrf.mxu0
        %v7551 = vadd.f32 0.0, %v7550
        %7552 = vdwg.mxu0
        %v7553 = vpack.c.bf16 %v7544, %v7544
        %v7554 = vpack.c.bf16 %v7546, %v7546
        %v7555 = vpack.c.bf16 %v7549, %v7549
        %v7556 = vpack.c.bf16 %v7551, %v7551
        %7557 = vmatpush.bf16.msra.mxu0 0
        %7558 = vmatpush.bf16.msra.mxu0 0
        %7559 = vmatpush.bf16.msra.mxu0 0
        %7560 = vmatpush.bf16.msra.mxu0 0
        %7561 = vmatpush.bf16.msra.mxu0 0
        %7562 = vmatpush.bf16.msra.mxu0 %v6370
        %7563 = vmatpush.bf16.msra.mxu0 %v6365
        %7564 = vmatpush.bf16.msra.mxu0 %v6364
        %7565 = vmatmul.bf16.gmra.mxu0 %v7368
        %v7566 = vpop.f32.mrf.mxu0
        %v7567 = vadd.f32 0.0, %v7566
        %v7568 = vpop.f32.mrf.mxu0
        %v7569 = vadd.f32 0.0, %v7568
        %7570 = vmatmul.bf16.gmra.mxu0 %v7371
        %v7571 = vpop.f32.mrf.mxu0
        %v7572 = vadd.f32 0.0, %v7571
        %v7573 = vpop.f32.mrf.mxu0
        %v7574 = vadd.f32 0.0, %v7573
        %7575 = vdwg.mxu0
        %v7576 = vpack.c.bf16 %v7567, %v7567
        %v7577 = vpack.c.bf16 %v7569, %v7569
        %v7578 = vpack.c.bf16 %v7572, %v7572
        %v7579 = vpack.c.bf16 %v7574, %v7574
        %v7584 = vunpack.c.l.b16 %v7392
        %v7585 = vunpack.c.l.b16 %v7393
        %v7586 = vunpack.c.l.b16 %v7394
        %v7587 = vunpack.c.l.b16 %v7395
        %v7588 = vpack.c.b16 %v7585, %v7584
        %v7589 = vpack.c.b16 %v7587, %v7586
        %v7596 = vunpack.c.l.b16 %v7415
        %v7597 = vunpack.c.l.b16 %v7416
        %v7598 = vunpack.c.l.b16 %v7417
        %v7599 = vunpack.c.l.b16 %v7418
        %v7600 = vpack.c.b16 %v7597, %v7596
        %v7601 = vpack.c.b16 %v7599, %v7598
        %v7608 = vunpack.c.l.b16 %v7438
        %v7609 = vunpack.c.l.b16 %v7439
        %v7610 = vunpack.c.l.b16 %v7440
        %v7611 = vunpack.c.l.b16 %v7441
        %v7612 = vpack.c.b16 %v7609, %v7608
        %v7613 = vpack.c.b16 %v7611, %v7610
        %v7620 = vunpack.c.l.b16 %v7461
        %v7621 = vunpack.c.l.b16 %v7462
        %v7622 = vunpack.c.l.b16 %v7463
        %v7623 = vunpack.c.l.b16 %v7464
        %v7624 = vpack.c.b16 %v7621, %v7620
        %v7625 = vpack.c.b16 %v7623, %v7622
        %v7632 = vunpack.c.l.b16 %v7484
        %v7633 = vunpack.c.l.b16 %v7485
        %v7634 = vunpack.c.l.b16 %v7486
        %v7635 = vunpack.c.l.b16 %v7487
        %v7636 = vpack.c.b16 %v7633, %v7632
        %v7637 = vpack.c.b16 %v7635, %v7634
        %v7644 = vunpack.c.l.b16 %v7507
        %v7645 = vunpack.c.l.b16 %v7508
        %v7646 = vunpack.c.l.b16 %v7509
        %v7647 = vunpack.c.l.b16 %v7510
        %v7648 = vpack.c.b16 %v7645, %v7644
        %v7649 = vpack.c.b16 %v7647, %v7646
        %v7656 = vunpack.c.l.b16 %v7530
        %v7657 = vunpack.c.l.b16 %v7531
        %v7658 = vunpack.c.l.b16 %v7532
        %v7659 = vunpack.c.l.b16 %v7533
        %v7660 = vpack.c.b16 %v7657, %v7656
        %v7661 = vpack.c.b16 %v7659, %v7658
        %v7668 = vunpack.c.l.b16 %v7553
        %v7669 = vunpack.c.l.b16 %v7554
        %v7670 = vunpack.c.l.b16 %v7555
        %v7671 = vunpack.c.l.b16 %v7556
        %v7672 = vpack.c.b16 %v7669, %v7668
        %v7673 = vpack.c.b16 %v7671, %v7670
        %v7680 = vunpack.c.l.b16 %v7576
        %v7681 = vunpack.c.l.b16 %v7577
        %v7682 = vunpack.c.l.b16 %v7578
        %v7683 = vunpack.c.l.b16 %v7579
        %v7684 = vpack.c.b16 %v7681, %v7680
        %v7685 = vpack.c.b16 %v7683, %v7682
        %s7688 = scalar_lea.vmem %s2, 240
        %v7689 = vld [vmem:[%s7688] sm:$0xff]
        %v7690 = vld [vmem:[%s7688 + $0x8] sm:$0xf]
        %v7691 = vld [vmem:[%s7688 + $0xc] sm:$0xff]
        %v7692 = vld [vmem:[%s7688 + $0x14] sm:$0xf]
        %v7693 = vld [vmem:[%s7688 + $0x18] sm:$0xff]
        %v7694 = vld [vmem:[%s7688 + $0x20] sm:$0xf]
        %v7695 = vld [vmem:[%s7688 + $0x24] sm:$0xff]
        %v7696 = vld [vmem:[%s7688 + $0x2c] sm:$0xf]
        %v7705 = vunpack.c.l.b16 %v7689
        %v7706 = vunpack.c.h.b16 %v7689
        %v7707 = vunpack.c.l.b16 %v7690
        %v7708 = vunpack.c.l.b16 %v7691
        %v7709 = vunpack.c.h.b16 %v7691
        %v7710 = vunpack.c.l.b16 %v7692
        %v7711 = vunpack.c.l.b16 %v7693
        %v7712 = vunpack.c.h.b16 %v7693
        %v7713 = vunpack.c.l.b16 %v7694
        %v7714 = vunpack.c.l.b16 %v7695
        %v7715 = vunpack.c.h.b16 %v7695
        %v7716 = vunpack.c.l.b16 %v7696
        %v7717 = vpack.c.b16 %v7708, %v7705
        %v7718 = vpack.c.b16 %v7709, %v7706
        %v7719 = vpack.c.b16 %v7710, %v7707
        %v7720 = vpack.c.b16 %v7714, %v7711
        %v7721 = vpack.c.b16 %v7715, %v7712
        %v7722 = vpack.c.b16 %v7716, %v7713
        %v7728 = vsel %vm2302, %v7719, 0
        %v7731 = vsel %vm2302, %v7722, 0
        %7733 = vmatpush.bf16.msra.mxu0 %v7625
        %7734 = vmatpush.bf16.msra.mxu0 %v7624
        %7735 = vmatpush.bf16.msra.mxu0 %v7613
        %7736 = vmatpush.bf16.msra.mxu0 %v7612
        %7737 = vmatpush.bf16.msra.mxu0 %v7601
        %7738 = vmatpush.bf16.msra.mxu0 %v7600
        %7739 = vmatpush.bf16.msra.mxu0 %v7589
        %7740 = vmatpush.bf16.msra.mxu0 %v7588
        %7741 = vmatmul.bf16.gmra.mxu0 %v7717
        %v7742 = vpop.f32.mrf.mxu0
        %v7743 = vadd.f32 0.0, %v7742
        %v7744 = vpop.f32.mrf.mxu0
        %v7745 = vadd.f32 0.0, %v7744
        %7746 = vmatmul.bf16.gmra.mxu0 %v7720
        %v7747 = vpop.f32.mrf.mxu0
        %v7748 = vadd.f32 0.0, %v7747
        %v7749 = vpop.f32.mrf.mxu0
        %v7750 = vadd.f32 0.0, %v7749
        %7751 = vdwg.mxu0
        %7752 = vmatpush.bf16.msra.mxu0 %v7673
        %7753 = vmatpush.bf16.msra.mxu0 %v7672
        %7754 = vmatpush.bf16.msra.mxu0 %v7661
        %7755 = vmatpush.bf16.msra.mxu0 %v7660
        %7756 = vmatpush.bf16.msra.mxu0 %v7649
        %7757 = vmatpush.bf16.msra.mxu0 %v7648
        %7758 = vmatpush.bf16.msra.mxu0 %v7637
        %7759 = vmatpush.bf16.msra.mxu0 %v7636
        %7760 = vmatmul.bf16.gmra.mxu0 %v7718
        %v7761 = vpop.f32.mrf.mxu0
        %v7762 = vadd.f32 %v7743, %v7761
        %v7763 = vpop.f32.mrf.mxu0
        %v7764 = vadd.f32 %v7745, %v7763
        %7765 = vmatmul.bf16.gmra.mxu0 %v7721
        %v7766 = vpop.f32.mrf.mxu0
        %v7767 = vadd.f32 %v7748, %v7766
        %v7768 = vpop.f32.mrf.mxu0
        %v7769 = vadd.f32 %v7750, %v7768
        %7770 = vdwg.mxu0
        %7771 = vmatpush.bf16.msra.mxu0 0
        %7772 = vmatpush.bf16.msra.mxu0 0
        %7773 = vmatpush.bf16.msra.mxu0 0
        %7774 = vmatpush.bf16.msra.mxu0 0
        %7775 = vmatpush.bf16.msra.mxu0 0
        %7776 = vmatpush.bf16.msra.mxu0 0
        %7777 = vmatpush.bf16.msra.mxu0 %v7685
        %7778 = vmatpush.bf16.msra.mxu0 %v7684
        %7779 = vmatmul.bf16.gmra.mxu0 %v7728
        %v7780 = vpop.f32.mrf.mxu0
        %v7781 = vadd.f32 %v7762, %v7780
        %v7782 = vpop.f32.mrf.mxu0
        %v7783 = vadd.f32 %v7764, %v7782
        %7784 = vmatmul.bf16.gmra.mxu0 %v7731
        %v7785 = vpop.f32.mrf.mxu0
        %v7786 = vadd.f32 %v7767, %v7785
        %v7787 = vpop.f32.mrf.mxu0
        %v7788 = vadd.f32 %v7769, %v7787
        %7789 = vdwg.mxu0
        %s7790 = scalar_lea.vmem %s3, 192
        %v7791 = vld [vmem:[%s7790] sm:$0xff]
        %v7792 = vld [vmem:[%s7790 + $0x8] sm:$0xff]
        %v7793 = vld [vmem:[%s7790 + $0x10] sm:$0xff]
        %v7794 = vld [vmem:[%s7790 + $0x18] sm:$0xff]
        %7796 = vset.pattern.permute.xlu0 0
        %7797 = vperm.xlu0 %7796, %v7791
        %v7798 = vpop.permute.xlu0 %7797
        %7801 = vset.pattern.permute.xlu0 0
        %7802 = vperm.xlu0 %7801, %v7792
        %v7803 = vpop.permute.xlu0 %7802
        %7806 = vset.pattern.permute.xlu0 0
        %7807 = vperm.xlu0 %7806, %v7793
        %v7808 = vpop.permute.xlu0 %7807
        %7811 = vset.pattern.permute.xlu0 0
        %7812 = vperm.xlu0 %7811, %v7794
        %v7813 = vpop.permute.xlu0 %7812
        %v7815 = vmul.f32 %v7781, %v7798
        %v7816 = vmul.f32 %v7783, %v7803
        %v7817 = vmul.f32 %v7786, %v7808
        %v7818 = vmul.f32 %v7788, %v7813
        %s7819 = scalar_lea.vmem %s4, 192
        %v7820 = vld [vmem:[%s7819] sm:$0xff]
        %v7821 = vld [vmem:[%s7819 + $0x8] sm:$0xff]
        %v7822 = vld [vmem:[%s7819 + $0x10] sm:$0xff]
        %v7823 = vld [vmem:[%s7819 + $0x18] sm:$0xff]
        %7825 = vset.pattern.permute.xlu0 0
        %7826 = vperm.xlu0 %7825, %v7820
        %v7827 = vpop.permute.xlu0 %7826
        %7830 = vset.pattern.permute.xlu0 0
        %7831 = vperm.xlu0 %7830, %v7821
        %v7832 = vpop.permute.xlu0 %7831
        %7835 = vset.pattern.permute.xlu0 0
        %7836 = vperm.xlu0 %7835, %v7822
        %v7837 = vpop.permute.xlu0 %7836
        %7840 = vset.pattern.permute.xlu0 0
        %7841 = vperm.xlu0 %7840, %v7823
        %v7842 = vpop.permute.xlu0 %7841
        %v7844 = vadd.f32 %v7815, %v7827
        %v7845 = vadd.f32 %v7816, %v7832
        %v7846 = vadd.f32 %v7817, %v7837
        %v7847 = vadd.f32 %v7818, %v7842
        %v7848 = vadd.f32 %v7844, %v6659
        %v7849 = vadd.f32 %v7845, %v6660
        %v7850 = vadd.f32 %v7846, %v6661
        %v7851 = vadd.f32 %v7847, %v6662
        %v7852 = vpack.c.bf16 %v7849, %v7848
        %v7853 = vpack.c.bf16 %v7851, %v7850
        %v7854 = vld [vmem:[#allocation9] sm:$0x3]
        %vm7855 = vcmask 31744
        %v7857 = vsel %vm7855, %v7852, 0
        %v7860 = vsel %vm7855, %v7853, 0
        %v7863 = vsel %vm5992, %v7854, 0
        %7865 = vmatpush.bf16.msra.mxu0 0
        %7866 = vmatpush.bf16.msra.mxu0 0
        %7867 = vmatpush.bf16.msra.mxu0 0
        %7868 = vmatpush.bf16.msra.mxu0 0
        %7869 = vmatpush.bf16.msra.mxu0 0
        %7870 = vmatpush.bf16.msra.mxu0 0
        %7871 = vmatpush.bf16.msra.mxu0 0
        %7872 = vmatpush.bf16.msra.mxu0 %v7863
        %7873 = vmatmul.bf16.gmra.mxu0 %v7857
        %v7874 = vpop.f32.mrf.mxu0
        %v7875 = vadd.f32 0.0, %v7874
        %v7876 = vpop.f32.mrf.mxu0
        %v7877 = vadd.f32 0.0, %v7876
        %7878 = vmatmul.bf16.gmra.mxu0 %v7860
        %v7879 = vpop.f32.mrf.mxu0
        %v7880 = vadd.f32 0.0, %v7879
        %v7881 = vpop.f32.mrf.mxu0
        %v7882 = vadd.f32 0.0, %v7881
        %7883 = vdwg.mxu0
        %v7884 = vpack.c.bf16 %v7875, %v7875
        %v7885 = vpack.c.bf16 %v7877, %v7877
        %v7886 = vpack.c.bf16 %v7880, %v7880
        %v7887 = vpack.c.bf16 %v7882, %v7882
        %s7888 = scalar_lea.vmem [#allocation9], 2
        %v7889 = vld [vmem:[%s7888] sm:$0x3]
        %v7891 = vsel %vm5992, %v7889, 0
        %7893 = vmatpush.bf16.msra.mxu0 0
        %7894 = vmatpush.bf16.msra.mxu0 0
        %7895 = vmatpush.bf16.msra.mxu0 0
        %7896 = vmatpush.bf16.msra.mxu0 0
        %7897 = vmatpush.bf16.msra.mxu0 0
        %7898 = vmatpush.bf16.msra.mxu0 0
        %7899 = vmatpush.bf16.msra.mxu0 0
        %7900 = vmatpush.bf16.msra.mxu0 %v7891
        %7901 = vmatmul.bf16.gmra.mxu0 %v7857
        %v7902 = vpop.f32.mrf.mxu0
        %v7903 = vadd.f32 0.0, %v7902
        %v7904 = vpop.f32.mrf.mxu0
        %v7905 = vadd.f32 0.0, %v7904
        %7906 = vmatmul.bf16.gmra.mxu0 %v7860
        %v7907 = vpop.f32.mrf.mxu0
        %v7908 = vadd.f32 0.0, %v7907
        %v7909 = vpop.f32.mrf.mxu0
        %v7910 = vadd.f32 0.0, %v7909
        %7911 = vdwg.mxu0
        %v7912 = vpack.c.bf16 %v7903, %v7903
        %v7913 = vpack.c.bf16 %v7905, %v7905
        %v7914 = vpack.c.bf16 %v7908, %v7908
        %v7915 = vpack.c.bf16 %v7910, %v7910
        %s7916 = scalar_lea.vmem [#allocation9], 4
        %v7917 = vld [vmem:[%s7916] sm:$0x3]
        %v7919 = vsel %vm5992, %v7917, 0
        %7921 = vmatpush.bf16.msra.mxu0 0
        %7922 = vmatpush.bf16.msra.mxu0 0
        %7923 = vmatpush.bf16.msra.mxu0 0
        %7924 = vmatpush.bf16.msra.mxu0 0
        %7925 = vmatpush.bf16.msra.mxu0 0
        %7926 = vmatpush.bf16.msra.mxu0 0
        %7927 = vmatpush.bf16.msra.mxu0 0
        %7928 = vmatpush.bf16.msra.mxu0 %v7919
        %7929 = vmatmul.bf16.gmra.mxu0 %v7857
        %v7930 = vpop.f32.mrf.mxu0
        %v7931 = vadd.f32 0.0, %v7930
        %v7932 = vpop.f32.mrf.mxu0
        %v7933 = vadd.f32 0.0, %v7932
        %7934 = vmatmul.bf16.gmra.mxu0 %v7860
        %v7935 = vpop.f32.mrf.mxu0
        %v7936 = vadd.f32 0.0, %v7935
        %v7937 = vpop.f32.mrf.mxu0
        %v7938 = vadd.f32 0.0, %v7937
        %7939 = vdwg.mxu0
        %v7940 = vpack.c.bf16 %v7931, %v7931
        %v7941 = vpack.c.bf16 %v7933, %v7933
        %v7942 = vpack.c.bf16 %v7936, %v7936
        %v7943 = vpack.c.bf16 %v7938, %v7938
        %s7944 = scalar_lea.vmem [#allocation9], 6
        %v7945 = vld [vmem:[%s7944] sm:$0x3]
        %v7947 = vsel %vm5992, %v7945, 0
        %7949 = vmatpush.bf16.msra.mxu0 0
        %7950 = vmatpush.bf16.msra.mxu0 0
        %7951 = vmatpush.bf16.msra.mxu0 0
        %7952 = vmatpush.bf16.msra.mxu0 0
        %7953 = vmatpush.bf16.msra.mxu0 0
        %7954 = vmatpush.bf16.msra.mxu0 0
        %7955 = vmatpush.bf16.msra.mxu0 0
        %7956 = vmatpush.bf16.msra.mxu0 %v7947
        %7957 = vmatmul.bf16.gmra.mxu0 %v7857
        %v7958 = vpop.f32.mrf.mxu0
        %v7959 = vadd.f32 0.0, %v7958
        %v7960 = vpop.f32.mrf.mxu0
        %v7961 = vadd.f32 0.0, %v7960
        %7962 = vmatmul.bf16.gmra.mxu0 %v7860
        %v7963 = vpop.f32.mrf.mxu0
        %v7964 = vadd.f32 0.0, %v7963
        %v7965 = vpop.f32.mrf.mxu0
        %v7966 = vadd.f32 0.0, %v7965
        %7967 = vdwg.mxu0
        %v7968 = vpack.c.bf16 %v7959, %v7959
        %v7969 = vpack.c.bf16 %v7961, %v7961
        %v7970 = vpack.c.bf16 %v7964, %v7964
        %v7971 = vpack.c.bf16 %v7966, %v7966
        %s7972 = scalar_lea.vmem [#allocation9], 8
        %v7973 = vld [vmem:[%s7972] sm:$0x3]
        %v7975 = vsel %vm5992, %v7973, 0
        %7977 = vmatpush.bf16.msra.mxu0 0
        %7978 = vmatpush.bf16.msra.mxu0 0
        %7979 = vmatpush.bf16.msra.mxu0 0
        %7980 = vmatpush.bf16.msra.mxu0 0
        %7981 = vmatpush.bf16.msra.mxu0 0
        %7982 = vmatpush.bf16.msra.mxu0 0
        %7983 = vmatpush.bf16.msra.mxu0 0
        %7984 = vmatpush.bf16.msra.mxu0 %v7975
        %7985 = vmatmul.bf16.gmra.mxu0 %v7857
        %v7986 = vpop.f32.mrf.mxu0
        %v7987 = vadd.f32 0.0, %v7986
        %v7988 = vpop.f32.mrf.mxu0
        %v7989 = vadd.f32 0.0, %v7988
        %7990 = vmatmul.bf16.gmra.mxu0 %v7860
        %v7991 = vpop.f32.mrf.mxu0
        %v7992 = vadd.f32 0.0, %v7991
        %v7993 = vpop.f32.mrf.mxu0
        %v7994 = vadd.f32 0.0, %v7993
        %7995 = vdwg.mxu0
        %v7996 = vpack.c.bf16 %v7987, %v7987
        %v7997 = vpack.c.bf16 %v7989, %v7989
        %v7998 = vpack.c.bf16 %v7992, %v7992
        %v7999 = vpack.c.bf16 %v7994, %v7994
        %s8000 = scalar_lea.vmem [#allocation9], 10
        %v8001 = vld [vmem:[%s8000] sm:$0x3]
        %v8003 = vsel %vm5992, %v8001, 0
        %8005 = vmatpush.bf16.msra.mxu0 0
        %8006 = vmatpush.bf16.msra.mxu0 0
        %8007 = vmatpush.bf16.msra.mxu0 0
        %8008 = vmatpush.bf16.msra.mxu0 0
        %8009 = vmatpush.bf16.msra.mxu0 0
        %8010 = vmatpush.bf16.msra.mxu0 0
        %8011 = vmatpush.bf16.msra.mxu0 0
        %8012 = vmatpush.bf16.msra.mxu0 %v8003
        %8013 = vmatmul.bf16.gmra.mxu0 %v7857
        %v8014 = vpop.f32.mrf.mxu0
        %v8015 = vadd.f32 0.0, %v8014
        %v8016 = vpop.f32.mrf.mxu0
        %v8017 = vadd.f32 0.0, %v8016
        %8018 = vmatmul.bf16.gmra.mxu0 %v7860
        %v8019 = vpop.f32.mrf.mxu0
        %v8020 = vadd.f32 0.0, %v8019
        %v8021 = vpop.f32.mrf.mxu0
        %v8022 = vadd.f32 0.0, %v8021
        %8023 = vdwg.mxu0
        %v8024 = vpack.c.bf16 %v8015, %v8015
        %v8025 = vpack.c.bf16 %v8017, %v8017
        %v8026 = vpack.c.bf16 %v8020, %v8020
        %v8027 = vpack.c.bf16 %v8022, %v8022
        %s8028 = scalar_lea.vmem [#allocation9], 12
        %v8029 = vld [vmem:[%s8028] sm:$0x3]
        %v8031 = vsel %vm5992, %v8029, 0
        %8033 = vmatpush.bf16.msra.mxu0 0
        %8034 = vmatpush.bf16.msra.mxu0 0
        %8035 = vmatpush.bf16.msra.mxu0 0
        %8036 = vmatpush.bf16.msra.mxu0 0
        %8037 = vmatpush.bf16.msra.mxu0 0
        %8038 = vmatpush.bf16.msra.mxu0 0
        %8039 = vmatpush.bf16.msra.mxu0 0
        %8040 = vmatpush.bf16.msra.mxu0 %v8031
        %8041 = vmatmul.bf16.gmra.mxu0 %v7857
        %v8042 = vpop.f32.mrf.mxu0
        %v8043 = vadd.f32 0.0, %v8042
        %v8044 = vpop.f32.mrf.mxu0
        %v8045 = vadd.f32 0.0, %v8044
        %8046 = vmatmul.bf16.gmra.mxu0 %v7860
        %v8047 = vpop.f32.mrf.mxu0
        %v8048 = vadd.f32 0.0, %v8047
        %v8049 = vpop.f32.mrf.mxu0
        %v8050 = vadd.f32 0.0, %v8049
        %8051 = vdwg.mxu0
        %v8052 = vpack.c.bf16 %v8043, %v8043
        %v8053 = vpack.c.bf16 %v8045, %v8045
        %v8054 = vpack.c.bf16 %v8048, %v8048
        %v8055 = vpack.c.bf16 %v8050, %v8050
        %s8056 = scalar_lea.vmem [#allocation9], 14
        %v8057 = vld [vmem:[%s8056] sm:$0x3]
        %v8059 = vsel %vm5992, %v8057, 0
        %8061 = vmatpush.bf16.msra.mxu0 0
        %8062 = vmatpush.bf16.msra.mxu0 0
        %8063 = vmatpush.bf16.msra.mxu0 0
        %8064 = vmatpush.bf16.msra.mxu0 0
        %8065 = vmatpush.bf16.msra.mxu0 0
        %8066 = vmatpush.bf16.msra.mxu0 0
        %8067 = vmatpush.bf16.msra.mxu0 0
        %8068 = vmatpush.bf16.msra.mxu0 %v8059
        %8069 = vmatmul.bf16.gmra.mxu0 %v7857
        %v8070 = vpop.f32.mrf.mxu0
        %v8071 = vadd.f32 0.0, %v8070
        %v8072 = vpop.f32.mrf.mxu0
        %v8073 = vadd.f32 0.0, %v8072
        %8074 = vmatmul.bf16.gmra.mxu0 %v7860
        %v8075 = vpop.f32.mrf.mxu0
        %v8076 = vadd.f32 0.0, %v8075
        %v8077 = vpop.f32.mrf.mxu0
        %v8078 = vadd.f32 0.0, %v8077
        %8079 = vdwg.mxu0
        %v8080 = vpack.c.bf16 %v8071, %v8071
        %v8081 = vpack.c.bf16 %v8073, %v8073
        %v8082 = vpack.c.bf16 %v8076, %v8076
        %v8083 = vpack.c.bf16 %v8078, %v8078
        %s8084 = scalar_lea.vmem [#allocation9], 16
        %v8085 = vld [vmem:[%s8084] sm:$0x3]
        %v8087 = vsel %vm5992, %v8085, 0
        %8089 = vmatpush.bf16.msra.mxu0 0
        %8090 = vmatpush.bf16.msra.mxu0 0
        %8091 = vmatpush.bf16.msra.mxu0 0
        %8092 = vmatpush.bf16.msra.mxu0 0
        %8093 = vmatpush.bf16.msra.mxu0 0
        %8094 = vmatpush.bf16.msra.mxu0 0
        %8095 = vmatpush.bf16.msra.mxu0 0
        %8096 = vmatpush.bf16.msra.mxu0 %v8087
        %8097 = vmatmul.bf16.gmra.mxu0 %v7857
        %v8098 = vpop.f32.mrf.mxu0
        %v8099 = vadd.f32 0.0, %v8098
        %v8100 = vpop.f32.mrf.mxu0
        %v8101 = vadd.f32 0.0, %v8100
        %8102 = vmatmul.bf16.gmra.mxu0 %v7860
        %v8103 = vpop.f32.mrf.mxu0
        %v8104 = vadd.f32 0.0, %v8103
        %v8105 = vpop.f32.mrf.mxu0
        %v8106 = vadd.f32 0.0, %v8105
        %8107 = vdwg.mxu0
        %v8108 = vpack.c.bf16 %v8099, %v8099
        %v8109 = vpack.c.bf16 %v8101, %v8101
        %v8110 = vpack.c.bf16 %v8104, %v8104
        %v8111 = vpack.c.bf16 %v8106, %v8106
        %v8116 = vunpack.c.l.b16 %v7884
        %v8117 = vunpack.c.l.b16 %v7885
        %v8118 = vunpack.c.l.b16 %v7886
        %v8119 = vunpack.c.l.b16 %v7887
        %v8120 = vpack.c.b16 %v8117, %v8116
        %v8121 = vpack.c.b16 %v8119, %v8118
        %v8128 = vunpack.c.l.b16 %v7912
        %v8129 = vunpack.c.l.b16 %v7913
        %v8130 = vunpack.c.l.b16 %v7914
        %v8131 = vunpack.c.l.b16 %v7915
        %v8132 = vpack.c.b16 %v8129, %v8128
        %v8133 = vpack.c.b16 %v8131, %v8130
        %v8140 = vunpack.c.l.b16 %v7940
        %v8141 = vunpack.c.l.b16 %v7941
        %v8142 = vunpack.c.l.b16 %v7942
        %v8143 = vunpack.c.l.b16 %v7943
        %v8144 = vpack.c.b16 %v8141, %v8140
        %v8145 = vpack.c.b16 %v8143, %v8142
        %v8152 = vunpack.c.l.b16 %v7968
        %v8153 = vunpack.c.l.b16 %v7969
        %v8154 = vunpack.c.l.b16 %v7970
        %v8155 = vunpack.c.l.b16 %v7971
        %v8156 = vpack.c.b16 %v8153, %v8152
        %v8157 = vpack.c.b16 %v8155, %v8154
        %v8164 = vunpack.c.l.b16 %v7996
        %v8165 = vunpack.c.l.b16 %v7997
        %v8166 = vunpack.c.l.b16 %v7998
        %v8167 = vunpack.c.l.b16 %v7999
        %v8168 = vpack.c.b16 %v8165, %v8164
        %v8169 = vpack.c.b16 %v8167, %v8166
        %v8176 = vunpack.c.l.b16 %v8024
        %v8177 = vunpack.c.l.b16 %v8025
        %v8178 = vunpack.c.l.b16 %v8026
        %v8179 = vunpack.c.l.b16 %v8027
        %v8180 = vpack.c.b16 %v8177, %v8176
        %v8181 = vpack.c.b16 %v8179, %v8178
        %v8188 = vunpack.c.l.b16 %v8052
        %v8189 = vunpack.c.l.b16 %v8053
        %v8190 = vunpack.c.l.b16 %v8054
        %v8191 = vunpack.c.l.b16 %v8055
        %v8192 = vpack.c.b16 %v8189, %v8188
        %v8193 = vpack.c.b16 %v8191, %v8190
        %v8200 = vunpack.c.l.b16 %v8080
        %v8201 = vunpack.c.l.b16 %v8081
        %v8202 = vunpack.c.l.b16 %v8082
        %v8203 = vunpack.c.l.b16 %v8083
        %v8204 = vpack.c.b16 %v8201, %v8200
        %v8205 = vpack.c.b16 %v8203, %v8202
        %v8212 = vunpack.c.l.b16 %v8108
        %v8213 = vunpack.c.l.b16 %v8109
        %v8214 = vunpack.c.l.b16 %v8110
        %v8215 = vunpack.c.l.b16 %v8111
        %v8216 = vpack.c.b16 %v8213, %v8212
        %v8217 = vpack.c.b16 %v8215, %v8214
        %s8220 = scalar_lea.vmem %s2, 288
        %v8221 = vld [vmem:[%s8220] sm:$0xff]
        %v8222 = vld [vmem:[%s8220 + $0x8] sm:$0xf]
        %v8223 = vld [vmem:[%s8220 + $0xc] sm:$0xff]
        %v8224 = vld [vmem:[%s8220 + $0x14] sm:$0xf]
        %v8225 = vld [vmem:[%s8220 + $0x18] sm:$0xff]
        %v8226 = vld [vmem:[%s8220 + $0x20] sm:$0xf]
        %v8227 = vld [vmem:[%s8220 + $0x24] sm:$0xff]
        %v8228 = vld [vmem:[%s8220 + $0x2c] sm:$0xf]
        %v8237 = vunpack.c.l.b16 %v8221
        %v8238 = vunpack.c.h.b16 %v8221
        %v8239 = vunpack.c.l.b16 %v8222
        %v8240 = vunpack.c.l.b16 %v8223
        %v8241 = vunpack.c.h.b16 %v8223
        %v8242 = vunpack.c.l.b16 %v8224
        %v8243 = vunpack.c.l.b16 %v8225
        %v8244 = vunpack.c.h.b16 %v8225
        %v8245 = vunpack.c.l.b16 %v8226
        %v8246 = vunpack.c.l.b16 %v8227
        %v8247 = vunpack.c.h.b16 %v8227
        %v8248 = vunpack.c.l.b16 %v8228
        %v8249 = vpack.c.b16 %v8240, %v8237
        %v8250 = vpack.c.b16 %v8241, %v8238
        %v8251 = vpack.c.b16 %v8242, %v8239
        %v8252 = vpack.c.b16 %v8246, %v8243
        %v8253 = vpack.c.b16 %v8247, %v8244
        %v8254 = vpack.c.b16 %v8248, %v8245
        %v8260 = vsel %vm2302, %v8251, 0
        %v8263 = vsel %vm2302, %v8254, 0
        %8265 = vmatpush.bf16.msra.mxu0 %v8157
        %8266 = vmatpush.bf16.msra.mxu0 %v8156
        %8267 = vmatpush.bf16.msra.mxu0 %v8145
        %8268 = vmatpush.bf16.msra.mxu0 %v8144
        %8269 = vmatpush.bf16.msra.mxu0 %v8133
        %8270 = vmatpush.bf16.msra.mxu0 %v8132
        %8271 = vmatpush.bf16.msra.mxu0 %v8121
        %8272 = vmatpush.bf16.msra.mxu0 %v8120
        %8273 = vmatmul.bf16.gmra.mxu0 %v8249
        %v8274 = vpop.f32.mrf.mxu0
        %v8275 = vadd.f32 0.0, %v8274
        %v8276 = vpop.f32.mrf.mxu0
        %v8277 = vadd.f32 0.0, %v8276
        %8278 = vmatmul.bf16.gmra.mxu0 %v8252
        %v8279 = vpop.f32.mrf.mxu0
        %v8280 = vadd.f32 0.0, %v8279
        %v8281 = vpop.f32.mrf.mxu0
        %v8282 = vadd.f32 0.0, %v8281
        %8283 = vdwg.mxu0
        %8284 = vmatpush.bf16.msra.mxu0 %v8205
        %8285 = vmatpush.bf16.msra.mxu0 %v8204
        %8286 = vmatpush.bf16.msra.mxu0 %v8193
        %8287 = vmatpush.bf16.msra.mxu0 %v8192
        %8288 = vmatpush.bf16.msra.mxu0 %v8181
        %8289 = vmatpush.bf16.msra.mxu0 %v8180
        %8290 = vmatpush.bf16.msra.mxu0 %v8169
        %8291 = vmatpush.bf16.msra.mxu0 %v8168
        %8292 = vmatmul.bf16.gmra.mxu0 %v8250
        %v8293 = vpop.f32.mrf.mxu0
        %v8294 = vadd.f32 %v8275, %v8293
        %v8295 = vpop.f32.mrf.mxu0
        %v8296 = vadd.f32 %v8277, %v8295
        %8297 = vmatmul.bf16.gmra.mxu0 %v8253
        %v8298 = vpop.f32.mrf.mxu0
        %v8299 = vadd.f32 %v8280, %v8298
        %v8300 = vpop.f32.mrf.mxu0
        %v8301 = vadd.f32 %v8282, %v8300
        %8302 = vdwg.mxu0
        %8303 = vmatpush.bf16.msra.mxu0 0
        %8304 = vmatpush.bf16.msra.mxu0 0
        %8305 = vmatpush.bf16.msra.mxu0 0
        %8306 = vmatpush.bf16.msra.mxu0 0
        %8307 = vmatpush.bf16.msra.mxu0 0
        %8308 = vmatpush.bf16.msra.mxu0 0
        %8309 = vmatpush.bf16.msra.mxu0 %v8217
        %8310 = vmatpush.bf16.msra.mxu0 %v8216
        %8311 = vmatmul.bf16.gmra.mxu0 %v8260
        %v8312 = vpop.f32.mrf.mxu0
        %v8313 = vadd.f32 %v8294, %v8312
        %v8314 = vpop.f32.mrf.mxu0
        %v8315 = vadd.f32 %v8296, %v8314
        %8316 = vmatmul.bf16.gmra.mxu0 %v8263
        %v8317 = vpop.f32.mrf.mxu0
        %v8318 = vadd.f32 %v8299, %v8317
        %v8319 = vpop.f32.mrf.mxu0
        %v8320 = vadd.f32 %v8301, %v8319
        %8321 = vdwg.mxu0
        %s8322 = scalar_lea.vmem %s3, 224
        %v8323 = vld [vmem:[%s8322] sm:$0xff]
        %v8324 = vld [vmem:[%s8322 + $0x8] sm:$0xff]
        %v8325 = vld [vmem:[%s8322 + $0x10] sm:$0xff]
        %v8326 = vld [vmem:[%s8322 + $0x18] sm:$0xff]
        %v8327 = vmul.f32 %v8313, %v8323
        %v8328 = vmul.f32 %v8315, %v8324
        %v8329 = vmul.f32 %v8318, %v8325
        %v8330 = vmul.f32 %v8320, %v8326
        %s8331 = scalar_lea.vmem %s4, 224
        %v8332 = vld [vmem:[%s8331] sm:$0xff]
        %v8333 = vld [vmem:[%s8331 + $0x8] sm:$0xff]
        %v8334 = vld [vmem:[%s8331 + $0x10] sm:$0xff]
        %v8335 = vld [vmem:[%s8331 + $0x18] sm:$0xff]
        %v8336 = vadd.f32 %v8327, %v8332
        %v8337 = vadd.f32 %v8328, %v8333
        %v8338 = vadd.f32 %v8329, %v8334
        %v8339 = vadd.f32 %v8330, %v8335
        %v8340 = vld [vmem:[#allocation7] sm:$0x3]
        %v8342 = vsel %vm5992, %v8340, 0
        %8344 = vmatpush.bf16.msra.mxu0 0
        %8345 = vmatpush.bf16.msra.mxu0 0
        %8346 = vmatpush.bf16.msra.mxu0 0
        %8347 = vmatpush.bf16.msra.mxu0 0
        %8348 = vmatpush.bf16.msra.mxu0 0
        %8349 = vmatpush.bf16.msra.mxu0 0
        %8350 = vmatpush.bf16.msra.mxu0 0
        %8351 = vmatpush.bf16.msra.mxu0 %v8342
        %8352 = vmatmul.bf16.gmra.mxu0 %v7857
        %v8353 = vpop.f32.mrf.mxu0
        %v8354 = vadd.f32 0.0, %v8353
        %v8355 = vpop.f32.mrf.mxu0
        %v8356 = vadd.f32 0.0, %v8355
        %8357 = vmatmul.bf16.gmra.mxu0 %v7860
        %v8358 = vpop.f32.mrf.mxu0
        %v8359 = vadd.f32 0.0, %v8358
        %v8360 = vpop.f32.mrf.mxu0
        %v8361 = vadd.f32 0.0, %v8360
        %8362 = vdwg.mxu0
        %v8363 = vpack.c.bf16 %v8354, %v8354
        %v8364 = vpack.c.bf16 %v8356, %v8356
        %v8365 = vpack.c.bf16 %v8359, %v8359
        %v8366 = vpack.c.bf16 %v8361, %v8361
        %s8367 = scalar_lea.vmem [#allocation7], 2
        %v8368 = vld [vmem:[%s8367] sm:$0x3]
        %v8370 = vsel %vm5992, %v8368, 0
        %8372 = vmatpush.bf16.msra.mxu0 0
        %8373 = vmatpush.bf16.msra.mxu0 0
        %8374 = vmatpush.bf16.msra.mxu0 0
        %8375 = vmatpush.bf16.msra.mxu0 0
        %8376 = vmatpush.bf16.msra.mxu0 0
        %8377 = vmatpush.bf16.msra.mxu0 0
        %8378 = vmatpush.bf16.msra.mxu0 0
        %8379 = vmatpush.bf16.msra.mxu0 %v8370
        %8380 = vmatmul.bf16.gmra.mxu0 %v7857
        %v8381 = vpop.f32.mrf.mxu0
        %v8382 = vadd.f32 0.0, %v8381
        %v8383 = vpop.f32.mrf.mxu0
        %v8384 = vadd.f32 0.0, %v8383
        %8385 = vmatmul.bf16.gmra.mxu0 %v7860
        %v8386 = vpop.f32.mrf.mxu0
        %v8387 = vadd.f32 0.0, %v8386
        %v8388 = vpop.f32.mrf.mxu0
        %v8389 = vadd.f32 0.0, %v8388
        %8390 = vdwg.mxu0
        %v8391 = vpack.c.bf16 %v8382, %v8382
        %v8392 = vpack.c.bf16 %v8384, %v8384
        %v8393 = vpack.c.bf16 %v8387, %v8387
        %v8394 = vpack.c.bf16 %v8389, %v8389
        %s8395 = scalar_lea.vmem [#allocation7], 4
        %v8396 = vld [vmem:[%s8395] sm:$0x3]
        %v8398 = vsel %vm5992, %v8396, 0
        %8400 = vmatpush.bf16.msra.mxu0 0
        %8401 = vmatpush.bf16.msra.mxu0 0
        %8402 = vmatpush.bf16.msra.mxu0 0
        %8403 = vmatpush.bf16.msra.mxu0 0
        %8404 = vmatpush.bf16.msra.mxu0 0
        %8405 = vmatpush.bf16.msra.mxu0 0
        %8406 = vmatpush.bf16.msra.mxu0 0
        %8407 = vmatpush.bf16.msra.mxu0 %v8398
        %8408 = vmatmul.bf16.gmra.mxu0 %v7857
        %v8409 = vpop.f32.mrf.mxu0
        %v8410 = vadd.f32 0.0, %v8409
        %v8411 = vpop.f32.mrf.mxu0
        %v8412 = vadd.f32 0.0, %v8411
        %8413 = vmatmul.bf16.gmra.mxu0 %v7860
        %v8414 = vpop.f32.mrf.mxu0
        %v8415 = vadd.f32 0.0, %v8414
        %v8416 = vpop.f32.mrf.mxu0
        %v8417 = vadd.f32 0.0, %v8416
        %8418 = vdwg.mxu0
        %v8419 = vpack.c.bf16 %v8410, %v8410
        %v8420 = vpack.c.bf16 %v8412, %v8412
        %v8421 = vpack.c.bf16 %v8415, %v8415
        %v8422 = vpack.c.bf16 %v8417, %v8417
        %s8423 = scalar_lea.vmem [#allocation7], 6
        %v8424 = vld [vmem:[%s8423] sm:$0x3]
        %v8426 = vsel %vm5992, %v8424, 0
        %8428 = vmatpush.bf16.msra.mxu0 0
        %8429 = vmatpush.bf16.msra.mxu0 0
        %8430 = vmatpush.bf16.msra.mxu0 0
        %8431 = vmatpush.bf16.msra.mxu0 0
        %8432 = vmatpush.bf16.msra.mxu0 0
        %8433 = vmatpush.bf16.msra.mxu0 0
        %8434 = vmatpush.bf16.msra.mxu0 0
        %8435 = vmatpush.bf16.msra.mxu0 %v8426
        %8436 = vmatmul.bf16.gmra.mxu0 %v7857
        %v8437 = vpop.f32.mrf.mxu0
        %v8438 = vadd.f32 0.0, %v8437
        %v8439 = vpop.f32.mrf.mxu0
        %v8440 = vadd.f32 0.0, %v8439
        %8441 = vmatmul.bf16.gmra.mxu0 %v7860
        %v8442 = vpop.f32.mrf.mxu0
        %v8443 = vadd.f32 0.0, %v8442
        %v8444 = vpop.f32.mrf.mxu0
        %v8445 = vadd.f32 0.0, %v8444
        %8446 = vdwg.mxu0
        %v8447 = vpack.c.bf16 %v8438, %v8438
        %v8448 = vpack.c.bf16 %v8440, %v8440
        %v8449 = vpack.c.bf16 %v8443, %v8443
        %v8450 = vpack.c.bf16 %v8445, %v8445
        %s8451 = scalar_lea.vmem [#allocation7], 8
        %v8452 = vld [vmem:[%s8451] sm:$0x3]
        %v8454 = vsel %vm5992, %v8452, 0
        %8456 = vmatpush.bf16.msra.mxu0 0
        %8457 = vmatpush.bf16.msra.mxu0 0
        %8458 = vmatpush.bf16.msra.mxu0 0
        %8459 = vmatpush.bf16.msra.mxu0 0
        %8460 = vmatpush.bf16.msra.mxu0 0
        %8461 = vmatpush.bf16.msra.mxu0 0
        %8462 = vmatpush.bf16.msra.mxu0 0
        %8463 = vmatpush.bf16.msra.mxu0 %v8454
        %8464 = vmatmul.bf16.gmra.mxu0 %v7857
        %v8465 = vpop.f32.mrf.mxu0
        %v8466 = vadd.f32 0.0, %v8465
        %v8467 = vpop.f32.mrf.mxu0
        %v8468 = vadd.f32 0.0, %v8467
        %8469 = vmatmul.bf16.gmra.mxu0 %v7860
        %v8470 = vpop.f32.mrf.mxu0
        %v8471 = vadd.f32 0.0, %v8470
        %v8472 = vpop.f32.mrf.mxu0
        %v8473 = vadd.f32 0.0, %v8472
        %8474 = vdwg.mxu0
        %v8475 = vpack.c.bf16 %v8466, %v8466
        %v8476 = vpack.c.bf16 %v8468, %v8468
        %v8477 = vpack.c.bf16 %v8471, %v8471
        %v8478 = vpack.c.bf16 %v8473, %v8473
        %s8479 = scalar_lea.vmem [#allocation7], 10
        %v8480 = vld [vmem:[%s8479] sm:$0x3]
        %v8482 = vsel %vm5992, %v8480, 0
        %8484 = vmatpush.bf16.msra.mxu0 0
        %8485 = vmatpush.bf16.msra.mxu0 0
        %8486 = vmatpush.bf16.msra.mxu0 0
        %8487 = vmatpush.bf16.msra.mxu0 0
        %8488 = vmatpush.bf16.msra.mxu0 0
        %8489 = vmatpush.bf16.msra.mxu0 0
        %8490 = vmatpush.bf16.msra.mxu0 0
        %8491 = vmatpush.bf16.msra.mxu0 %v8482
        %8492 = vmatmul.bf16.gmra.mxu0 %v7857
        %v8493 = vpop.f32.mrf.mxu0
        %v8494 = vadd.f32 0.0, %v8493
        %v8495 = vpop.f32.mrf.mxu0
        %v8496 = vadd.f32 0.0, %v8495
        %8497 = vmatmul.bf16.gmra.mxu0 %v7860
        %v8498 = vpop.f32.mrf.mxu0
        %v8499 = vadd.f32 0.0, %v8498
        %v8500 = vpop.f32.mrf.mxu0
        %v8501 = vadd.f32 0.0, %v8500
        %8502 = vdwg.mxu0
        %v8503 = vpack.c.bf16 %v8494, %v8494
        %v8504 = vpack.c.bf16 %v8496, %v8496
        %v8505 = vpack.c.bf16 %v8499, %v8499
        %v8506 = vpack.c.bf16 %v8501, %v8501
        %s8507 = scalar_lea.vmem [#allocation7], 12
        %v8508 = vld [vmem:[%s8507] sm:$0x3]
        %v8510 = vsel %vm5992, %v8508, 0
        %8512 = vmatpush.bf16.msra.mxu0 0
        %8513 = vmatpush.bf16.msra.mxu0 0
        %8514 = vmatpush.bf16.msra.mxu0 0
        %8515 = vmatpush.bf16.msra.mxu0 0
        %8516 = vmatpush.bf16.msra.mxu0 0
        %8517 = vmatpush.bf16.msra.mxu0 0
        %8518 = vmatpush.bf16.msra.mxu0 0
        %8519 = vmatpush.bf16.msra.mxu0 %v8510
        %8520 = vmatmul.bf16.gmra.mxu0 %v7857
        %v8521 = vpop.f32.mrf.mxu0
        %v8522 = vadd.f32 0.0, %v8521
        %v8523 = vpop.f32.mrf.mxu0
        %v8524 = vadd.f32 0.0, %v8523
        %8525 = vmatmul.bf16.gmra.mxu0 %v7860
        %v8526 = vpop.f32.mrf.mxu0
        %v8527 = vadd.f32 0.0, %v8526
        %v8528 = vpop.f32.mrf.mxu0
        %v8529 = vadd.f32 0.0, %v8528
        %8530 = vdwg.mxu0
        %v8531 = vpack.c.bf16 %v8522, %v8522
        %v8532 = vpack.c.bf16 %v8524, %v8524
        %v8533 = vpack.c.bf16 %v8527, %v8527
        %v8534 = vpack.c.bf16 %v8529, %v8529
        %s8535 = scalar_lea.vmem [#allocation7], 14
        %v8536 = vld [vmem:[%s8535] sm:$0x3]
        %v8538 = vsel %vm5992, %v8536, 0
        %8540 = vmatpush.bf16.msra.mxu0 0
        %8541 = vmatpush.bf16.msra.mxu0 0
        %8542 = vmatpush.bf16.msra.mxu0 0
        %8543 = vmatpush.bf16.msra.mxu0 0
        %8544 = vmatpush.bf16.msra.mxu0 0
        %8545 = vmatpush.bf16.msra.mxu0 0
        %8546 = vmatpush.bf16.msra.mxu0 0
        %8547 = vmatpush.bf16.msra.mxu0 %v8538
        %8548 = vmatmul.bf16.gmra.mxu0 %v7857
        %v8549 = vpop.f32.mrf.mxu0
        %v8550 = vadd.f32 0.0, %v8549
        %v8551 = vpop.f32.mrf.mxu0
        %v8552 = vadd.f32 0.0, %v8551
        %8553 = vmatmul.bf16.gmra.mxu0 %v7860
        %v8554 = vpop.f32.mrf.mxu0
        %v8555 = vadd.f32 0.0, %v8554
        %v8556 = vpop.f32.mrf.mxu0
        %v8557 = vadd.f32 0.0, %v8556
        %8558 = vdwg.mxu0
        %v8559 = vpack.c.bf16 %v8550, %v8550
        %v8560 = vpack.c.bf16 %v8552, %v8552
        %v8561 = vpack.c.bf16 %v8555, %v8555
        %v8562 = vpack.c.bf16 %v8557, %v8557
        %s8563 = scalar_lea.vmem [#allocation7], 16
        %v8564 = vld [vmem:[%s8563] sm:$0x3]
        %v8566 = vsel %vm5992, %v8564, 0
        %8568 = vmatpush.bf16.msra.mxu0 0
        %8569 = vmatpush.bf16.msra.mxu0 0
        %8570 = vmatpush.bf16.msra.mxu0 0
        %8571 = vmatpush.bf16.msra.mxu0 0
        %8572 = vmatpush.bf16.msra.mxu0 0
        %8573 = vmatpush.bf16.msra.mxu0 0
        %8574 = vmatpush.bf16.msra.mxu0 0
        %8575 = vmatpush.bf16.msra.mxu0 %v8566
        %8576 = vmatmul.bf16.gmra.mxu0 %v7857
        %v8577 = vpop.f32.mrf.mxu0
        %v8578 = vadd.f32 0.0, %v8577
        %v8579 = vpop.f32.mrf.mxu0
        %v8580 = vadd.f32 0.0, %v8579
        %8581 = vmatmul.bf16.gmra.mxu0 %v7860
        %v8582 = vpop.f32.mrf.mxu0
        %v8583 = vadd.f32 0.0, %v8582
        %v8584 = vpop.f32.mrf.mxu0
        %v8585 = vadd.f32 0.0, %v8584
        %8586 = vdwg.mxu0
        %v8587 = vpack.c.bf16 %v8578, %v8578
        %v8588 = vpack.c.bf16 %v8580, %v8580
        %v8589 = vpack.c.bf16 %v8583, %v8583
        %v8590 = vpack.c.bf16 %v8585, %v8585
        %v8595 = vunpack.c.l.b16 %v8363
        %v8596 = vunpack.c.l.b16 %v8364
        %v8597 = vunpack.c.l.b16 %v8365
        %v8598 = vunpack.c.l.b16 %v8366
        %v8599 = vpack.c.b16 %v8596, %v8595
        %v8600 = vpack.c.b16 %v8598, %v8597
        %v8607 = vunpack.c.l.b16 %v8391
        %v8608 = vunpack.c.l.b16 %v8392
        %v8609 = vunpack.c.l.b16 %v8393
        %v8610 = vunpack.c.l.b16 %v8394
        %v8611 = vpack.c.b16 %v8608, %v8607
        %v8612 = vpack.c.b16 %v8610, %v8609
        %v8619 = vunpack.c.l.b16 %v8419
        %v8620 = vunpack.c.l.b16 %v8420
        %v8621 = vunpack.c.l.b16 %v8421
        %v8622 = vunpack.c.l.b16 %v8422
        %v8623 = vpack.c.b16 %v8620, %v8619
        %v8624 = vpack.c.b16 %v8622, %v8621
        %v8631 = vunpack.c.l.b16 %v8447
        %v8632 = vunpack.c.l.b16 %v8448
        %v8633 = vunpack.c.l.b16 %v8449
        %v8634 = vunpack.c.l.b16 %v8450
        %v8635 = vpack.c.b16 %v8632, %v8631
        %v8636 = vpack.c.b16 %v8634, %v8633
        %v8643 = vunpack.c.l.b16 %v8475
        %v8644 = vunpack.c.l.b16 %v8476
        %v8645 = vunpack.c.l.b16 %v8477
        %v8646 = vunpack.c.l.b16 %v8478
        %v8647 = vpack.c.b16 %v8644, %v8643
        %v8648 = vpack.c.b16 %v8646, %v8645
        %v8655 = vunpack.c.l.b16 %v8503
        %v8656 = vunpack.c.l.b16 %v8504
        %v8657 = vunpack.c.l.b16 %v8505
        %v8658 = vunpack.c.l.b16 %v8506
        %v8659 = vpack.c.b16 %v8656, %v8655
        %v8660 = vpack.c.b16 %v8658, %v8657
        %v8667 = vunpack.c.l.b16 %v8531
        %v8668 = vunpack.c.l.b16 %v8532
        %v8669 = vunpack.c.l.b16 %v8533
        %v8670 = vunpack.c.l.b16 %v8534
        %v8671 = vpack.c.b16 %v8668, %v8667
        %v8672 = vpack.c.b16 %v8670, %v8669
        %v8679 = vunpack.c.l.b16 %v8559
        %v8680 = vunpack.c.l.b16 %v8560
        %v8681 = vunpack.c.l.b16 %v8561
        %v8682 = vunpack.c.l.b16 %v8562
        %v8683 = vpack.c.b16 %v8680, %v8679
        %v8684 = vpack.c.b16 %v8682, %v8681
        %v8691 = vunpack.c.l.b16 %v8587
        %v8692 = vunpack.c.l.b16 %v8588
        %v8693 = vunpack.c.l.b16 %v8589
        %v8694 = vunpack.c.l.b16 %v8590
        %v8695 = vpack.c.b16 %v8692, %v8691
        %v8696 = vpack.c.b16 %v8694, %v8693
        %s8699 = scalar_lea.vmem %s2, 336
        %v8700 = vld [vmem:[%s8699] sm:$0xff]
        %v8701 = vld [vmem:[%s8699 + $0x8] sm:$0xf]
        %v8702 = vld [vmem:[%s8699 + $0xc] sm:$0xff]
        %v8703 = vld [vmem:[%s8699 + $0x14] sm:$0xf]
        %v8704 = vld [vmem:[%s8699 + $0x18] sm:$0xff]
        %v8705 = vld [vmem:[%s8699 + $0x20] sm:$0xf]
        %v8706 = vld [vmem:[%s8699 + $0x24] sm:$0xff]
        %v8707 = vld [vmem:[%s8699 + $0x2c] sm:$0xf]
        %v8716 = vunpack.c.l.b16 %v8700
        %v8717 = vunpack.c.h.b16 %v8700
        %v8718 = vunpack.c.l.b16 %v8701
        %v8719 = vunpack.c.l.b16 %v8702
        %v8720 = vunpack.c.h.b16 %v8702
        %v8721 = vunpack.c.l.b16 %v8703
        %v8722 = vunpack.c.l.b16 %v8704
        %v8723 = vunpack.c.h.b16 %v8704
        %v8724 = vunpack.c.l.b16 %v8705
        %v8725 = vunpack.c.l.b16 %v8706
        %v8726 = vunpack.c.h.b16 %v8706
        %v8727 = vunpack.c.l.b16 %v8707
        %v8728 = vpack.c.b16 %v8719, %v8716
        %v8729 = vpack.c.b16 %v8720, %v8717
        %v8730 = vpack.c.b16 %v8721, %v8718
        %v8731 = vpack.c.b16 %v8725, %v8722
        %v8732 = vpack.c.b16 %v8726, %v8723
        %v8733 = vpack.c.b16 %v8727, %v8724
        %v8739 = vsel %vm2302, %v8730, 0
        %v8742 = vsel %vm2302, %v8733, 0
        %8744 = vmatpush.bf16.msra.mxu0 %v8636
        %8745 = vmatpush.bf16.msra.mxu0 %v8635
        %8746 = vmatpush.bf16.msra.mxu0 %v8624
        %8747 = vmatpush.bf16.msra.mxu0 %v8623
        %8748 = vmatpush.bf16.msra.mxu0 %v8612
        %8749 = vmatpush.bf16.msra.mxu0 %v8611
        %8750 = vmatpush.bf16.msra.mxu0 %v8600
        %8751 = vmatpush.bf16.msra.mxu0 %v8599
        %8752 = vmatmul.bf16.gmra.mxu0 %v8728
        %v8753 = vpop.f32.mrf.mxu0
        %v8754 = vadd.f32 0.0, %v8753
        %v8755 = vpop.f32.mrf.mxu0
        %v8756 = vadd.f32 0.0, %v8755
        %8757 = vmatmul.bf16.gmra.mxu0 %v8731
        %v8758 = vpop.f32.mrf.mxu0
        %v8759 = vadd.f32 0.0, %v8758
        %v8760 = vpop.f32.mrf.mxu0
        %v8761 = vadd.f32 0.0, %v8760
        %8762 = vdwg.mxu0
        %8763 = vmatpush.bf16.msra.mxu0 %v8684
        %8764 = vmatpush.bf16.msra.mxu0 %v8683
        %8765 = vmatpush.bf16.msra.mxu0 %v8672
        %8766 = vmatpush.bf16.msra.mxu0 %v8671
        %8767 = vmatpush.bf16.msra.mxu0 %v8660
        %8768 = vmatpush.bf16.msra.mxu0 %v8659
        %8769 = vmatpush.bf16.msra.mxu0 %v8648
        %8770 = vmatpush.bf16.msra.mxu0 %v8647
        %8771 = vmatmul.bf16.gmra.mxu0 %v8729
        %v8772 = vpop.f32.mrf.mxu0
        %v8773 = vadd.f32 %v8754, %v8772
        %v8774 = vpop.f32.mrf.mxu0
        %v8775 = vadd.f32 %v8756, %v8774
        %8776 = vmatmul.bf16.gmra.mxu0 %v8732
        %v8777 = vpop.f32.mrf.mxu0
        %v8778 = vadd.f32 %v8759, %v8777
        %v8779 = vpop.f32.mrf.mxu0
        %v8780 = vadd.f32 %v8761, %v8779
        %8781 = vdwg.mxu0
        %8782 = vmatpush.bf16.msra.mxu0 0
        %8783 = vmatpush.bf16.msra.mxu0 0
        %8784 = vmatpush.bf16.msra.mxu0 0
        %8785 = vmatpush.bf16.msra.mxu0 0
        %8786 = vmatpush.bf16.msra.mxu0 0
        %8787 = vmatpush.bf16.msra.mxu0 0
        %8788 = vmatpush.bf16.msra.mxu0 %v8696
        %8789 = vmatpush.bf16.msra.mxu0 %v8695
        %8790 = vmatmul.bf16.gmra.mxu0 %v8739
        %v8791 = vpop.f32.mrf.mxu0
        %v8792 = vadd.f32 %v8773, %v8791
        %v8793 = vpop.f32.mrf.mxu0
        %v8794 = vadd.f32 %v8775, %v8793
        %8795 = vmatmul.bf16.gmra.mxu0 %v8742
        %v8796 = vpop.f32.mrf.mxu0
        %v8797 = vadd.f32 %v8778, %v8796
        %v8798 = vpop.f32.mrf.mxu0
        %v8799 = vadd.f32 %v8780, %v8798
        %8800 = vdwg.mxu0
        %s8801 = scalar_lea.vmem %s3, 256
        %v8802 = vld [vmem:[%s8801] sm:$0xff]
        %v8803 = vld [vmem:[%s8801 + $0x8] sm:$0xff]
        %v8804 = vld [vmem:[%s8801 + $0x10] sm:$0xff]
        %v8805 = vld [vmem:[%s8801 + $0x18] sm:$0xff]
        %8807 = vset.pattern.permute.xlu0 0
        %8808 = vperm.xlu0 %8807, %v8802
        %v8809 = vpop.permute.xlu0 %8808
        %8812 = vset.pattern.permute.xlu0 0
        %8813 = vperm.xlu0 %8812, %v8803
        %v8814 = vpop.permute.xlu0 %8813
        %8817 = vset.pattern.permute.xlu0 0
        %8818 = vperm.xlu0 %8817, %v8804
        %v8819 = vpop.permute.xlu0 %8818
        %8822 = vset.pattern.permute.xlu0 0
        %8823 = vperm.xlu0 %8822, %v8805
        %v8824 = vpop.permute.xlu0 %8823
        %v8826 = vmul.f32 %v8792, %v8809
        %v8827 = vmul.f32 %v8794, %v8814
        %v8828 = vmul.f32 %v8797, %v8819
        %v8829 = vmul.f32 %v8799, %v8824
        %s8830 = scalar_lea.vmem %s4, 256
        %v8831 = vld [vmem:[%s8830] sm:$0xff]
        %v8832 = vld [vmem:[%s8830 + $0x8] sm:$0xff]
        %v8833 = vld [vmem:[%s8830 + $0x10] sm:$0xff]
        %v8834 = vld [vmem:[%s8830 + $0x18] sm:$0xff]
        %8836 = vset.pattern.permute.xlu0 0
        %8837 = vperm.xlu0 %8836, %v8831
        %v8838 = vpop.permute.xlu0 %8837
        %8841 = vset.pattern.permute.xlu0 0
        %8842 = vperm.xlu0 %8841, %v8832
        %v8843 = vpop.permute.xlu0 %8842
        %8846 = vset.pattern.permute.xlu0 0
        %8847 = vperm.xlu0 %8846, %v8833
        %v8848 = vpop.permute.xlu0 %8847
        %8851 = vset.pattern.permute.xlu0 0
        %8852 = vperm.xlu0 %8851, %v8834
        %v8853 = vpop.permute.xlu0 %8852
        %v8855 = vadd.f32 %v8826, %v8838
        %v8856 = vadd.f32 %v8827, %v8843
        %v8857 = vadd.f32 %v8828, %v8848
        %v8858 = vadd.f32 %v8829, %v8853
        %vm8859 = vcmp.ge.f32.partialorder %v8855, 0.0
        %vm8860 = vcmp.ge.f32.partialorder %v8856, 0.0
        %vm8861 = vcmp.ge.f32.partialorder %v8857, 0.0
        %vm8862 = vcmp.ge.f32.partialorder %v8858, 0.0
        %v8863 = vmul.f32 %v8855, 0.01
        %v8864 = vmul.f32 %v8856, 0.01
        %v8865 = vmul.f32 %v8857, 0.01
        %v8866 = vmul.f32 %v8858, 0.01
        %v8867 = vsel %vm8859, %v8855, %v8863
        %v8868 = vsel %vm8860, %v8856, %v8864
        %v8869 = vsel %vm8861, %v8857, %v8865
        %v8870 = vsel %vm8862, %v8858, %v8866
        %v8871 = vpack.c.bf16 %v8868, %v8867
        %v8872 = vpack.c.bf16 %v8870, %v8869
        %v8874 = vsel %vm7855, %v8871, 0
        %v8877 = vsel %vm7855, %v8872, 0
        %8879 = vmatpush.bf16.msra.mxu0 0
        %8880 = vmatpush.bf16.msra.mxu0 0
        %8881 = vmatpush.bf16.msra.mxu0 0
        %8882 = vmatpush.bf16.msra.mxu0 0
        %8883 = vmatpush.bf16.msra.mxu0 0
        %8884 = vmatpush.bf16.msra.mxu0 0
        %8885 = vmatpush.bf16.msra.mxu0 0
        %8886 = vmatpush.bf16.msra.mxu0 %v7863
        %8887 = vmatmul.bf16.gmra.mxu0 %v8874
        %v8888 = vpop.f32.mrf.mxu0
        %v8889 = vadd.f32 0.0, %v8888
        %v8890 = vpop.f32.mrf.mxu0
        %v8891 = vadd.f32 0.0, %v8890
        %8892 = vmatmul.bf16.gmra.mxu0 %v8877
        %v8893 = vpop.f32.mrf.mxu0
        %v8894 = vadd.f32 0.0, %v8893
        %v8895 = vpop.f32.mrf.mxu0
        %v8896 = vadd.f32 0.0, %v8895
        %8897 = vdwg.mxu0
        %v8898 = vpack.c.bf16 %v8889, %v8889
        %v8899 = vpack.c.bf16 %v8891, %v8891
        %v8900 = vpack.c.bf16 %v8894, %v8894
        %v8901 = vpack.c.bf16 %v8896, %v8896
        %8902 = vmatpush.bf16.msra.mxu0 0
        %8903 = vmatpush.bf16.msra.mxu0 0
        %8904 = vmatpush.bf16.msra.mxu0 0
        %8905 = vmatpush.bf16.msra.mxu0 0
        %8906 = vmatpush.bf16.msra.mxu0 0
        %8907 = vmatpush.bf16.msra.mxu0 0
        %8908 = vmatpush.bf16.msra.mxu0 0
        %8909 = vmatpush.bf16.msra.mxu0 %v7891
        %8910 = vmatmul.bf16.gmra.mxu0 %v8874
        %v8911 = vpop.f32.mrf.mxu0
        %v8912 = vadd.f32 0.0, %v8911
        %v8913 = vpop.f32.mrf.mxu0
        %v8914 = vadd.f32 0.0, %v8913
        %8915 = vmatmul.bf16.gmra.mxu0 %v8877
        %v8916 = vpop.f32.mrf.mxu0
        %v8917 = vadd.f32 0.0, %v8916
        %v8918 = vpop.f32.mrf.mxu0
        %v8919 = vadd.f32 0.0, %v8918
        %8920 = vdwg.mxu0
        %v8921 = vpack.c.bf16 %v8912, %v8912
        %v8922 = vpack.c.bf16 %v8914, %v8914
        %v8923 = vpack.c.bf16 %v8917, %v8917
        %v8924 = vpack.c.bf16 %v8919, %v8919
        %8925 = vmatpush.bf16.msra.mxu0 0
        %8926 = vmatpush.bf16.msra.mxu0 0
        %8927 = vmatpush.bf16.msra.mxu0 0
        %8928 = vmatpush.bf16.msra.mxu0 0
        %8929 = vmatpush.bf16.msra.mxu0 0
        %8930 = vmatpush.bf16.msra.mxu0 0
        %8931 = vmatpush.bf16.msra.mxu0 0
        %8932 = vmatpush.bf16.msra.mxu0 %v7919
        %8933 = vmatmul.bf16.gmra.mxu0 %v8874
        %v8934 = vpop.f32.mrf.mxu0
        %v8935 = vadd.f32 0.0, %v8934
        %v8936 = vpop.f32.mrf.mxu0
        %v8937 = vadd.f32 0.0, %v8936
        %8938 = vmatmul.bf16.gmra.mxu0 %v8877
        %v8939 = vpop.f32.mrf.mxu0
        %v8940 = vadd.f32 0.0, %v8939
        %v8941 = vpop.f32.mrf.mxu0
        %v8942 = vadd.f32 0.0, %v8941
        %8943 = vdwg.mxu0
        %v8944 = vpack.c.bf16 %v8935, %v8935
        %v8945 = vpack.c.bf16 %v8937, %v8937
        %v8946 = vpack.c.bf16 %v8940, %v8940
        %v8947 = vpack.c.bf16 %v8942, %v8942
        %8948 = vmatpush.bf16.msra.mxu0 0
        %8949 = vmatpush.bf16.msra.mxu0 0
        %8950 = vmatpush.bf16.msra.mxu0 0
        %8951 = vmatpush.bf16.msra.mxu0 0
        %8952 = vmatpush.bf16.msra.mxu0 0
        %8953 = vmatpush.bf16.msra.mxu0 0
        %8954 = vmatpush.bf16.msra.mxu0 0
        %8955 = vmatpush.bf16.msra.mxu0 %v7947
        %8956 = vmatmul.bf16.gmra.mxu0 %v8874
        %v8957 = vpop.f32.mrf.mxu0
        %v8958 = vadd.f32 0.0, %v8957
        %v8959 = vpop.f32.mrf.mxu0
        %v8960 = vadd.f32 0.0, %v8959
        %8961 = vmatmul.bf16.gmra.mxu0 %v8877
        %v8962 = vpop.f32.mrf.mxu0
        %v8963 = vadd.f32 0.0, %v8962
        %v8964 = vpop.f32.mrf.mxu0
        %v8965 = vadd.f32 0.0, %v8964
        %8966 = vdwg.mxu0
        %v8967 = vpack.c.bf16 %v8958, %v8958
        %v8968 = vpack.c.bf16 %v8960, %v8960
        %v8969 = vpack.c.bf16 %v8963, %v8963
        %v8970 = vpack.c.bf16 %v8965, %v8965
        %8971 = vmatpush.bf16.msra.mxu0 0
        %8972 = vmatpush.bf16.msra.mxu0 0
        %8973 = vmatpush.bf16.msra.mxu0 0
        %8974 = vmatpush.bf16.msra.mxu0 0
        %8975 = vmatpush.bf16.msra.mxu0 0
        %8976 = vmatpush.bf16.msra.mxu0 0
        %8977 = vmatpush.bf16.msra.mxu0 0
        %8978 = vmatpush.bf16.msra.mxu0 %v7975
        %8979 = vmatmul.bf16.gmra.mxu0 %v8874
        %v8980 = vpop.f32.mrf.mxu0
        %v8981 = vadd.f32 0.0, %v8980
        %v8982 = vpop.f32.mrf.mxu0
        %v8983 = vadd.f32 0.0, %v8982
        %8984 = vmatmul.bf16.gmra.mxu0 %v8877
        %v8985 = vpop.f32.mrf.mxu0
        %v8986 = vadd.f32 0.0, %v8985
        %v8987 = vpop.f32.mrf.mxu0
        %v8988 = vadd.f32 0.0, %v8987
        %8989 = vdwg.mxu0
        %v8990 = vpack.c.bf16 %v8981, %v8981
        %v8991 = vpack.c.bf16 %v8983, %v8983
        %v8992 = vpack.c.bf16 %v8986, %v8986
        %v8993 = vpack.c.bf16 %v8988, %v8988
        %8994 = vmatpush.bf16.msra.mxu0 0
        %8995 = vmatpush.bf16.msra.mxu0 0
        %8996 = vmatpush.bf16.msra.mxu0 0
        %8997 = vmatpush.bf16.msra.mxu0 0
        %8998 = vmatpush.bf16.msra.mxu0 0
        %8999 = vmatpush.bf16.msra.mxu0 0
        %9000 = vmatpush.bf16.msra.mxu0 0
        %9001 = vmatpush.bf16.msra.mxu0 %v8003
        %9002 = vmatmul.bf16.gmra.mxu0 %v8874
        %v9003 = vpop.f32.mrf.mxu0
        %v9004 = vadd.f32 0.0, %v9003
        %v9005 = vpop.f32.mrf.mxu0
        %v9006 = vadd.f32 0.0, %v9005
        %9007 = vmatmul.bf16.gmra.mxu0 %v8877
        %v9008 = vpop.f32.mrf.mxu0
        %v9009 = vadd.f32 0.0, %v9008
        %v9010 = vpop.f32.mrf.mxu0
        %v9011 = vadd.f32 0.0, %v9010
        %9012 = vdwg.mxu0
        %v9013 = vpack.c.bf16 %v9004, %v9004
        %v9014 = vpack.c.bf16 %v9006, %v9006
        %v9015 = vpack.c.bf16 %v9009, %v9009
        %v9016 = vpack.c.bf16 %v9011, %v9011
        %9017 = vmatpush.bf16.msra.mxu0 0
        %9018 = vmatpush.bf16.msra.mxu0 0
        %9019 = vmatpush.bf16.msra.mxu0 0
        %9020 = vmatpush.bf16.msra.mxu0 0
        %9021 = vmatpush.bf16.msra.mxu0 0
        %9022 = vmatpush.bf16.msra.mxu0 0
        %9023 = vmatpush.bf16.msra.mxu0 0
        %9024 = vmatpush.bf16.msra.mxu0 %v8031
        %9025 = vmatmul.bf16.gmra.mxu0 %v8874
        %v9026 = vpop.f32.mrf.mxu0
        %v9027 = vadd.f32 0.0, %v9026
        %v9028 = vpop.f32.mrf.mxu0
        %v9029 = vadd.f32 0.0, %v9028
        %9030 = vmatmul.bf16.gmra.mxu0 %v8877
        %v9031 = vpop.f32.mrf.mxu0
        %v9032 = vadd.f32 0.0, %v9031
        %v9033 = vpop.f32.mrf.mxu0
        %v9034 = vadd.f32 0.0, %v9033
        %9035 = vdwg.mxu0
        %v9036 = vpack.c.bf16 %v9027, %v9027
        %v9037 = vpack.c.bf16 %v9029, %v9029
        %v9038 = vpack.c.bf16 %v9032, %v9032
        %v9039 = vpack.c.bf16 %v9034, %v9034
        %9040 = vmatpush.bf16.msra.mxu0 0
        %9041 = vmatpush.bf16.msra.mxu0 0
        %9042 = vmatpush.bf16.msra.mxu0 0
        %9043 = vmatpush.bf16.msra.mxu0 0
        %9044 = vmatpush.bf16.msra.mxu0 0
        %9045 = vmatpush.bf16.msra.mxu0 0
        %9046 = vmatpush.bf16.msra.mxu0 0
        %9047 = vmatpush.bf16.msra.mxu0 %v8059
        %9048 = vmatmul.bf16.gmra.mxu0 %v8874
        %v9049 = vpop.f32.mrf.mxu0
        %v9050 = vadd.f32 0.0, %v9049
        %v9051 = vpop.f32.mrf.mxu0
        %v9052 = vadd.f32 0.0, %v9051
        %9053 = vmatmul.bf16.gmra.mxu0 %v8877
        %v9054 = vpop.f32.mrf.mxu0
        %v9055 = vadd.f32 0.0, %v9054
        %v9056 = vpop.f32.mrf.mxu0
        %v9057 = vadd.f32 0.0, %v9056
        %9058 = vdwg.mxu0
        %v9059 = vpack.c.bf16 %v9050, %v9050
        %v9060 = vpack.c.bf16 %v9052, %v9052
        %v9061 = vpack.c.bf16 %v9055, %v9055
        %v9062 = vpack.c.bf16 %v9057, %v9057
        %9063 = vmatpush.bf16.msra.mxu0 0
        %9064 = vmatpush.bf16.msra.mxu0 0
        %9065 = vmatpush.bf16.msra.mxu0 0
        %9066 = vmatpush.bf16.msra.mxu0 0
        %9067 = vmatpush.bf16.msra.mxu0 0
        %9068 = vmatpush.bf16.msra.mxu0 0
        %9069 = vmatpush.bf16.msra.mxu0 0
        %9070 = vmatpush.bf16.msra.mxu0 %v8087
        %9071 = vmatmul.bf16.gmra.mxu0 %v8874
        %v9072 = vpop.f32.mrf.mxu0
        %v9073 = vadd.f32 0.0, %v9072
        %v9074 = vpop.f32.mrf.mxu0
        %v9075 = vadd.f32 0.0, %v9074
        %9076 = vmatmul.bf16.gmra.mxu0 %v8877
        %v9077 = vpop.f32.mrf.mxu0
        %v9078 = vadd.f32 0.0, %v9077
        %v9079 = vpop.f32.mrf.mxu0
        %v9080 = vadd.f32 0.0, %v9079
        %9081 = vdwg.mxu0
        %v9082 = vpack.c.bf16 %v9073, %v9073
        %v9083 = vpack.c.bf16 %v9075, %v9075
        %v9084 = vpack.c.bf16 %v9078, %v9078
        %v9085 = vpack.c.bf16 %v9080, %v9080
        %v9090 = vunpack.c.l.b16 %v8898
        %v9091 = vunpack.c.l.b16 %v8899
        %v9092 = vunpack.c.l.b16 %v8900
        %v9093 = vunpack.c.l.b16 %v8901
        %v9094 = vpack.c.b16 %v9091, %v9090
        %v9095 = vpack.c.b16 %v9093, %v9092
        %v9102 = vunpack.c.l.b16 %v8921
        %v9103 = vunpack.c.l.b16 %v8922
        %v9104 = vunpack.c.l.b16 %v8923
        %v9105 = vunpack.c.l.b16 %v8924
        %v9106 = vpack.c.b16 %v9103, %v9102
        %v9107 = vpack.c.b16 %v9105, %v9104
        %v9114 = vunpack.c.l.b16 %v8944
        %v9115 = vunpack.c.l.b16 %v8945
        %v9116 = vunpack.c.l.b16 %v8946
        %v9117 = vunpack.c.l.b16 %v8947
        %v9118 = vpack.c.b16 %v9115, %v9114
        %v9119 = vpack.c.b16 %v9117, %v9116
        %v9126 = vunpack.c.l.b16 %v8967
        %v9127 = vunpack.c.l.b16 %v8968
        %v9128 = vunpack.c.l.b16 %v8969
        %v9129 = vunpack.c.l.b16 %v8970
        %v9130 = vpack.c.b16 %v9127, %v9126
        %v9131 = vpack.c.b16 %v9129, %v9128
        %v9138 = vunpack.c.l.b16 %v8990
        %v9139 = vunpack.c.l.b16 %v8991
        %v9140 = vunpack.c.l.b16 %v8992
        %v9141 = vunpack.c.l.b16 %v8993
        %v9142 = vpack.c.b16 %v9139, %v9138
        %v9143 = vpack.c.b16 %v9141, %v9140
        %v9150 = vunpack.c.l.b16 %v9013
        %v9151 = vunpack.c.l.b16 %v9014
        %v9152 = vunpack.c.l.b16 %v9015
        %v9153 = vunpack.c.l.b16 %v9016
        %v9154 = vpack.c.b16 %v9151, %v9150
        %v9155 = vpack.c.b16 %v9153, %v9152
        %v9162 = vunpack.c.l.b16 %v9036
        %v9163 = vunpack.c.l.b16 %v9037
        %v9164 = vunpack.c.l.b16 %v9038
        %v9165 = vunpack.c.l.b16 %v9039
        %v9166 = vpack.c.b16 %v9163, %v9162
        %v9167 = vpack.c.b16 %v9165, %v9164
        %v9174 = vunpack.c.l.b16 %v9059
        %v9175 = vunpack.c.l.b16 %v9060
        %v9176 = vunpack.c.l.b16 %v9061
        %v9177 = vunpack.c.l.b16 %v9062
        %v9178 = vpack.c.b16 %v9175, %v9174
        %v9179 = vpack.c.b16 %v9177, %v9176
        %v9186 = vunpack.c.l.b16 %v9082
        %v9187 = vunpack.c.l.b16 %v9083
        %v9188 = vunpack.c.l.b16 %v9084
        %v9189 = vunpack.c.l.b16 %v9085
        %v9190 = vpack.c.b16 %v9187, %v9186
        %v9191 = vpack.c.b16 %v9189, %v9188
        %s9194 = scalar_lea.vmem %s2, 384
        %v9195 = vld [vmem:[%s9194] sm:$0xff]
        %v9196 = vld [vmem:[%s9194 + $0x8] sm:$0xf]
        %v9197 = vld [vmem:[%s9194 + $0xc] sm:$0xff]
        %v9198 = vld [vmem:[%s9194 + $0x14] sm:$0xf]
        %v9199 = vld [vmem:[%s9194 + $0x18] sm:$0xff]
        %v9200 = vld [vmem:[%s9194 + $0x20] sm:$0xf]
        %v9201 = vld [vmem:[%s9194 + $0x24] sm:$0xff]
        %v9202 = vld [vmem:[%s9194 + $0x2c] sm:$0xf]
        %v9211 = vunpack.c.l.b16 %v9195
        %v9212 = vunpack.c.h.b16 %v9195
        %v9213 = vunpack.c.l.b16 %v9196
        %v9214 = vunpack.c.l.b16 %v9197
        %v9215 = vunpack.c.h.b16 %v9197
        %v9216 = vunpack.c.l.b16 %v9198
        %v9217 = vunpack.c.l.b16 %v9199
        %v9218 = vunpack.c.h.b16 %v9199
        %v9219 = vunpack.c.l.b16 %v9200
        %v9220 = vunpack.c.l.b16 %v9201
        %v9221 = vunpack.c.h.b16 %v9201
        %v9222 = vunpack.c.l.b16 %v9202
        %v9223 = vpack.c.b16 %v9214, %v9211
        %v9224 = vpack.c.b16 %v9215, %v9212
        %v9225 = vpack.c.b16 %v9216, %v9213
        %v9226 = vpack.c.b16 %v9220, %v9217
        %v9227 = vpack.c.b16 %v9221, %v9218
        %v9228 = vpack.c.b16 %v9222, %v9219
        %v9234 = vsel %vm2302, %v9225, 0
        %v9237 = vsel %vm2302, %v9228, 0
        %9239 = vmatpush.bf16.msra.mxu0 %v9131
        %9240 = vmatpush.bf16.msra.mxu0 %v9130
        %9241 = vmatpush.bf16.msra.mxu0 %v9119
        %9242 = vmatpush.bf16.msra.mxu0 %v9118
        %9243 = vmatpush.bf16.msra.mxu0 %v9107
        %9244 = vmatpush.bf16.msra.mxu0 %v9106
        %9245 = vmatpush.bf16.msra.mxu0 %v9095
        %9246 = vmatpush.bf16.msra.mxu0 %v9094
        %9247 = vmatmul.bf16.gmra.mxu0 %v9223
        %v9248 = vpop.f32.mrf.mxu0
        %v9249 = vadd.f32 0.0, %v9248
        %v9250 = vpop.f32.mrf.mxu0
        %v9251 = vadd.f32 0.0, %v9250
        %9252 = vmatmul.bf16.gmra.mxu0 %v9226
        %v9253 = vpop.f32.mrf.mxu0
        %v9254 = vadd.f32 0.0, %v9253
        %v9255 = vpop.f32.mrf.mxu0
        %v9256 = vadd.f32 0.0, %v9255
        %9257 = vdwg.mxu0
        %9258 = vmatpush.bf16.msra.mxu0 %v9179
        %9259 = vmatpush.bf16.msra.mxu0 %v9178
        %9260 = vmatpush.bf16.msra.mxu0 %v9167
        %9261 = vmatpush.bf16.msra.mxu0 %v9166
        %9262 = vmatpush.bf16.msra.mxu0 %v9155
        %9263 = vmatpush.bf16.msra.mxu0 %v9154
        %9264 = vmatpush.bf16.msra.mxu0 %v9143
        %9265 = vmatpush.bf16.msra.mxu0 %v9142
        %9266 = vmatmul.bf16.gmra.mxu0 %v9224
        %v9267 = vpop.f32.mrf.mxu0
        %v9268 = vadd.f32 %v9249, %v9267
        %v9269 = vpop.f32.mrf.mxu0
        %v9270 = vadd.f32 %v9251, %v9269
        %9271 = vmatmul.bf16.gmra.mxu0 %v9227
        %v9272 = vpop.f32.mrf.mxu0
        %v9273 = vadd.f32 %v9254, %v9272
        %v9274 = vpop.f32.mrf.mxu0
        %v9275 = vadd.f32 %v9256, %v9274
        %9276 = vdwg.mxu0
        %9277 = vmatpush.bf16.msra.mxu0 0
        %9278 = vmatpush.bf16.msra.mxu0 0
        %9279 = vmatpush.bf16.msra.mxu0 0
        %9280 = vmatpush.bf16.msra.mxu0 0
        %9281 = vmatpush.bf16.msra.mxu0 0
        %9282 = vmatpush.bf16.msra.mxu0 0
        %9283 = vmatpush.bf16.msra.mxu0 %v9191
        %9284 = vmatpush.bf16.msra.mxu0 %v9190
        %9285 = vmatmul.bf16.gmra.mxu0 %v9234
        %v9286 = vpop.f32.mrf.mxu0
        %v9287 = vadd.f32 %v9268, %v9286
        %v9288 = vpop.f32.mrf.mxu0
        %v9289 = vadd.f32 %v9270, %v9288
        %9290 = vmatmul.bf16.gmra.mxu0 %v9237
        %v9291 = vpop.f32.mrf.mxu0
        %v9292 = vadd.f32 %v9273, %v9291
        %v9293 = vpop.f32.mrf.mxu0
        %v9294 = vadd.f32 %v9275, %v9293
        %9295 = vdwg.mxu0
        %s9296 = scalar_lea.vmem %s3, 288
        %v9297 = vld [vmem:[%s9296] sm:$0xff]
        %v9298 = vld [vmem:[%s9296 + $0x8] sm:$0xff]
        %v9299 = vld [vmem:[%s9296 + $0x10] sm:$0xff]
        %v9300 = vld [vmem:[%s9296 + $0x18] sm:$0xff]
        %v9301 = vmul.f32 %v9287, %v9297
        %v9302 = vmul.f32 %v9289, %v9298
        %v9303 = vmul.f32 %v9292, %v9299
        %v9304 = vmul.f32 %v9294, %v9300
        %s9305 = scalar_lea.vmem %s4, 288
        %v9306 = vld [vmem:[%s9305] sm:$0xff]
        %v9307 = vld [vmem:[%s9305 + $0x8] sm:$0xff]
        %v9308 = vld [vmem:[%s9305 + $0x10] sm:$0xff]
        %v9309 = vld [vmem:[%s9305 + $0x18] sm:$0xff]
        %v9310 = vadd.f32 %v9301, %v9306
        %v9311 = vadd.f32 %v9302, %v9307
        %v9312 = vadd.f32 %v9303, %v9308
        %v9313 = vadd.f32 %v9304, %v9309
        %v9314 = vadd.f32 %v9310, %v8336
        %v9315 = vadd.f32 %v9311, %v8337
        %v9316 = vadd.f32 %v9312, %v8338
        %v9317 = vadd.f32 %v9313, %v8339
        %v9318 = vpack.c.bf16 %v9314, %v9314
        %v9319 = vpack.c.bf16 %v9315, %v9315
        %v9320 = vpack.c.bf16 %v9316, %v9316
        %v9321 = vpack.c.bf16 %v9317, %v9317
        %v9326 = vunpack.c.l.b16 %v9318
        %v9327 = vunpack.c.l.b16 %v9319
        %v9328 = vunpack.c.l.b16 %v9320
        %v9329 = vunpack.c.l.b16 %v9321
        %v9330 = vpack.c.b16 %v9327, %v9326
        %v9331 = vpack.c.b16 %v9329, %v9328
        %s9334 = scalar_lea.vmem %s2, 432
        %v9335 = vld [vmem:[%s9334] sm:$0xff]
        %v9336 = vld [vmem:[%s9334 + $0x8] sm:$0xf]
        %v9337 = vld [vmem:[%s9334 + $0xc] sm:$0xff]
        %v9338 = vld [vmem:[%s9334 + $0x14] sm:$0xf]
        %v9339 = vld [vmem:[%s9334 + $0x18] sm:$0xff]
        %v9340 = vld [vmem:[%s9334 + $0x20] sm:$0xf]
        %v9341 = vld [vmem:[%s9334 + $0x24] sm:$0xff]
        %v9342 = vld [vmem:[%s9334 + $0x2c] sm:$0xf]
        %v9351 = vunpack.c.l.b16 %v9335
        %v9352 = vunpack.c.h.b16 %v9335
        %v9353 = vunpack.c.l.b16 %v9336
        %v9354 = vunpack.c.l.b16 %v9337
        %v9355 = vunpack.c.h.b16 %v9337
        %v9356 = vunpack.c.l.b16 %v9338
        %v9357 = vunpack.c.l.b16 %v9339
        %v9358 = vunpack.c.h.b16 %v9339
        %v9359 = vunpack.c.l.b16 %v9340
        %v9360 = vunpack.c.l.b16 %v9341
        %v9361 = vunpack.c.h.b16 %v9341
        %v9362 = vunpack.c.l.b16 %v9342
        %v9363 = vpack.c.b16 %v9354, %v9351
        %v9364 = vpack.c.b16 %v9355, %v9352
        %v9365 = vpack.c.b16 %v9356, %v9353
        %v9366 = vpack.c.b16 %v9360, %v9357
        %v9367 = vpack.c.b16 %v9361, %v9358
        %v9368 = vpack.c.b16 %v9362, %v9359
        %v9374 = vsel %vm2302, %v9365, 0
        %v9377 = vsel %vm2302, %v9368, 0
        %9379 = vmatpush.bf16.msra.mxu0 0
        %9380 = vmatpush.bf16.msra.mxu0 0
        %9381 = vmatpush.bf16.msra.mxu0 0
        %9382 = vmatpush.bf16.msra.mxu0 0
        %9383 = vmatpush.bf16.msra.mxu0 0
        %9384 = vmatpush.bf16.msra.mxu0 0
        %9385 = vmatpush.bf16.msra.mxu0 0
        %9386 = vmatpush.bf16.msra.mxu0 0
        %9387 = vmatmul.bf16.gmra.mxu0 %v9363
        %v9388 = vpop.f32.mrf.mxu0
        %v9389 = vadd.f32 0.0, %v9388
        %v9390 = vpop.f32.mrf.mxu0
        %v9391 = vadd.f32 0.0, %v9390
        %9392 = vmatmul.bf16.gmra.mxu0 %v9366
        %v9393 = vpop.f32.mrf.mxu0
        %v9394 = vadd.f32 0.0, %v9393
        %v9395 = vpop.f32.mrf.mxu0
        %v9396 = vadd.f32 0.0, %v9395
        %9397 = vdwg.mxu0
        %9398 = vmatpush.bf16.msra.mxu0 0
        %9399 = vmatpush.bf16.msra.mxu0 0
        %9400 = vmatpush.bf16.msra.mxu0 0
        %9401 = vmatpush.bf16.msra.mxu0 0
        %9402 = vmatpush.bf16.msra.mxu0 0
        %9403 = vmatpush.bf16.msra.mxu0 0
        %9404 = vmatpush.bf16.msra.mxu0 %v9331
        %9405 = vmatpush.bf16.msra.mxu0 %v9330
        %9406 = vmatmul.bf16.gmra.mxu0 %v9364
        %v9407 = vpop.f32.mrf.mxu0
        %v9408 = vadd.f32 %v9389, %v9407
        %v9409 = vpop.f32.mrf.mxu0
        %v9410 = vadd.f32 %v9391, %v9409
        %9411 = vmatmul.bf16.gmra.mxu0 %v9367
        %v9412 = vpop.f32.mrf.mxu0
        %v9413 = vadd.f32 %v9394, %v9412
        %v9414 = vpop.f32.mrf.mxu0
        %v9415 = vadd.f32 %v9396, %v9414
        %9416 = vdwg.mxu0
        %9417 = vmatpush.bf16.msra.mxu0 0
        %9418 = vmatpush.bf16.msra.mxu0 0
        %9419 = vmatpush.bf16.msra.mxu0 0
        %9420 = vmatpush.bf16.msra.mxu0 0
        %9421 = vmatpush.bf16.msra.mxu0 0
        %9422 = vmatpush.bf16.msra.mxu0 0
        %9423 = vmatpush.bf16.msra.mxu0 0
        %9424 = vmatpush.bf16.msra.mxu0 0
        %9425 = vmatmul.bf16.gmra.mxu0 %v9374
        %v9426 = vpop.f32.mrf.mxu0
        %v9427 = vadd.f32 %v9408, %v9426
        %v9428 = vpop.f32.mrf.mxu0
        %v9429 = vadd.f32 %v9410, %v9428
        %9430 = vmatmul.bf16.gmra.mxu0 %v9377
        %v9431 = vpop.f32.mrf.mxu0
        %v9432 = vadd.f32 %v9413, %v9431
        %v9433 = vpop.f32.mrf.mxu0
        %v9434 = vadd.f32 %v9415, %v9433
        %9435 = vdwg.mxu0
        %s9436 = scalar_lea.vmem %s3, 320
        %v9437 = vld [vmem:[%s9436] sm:$0xff]
        %v9438 = vld [vmem:[%s9436 + $0x8] sm:$0xff]
        %v9439 = vld [vmem:[%s9436 + $0x10] sm:$0xff]
        %v9440 = vld [vmem:[%s9436 + $0x18] sm:$0xff]
        %v9441 = vmul.f32 %v9427, %v9437
        %v9442 = vmul.f32 %v9429, %v9438
        %v9443 = vmul.f32 %v9432, %v9439
        %v9444 = vmul.f32 %v9434, %v9440
        %s9445 = scalar_lea.vmem %s4, 320
        %v9446 = vld [vmem:[%s9445] sm:$0xff]
        %v9447 = vld [vmem:[%s9445 + $0x8] sm:$0xff]
        %v9448 = vld [vmem:[%s9445 + $0x10] sm:$0xff]
        %v9449 = vld [vmem:[%s9445 + $0x18] sm:$0xff]
        %v9450 = vadd.f32 %v9441, %v9446
        %v9451 = vadd.f32 %v9442, %v9447
        %v9452 = vadd.f32 %v9443, %v9448
        %v9453 = vadd.f32 %v9444, %v9449
        %s9454 = scalar_lea.vmem %s2, 480
        %v9455 = vld [vmem:[%s9454] sm:$0xff]
        %v9456 = vld [vmem:[%s9454 + $0x8] sm:$0xf]
        %v9457 = vld [vmem:[%s9454 + $0xc] sm:$0xff]
        %v9458 = vld [vmem:[%s9454 + $0x14] sm:$0xf]
        %v9459 = vld [vmem:[%s9454 + $0x18] sm:$0xff]
        %v9460 = vld [vmem:[%s9454 + $0x20] sm:$0xf]
        %v9461 = vld [vmem:[%s9454 + $0x24] sm:$0xff]
        %v9462 = vld [vmem:[%s9454 + $0x2c] sm:$0xf]
        %v9471 = vunpack.c.l.b16 %v9455
        %v9472 = vunpack.c.h.b16 %v9455
        %v9473 = vunpack.c.l.b16 %v9456
        %v9474 = vunpack.c.l.b16 %v9457
        %v9475 = vunpack.c.h.b16 %v9457
        %v9476 = vunpack.c.l.b16 %v9458
        %v9477 = vunpack.c.l.b16 %v9459
        %v9478 = vunpack.c.h.b16 %v9459
        %v9479 = vunpack.c.l.b16 %v9460
        %v9480 = vunpack.c.l.b16 %v9461
        %v9481 = vunpack.c.h.b16 %v9461
        %v9482 = vunpack.c.l.b16 %v9462
        %v9483 = vpack.c.b16 %v9474, %v9471
        %v9484 = vpack.c.b16 %v9475, %v9472
        %v9485 = vpack.c.b16 %v9476, %v9473
        %v9486 = vpack.c.b16 %v9480, %v9477
        %v9487 = vpack.c.b16 %v9481, %v9478
        %v9488 = vpack.c.b16 %v9482, %v9479
        %v9494 = vsel %vm2302, %v9485, 0
        %v9497 = vsel %vm2302, %v9488, 0
        %9499 = vmatpush.bf16.msra.mxu0 0
        %9500 = vmatpush.bf16.msra.mxu0 0
        %9501 = vmatpush.bf16.msra.mxu0 0
        %9502 = vmatpush.bf16.msra.mxu0 0
        %9503 = vmatpush.bf16.msra.mxu0 0
        %9504 = vmatpush.bf16.msra.mxu0 0
        %9505 = vmatpush.bf16.msra.mxu0 0
        %9506 = vmatpush.bf16.msra.mxu0 0
        %9507 = vmatmul.bf16.gmra.mxu0 %v9483
        %v9508 = vpop.f32.mrf.mxu0
        %v9509 = vadd.f32 0.0, %v9508
        %v9510 = vpop.f32.mrf.mxu0
        %v9511 = vadd.f32 0.0, %v9510
        %9512 = vmatmul.bf16.gmra.mxu0 %v9486
        %v9513 = vpop.f32.mrf.mxu0
        %v9514 = vadd.f32 0.0, %v9513
        %v9515 = vpop.f32.mrf.mxu0
        %v9516 = vadd.f32 0.0, %v9515
        %9517 = vdwg.mxu0
        %9518 = vmatpush.bf16.msra.mxu0 0
        %9519 = vmatpush.bf16.msra.mxu0 0
        %9520 = vmatpush.bf16.msra.mxu0 0
        %9521 = vmatpush.bf16.msra.mxu0 0
        %9522 = vmatpush.bf16.msra.mxu0 0
        %9523 = vmatpush.bf16.msra.mxu0 0
        %9524 = vmatpush.bf16.msra.mxu0 %v9331
        %9525 = vmatpush.bf16.msra.mxu0 %v9330
        %9526 = vmatmul.bf16.gmra.mxu0 %v9484
        %v9527 = vpop.f32.mrf.mxu0
        %v9528 = vadd.f32 %v9509, %v9527
        %v9529 = vpop.f32.mrf.mxu0
        %v9530 = vadd.f32 %v9511, %v9529
        %9531 = vmatmul.bf16.gmra.mxu0 %v9487
        %v9532 = vpop.f32.mrf.mxu0
        %v9533 = vadd.f32 %v9514, %v9532
        %v9534 = vpop.f32.mrf.mxu0
        %v9535 = vadd.f32 %v9516, %v9534
        %9536 = vdwg.mxu0
        %9537 = vmatpush.bf16.msra.mxu0 0
        %9538 = vmatpush.bf16.msra.mxu0 0
        %9539 = vmatpush.bf16.msra.mxu0 0
        %9540 = vmatpush.bf16.msra.mxu0 0
        %9541 = vmatpush.bf16.msra.mxu0 0
        %9542 = vmatpush.bf16.msra.mxu0 0
        %9543 = vmatpush.bf16.msra.mxu0 0
        %9544 = vmatpush.bf16.msra.mxu0 0
        %9545 = vmatmul.bf16.gmra.mxu0 %v9494
        %v9546 = vpop.f32.mrf.mxu0
        %v9547 = vadd.f32 %v9528, %v9546
        %v9548 = vpop.f32.mrf.mxu0
        %v9549 = vadd.f32 %v9530, %v9548
        %9550 = vmatmul.bf16.gmra.mxu0 %v9497
        %v9551 = vpop.f32.mrf.mxu0
        %v9552 = vadd.f32 %v9533, %v9551
        %v9553 = vpop.f32.mrf.mxu0
        %v9554 = vadd.f32 %v9535, %v9553
        %9555 = vdwg.mxu0
        %s9556 = scalar_lea.vmem %s3, 352
        %v9557 = vld [vmem:[%s9556] sm:$0xff]
        %v9558 = vld [vmem:[%s9556 + $0x8] sm:$0xff]
        %v9559 = vld [vmem:[%s9556 + $0x10] sm:$0xff]
        %v9560 = vld [vmem:[%s9556 + $0x18] sm:$0xff]
        %v9561 = vmul.f32 %v9547, %v9557
        %v9562 = vmul.f32 %v9549, %v9558
        %v9563 = vmul.f32 %v9552, %v9559
        %v9564 = vmul.f32 %v9554, %v9560
        %s9565 = scalar_lea.vmem %s4, 352
        %v9566 = vld [vmem:[%s9565] sm:$0xff]
        %v9567 = vld [vmem:[%s9565 + $0x8] sm:$0xff]
        %v9568 = vld [vmem:[%s9565 + $0x10] sm:$0xff]
        %v9569 = vld [vmem:[%s9565 + $0x18] sm:$0xff]
        %v9570 = vadd.f32 %v9561, %v9566
        %v9571 = vadd.f32 %v9562, %v9567
        %v9572 = vadd.f32 %v9563, %v9568
        %v9573 = vadd.f32 %v9564, %v9569
        %vm9574 = vcmp.ge.f32.partialorder %v9570, 0.0
        %vm9575 = vcmp.ge.f32.partialorder %v9571, 0.0
        %vm9576 = vcmp.ge.f32.partialorder %v9572, 0.0
        %vm9577 = vcmp.ge.f32.partialorder %v9573, 0.0
        %v9578 = vmul.f32 %v9570, 0.01
        %v9579 = vmul.f32 %v9571, 0.01
        %v9580 = vmul.f32 %v9572, 0.01
        %v9581 = vmul.f32 %v9573, 0.01
        %v9582 = vsel %vm9574, %v9570, %v9578
        %v9583 = vsel %vm9575, %v9571, %v9579
        %v9584 = vsel %vm9576, %v9572, %v9580
        %v9585 = vsel %vm9577, %v9573, %v9581
        %v9586 = vpack.c.bf16 %v9582, %v9582
        %v9587 = vpack.c.bf16 %v9583, %v9583
        %v9588 = vpack.c.bf16 %v9584, %v9584
        %v9589 = vpack.c.bf16 %v9585, %v9585
        %v9594 = vunpack.c.l.b16 %v9586
        %v9595 = vunpack.c.l.b16 %v9587
        %v9596 = vunpack.c.l.b16 %v9588
        %v9597 = vunpack.c.l.b16 %v9589
        %v9598 = vpack.c.b16 %v9595, %v9594
        %v9599 = vpack.c.b16 %v9597, %v9596
        %s9602 = scalar_lea.vmem %s2, 528
        %v9603 = vld [vmem:[%s9602] sm:$0xff]
        %v9604 = vld [vmem:[%s9602 + $0x8] sm:$0xf]
        %v9605 = vld [vmem:[%s9602 + $0xc] sm:$0xff]
        %v9606 = vld [vmem:[%s9602 + $0x14] sm:$0xf]
        %v9607 = vld [vmem:[%s9602 + $0x18] sm:$0xff]
        %v9608 = vld [vmem:[%s9602 + $0x20] sm:$0xf]
        %v9609 = vld [vmem:[%s9602 + $0x24] sm:$0xff]
        %v9610 = vld [vmem:[%s9602 + $0x2c] sm:$0xf]
        %v9619 = vunpack.c.l.b16 %v9603
        %v9620 = vunpack.c.h.b16 %v9603
        %v9621 = vunpack.c.l.b16 %v9604
        %v9622 = vunpack.c.l.b16 %v9605
        %v9623 = vunpack.c.h.b16 %v9605
        %v9624 = vunpack.c.l.b16 %v9606
        %v9625 = vunpack.c.l.b16 %v9607
        %v9626 = vunpack.c.h.b16 %v9607
        %v9627 = vunpack.c.l.b16 %v9608
        %v9628 = vunpack.c.l.b16 %v9609
        %v9629 = vunpack.c.h.b16 %v9609
        %v9630 = vunpack.c.l.b16 %v9610
        %v9631 = vpack.c.b16 %v9622, %v9619
        %v9632 = vpack.c.b16 %v9623, %v9620
        %v9633 = vpack.c.b16 %v9624, %v9621
        %v9634 = vpack.c.b16 %v9628, %v9625
        %v9635 = vpack.c.b16 %v9629, %v9626
        %v9636 = vpack.c.b16 %v9630, %v9627
        %v9642 = vsel %vm2302, %v9633, 0
        %v9645 = vsel %vm2302, %v9636, 0
        %9647 = vmatpush.bf16.msra.mxu0 0
        %9648 = vmatpush.bf16.msra.mxu0 0
        %9649 = vmatpush.bf16.msra.mxu0 0
        %9650 = vmatpush.bf16.msra.mxu0 0
        %9651 = vmatpush.bf16.msra.mxu0 0
        %9652 = vmatpush.bf16.msra.mxu0 0
        %9653 = vmatpush.bf16.msra.mxu0 0
        %9654 = vmatpush.bf16.msra.mxu0 0
        %9655 = vmatmul.bf16.gmra.mxu0 %v9631
        %v9656 = vpop.f32.mrf.mxu0
        %v9657 = vadd.f32 0.0, %v9656
        %v9658 = vpop.f32.mrf.mxu0
        %v9659 = vadd.f32 0.0, %v9658
        %9660 = vmatmul.bf16.gmra.mxu0 %v9634
        %v9661 = vpop.f32.mrf.mxu0
        %v9662 = vadd.f32 0.0, %v9661
        %v9663 = vpop.f32.mrf.mxu0
        %v9664 = vadd.f32 0.0, %v9663
        %9665 = vdwg.mxu0
        %9666 = vmatpush.bf16.msra.mxu0 0
        %9667 = vmatpush.bf16.msra.mxu0 0
        %9668 = vmatpush.bf16.msra.mxu0 0
        %9669 = vmatpush.bf16.msra.mxu0 0
        %9670 = vmatpush.bf16.msra.mxu0 0
        %9671 = vmatpush.bf16.msra.mxu0 0
        %9672 = vmatpush.bf16.msra.mxu0 %v9599
        %9673 = vmatpush.bf16.msra.mxu0 %v9598
        %9674 = vmatmul.bf16.gmra.mxu0 %v9632
        %v9675 = vpop.f32.mrf.mxu0
        %v9676 = vadd.f32 %v9657, %v9675
        %v9677 = vpop.f32.mrf.mxu0
        %v9678 = vadd.f32 %v9659, %v9677
        %9679 = vmatmul.bf16.gmra.mxu0 %v9635
        %v9680 = vpop.f32.mrf.mxu0
        %v9681 = vadd.f32 %v9662, %v9680
        %v9682 = vpop.f32.mrf.mxu0
        %v9683 = vadd.f32 %v9664, %v9682
        %9684 = vdwg.mxu0
        %9685 = vmatpush.bf16.msra.mxu0 0
        %9686 = vmatpush.bf16.msra.mxu0 0
        %9687 = vmatpush.bf16.msra.mxu0 0
        %9688 = vmatpush.bf16.msra.mxu0 0
        %9689 = vmatpush.bf16.msra.mxu0 0
        %9690 = vmatpush.bf16.msra.mxu0 0
        %9691 = vmatpush.bf16.msra.mxu0 0
        %9692 = vmatpush.bf16.msra.mxu0 0
        %9693 = vmatmul.bf16.gmra.mxu0 %v9642
        %v9694 = vpop.f32.mrf.mxu0
        %v9695 = vadd.f32 %v9676, %v9694
        %v9696 = vpop.f32.mrf.mxu0
        %v9697 = vadd.f32 %v9678, %v9696
        %9698 = vmatmul.bf16.gmra.mxu0 %v9645
        %v9699 = vpop.f32.mrf.mxu0
        %v9700 = vadd.f32 %v9681, %v9699
        %v9701 = vpop.f32.mrf.mxu0
        %v9702 = vadd.f32 %v9683, %v9701
        %9703 = vdwg.mxu0
        %s9704 = scalar_lea.vmem %s3, 384
        %v9705 = vld [vmem:[%s9704] sm:$0xff]
        %v9706 = vld [vmem:[%s9704 + $0x8] sm:$0xff]
        %v9707 = vld [vmem:[%s9704 + $0x10] sm:$0xff]
        %v9708 = vld [vmem:[%s9704 + $0x18] sm:$0xff]
        %v9709 = vmul.f32 %v9695, %v9705
        %v9710 = vmul.f32 %v9697, %v9706
        %v9711 = vmul.f32 %v9700, %v9707
        %v9712 = vmul.f32 %v9702, %v9708
        %s9713 = scalar_lea.vmem %s4, 384
        %v9714 = vld [vmem:[%s9713] sm:$0xff]
        %v9715 = vld [vmem:[%s9713 + $0x8] sm:$0xff]
        %v9716 = vld [vmem:[%s9713 + $0x10] sm:$0xff]
        %v9717 = vld [vmem:[%s9713 + $0x18] sm:$0xff]
        %v9718 = vadd.f32 %v9709, %v9714
        %v9719 = vadd.f32 %v9710, %v9715
        %v9720 = vadd.f32 %v9711, %v9716
        %v9721 = vadd.f32 %v9712, %v9717
        %v9722 = vadd.f32 %v9718, %v9450
        %v9723 = vadd.f32 %v9719, %v9451
        %v9724 = vadd.f32 %v9720, %v9452
        %v9725 = vadd.f32 %v9721, %v9453
        %v9726 = vpack.c.bf16 %v9722, %v9722
        %v9727 = vpack.c.bf16 %v9723, %v9723
        %v9728 = vpack.c.bf16 %v9724, %v9724
        %v9729 = vpack.c.bf16 %v9725, %v9725
        %v9734 = vunpack.c.l.b16 %v9726
        %v9735 = vunpack.c.l.b16 %v9727
        %v9736 = vunpack.c.l.b16 %v9728
        %v9737 = vunpack.c.l.b16 %v9729
        %v9738 = vpack.c.b16 %v9735, %v9734
        %v9739 = vpack.c.b16 %v9737, %v9736
        %s9742 = scalar_lea.vmem %s2, 576
        %v9743 = vld [vmem:[%s9742] sm:$0xff]
        %v9744 = vld [vmem:[%s9742 + $0x8] sm:$0xf]
        %v9745 = vld [vmem:[%s9742 + $0xc] sm:$0xff]
        %v9746 = vld [vmem:[%s9742 + $0x14] sm:$0xf]
        %v9747 = vld [vmem:[%s9742 + $0x18] sm:$0xff]
        %v9748 = vld [vmem:[%s9742 + $0x20] sm:$0xf]
        %v9749 = vld [vmem:[%s9742 + $0x24] sm:$0xff]
        %v9750 = vld [vmem:[%s9742 + $0x2c] sm:$0xf]
        %v9759 = vunpack.c.l.b16 %v9743
        %v9760 = vunpack.c.h.b16 %v9743
        %v9761 = vunpack.c.l.b16 %v9744
        %v9762 = vunpack.c.l.b16 %v9745
        %v9763 = vunpack.c.h.b16 %v9745
        %v9764 = vunpack.c.l.b16 %v9746
        %v9765 = vunpack.c.l.b16 %v9747
        %v9766 = vunpack.c.h.b16 %v9747
        %v9767 = vunpack.c.l.b16 %v9748
        %v9768 = vunpack.c.l.b16 %v9749
        %v9769 = vunpack.c.h.b16 %v9749
        %v9770 = vunpack.c.l.b16 %v9750
        %v9771 = vpack.c.b16 %v9762, %v9759
        %v9772 = vpack.c.b16 %v9763, %v9760
        %v9773 = vpack.c.b16 %v9764, %v9761
        %v9774 = vpack.c.b16 %v9768, %v9765
        %v9775 = vpack.c.b16 %v9769, %v9766
        %v9776 = vpack.c.b16 %v9770, %v9767
        %v9782 = vsel %vm2302, %v9773, 0
        %v9785 = vsel %vm2302, %v9776, 0
        %9787 = vmatpush.bf16.msra.mxu0 0
        %9788 = vmatpush.bf16.msra.mxu0 0
        %9789 = vmatpush.bf16.msra.mxu0 0
        %9790 = vmatpush.bf16.msra.mxu0 0
        %9791 = vmatpush.bf16.msra.mxu0 0
        %9792 = vmatpush.bf16.msra.mxu0 0
        %9793 = vmatpush.bf16.msra.mxu0 0
        %9794 = vmatpush.bf16.msra.mxu0 0
        %9795 = vmatmul.bf16.gmra.mxu0 %v9771
        %v9796 = vpop.f32.mrf.mxu0
        %v9797 = vadd.f32 0.0, %v9796
        %v9798 = vpop.f32.mrf.mxu0
        %v9799 = vadd.f32 0.0, %v9798
        %9800 = vmatmul.bf16.gmra.mxu0 %v9774
        %v9801 = vpop.f32.mrf.mxu0
        %v9802 = vadd.f32 0.0, %v9801
        %v9803 = vpop.f32.mrf.mxu0
        %v9804 = vadd.f32 0.0, %v9803
        %9805 = vdwg.mxu0
        %9806 = vmatpush.bf16.msra.mxu0 0
        %9807 = vmatpush.bf16.msra.mxu0 0
        %9808 = vmatpush.bf16.msra.mxu0 0
        %9809 = vmatpush.bf16.msra.mxu0 0
        %9810 = vmatpush.bf16.msra.mxu0 0
        %9811 = vmatpush.bf16.msra.mxu0 0
        %9812 = vmatpush.bf16.msra.mxu0 %v9739
        %9813 = vmatpush.bf16.msra.mxu0 %v9738
        %9814 = vmatmul.bf16.gmra.mxu0 %v9772
        %v9815 = vpop.f32.mrf.mxu0
        %v9816 = vadd.f32 %v9797, %v9815
        %v9817 = vpop.f32.mrf.mxu0
        %v9818 = vadd.f32 %v9799, %v9817
        %9819 = vmatmul.bf16.gmra.mxu0 %v9775
        %v9820 = vpop.f32.mrf.mxu0
        %v9821 = vadd.f32 %v9802, %v9820
        %v9822 = vpop.f32.mrf.mxu0
        %v9823 = vadd.f32 %v9804, %v9822
        %9824 = vdwg.mxu0
        %9825 = vmatpush.bf16.msra.mxu0 0
        %9826 = vmatpush.bf16.msra.mxu0 0
        %9827 = vmatpush.bf16.msra.mxu0 0
        %9828 = vmatpush.bf16.msra.mxu0 0
        %9829 = vmatpush.bf16.msra.mxu0 0
        %9830 = vmatpush.bf16.msra.mxu0 0
        %9831 = vmatpush.bf16.msra.mxu0 0
        %9832 = vmatpush.bf16.msra.mxu0 0
        %9833 = vmatmul.bf16.gmra.mxu0 %v9782
        %v9834 = vpop.f32.mrf.mxu0
        %v9835 = vadd.f32 %v9816, %v9834
        %v9836 = vpop.f32.mrf.mxu0
        %v9837 = vadd.f32 %v9818, %v9836
        %9838 = vmatmul.bf16.gmra.mxu0 %v9785
        %v9839 = vpop.f32.mrf.mxu0
        %v9840 = vadd.f32 %v9821, %v9839
        %v9841 = vpop.f32.mrf.mxu0
        %v9842 = vadd.f32 %v9823, %v9841
        %9843 = vdwg.mxu0
        %s9844 = scalar_lea.vmem %s3, 416
        %v9845 = vld [vmem:[%s9844] sm:$0xff]
        %v9846 = vld [vmem:[%s9844 + $0x8] sm:$0xff]
        %v9847 = vld [vmem:[%s9844 + $0x10] sm:$0xff]
        %v9848 = vld [vmem:[%s9844 + $0x18] sm:$0xff]
        %v9849 = vmul.f32 %v9835, %v9845
        %v9850 = vmul.f32 %v9837, %v9846
        %v9851 = vmul.f32 %v9840, %v9847
        %v9852 = vmul.f32 %v9842, %v9848
        %s9853 = scalar_lea.vmem %s4, 416
        %v9854 = vld [vmem:[%s9853] sm:$0xff]
        %v9855 = vld [vmem:[%s9853 + $0x8] sm:$0xff]
        %v9856 = vld [vmem:[%s9853 + $0x10] sm:$0xff]
        %v9857 = vld [vmem:[%s9853 + $0x18] sm:$0xff]
        %v9858 = vadd.f32 %v9849, %v9854
        %v9859 = vadd.f32 %v9850, %v9855
        %v9860 = vadd.f32 %v9851, %v9856
        %v9861 = vadd.f32 %v9852, %v9857
        %s9862 = scalar_lea.vmem %s2, 624
        %v9863 = vld [vmem:[%s9862] sm:$0xff]
        %v9864 = vld [vmem:[%s9862 + $0x8] sm:$0xf]
        %v9865 = vld [vmem:[%s9862 + $0xc] sm:$0xff]
        %v9866 = vld [vmem:[%s9862 + $0x14] sm:$0xf]
        %v9867 = vld [vmem:[%s9862 + $0x18] sm:$0xff]
        %v9868 = vld [vmem:[%s9862 + $0x20] sm:$0xf]
        %v9869 = vld [vmem:[%s9862 + $0x24] sm:$0xff]
        %v9870 = vld [vmem:[%s9862 + $0x2c] sm:$0xf]
        %v9879 = vunpack.c.l.b16 %v9863
        %v9880 = vunpack.c.h.b16 %v9863
        %v9881 = vunpack.c.l.b16 %v9864
        %v9882 = vunpack.c.l.b16 %v9865
        %v9883 = vunpack.c.h.b16 %v9865
        %v9884 = vunpack.c.l.b16 %v9866
        %v9885 = vunpack.c.l.b16 %v9867
        %v9886 = vunpack.c.h.b16 %v9867
        %v9887 = vunpack.c.l.b16 %v9868
        %v9888 = vunpack.c.l.b16 %v9869
        %v9889 = vunpack.c.h.b16 %v9869
        %v9890 = vunpack.c.l.b16 %v9870
        %v9891 = vpack.c.b16 %v9882, %v9879
        %v9892 = vpack.c.b16 %v9883, %v9880
        %v9893 = vpack.c.b16 %v9884, %v9881
        %v9894 = vpack.c.b16 %v9888, %v9885
        %v9895 = vpack.c.b16 %v9889, %v9886
        %v9896 = vpack.c.b16 %v9890, %v9887
        %v9902 = vsel %vm2302, %v9893, 0
        %v9905 = vsel %vm2302, %v9896, 0
        %9907 = vmatpush.bf16.msra.mxu0 0
        %9908 = vmatpush.bf16.msra.mxu0 0
        %9909 = vmatpush.bf16.msra.mxu0 0
        %9910 = vmatpush.bf16.msra.mxu0 0
        %9911 = vmatpush.bf16.msra.mxu0 0
        %9912 = vmatpush.bf16.msra.mxu0 0
        %9913 = vmatpush.bf16.msra.mxu0 0
        %9914 = vmatpush.bf16.msra.mxu0 0
        %9915 = vmatmul.bf16.gmra.mxu0 %v9891
        %v9916 = vpop.f32.mrf.mxu0
        %v9917 = vadd.f32 0.0, %v9916
        %v9918 = vpop.f32.mrf.mxu0
        %v9919 = vadd.f32 0.0, %v9918
        %9920 = vmatmul.bf16.gmra.mxu0 %v9894
        %v9921 = vpop.f32.mrf.mxu0
        %v9922 = vadd.f32 0.0, %v9921
        %v9923 = vpop.f32.mrf.mxu0
        %v9924 = vadd.f32 0.0, %v9923
        %9925 = vdwg.mxu0
        %9926 = vmatpush.bf16.msra.mxu0 0
        %9927 = vmatpush.bf16.msra.mxu0 0
        %9928 = vmatpush.bf16.msra.mxu0 0
        %9929 = vmatpush.bf16.msra.mxu0 0
        %9930 = vmatpush.bf16.msra.mxu0 0
        %9931 = vmatpush.bf16.msra.mxu0 0
        %9932 = vmatpush.bf16.msra.mxu0 %v9739
        %9933 = vmatpush.bf16.msra.mxu0 %v9738
        %9934 = vmatmul.bf16.gmra.mxu0 %v9892
        %v9935 = vpop.f32.mrf.mxu0
        %v9936 = vadd.f32 %v9917, %v9935
        %v9937 = vpop.f32.mrf.mxu0
        %v9938 = vadd.f32 %v9919, %v9937
        %9939 = vmatmul.bf16.gmra.mxu0 %v9895
        %v9940 = vpop.f32.mrf.mxu0
        %v9941 = vadd.f32 %v9922, %v9940
        %v9942 = vpop.f32.mrf.mxu0
        %v9943 = vadd.f32 %v9924, %v9942
        %9944 = vdwg.mxu0
        %9945 = vmatpush.bf16.msra.mxu0 0
        %9946 = vmatpush.bf16.msra.mxu0 0
        %9947 = vmatpush.bf16.msra.mxu0 0
        %9948 = vmatpush.bf16.msra.mxu0 0
        %9949 = vmatpush.bf16.msra.mxu0 0
        %9950 = vmatpush.bf16.msra.mxu0 0
        %9951 = vmatpush.bf16.msra.mxu0 0
        %9952 = vmatpush.bf16.msra.mxu0 0
        %9953 = vmatmul.bf16.gmra.mxu0 %v9902
        %v9954 = vpop.f32.mrf.mxu0
        %v9955 = vadd.f32 %v9936, %v9954
        %v9956 = vpop.f32.mrf.mxu0
        %v9957 = vadd.f32 %v9938, %v9956
        %9958 = vmatmul.bf16.gmra.mxu0 %v9905
        %v9959 = vpop.f32.mrf.mxu0
        %v9960 = vadd.f32 %v9941, %v9959
        %v9961 = vpop.f32.mrf.mxu0
        %v9962 = vadd.f32 %v9943, %v9961
        %9963 = vdwg.mxu0
        %s9964 = scalar_lea.vmem %s3, 448
        %v9965 = vld [vmem:[%s9964] sm:$0xff]
        %v9966 = vld [vmem:[%s9964 + $0x8] sm:$0xff]
        %v9967 = vld [vmem:[%s9964 + $0x10] sm:$0xff]
        %v9968 = vld [vmem:[%s9964 + $0x18] sm:$0xff]
        %v9969 = vmul.f32 %v9955, %v9965
        %v9970 = vmul.f32 %v9957, %v9966
        %v9971 = vmul.f32 %v9960, %v9967
        %v9972 = vmul.f32 %v9962, %v9968
        %s9973 = scalar_lea.vmem %s4, 448
        %v9974 = vld [vmem:[%s9973] sm:$0xff]
        %v9975 = vld [vmem:[%s9973 + $0x8] sm:$0xff]
        %v9976 = vld [vmem:[%s9973 + $0x10] sm:$0xff]
        %v9977 = vld [vmem:[%s9973 + $0x18] sm:$0xff]
        %v9978 = vadd.f32 %v9969, %v9974
        %v9979 = vadd.f32 %v9970, %v9975
        %v9980 = vadd.f32 %v9971, %v9976
        %v9981 = vadd.f32 %v9972, %v9977
        %vm9982 = vcmp.ge.f32.partialorder %v9978, 0.0
        %vm9983 = vcmp.ge.f32.partialorder %v9979, 0.0
        %vm9984 = vcmp.ge.f32.partialorder %v9980, 0.0
        %vm9985 = vcmp.ge.f32.partialorder %v9981, 0.0
        %v9986 = vmul.f32 %v9978, 0.01
        %v9987 = vmul.f32 %v9979, 0.01
        %v9988 = vmul.f32 %v9980, 0.01
        %v9989 = vmul.f32 %v9981, 0.01
        %v9990 = vsel %vm9982, %v9978, %v9986
        %v9991 = vsel %vm9983, %v9979, %v9987
        %v9992 = vsel %vm9984, %v9980, %v9988
        %v9993 = vsel %vm9985, %v9981, %v9989
        %v9994 = vpack.c.bf16 %v9990, %v9990
        %v9995 = vpack.c.bf16 %v9991, %v9991
        %v9996 = vpack.c.bf16 %v9992, %v9992
        %v9997 = vpack.c.bf16 %v9993, %v9993
        %v10002 = vunpack.c.l.b16 %v9994
        %v10003 = vunpack.c.l.b16 %v9995
        %v10004 = vunpack.c.l.b16 %v9996
        %v10005 = vunpack.c.l.b16 %v9997
        %v10006 = vpack.c.b16 %v10003, %v10002
        %v10007 = vpack.c.b16 %v10005, %v10004
        %s10010 = scalar_lea.vmem %s2, 672
        %v10011 = vld [vmem:[%s10010] sm:$0xff]
        %v10012 = vld [vmem:[%s10010 + $0x8] sm:$0xf]
        %v10013 = vld [vmem:[%s10010 + $0xc] sm:$0xff]
        %v10014 = vld [vmem:[%s10010 + $0x14] sm:$0xf]
        %v10015 = vld [vmem:[%s10010 + $0x18] sm:$0xff]
        %v10016 = vld [vmem:[%s10010 + $0x20] sm:$0xf]
        %v10017 = vld [vmem:[%s10010 + $0x24] sm:$0xff]
        %v10018 = vld [vmem:[%s10010 + $0x2c] sm:$0xf]
        %v10027 = vunpack.c.l.b16 %v10011
        %v10028 = vunpack.c.h.b16 %v10011
        %v10029 = vunpack.c.l.b16 %v10012
        %v10030 = vunpack.c.l.b16 %v10013
        %v10031 = vunpack.c.h.b16 %v10013
        %v10032 = vunpack.c.l.b16 %v10014
        %v10033 = vunpack.c.l.b16 %v10015
        %v10034 = vunpack.c.h.b16 %v10015
        %v10035 = vunpack.c.l.b16 %v10016
        %v10036 = vunpack.c.l.b16 %v10017
        %v10037 = vunpack.c.h.b16 %v10017
        %v10038 = vunpack.c.l.b16 %v10018
        %v10039 = vpack.c.b16 %v10030, %v10027
        %v10040 = vpack.c.b16 %v10031, %v10028
        %v10041 = vpack.c.b16 %v10032, %v10029
        %v10042 = vpack.c.b16 %v10036, %v10033
        %v10043 = vpack.c.b16 %v10037, %v10034
        %v10044 = vpack.c.b16 %v10038, %v10035
        %v10050 = vsel %vm2302, %v10041, 0
        %v10053 = vsel %vm2302, %v10044, 0
        %10055 = vmatpush.bf16.msra.mxu0 0
        %10056 = vmatpush.bf16.msra.mxu0 0
        %10057 = vmatpush.bf16.msra.mxu0 0
        %10058 = vmatpush.bf16.msra.mxu0 0
        %10059 = vmatpush.bf16.msra.mxu0 0
        %10060 = vmatpush.bf16.msra.mxu0 0
        %10061 = vmatpush.bf16.msra.mxu0 0
        %10062 = vmatpush.bf16.msra.mxu0 0
        %10063 = vmatmul.bf16.gmra.mxu0 %v10039
        %v10064 = vpop.f32.mrf.mxu0
        %v10065 = vadd.f32 0.0, %v10064
        %v10066 = vpop.f32.mrf.mxu0
        %v10067 = vadd.f32 0.0, %v10066
        %10068 = vmatmul.bf16.gmra.mxu0 %v10042
        %v10069 = vpop.f32.mrf.mxu0
        %v10070 = vadd.f32 0.0, %v10069
        %v10071 = vpop.f32.mrf.mxu0
        %v10072 = vadd.f32 0.0, %v10071
        %10073 = vdwg.mxu0
        %10074 = vmatpush.bf16.msra.mxu0 0
        %10075 = vmatpush.bf16.msra.mxu0 0
        %10076 = vmatpush.bf16.msra.mxu0 0
        %10077 = vmatpush.bf16.msra.mxu0 0
        %10078 = vmatpush.bf16.msra.mxu0 0
        %10079 = vmatpush.bf16.msra.mxu0 0
        %10080 = vmatpush.bf16.msra.mxu0 %v10007
        %10081 = vmatpush.bf16.msra.mxu0 %v10006
        %10082 = vmatmul.bf16.gmra.mxu0 %v10040
        %v10083 = vpop.f32.mrf.mxu0
        %v10084 = vadd.f32 %v10065, %v10083
        %v10085 = vpop.f32.mrf.mxu0
        %v10086 = vadd.f32 %v10067, %v10085
        %10087 = vmatmul.bf16.gmra.mxu0 %v10043
        %v10088 = vpop.f32.mrf.mxu0
        %v10089 = vadd.f32 %v10070, %v10088
        %v10090 = vpop.f32.mrf.mxu0
        %v10091 = vadd.f32 %v10072, %v10090
        %10092 = vdwg.mxu0
        %10093 = vmatpush.bf16.msra.mxu0 0
        %10094 = vmatpush.bf16.msra.mxu0 0
        %10095 = vmatpush.bf16.msra.mxu0 0
        %10096 = vmatpush.bf16.msra.mxu0 0
        %10097 = vmatpush.bf16.msra.mxu0 0
        %10098 = vmatpush.bf16.msra.mxu0 0
        %10099 = vmatpush.bf16.msra.mxu0 0
        %10100 = vmatpush.bf16.msra.mxu0 0
        %10101 = vmatmul.bf16.gmra.mxu0 %v10050
        %v10102 = vpop.f32.mrf.mxu0
        %v10103 = vadd.f32 %v10084, %v10102
        %v10104 = vpop.f32.mrf.mxu0
        %v10105 = vadd.f32 %v10086, %v10104
        %10106 = vmatmul.bf16.gmra.mxu0 %v10053
        %v10107 = vpop.f32.mrf.mxu0
        %v10108 = vadd.f32 %v10089, %v10107
        %v10109 = vpop.f32.mrf.mxu0
        %v10110 = vadd.f32 %v10091, %v10109
        %10111 = vdwg.mxu0
        %s10112 = scalar_lea.vmem %s3, 480
        %v10113 = vld [vmem:[%s10112] sm:$0xff]
        %v10114 = vld [vmem:[%s10112 + $0x8] sm:$0xff]
        %v10115 = vld [vmem:[%s10112 + $0x10] sm:$0xff]
        %v10116 = vld [vmem:[%s10112 + $0x18] sm:$0xff]
        %v10117 = vmul.f32 %v10103, %v10113
        %v10118 = vmul.f32 %v10105, %v10114
        %v10119 = vmul.f32 %v10108, %v10115
        %v10120 = vmul.f32 %v10110, %v10116
        %s10121 = scalar_lea.vmem %s4, 480
        %v10122 = vld [vmem:[%s10121] sm:$0xff]
        %v10123 = vld [vmem:[%s10121 + $0x8] sm:$0xff]
        %v10124 = vld [vmem:[%s10121 + $0x10] sm:$0xff]
        %v10125 = vld [vmem:[%s10121 + $0x18] sm:$0xff]
        %v10126 = vadd.f32 %v10117, %v10122
        %v10127 = vadd.f32 %v10118, %v10123
        %v10128 = vadd.f32 %v10119, %v10124
        %v10129 = vadd.f32 %v10120, %v10125
        %v10130 = vadd.f32 %v10126, %v9858
        %v10131 = vadd.f32 %v10127, %v9859
        %v10132 = vadd.f32 %v10128, %v9860
        %v10133 = vadd.f32 %v10129, %v9861
        %v10134 = vpack.c.bf16 %v10130, %v10130
        %v10135 = vpack.c.bf16 %v10131, %v10131
        %v10136 = vpack.c.bf16 %v10132, %v10132
        %v10137 = vpack.c.bf16 %v10133, %v10133
        %v10142 = vunpack.c.l.b16 %v10134
        %v10143 = vunpack.c.l.b16 %v10135
        %v10144 = vunpack.c.l.b16 %v10136
        %v10145 = vunpack.c.l.b16 %v10137
        %v10146 = vpack.c.b16 %v10143, %v10142
        %v10147 = vpack.c.b16 %v10145, %v10144
        %s10150 = scalar_lea.vmem %s2, 720
        %v10151 = vld [vmem:[%s10150] sm:$0xff]
        %v10152 = vld [vmem:[%s10150 + $0x8] sm:$0xf]
        %v10153 = vld [vmem:[%s10150 + $0xc] sm:$0xff]
        %v10154 = vld [vmem:[%s10150 + $0x14] sm:$0xf]
        %v10155 = vld [vmem:[%s10150 + $0x18] sm:$0xff]
        %v10156 = vld [vmem:[%s10150 + $0x20] sm:$0xf]
        %v10157 = vld [vmem:[%s10150 + $0x24] sm:$0xff]
        %v10158 = vld [vmem:[%s10150 + $0x2c] sm:$0xf]
        %v10167 = vunpack.c.l.b16 %v10151
        %v10168 = vunpack.c.h.b16 %v10151
        %v10169 = vunpack.c.l.b16 %v10152
        %v10170 = vunpack.c.l.b16 %v10153
        %v10171 = vunpack.c.h.b16 %v10153
        %v10172 = vunpack.c.l.b16 %v10154
        %v10173 = vunpack.c.l.b16 %v10155
        %v10174 = vunpack.c.h.b16 %v10155
        %v10175 = vunpack.c.l.b16 %v10156
        %v10176 = vunpack.c.l.b16 %v10157
        %v10177 = vunpack.c.h.b16 %v10157
        %v10178 = vunpack.c.l.b16 %v10158
        %v10179 = vpack.c.b16 %v10170, %v10167
        %v10180 = vpack.c.b16 %v10171, %v10168
        %v10181 = vpack.c.b16 %v10172, %v10169
        %v10182 = vpack.c.b16 %v10176, %v10173
        %v10183 = vpack.c.b16 %v10177, %v10174
        %v10184 = vpack.c.b16 %v10178, %v10175
        %v10190 = vsel %vm2302, %v10181, 0
        %v10193 = vsel %vm2302, %v10184, 0
        %10195 = vmatpush.bf16.msra.mxu0 0
        %10196 = vmatpush.bf16.msra.mxu0 0
        %10197 = vmatpush.bf16.msra.mxu0 0
        %10198 = vmatpush.bf16.msra.mxu0 0
        %10199 = vmatpush.bf16.msra.mxu0 0
        %10200 = vmatpush.bf16.msra.mxu0 0
        %10201 = vmatpush.bf16.msra.mxu0 0
        %10202 = vmatpush.bf16.msra.mxu0 0
        %10203 = vmatmul.bf16.gmra.mxu0 %v10179
        %v10204 = vpop.f32.mrf.mxu0
        %v10205 = vadd.f32 0.0, %v10204
        %v10206 = vpop.f32.mrf.mxu0
        %v10207 = vadd.f32 0.0, %v10206
        %10208 = vmatmul.bf16.gmra.mxu0 %v10182
        %v10209 = vpop.f32.mrf.mxu0
        %v10210 = vadd.f32 0.0, %v10209
        %v10211 = vpop.f32.mrf.mxu0
        %v10212 = vadd.f32 0.0, %v10211
        %10213 = vdwg.mxu0
        %10214 = vmatpush.bf16.msra.mxu0 0
        %10215 = vmatpush.bf16.msra.mxu0 0
        %10216 = vmatpush.bf16.msra.mxu0 0
        %10217 = vmatpush.bf16.msra.mxu0 0
        %10218 = vmatpush.bf16.msra.mxu0 0
        %10219 = vmatpush.bf16.msra.mxu0 0
        %10220 = vmatpush.bf16.msra.mxu0 %v10147
        %10221 = vmatpush.bf16.msra.mxu0 %v10146
        %10222 = vmatmul.bf16.gmra.mxu0 %v10180
        %v10223 = vpop.f32.mrf.mxu0
        %v10224 = vadd.f32 %v10205, %v10223
        %v10225 = vpop.f32.mrf.mxu0
        %v10226 = vadd.f32 %v10207, %v10225
        %10227 = vmatmul.bf16.gmra.mxu0 %v10183
        %v10228 = vpop.f32.mrf.mxu0
        %v10229 = vadd.f32 %v10210, %v10228
        %v10230 = vpop.f32.mrf.mxu0
        %v10231 = vadd.f32 %v10212, %v10230
        %10232 = vdwg.mxu0
        %10233 = vmatpush.bf16.msra.mxu0 0
        %10234 = vmatpush.bf16.msra.mxu0 0
        %10235 = vmatpush.bf16.msra.mxu0 0
        %10236 = vmatpush.bf16.msra.mxu0 0
        %10237 = vmatpush.bf16.msra.mxu0 0
        %10238 = vmatpush.bf16.msra.mxu0 0
        %10239 = vmatpush.bf16.msra.mxu0 0
        %10240 = vmatpush.bf16.msra.mxu0 0
        %10241 = vmatmul.bf16.gmra.mxu0 %v10190
        %v10242 = vpop.f32.mrf.mxu0
        %v10243 = vadd.f32 %v10224, %v10242
        %v10244 = vpop.f32.mrf.mxu0
        %v10245 = vadd.f32 %v10226, %v10244
        %10246 = vmatmul.bf16.gmra.mxu0 %v10193
        %v10247 = vpop.f32.mrf.mxu0
        %v10248 = vadd.f32 %v10229, %v10247
        %v10249 = vpop.f32.mrf.mxu0
        %v10250 = vadd.f32 %v10231, %v10249
        %10251 = vdwg.mxu0
        %s10252 = scalar_lea.vmem %s3, 512
        %v10253 = vld [vmem:[%s10252] sm:$0xff]
        %v10254 = vld [vmem:[%s10252 + $0x8] sm:$0xff]
        %v10255 = vld [vmem:[%s10252 + $0x10] sm:$0xff]
        %v10256 = vld [vmem:[%s10252 + $0x18] sm:$0xff]
        %v10257 = vmul.f32 %v10243, %v10253
        %v10258 = vmul.f32 %v10245, %v10254
        %v10259 = vmul.f32 %v10248, %v10255
        %v10260 = vmul.f32 %v10250, %v10256
        %s10261 = scalar_lea.vmem %s4, 512
        %v10262 = vld [vmem:[%s10261] sm:$0xff]
        %v10263 = vld [vmem:[%s10261 + $0x8] sm:$0xff]
        %v10264 = vld [vmem:[%s10261 + $0x10] sm:$0xff]
        %v10265 = vld [vmem:[%s10261 + $0x18] sm:$0xff]
        %v10266 = vadd.f32 %v10257, %v10262
        %v10267 = vadd.f32 %v10258, %v10263
        %v10268 = vadd.f32 %v10259, %v10264
        %v10269 = vadd.f32 %v10260, %v10265
        %s10270 = scalar_lea.vmem %s2, 768
        %v10271 = vld [vmem:[%s10270] sm:$0xff]
        %v10272 = vld [vmem:[%s10270 + $0x8] sm:$0xf]
        %v10273 = vld [vmem:[%s10270 + $0xc] sm:$0xff]
        %v10274 = vld [vmem:[%s10270 + $0x14] sm:$0xf]
        %v10275 = vld [vmem:[%s10270 + $0x18] sm:$0xff]
        %v10276 = vld [vmem:[%s10270 + $0x20] sm:$0xf]
        %v10277 = vld [vmem:[%s10270 + $0x24] sm:$0xff]
        %v10278 = vld [vmem:[%s10270 + $0x2c] sm:$0xf]
        %v10287 = vunpack.c.l.b16 %v10271
        %v10288 = vunpack.c.h.b16 %v10271
        %v10289 = vunpack.c.l.b16 %v10272
        %v10290 = vunpack.c.l.b16 %v10273
        %v10291 = vunpack.c.h.b16 %v10273
        %v10292 = vunpack.c.l.b16 %v10274
        %v10293 = vunpack.c.l.b16 %v10275
        %v10294 = vunpack.c.h.b16 %v10275
        %v10295 = vunpack.c.l.b16 %v10276
        %v10296 = vunpack.c.l.b16 %v10277
        %v10297 = vunpack.c.h.b16 %v10277
        %v10298 = vunpack.c.l.b16 %v10278
        %v10299 = vpack.c.b16 %v10290, %v10287
        %v10300 = vpack.c.b16 %v10291, %v10288
        %v10301 = vpack.c.b16 %v10292, %v10289
        %v10302 = vpack.c.b16 %v10296, %v10293
        %v10303 = vpack.c.b16 %v10297, %v10294
        %v10304 = vpack.c.b16 %v10298, %v10295
        %v10310 = vsel %vm2302, %v10301, 0
        %v10313 = vsel %vm2302, %v10304, 0
        %10315 = vmatpush.bf16.msra.mxu0 0
        %10316 = vmatpush.bf16.msra.mxu0 0
        %10317 = vmatpush.bf16.msra.mxu0 0
        %10318 = vmatpush.bf16.msra.mxu0 0
        %10319 = vmatpush.bf16.msra.mxu0 0
        %10320 = vmatpush.bf16.msra.mxu0 0
        %10321 = vmatpush.bf16.msra.mxu0 0
        %10322 = vmatpush.bf16.msra.mxu0 0
        %10323 = vmatmul.bf16.gmra.mxu0 %v10299
        %v10324 = vpop.f32.mrf.mxu0
        %v10325 = vadd.f32 0.0, %v10324
        %v10326 = vpop.f32.mrf.mxu0
        %v10327 = vadd.f32 0.0, %v10326
        %10328 = vmatmul.bf16.gmra.mxu0 %v10302
        %v10329 = vpop.f32.mrf.mxu0
        %v10330 = vadd.f32 0.0, %v10329
        %v10331 = vpop.f32.mrf.mxu0
        %v10332 = vadd.f32 0.0, %v10331
        %10333 = vdwg.mxu0
        %10334 = vmatpush.bf16.msra.mxu0 0
        %10335 = vmatpush.bf16.msra.mxu0 0
        %10336 = vmatpush.bf16.msra.mxu0 0
        %10337 = vmatpush.bf16.msra.mxu0 0
        %10338 = vmatpush.bf16.msra.mxu0 0
        %10339 = vmatpush.bf16.msra.mxu0 0
        %10340 = vmatpush.bf16.msra.mxu0 %v10147
        %10341 = vmatpush.bf16.msra.mxu0 %v10146
        %10342 = vmatmul.bf16.gmra.mxu0 %v10300
        %v10343 = vpop.f32.mrf.mxu0
        %v10344 = vadd.f32 %v10325, %v10343
        %v10345 = vpop.f32.mrf.mxu0
        %v10346 = vadd.f32 %v10327, %v10345
        %10347 = vmatmul.bf16.gmra.mxu0 %v10303
        %v10348 = vpop.f32.mrf.mxu0
        %v10349 = vadd.f32 %v10330, %v10348
        %v10350 = vpop.f32.mrf.mxu0
        %v10351 = vadd.f32 %v10332, %v10350
        %10352 = vdwg.mxu0
        %10353 = vmatpush.bf16.msra.mxu0 0
        %10354 = vmatpush.bf16.msra.mxu0 0
        %10355 = vmatpush.bf16.msra.mxu0 0
        %10356 = vmatpush.bf16.msra.mxu0 0
        %10357 = vmatpush.bf16.msra.mxu0 0
        %10358 = vmatpush.bf16.msra.mxu0 0
        %10359 = vmatpush.bf16.msra.mxu0 0
        %10360 = vmatpush.bf16.msra.mxu0 0
        %10361 = vmatmul.bf16.gmra.mxu0 %v10310
        %v10362 = vpop.f32.mrf.mxu0
        %v10363 = vadd.f32 %v10344, %v10362
        %v10364 = vpop.f32.mrf.mxu0
        %v10365 = vadd.f32 %v10346, %v10364
        %10366 = vmatmul.bf16.gmra.mxu0 %v10313
        %v10367 = vpop.f32.mrf.mxu0
        %v10368 = vadd.f32 %v10349, %v10367
        %v10369 = vpop.f32.mrf.mxu0
        %v10370 = vadd.f32 %v10351, %v10369
        %10371 = vdwg.mxu0
        %s10372 = scalar_lea.vmem %s3, 544
        %v10373 = vld [vmem:[%s10372] sm:$0xff]
        %v10374 = vld [vmem:[%s10372 + $0x8] sm:$0xff]
        %v10375 = vld [vmem:[%s10372 + $0x10] sm:$0xff]
        %v10376 = vld [vmem:[%s10372 + $0x18] sm:$0xff]
        %v10377 = vmul.f32 %v10363, %v10373
        %v10378 = vmul.f32 %v10365, %v10374
        %v10379 = vmul.f32 %v10368, %v10375
        %v10380 = vmul.f32 %v10370, %v10376
        %s10381 = scalar_lea.vmem %s4, 544
        %v10382 = vld [vmem:[%s10381] sm:$0xff]
        %v10383 = vld [vmem:[%s10381 + $0x8] sm:$0xff]
        %v10384 = vld [vmem:[%s10381 + $0x10] sm:$0xff]
        %v10385 = vld [vmem:[%s10381 + $0x18] sm:$0xff]
        %v10386 = vadd.f32 %v10377, %v10382
        %v10387 = vadd.f32 %v10378, %v10383
        %v10388 = vadd.f32 %v10379, %v10384
        %v10389 = vadd.f32 %v10380, %v10385
        %vm10390 = vcmp.ge.f32.partialorder %v10386, 0.0
        %vm10391 = vcmp.ge.f32.partialorder %v10387, 0.0
        %vm10392 = vcmp.ge.f32.partialorder %v10388, 0.0
        %vm10393 = vcmp.ge.f32.partialorder %v10389, 0.0
        %v10394 = vmul.f32 %v10386, 0.01
        %v10395 = vmul.f32 %v10387, 0.01
        %v10396 = vmul.f32 %v10388, 0.01
        %v10397 = vmul.f32 %v10389, 0.01
        %v10398 = vsel %vm10390, %v10386, %v10394
        %v10399 = vsel %vm10391, %v10387, %v10395
        %v10400 = vsel %vm10392, %v10388, %v10396
        %v10401 = vsel %vm10393, %v10389, %v10397
        %v10402 = vpack.c.bf16 %v10398, %v10398
        %v10403 = vpack.c.bf16 %v10399, %v10399
        %v10404 = vpack.c.bf16 %v10400, %v10400
        %v10405 = vpack.c.bf16 %v10401, %v10401
        %v10410 = vunpack.c.l.b16 %v10402
        %v10411 = vunpack.c.l.b16 %v10403
        %v10412 = vunpack.c.l.b16 %v10404
        %v10413 = vunpack.c.l.b16 %v10405
        %v10414 = vpack.c.b16 %v10411, %v10410
        %v10415 = vpack.c.b16 %v10413, %v10412
        %s10418 = scalar_lea.vmem %s2, 816
        %v10419 = vld [vmem:[%s10418] sm:$0xff]
        %v10420 = vld [vmem:[%s10418 + $0x8] sm:$0xf]
        %v10421 = vld [vmem:[%s10418 + $0xc] sm:$0xff]
        %v10422 = vld [vmem:[%s10418 + $0x14] sm:$0xf]
        %v10423 = vld [vmem:[%s10418 + $0x18] sm:$0xff]
        %v10424 = vld [vmem:[%s10418 + $0x20] sm:$0xf]
        %v10425 = vld [vmem:[%s10418 + $0x24] sm:$0xff]
        %v10426 = vld [vmem:[%s10418 + $0x2c] sm:$0xf]
        %v10435 = vunpack.c.l.b16 %v10419
        %v10436 = vunpack.c.h.b16 %v10419
        %v10437 = vunpack.c.l.b16 %v10420
        %v10438 = vunpack.c.l.b16 %v10421
        %v10439 = vunpack.c.h.b16 %v10421
        %v10440 = vunpack.c.l.b16 %v10422
        %v10441 = vunpack.c.l.b16 %v10423
        %v10442 = vunpack.c.h.b16 %v10423
        %v10443 = vunpack.c.l.b16 %v10424
        %v10444 = vunpack.c.l.b16 %v10425
        %v10445 = vunpack.c.h.b16 %v10425
        %v10446 = vunpack.c.l.b16 %v10426
        %v10447 = vpack.c.b16 %v10438, %v10435
        %v10448 = vpack.c.b16 %v10439, %v10436
        %v10449 = vpack.c.b16 %v10440, %v10437
        %v10450 = vpack.c.b16 %v10444, %v10441
        %v10451 = vpack.c.b16 %v10445, %v10442
        %v10452 = vpack.c.b16 %v10446, %v10443
        %v10458 = vsel %vm2302, %v10449, 0
        %v10461 = vsel %vm2302, %v10452, 0
        %10463 = vmatpush.bf16.msra.mxu0 0
        %10464 = vmatpush.bf16.msra.mxu0 0
        %10465 = vmatpush.bf16.msra.mxu0 0
        %10466 = vmatpush.bf16.msra.mxu0 0
        %10467 = vmatpush.bf16.msra.mxu0 0
        %10468 = vmatpush.bf16.msra.mxu0 0
        %10469 = vmatpush.bf16.msra.mxu0 0
        %10470 = vmatpush.bf16.msra.mxu0 0
        %10471 = vmatmul.bf16.gmra.mxu0 %v10447
        %v10472 = vpop.f32.mrf.mxu0
        %v10473 = vadd.f32 0.0, %v10472
        %v10474 = vpop.f32.mrf.mxu0
        %v10475 = vadd.f32 0.0, %v10474
        %10476 = vmatmul.bf16.gmra.mxu0 %v10450
        %v10477 = vpop.f32.mrf.mxu0
        %v10478 = vadd.f32 0.0, %v10477
        %v10479 = vpop.f32.mrf.mxu0
        %v10480 = vadd.f32 0.0, %v10479
        %10481 = vdwg.mxu0
        %10482 = vmatpush.bf16.msra.mxu0 0
        %10483 = vmatpush.bf16.msra.mxu0 0
        %10484 = vmatpush.bf16.msra.mxu0 0
        %10485 = vmatpush.bf16.msra.mxu0 0
        %10486 = vmatpush.bf16.msra.mxu0 0
        %10487 = vmatpush.bf16.msra.mxu0 0
        %10488 = vmatpush.bf16.msra.mxu0 %v10415
        %10489 = vmatpush.bf16.msra.mxu0 %v10414
        %10490 = vmatmul.bf16.gmra.mxu0 %v10448
        %v10491 = vpop.f32.mrf.mxu0
        %v10492 = vadd.f32 %v10473, %v10491
        %v10493 = vpop.f32.mrf.mxu0
        %v10494 = vadd.f32 %v10475, %v10493
        %10495 = vmatmul.bf16.gmra.mxu0 %v10451
        %v10496 = vpop.f32.mrf.mxu0
        %v10497 = vadd.f32 %v10478, %v10496
        %v10498 = vpop.f32.mrf.mxu0
        %v10499 = vadd.f32 %v10480, %v10498
        %10500 = vdwg.mxu0
        %10501 = vmatpush.bf16.msra.mxu0 0
        %10502 = vmatpush.bf16.msra.mxu0 0
        %10503 = vmatpush.bf16.msra.mxu0 0
        %10504 = vmatpush.bf16.msra.mxu0 0
        %10505 = vmatpush.bf16.msra.mxu0 0
        %10506 = vmatpush.bf16.msra.mxu0 0
        %10507 = vmatpush.bf16.msra.mxu0 0
        %10508 = vmatpush.bf16.msra.mxu0 0
        %10509 = vmatmul.bf16.gmra.mxu0 %v10458
        %v10510 = vpop.f32.mrf.mxu0
        %v10511 = vadd.f32 %v10492, %v10510
        %v10512 = vpop.f32.mrf.mxu0
        %v10513 = vadd.f32 %v10494, %v10512
        %10514 = vmatmul.bf16.gmra.mxu0 %v10461
        %v10515 = vpop.f32.mrf.mxu0
        %v10516 = vadd.f32 %v10497, %v10515
        %v10517 = vpop.f32.mrf.mxu0
        %v10518 = vadd.f32 %v10499, %v10517
        %10519 = vdwg.mxu0
        %s10520 = scalar_lea.vmem %s3, 576
        %v10521 = vld [vmem:[%s10520] sm:$0xff]
        %v10522 = vld [vmem:[%s10520 + $0x8] sm:$0xff]
        %v10523 = vld [vmem:[%s10520 + $0x10] sm:$0xff]
        %v10524 = vld [vmem:[%s10520 + $0x18] sm:$0xff]
        %v10525 = vmul.f32 %v10511, %v10521
        %v10526 = vmul.f32 %v10513, %v10522
        %v10527 = vmul.f32 %v10516, %v10523
        %v10528 = vmul.f32 %v10518, %v10524
        %s10529 = scalar_lea.vmem %s4, 576
        %v10530 = vld [vmem:[%s10529] sm:$0xff]
        %v10531 = vld [vmem:[%s10529 + $0x8] sm:$0xff]
        %v10532 = vld [vmem:[%s10529 + $0x10] sm:$0xff]
        %v10533 = vld [vmem:[%s10529 + $0x18] sm:$0xff]
        %v10534 = vadd.f32 %v10525, %v10530
        %v10535 = vadd.f32 %v10526, %v10531
        %v10536 = vadd.f32 %v10527, %v10532
        %v10537 = vadd.f32 %v10528, %v10533
        %v10538 = vadd.f32 %v10534, %v10266
        %v10539 = vadd.f32 %v10535, %v10267
        %v10540 = vadd.f32 %v10536, %v10268
        %v10541 = vadd.f32 %v10537, %v10269
        %vm10542 = vcmask 7168
        %10543 = vst.msk [vmem:[%s469] sm:$0xff] %vm10542, %v10538
        %10544 = vst.msk [vmem:[%s469 + $0x8] sm:$0xff] %vm10542, %v10539
        %10545 = vst.msk [vmem:[%s469 + $0x10] sm:$0xff] %vm10542, %v10540
        %10546 = vst.msk [vmem:[%s469 + $0x18] sm:$0xff] %vm10542, %v10541
        %p10547 = scmp.lt.s32.totalorder %s25, 1
        %s10548 = scalar_select %p10547, %s25, 1
        %s10549 = smul.addr %s10548, 4
        %s10550 = smul.addr %s10549, 8
        %s10551 = scalar_lea.vmem %s11, %s10550
        // Predicated region
        $region85: #{spectrogram_forward.1} parent=63 // pred_check
          %p10552 = pneg %p279
        $region86: #{spectrogram_forward.1} parent=63 // pred_check_branch
          %10554 = sbr.rel (%p10552) target = $region88
        $region87: #{spectrogram_forward.1} parent=63 // pred_region
          _
        $region88: #{spectrogram_forward.1} parent=63 // pred_fallthru
          _
      $region64: #{spectrogram_forward.1} parent=5 // pred_fallthru
        _
      %p10555 = scmp.le.s32.totalorder 2, %s20
      // Predicated region
      $region89: #{spectrogram_forward.1} parent=5 // pred_check
        %p10556 = pneg %p10555
      $region90: #{spectrogram_forward.1} parent=5 // pred_check_branch
        %10558 = sbr.rel (%p10556) target = $region92
      $region91: #{spectrogram_forward.1} parent=5 // pred_region
        %s10559 = ssub.s32 %s20, 2
        // Predicated region
        $region93: #{spectrogram_forward.1} parent=91 // pred_check
          %p10560 = pneg %p285
        $region94: #{spectrogram_forward.1} parent=91 // pred_check_branch
          %10562 = sbr.rel (%p10560) target = $region96
        $region95: #{spectrogram_forward.1} parent=91 // pred_region
          %p10563 = scmp.lt.s32.totalorder %s26, 1
          %s10564 = scalar_select %p10563, %s26, 1
          %s10565 = smul.addr %s10564, 4
          %s10566 = smul.addr %s10565, 8
          %s10567 = scalar_lea.vmem %s11, %s10566
        $region96: #{spectrogram_forward.1} parent=91 // pred_fallthru
          _
      $region92: #{spectrogram_forward.1} parent=5 // pred_fallthru
        _
    $region6: #{spectrogram_forward.1} parent=1 // loop_footer
      %s24 = sadd.s32 1, %s20
    $region7: #{spectrogram_forward.1} parent=1 // loop_footer_branch
      %19 = sbr.rel target = $region3
    $region8: #{spectrogram_forward.1} parent=1 // loop_exit
      _
    %10568 = vsyncpa [#allocation3], 1
    %s10569 = scalar_lea.sflag [#allocation3], 1
    %10570 = vsyncpa %s10569, 1
    %10571 = vsyncpa [#allocation5], 1
    %10572 = vsyncpa [#allocation8], 1

</llo_original>
